<compile_context>
chip_gen: v7x
topology: tpu7x:2x2x1
jax: 0.10.0
libtpu: 0.0.40
codegen_flags: <defaults>
</compile_context>

<pallas_src>
import numpy as np
import jax
import jax.numpy as jnp
from jax.experimental import pallas as pl
from jax.experimental.pallas import tpu as pltpu

# --- module hyper-parameters (match MLP(d_in=2+4*L, d_h, n_layers, L)) ---
L = 10
D_IN = 2 + 4 * L     # 42 = pos_enc output dim
D_H = 32
N_LAYERS = 2
EPS = 1e-5           # nn.LayerNorm default eps
TB = 2048            # batch tile (lanes) per grid step; multiple of 128
NVEC = 2 + 3 * N_LAYERS   # packed vector slab columns: b0, bh*, gamma*, beta*, bo


def mlp_kernel(coords_ref, w0c_ref, w0s_ref, w0co_ref, wh_ref, wo_ref,
               vec_ref, out_ref):
    coords = coords_ref[...]                     # (2, TB)  f32, batch on lanes
    vec = vec_ref[...]                           # (D_H, NVEC) packed vectors

    b0 = vec[:, 0:1]                                                  # (D_H,1)
    bh = [vec[:, 1 + i:2 + i] for i in range(N_LAYERS)]
    gam = [vec[:, 1 + N_LAYERS + i:2 + N_LAYERS + i] for i in range(N_LAYERS)]
    bet = [vec[:, 1 + 2 * N_LAYERS + i:2 + 2 * N_LAYERS + i]
           for i in range(N_LAYERS)]
    bo = vec[0:3, NVEC - 1:NVEC]                                      # (3, 1)

    def mm(a, b):
        return jnp.dot(a, b, preferred_element_type=jnp.float32)

    # ---- positional encoding: direct sin/cos only for levels 0..3, then
    #      double-angle recurrence for the higher octaves. Rows are interleaved
    #      [x_k, y_k] per level.
    xy0 = coords * jnp.float32(np.pi)            # level 0 args: [pi*x, pi*y]
    xy1 = xy0 * 2.0
    xy2 = xy1 * 2.0
    xy3 = xy2 * 2.0
    args03 = jnp.concatenate([xy0, xy1, xy2, xy3], axis=0)   # (8, TB)
    s_a = jnp.sin(args03)                        # levels 0..3 (full sublanes)
    c_a = jnp.cos(args03)

    def double(s, c, n):
        for _ in range(n):
            s, c = 2.0 * s * c, 1.0 - 2.0 * s * s
        return s, c

    s_b, c_b = double(s_a, c_a, 4)               # levels 4..7
    s_c, c_c = double(s_b, c_b, 2)               # levels 6..9
    S = jnp.concatenate([s_a, s_b, s_c[4:8]], axis=0)   # (2L, TB) levels 0..9
    C = jnp.concatenate([c_a, c_b, c_c[4:8]], axis=0)   # (2L, TB)

    # ---- layer 0: Linear(42, 32) + ReLU, fused into 3 matmuls ----
    h = mm(w0c_ref[...], coords) + mm(w0s_ref[...], S) + mm(w0co_ref[...], C) + b0
    h = jnp.maximum(h, 0.0)

    # ---- hidden blocks: Linear(32,32) + ReLU + LayerNorm (one-pass var) ----
    for i in range(N_LAYERS):                    # static unroll
        h = jnp.maximum(mm(wh_ref[i], h) + bh[i], 0.0)
        mu = jnp.mean(h, axis=0, keepdims=True)              # (1, TB)
        ms = jnp.mean(h * h, axis=0, keepdims=True)
        var = ms - mu * mu
        h = (h - mu) * jax.lax.rsqrt(var + EPS) * gam[i] + bet[i]

    # ---- output head: Linear(32, 3) + sigmoid -> lane-dense store ----
    o = mm(wo_ref[...], h) + bo
    out_ref[...] = jax.nn.sigmoid(o)


def mlp_forward(coords, params, tb=TB):
    """coords: (B, 2) f32.  params: PyTorch-layout weights (see init_params)."""
    w0, b0, wh, bh, g, beta, wo, bo = params
    B = coords.shape[0]
    tb = min(tb, max(128, ((B + 127) // 128) * 128))   # avoid over-padding
    nb = (B + tb - 1) // tb
    Bp = nb * tb

    # Layout plumbing: batch onto lanes, pad to a tile multiple.
    coords_t = jnp.pad(coords.T, ((0, 0), (0, Bp - B)))          # (2, Bp)

    # Layer-0 weight (D_H, 42) re-cut to kernel feature order:
    #   coords block, sin block (cols [x_s0, y_s0, x_s1, y_s1, ...]),
    #   cos block (same interleave).
    w0c = w0[:, 0:2]
    w0_xs = w0[:, 2:2 + L]
    w0_xc = w0[:, 2 + L:2 + 2 * L]
    w0_ys = w0[:, 2 + 2 * L:2 + 3 * L]
    w0_yc = w0[:, 2 + 3 * L:2 + 4 * L]
    w0s = jnp.stack([w0_xs, w0_ys], axis=-1).reshape(D_H, 2 * L)
    w0co = jnp.stack([w0_xc, w0_yc], axis=-1).reshape(D_H, 2 * L)

    # Pack all small per-layer vectors into a single (D_H, NVEC) slab.
    bo_pad = jnp.zeros((D_H,), jnp.float32).at[:3].set(bo)
    cols = [b0] + [bh[i] for i in range(N_LAYERS)] \
         + [g[i] for i in range(N_LAYERS)] + [beta[i] for i in range(N_LAYERS)] \
         + [bo_pad]
    vec = jnp.stack(cols, axis=1)                                # (D_H, NVEC)

    const2 = lambda i: (0, 0)
    const3 = lambda i: (0, 0, 0)

    out_t = pl.pallas_call(
        mlp_kernel,
        out_shape=jax.ShapeDtypeStruct((3, Bp), jnp.float32),
        grid_spec=pltpu.PrefetchScalarGridSpec(
            num_scalar_prefetch=0,
            grid=(nb,),
            in_specs=[
                pl.BlockSpec((2, tb), lambda i: (0, i)),          # coords tile
                pl.BlockSpec((D_H, 2), const2),                   # W0 coords cols
                pl.BlockSpec((D_H, 2 * L), const2),               # W0 sin cols
                pl.BlockSpec((D_H, 2 * L), const2),               # W0 cos cols
                pl.BlockSpec((N_LAYERS, D_H, D_H), const3),       # hidden weights
                pl.BlockSpec((3, D_H), const2),                   # output weight
                pl.BlockSpec((D_H, NVEC), const2),                # packed vectors
            ],
            out_specs=pl.BlockSpec((3, tb), lambda i: (0, i)),
        ),
        compiler_params=pltpu.CompilerParams(
            dimension_semantics=("parallel",)),   # v7x: use pltpu.CORE_PARALLEL
    )(coords_t, w0c, w0s, w0co, wh, wo, vec)

    return out_t[:, :B].T                                        # (B, 3)


def init_params(key):
    """Deterministic synthetic params in PyTorch layout (W is (out, in))."""
    ks = jax.random.split(key, 6)

    def lin(kw, kb, din, dout):
        s = 1.0 / np.sqrt(din)
        w = jax.random.uniform(kw, (dout, din), jnp.float32, -s, s)
        b = jax.random.uniform(kb, (dout,), jnp.float32, -s, s)
        return w, b

    w0, b0 = lin(ks[0], ks[1], D_IN, D_H)
    whs, bhs = [], []
    for i in range(N_LAYERS):
        w, b = lin(jax.random.fold_in(ks[2], i),
                   jax.random.fold_in(ks[3], i), D_H, D_H)
        whs.append(w)
        bhs.append(b)
    wh = jnp.stack(whs)                                   # (N_LAYERS, D_H, D_H)
    bh = jnp.stack(bhs)                                   # (N_LAYERS, D_H)
    g = jnp.ones((N_LAYERS, D_H), jnp.float32)            # LayerNorm gamma
    beta = jnp.zeros((N_LAYERS, D_H), jnp.float32)        # LayerNorm beta
    wo, bo = lin(ks[4], ks[5], D_H, 3)
    return (w0, b0, wh, bh, g, beta, wo, bo)


def ref_forward(coords, params):
    """Pure-JAX reference, written exactly like the PyTorch module."""
    w0, b0, wh, bh, g, beta, wo, bo = params
    freqs = (2.0 ** jnp.arange(L, dtype=jnp.float32)) * jnp.pi
    x, y = coords[:, 0:1], coords[:, 1:2]
    xf, yf = x * freqs, y * freqs
    pe = jnp.concatenate([coords, jnp.sin(xf), jnp.cos(xf),
                          jnp.sin(yf), jnp.cos(yf)], axis=-1)   # (B, 42)
    h = jnp.maximum(pe @ w0.T + b0, 0.0)
    for i in range(N_LAYERS):
        h = jnp.maximum(h @ wh[i].T + bh[i], 0.0)
        mu = h.mean(-1, keepdims=True)
        var = jnp.square(h - mu).mean(-1, keepdims=True)
        h = (h - mu) * jax.lax.rsqrt(var + EPS) * g[i] + beta[i]
    return jax.nn.sigmoid(h @ wo.T + bo)


if __name__ == "__main__":
    key = jax.random.PRNGKey(0)
    k_coords, k_params = jax.random.split(key)

    B = 4096                                     # 2 grid steps of TB=2048
    coords = jax.random.uniform(k_coords, (B, 2), jnp.float32)   # in [0, 1)
    params = init_params(k_params)

    out = jax.jit(mlp_forward)(coords, params)
    out = jax.block_until_ready(out)

    ref = ref_forward(coords, params)
    # 5e-3 tolerance absorbs the (tiny) phase difference between the
    # double-angle octave recurrence and direct f32 sin/cos at the top octave.
    np.testing.assert_allclose(np.asarray(out), np.asarray(ref),
                               rtol=5e-3, atol=5e-3)
    print("KERNEL_OK")
</pallas_src>

<mosaic_0001>
module attributes {stable_mosaic.version = 11 : i64} {
  func.func @mlp_kernel(%arg0: i32, %arg1: memref<2x2048xf32, #tpu.memory_space<vmem>>, %arg2: memref<32x2xf32, #tpu.memory_space<vmem>>, %arg3: memref<32x20xf32, #tpu.memory_space<vmem>>, %arg4: memref<32x20xf32, #tpu.memory_space<vmem>>, %arg5: memref<2x32x32xf32, #tpu.memory_space<vmem>>, %arg6: memref<3x32xf32, #tpu.memory_space<vmem>>, %arg7: memref<32x8xf32, #tpu.memory_space<vmem>>, %arg8: memref<3x2048xf32, #tpu.memory_space<vmem>>) attributes {dimension_semantics = [#tpu.dimension_semantics<parallel>], iteration_bounds = array<i64: 2>, scalar_prefetch = 0 : i64, scratch_operands = 0 : i64, tpu.core_type = #tpu.core_type<tc>, window_params = [{transform_indices = @transform_0, window_bounds = array<i64: 2, 2048>}, {pipeline_mode = #tpu.pipeline_mode<synchronous>, transform_indices = @transform_1, window_bounds = array<i64: 32, 2>}, {pipeline_mode = #tpu.pipeline_mode<synchronous>, transform_indices = @transform_2, window_bounds = array<i64: 32, 20>}, {pipeline_mode = #tpu.pipeline_mode<synchronous>, transform_indices = @transform_3, window_bounds = array<i64: 32, 20>}, {pipeline_mode = #tpu.pipeline_mode<synchronous>, transform_indices = @transform_4, window_bounds = array<i64: 2, 32, 32>}, {pipeline_mode = #tpu.pipeline_mode<synchronous>, transform_indices = @transform_5, window_bounds = array<i64: 3, 32>}, {pipeline_mode = #tpu.pipeline_mode<synchronous>, transform_indices = @transform_6, window_bounds = array<i64: 32, 8>}, {transform_indices = @transform_7, window_bounds = array<i64: 3, 2048>}]} {
    %c0 = arith.constant 0 : index
    %c0_0 = arith.constant 0 : index
    %0 = vector.load %arg1[%c0, %c0_0] : memref<2x2048xf32, #tpu.memory_space<vmem>>, vector<2x2048xf32>
    %c0_1 = arith.constant 0 : index
    %c0_2 = arith.constant 0 : index
    %1 = vector.load %arg7[%c0_1, %c0_2] : memref<32x8xf32, #tpu.memory_space<vmem>>, vector<32x8xf32>
    %2 = vector.extract_strided_slice %1 {offsets = [0, 0], sizes = [32, 1], strides = [1, 1]} : vector<32x8xf32> to vector<32x1xf32>
    %3 = vector.extract_strided_slice %1 {offsets = [0, 1], sizes = [32, 1], strides = [1, 1]} : vector<32x8xf32> to vector<32x1xf32>
    %4 = vector.extract_strided_slice %1 {offsets = [0, 2], sizes = [32, 1], strides = [1, 1]} : vector<32x8xf32> to vector<32x1xf32>
    %5 = vector.extract_strided_slice %1 {offsets = [0, 3], sizes = [32, 1], strides = [1, 1]} : vector<32x8xf32> to vector<32x1xf32>
    %6 = vector.extract_strided_slice %1 {offsets = [0, 4], sizes = [32, 1], strides = [1, 1]} : vector<32x8xf32> to vector<32x1xf32>
    %7 = vector.extract_strided_slice %1 {offsets = [0, 5], sizes = [32, 1], strides = [1, 1]} : vector<32x8xf32> to vector<32x1xf32>
    %8 = vector.extract_strided_slice %1 {offsets = [0, 6], sizes = [32, 1], strides = [1, 1]} : vector<32x8xf32> to vector<32x1xf32>
    %9 = vector.extract_strided_slice %1 {offsets = [0, 7], sizes = [3, 1], strides = [1, 1]} : vector<32x8xf32> to vector<3x1xf32>
    %cst = arith.constant 3.14159274 : f32
    %10 = vector.broadcast %cst : f32 to vector<2x2048xf32>
    %11 = arith.mulf %0, %10 : vector<2x2048xf32>
    %cst_3 = arith.constant 2.000000e+00 : f32
    %12 = vector.broadcast %cst_3 : f32 to vector<2x2048xf32>
    %13 = arith.mulf %11, %12 : vector<2x2048xf32>
    %cst_4 = arith.constant 2.000000e+00 : f32
    %14 = vector.broadcast %cst_4 : f32 to vector<2x2048xf32>
    %15 = arith.mulf %13, %14 : vector<2x2048xf32>
    %cst_5 = arith.constant 2.000000e+00 : f32
    %16 = vector.broadcast %cst_5 : f32 to vector<2x2048xf32>
    %17 = arith.mulf %15, %16 : vector<2x2048xf32>
    %18 = tpu.concatenate %11, %13, %15, %17 in 0 : vector<2x2048xf32>, vector<2x2048xf32>, vector<2x2048xf32>, vector<2x2048xf32> -> vector<8x2048xf32>
    %19 = math.sin %18 : vector<8x2048xf32>
    %20 = math.cos %18 : vector<8x2048xf32>
    %cst_6 = arith.constant 2.000000e+00 : f32
    %21 = vector.broadcast %cst_6 : f32 to vector<8x2048xf32>
    %22 = arith.mulf %21, %19 : vector<8x2048xf32>
    %23 = arith.mulf %22, %20 : vector<8x2048xf32>
    %cst_7 = arith.constant 2.000000e+00 : f32
    %24 = vector.broadcast %cst_7 : f32 to vector<8x2048xf32>
    %25 = arith.mulf %24, %19 : vector<8x2048xf32>
    %26 = arith.mulf %25, %19 : vector<8x2048xf32>
    %cst_8 = arith.constant 1.000000e+00 : f32
    %27 = vector.broadcast %cst_8 : f32 to vector<8x2048xf32>
    %28 = arith.subf %27, %26 : vector<8x2048xf32>
    %cst_9 = arith.constant 2.000000e+00 : f32
    %29 = vector.broadcast %cst_9 : f32 to vector<8x2048xf32>
    %30 = arith.mulf %29, %23 : vector<8x2048xf32>
    %31 = arith.mulf %30, %28 : vector<8x2048xf32>
    %cst_10 = arith.constant 2.000000e+00 : f32
    %32 = vector.broadcast %cst_10 : f32 to vector<8x2048xf32>
    %33 = arith.mulf %32, %23 : vector<8x2048xf32>
    %34 = arith.mulf %33, %23 : vector<8x2048xf32>
    %cst_11 = arith.constant 1.000000e+00 : f32
    %35 = vector.broadcast %cst_11 : f32 to vector<8x2048xf32>
    %36 = arith.subf %35, %34 : vector<8x2048xf32>
    %cst_12 = arith.constant 2.000000e+00 : f32
    %37 = vector.broadcast %cst_12 : f32 to vector<8x2048xf32>
    %38 = arith.mulf %37, %31 : vector<8x2048xf32>
    %39 = arith.mulf %38, %36 : vector<8x2048xf32>
    %cst_13 = arith.constant 2.000000e+00 : f32
    %40 = vector.broadcast %cst_13 : f32 to vector<8x2048xf32>
    %41 = arith.mulf %40, %31 : vector<8x2048xf32>
    %42 = arith.mulf %41, %31 : vector<8x2048xf32>
    %cst_14 = arith.constant 1.000000e+00 : f32
    %43 = vector.broadcast %cst_14 : f32 to vector<8x2048xf32>
    %44 = arith.subf %43, %42 : vector<8x2048xf32>
    %cst_15 = arith.constant 2.000000e+00 : f32
    %45 = vector.broadcast %cst_15 : f32 to vector<8x2048xf32>
    %46 = arith.mulf %45, %39 : vector<8x2048xf32>
    %47 = arith.mulf %46, %44 : vector<8x2048xf32>
    %cst_16 = arith.constant 2.000000e+00 : f32
    %48 = vector.broadcast %cst_16 : f32 to vector<8x2048xf32>
    %49 = arith.mulf %48, %39 : vector<8x2048xf32>
    %50 = arith.mulf %49, %39 : vector<8x2048xf32>
    %cst_17 = arith.constant 1.000000e+00 : f32
    %51 = vector.broadcast %cst_17 : f32 to vector<8x2048xf32>
    %52 = arith.subf %51, %50 : vector<8x2048xf32>
    %cst_18 = arith.constant 2.000000e+00 : f32
    %53 = vector.broadcast %cst_18 : f32 to vector<8x2048xf32>
    %54 = arith.mulf %53, %47 : vector<8x2048xf32>
    %55 = arith.mulf %54, %52 : vector<8x2048xf32>
    %cst_19 = arith.constant 2.000000e+00 : f32
    %56 = vector.broadcast %cst_19 : f32 to vector<8x2048xf32>
    %57 = arith.mulf %56, %47 : vector<8x2048xf32>
    %58 = arith.mulf %57, %47 : vector<8x2048xf32>
    %cst_20 = arith.constant 1.000000e+00 : f32
    %59 = vector.broadcast %cst_20 : f32 to vector<8x2048xf32>
    %60 = arith.subf %59, %58 : vector<8x2048xf32>
    %cst_21 = arith.constant 2.000000e+00 : f32
    %61 = vector.broadcast %cst_21 : f32 to vector<8x2048xf32>
    %62 = arith.mulf %61, %55 : vector<8x2048xf32>
    %63 = arith.mulf %62, %60 : vector<8x2048xf32>
    %cst_22 = arith.constant 2.000000e+00 : f32
    %64 = vector.broadcast %cst_22 : f32 to vector<8x2048xf32>
    %65 = arith.mulf %64, %55 : vector<8x2048xf32>
    %66 = arith.mulf %65, %55 : vector<8x2048xf32>
    %cst_23 = arith.constant 1.000000e+00 : f32
    %67 = vector.broadcast %cst_23 : f32 to vector<8x2048xf32>
    %68 = arith.subf %67, %66 : vector<8x2048xf32>
    %69 = vector.extract_strided_slice %63 {offsets = [4, 0], sizes = [4, 2048], strides = [1, 1]} : vector<8x2048xf32> to vector<4x2048xf32>
    %70 = tpu.concatenate %19, %47, %69 in 0 : vector<8x2048xf32>, vector<8x2048xf32>, vector<4x2048xf32> -> vector<20x2048xf32>
    %71 = vector.extract_strided_slice %68 {offsets = [4, 0], sizes = [4, 2048], strides = [1, 1]} : vector<8x2048xf32> to vector<4x2048xf32>
    %72 = tpu.concatenate %20, %52, %71 in 0 : vector<8x2048xf32>, vector<8x2048xf32>, vector<4x2048xf32> -> vector<20x2048xf32>
    %c0_24 = arith.constant 0 : index
    %c0_25 = arith.constant 0 : index
    %73 = vector.load %arg2[%c0_24, %c0_25] : memref<32x2xf32, #tpu.memory_space<vmem>>, vector<32x2xf32>
    %cst_26 = arith.constant dense<0.000000e+00> : vector<32x2048xf32>
    %74 = tpu.matmul %73, %0, %cst_26 {dimension_numbers = #tpu.dot_dimension_numbers<[1], [0], [0], [1], [0, 0, 1, 1], [], []>} : vector<32x2xf32>, vector<2x2048xf32>, vector<32x2048xf32> -> vector<32x2048xf32>
    %c0_27 = arith.constant 0 : index
    %c0_28 = arith.constant 0 : index
    %75 = vector.load %arg3[%c0_27, %c0_28] : memref<32x20xf32, #tpu.memory_space<vmem>>, vector<32x20xf32>
    %cst_29 = arith.constant dense<0.000000e+00> : vector<32x2048xf32>
    %76 = tpu.matmul %75, %70, %cst_29 {dimension_numbers = #tpu.dot_dimension_numbers<[1], [0], [0], [1], [0, 0, 1, 1], [], []>} : vector<32x20xf32>, vector<20x2048xf32>, vector<32x2048xf32> -> vector<32x2048xf32>
    %77 = arith.addf %74, %76 : vector<32x2048xf32>
    %c0_30 = arith.constant 0 : index
    %c0_31 = arith.constant 0 : index
    %78 = vector.load %arg4[%c0_30, %c0_31] : memref<32x20xf32, #tpu.memory_space<vmem>>, vector<32x20xf32>
    %cst_32 = arith.constant dense<0.000000e+00> : vector<32x2048xf32>
    %79 = tpu.matmul %78, %72, %cst_32 {dimension_numbers = #tpu.dot_dimension_numbers<[1], [0], [0], [1], [0, 0, 1, 1], [], []>} : vector<32x20xf32>, vector<20x2048xf32>, vector<32x2048xf32> -> vector<32x2048xf32>
    %80 = arith.addf %77, %79 : vector<32x2048xf32>
    %81 = vector.broadcast %2 : vector<32x1xf32> to vector<32x2048xf32>
    %82 = arith.addf %80, %81 : vector<32x2048xf32>
    %cst_33 = arith.constant 0.000000e+00 : f32
    %83 = vector.broadcast %cst_33 : f32 to vector<32x2048xf32>
    %84 = arith.maximumf %82, %83 : vector<32x2048xf32>
    %c0_34 = arith.constant 0 : index
    %c0_35 = arith.constant 0 : index
    %c0_36 = arith.constant 0 : index
    %85 = vector.load %arg5[%c0_34, %c0_35, %c0_36] : memref<2x32x32xf32, #tpu.memory_space<vmem>>, vector<1x32x32xf32>
    %86 = vector.shape_cast %85 : vector<1x32x32xf32> to vector<32x32xf32>
    %cst_37 = arith.constant dense<0.000000e+00> : vector<32x2048xf32>
    %87 = tpu.matmul %86, %84, %cst_37 {dimension_numbers = #tpu.dot_dimension_numbers<[1], [0], [0], [1], [0, 0, 1, 1], [], []>} : vector<32x32xf32>, vector<32x2048xf32>, vector<32x2048xf32> -> vector<32x2048xf32>
    %88 = vector.broadcast %3 : vector<32x1xf32> to vector<32x2048xf32>
    %89 = arith.addf %87, %88 : vector<32x2048xf32>
    %cst_38 = arith.constant 0.000000e+00 : f32
    %90 = vector.broadcast %cst_38 : f32 to vector<32x2048xf32>
    %91 = arith.maximumf %89, %90 : vector<32x2048xf32>
    %cst_39 = arith.constant dense<0.000000e+00> : vector<2048xf32>
    %92 = vector.multi_reduction <add>, %91, %cst_39 [0] : vector<32x2048xf32> to vector<2048xf32>
    %93 = vector.shape_cast %92 : vector<2048xf32> to vector<1x2048xf32>
    %cst_40 = arith.constant 3.200000e+01 : f32
    %94 = vector.broadcast %cst_40 : f32 to vector<1x2048xf32>
    %95 = arith.divf %93, %94 : vector<1x2048xf32>
    %96 = arith.mulf %91, %91 : vector<32x2048xf32>
    %cst_41 = arith.constant dense<0.000000e+00> : vector<2048xf32>
    %97 = vector.multi_reduction <add>, %96, %cst_41 [0] : vector<32x2048xf32> to vector<2048xf32>
    %98 = vector.shape_cast %97 : vector<2048xf32> to vector<1x2048xf32>
    %cst_42 = arith.constant 3.200000e+01 : f32
    %99 = vector.broadcast %cst_42 : f32 to vector<1x2048xf32>
    %100 = arith.divf %98, %99 : vector<1x2048xf32>
    %101 = arith.mulf %95, %95 : vector<1x2048xf32>
    %102 = arith.subf %100, %101 : vector<1x2048xf32>
    %103 = vector.broadcast %95 : vector<1x2048xf32> to vector<32x2048xf32>
    %104 = arith.subf %91, %103 : vector<32x2048xf32>
    %cst_43 = arith.constant 9.99999974E-6 : f32
    %105 = vector.broadcast %cst_43 : f32 to vector<1x2048xf32>
    %106 = arith.addf %102, %105 : vector<1x2048xf32>
    %107 = math.rsqrt %106 : vector<1x2048xf32>
    %108 = vector.broadcast %107 : vector<1x2048xf32> to vector<32x2048xf32>
    %109 = arith.mulf %104, %108 : vector<32x2048xf32>
    %110 = vector.broadcast %5 : vector<32x1xf32> to vector<32x2048xf32>
    %111 = arith.mulf %109, %110 : vector<32x2048xf32>
    %112 = vector.broadcast %7 : vector<32x1xf32> to vector<32x2048xf32>
    %113 = arith.addf %111, %112 : vector<32x2048xf32>
    %c1 = arith.constant 1 : index
    %c0_44 = arith.constant 0 : index
    %c0_45 = arith.constant 0 : index
    %114 = vector.load %arg5[%c1, %c0_44, %c0_45] : memref<2x32x32xf32, #tpu.memory_space<vmem>>, vector<1x32x32xf32>
    %115 = vector.shape_cast %114 : vector<1x32x32xf32> to vector<32x32xf32>
    %cst_46 = arith.constant dense<0.000000e+00> : vector<32x2048xf32>
    %116 = tpu.matmul %115, %113, %cst_46 {dimension_numbers = #tpu.dot_dimension_numbers<[1], [0], [0], [1], [0, 0, 1, 1], [], []>} : vector<32x32xf32>, vector<32x2048xf32>, vector<32x2048xf32> -> vector<32x2048xf32>
    %117 = vector.broadcast %4 : vector<32x1xf32> to vector<32x2048xf32>
    %118 = arith.addf %116, %117 : vector<32x2048xf32>
    %cst_47 = arith.constant 0.000000e+00 : f32
    %119 = vector.broadcast %cst_47 : f32 to vector<32x2048xf32>
    %120 = arith.maximumf %118, %119 : vector<32x2048xf32>
    %cst_48 = arith.constant dense<0.000000e+00> : vector<2048xf32>
    %121 = vector.multi_reduction <add>, %120, %cst_48 [0] : vector<32x2048xf32> to vector<2048xf32>
    %122 = vector.shape_cast %121 : vector<2048xf32> to vector<1x2048xf32>
    %cst_49 = arith.constant 3.200000e+01 : f32
    %123 = vector.broadcast %cst_49 : f32 to vector<1x2048xf32>
    %124 = arith.divf %122, %123 : vector<1x2048xf32>
    %125 = arith.mulf %120, %120 : vector<32x2048xf32>
    %cst_50 = arith.constant dense<0.000000e+00> : vector<2048xf32>
    %126 = vector.multi_reduction <add>, %125, %cst_50 [0] : vector<32x2048xf32> to vector<2048xf32>
    %127 = vector.shape_cast %126 : vector<2048xf32> to vector<1x2048xf32>
    %cst_51 = arith.constant 3.200000e+01 : f32
    %128 = vector.broadcast %cst_51 : f32 to vector<1x2048xf32>
    %129 = arith.divf %127, %128 : vector<1x2048xf32>
    %130 = arith.mulf %124, %124 : vector<1x2048xf32>
    %131 = arith.subf %129, %130 : vector<1x2048xf32>
    %132 = vector.broadcast %124 : vector<1x2048xf32> to vector<32x2048xf32>
    %133 = arith.subf %120, %132 : vector<32x2048xf32>
    %cst_52 = arith.constant 9.99999974E-6 : f32
    %134 = vector.broadcast %cst_52 : f32 to vector<1x2048xf32>
    %135 = arith.addf %131, %134 : vector<1x2048xf32>
    %136 = math.rsqrt %135 : vector<1x2048xf32>
    %137 = vector.broadcast %136 : vector<1x2048xf32> to vector<32x2048xf32>
    %138 = arith.mulf %133, %137 : vector<32x2048xf32>
    %139 = vector.broadcast %6 : vector<32x1xf32> to vector<32x2048xf32>
    %140 = arith.mulf %138, %139 : vector<32x2048xf32>
    %141 = vector.broadcast %8 : vector<32x1xf32> to vector<32x2048xf32>
    %142 = arith.addf %140, %141 : vector<32x2048xf32>
    %c0_53 = arith.constant 0 : index
    %c0_54 = arith.constant 0 : index
    %143 = vector.load %arg6[%c0_53, %c0_54] : memref<3x32xf32, #tpu.memory_space<vmem>>, vector<3x32xf32>
    %cst_55 = arith.constant dense<0.000000e+00> : vector<3x2048xf32>
    %144 = tpu.matmul %143, %142, %cst_55 {dimension_numbers = #tpu.dot_dimension_numbers<[1], [0], [0], [1], [0, 0, 1, 1], [], []>} : vector<3x32xf32>, vector<32x2048xf32>, vector<3x2048xf32> -> vector<3x2048xf32>
    %145 = vector.broadcast %9 : vector<3x1xf32> to vector<3x2048xf32>
    %146 = arith.addf %144, %145 : vector<3x2048xf32>
    %147 = arith.negf %146 : vector<3x2048xf32>
    %148 = math.exp %147 : vector<3x2048xf32>
    %cst_56 = arith.constant 1.000000e+00 : f32
    %149 = vector.broadcast %cst_56 : f32 to vector<3x2048xf32>
    %150 = arith.addf %149, %148 : vector<3x2048xf32>
    %151 = arith.divf %149, %150 : vector<3x2048xf32>
    %c0_57 = arith.constant 0 : index
    %c0_58 = arith.constant 0 : index
    %152 = vector.load %arg8[%c0_57, %c0_58] : memref<3x2048xf32, #tpu.memory_space<vmem>>, vector<3x2048xf32>
    tpu.vector_store %arg8[%c0_57, %c0_58], %151 {strides = array<i32>} : memref<3x2048xf32, #tpu.memory_space<vmem>>, vector<3x2048xf32>,
    return
  }
  func.func @transform_0(%arg0: i32) -> (i32, i32) {
    %c0_i32 = arith.constant 0 : i32
    %c0_i32_0 = arith.constant 0 : i32
    return %c0_i32, %arg0 : i32, i32
  }
  func.func @transform_1(%arg0: i32) -> (i32, i32) {
    %c0_i32 = arith.constant 0 : i32
    %c0_i32_0 = arith.constant 0 : i32
    %c0_i32_1 = arith.constant 0 : i32
    return %c0_i32, %c0_i32_0 : i32, i32
  }
  func.func @transform_2(%arg0: i32) -> (i32, i32) {
    %c0_i32 = arith.constant 0 : i32
    %c0_i32_0 = arith.constant 0 : i32
    %c0_i32_1 = arith.constant 0 : i32
    return %c0_i32, %c0_i32_0 : i32, i32
  }
  func.func @transform_3(%arg0: i32) -> (i32, i32) {
    %c0_i32 = arith.constant 0 : i32
    %c0_i32_0 = arith.constant 0 : i32
    %c0_i32_1 = arith.constant 0 : i32
    return %c0_i32, %c0_i32_0 : i32, i32
  }
  func.func @transform_4(%arg0: i32) -> (i32, i32, i32) {
    %c0_i32 = arith.constant 0 : i32
    %c0_i32_0 = arith.constant 0 : i32
    %c0_i32_1 = arith.constant 0 : i32
    %c0_i32_2 = arith.constant 0 : i32
    return %c0_i32, %c0_i32_0, %c0_i32_1 : i32, i32, i32
  }
  func.func @transform_5(%arg0: i32) -> (i32, i32) {
    %c0_i32 = arith.constant 0 : i32
    %c0_i32_0 = arith.constant 0 : i32
    %c0_i32_1 = arith.constant 0 : i32
    return %c0_i32, %c0_i32_0 : i32, i32
  }
  func.func @transform_6(%arg0: i32) -> (i32, i32) {
    %c0_i32 = arith.constant 0 : i32
    %c0_i32_0 = arith.constant 0 : i32
    %c0_i32_1 = arith.constant 0 : i32
    return %c0_i32, %c0_i32_0 : i32, i32
  }
  func.func @transform_7(%arg0: i32) -> (i32, i32) {
    %c0_i32 = arith.constant 0 : i32
    %c0_i32_0 = arith.constant 0 : i32
    return %c0_i32, %arg0 : i32, i32
  }
}

</mosaic_0001>

<llo_original>
// kernel: mlp_forward.1
$region0: #{mlp_forward.1}
  #allocation0 [shape = 'u32[]', space=smem, size = 0x4, offset = 0x4, fixed_abs, tag = 'smem constant byte address 0x4 - core index']
  #allocation1 [shape = 'u32[144,128]{1,0:T(1,128)}', space=vmem, size = 0x12000, scoped, tag = 'internal scratch']
  %s0 = inlined_call_operand.vmem [shape: f32[2,4096], index: 0, kind: input, shape index: {}]
  %s1 = inlined_call_operand.vmem [shape: f32[32,2], index: 1, kind: input, shape index: {}]
  %s2 = inlined_call_operand.vmem [shape: f32[32,20], index: 2, kind: input, shape index: {}]
  %s3 = inlined_call_operand.vmem [shape: f32[32,20], index: 3, kind: input, shape index: {}]
  %s4 = inlined_call_operand.vmem [shape: f32[2,32,32], index: 4, kind: input, shape index: {}]
  %s5 = inlined_call_operand.vmem [shape: f32[3,32], index: 5, kind: input, shape index: {}]
  %s6 = inlined_call_operand.vmem [shape: f32[32,8], index: 6, kind: input, shape index: {}]
  %s7 = inlined_call_operand.hbm [shape: f32[3,4096], index: 7, kind: output, shape index: {}]
  %s8 = sld [smem:[#allocation0]]
  $region61: #{mlp_forward.1} parent=0
    _
  %s10 = ssub.s32 1, %s8
  %s11 = scalar_select 0, %s10, %s8
  $region1: #{mlp_forward.1} parent=0
    #allocation2 [shape = 'u8[65536]{0}', space=vmem, size = 0x10000, scoped, tag = 'output window, operand 0']
    #allocation3 [shape = 's32[2]{0}', space=sflag, size = 0x8, scoped, tag = 'scoped memory for mlp_forward.1']
    %12 = vsyncpa [#allocation3], 0
    %s13 = scalar_lea.sflag [#allocation3], 1
    %14 = vsyncpa %s13, 0
    loop: start=0, step=1, limit=4
    $region2: #{mlp_forward.1} parent=1 // loop_pre_header
      _
    $region3: #{mlp_forward.1} parent=1 // loop_header
      %s16 = sphi 0, %s20
      %p17 = scmp.ge.s32.totalorder %s16, 4
      %s26 = sphi 0, %s28
      %s29 = sphi 0, %s26
      %s30 = sphi 0, %s29
      %s46 = sphi 0, %s30
      %s50 = sphi 0, %s50
      %s52 = sphi 0, %s50
      %s53 = sphi 0, %s52
      %s67 = sphi 0, %s53
      %s71 = sphi 0, %s71
      %s73 = sphi 0, %s71
      %s74 = sphi 0, %s73
      %s88 = sphi 0, %s74
      %s92 = sphi 0, %s92
      %s94 = sphi 0, %s92
      %s95 = sphi 0, %s94
      %s109 = sphi 0, %s95
      %s113 = sphi 0, %s113
      %s115 = sphi 0, %s113
      %s116 = sphi 0, %s115
      %s130 = sphi 0, %s116
      %s134 = sphi 0, %s134
      %s136 = sphi 0, %s134
      %s137 = sphi 0, %s136
      %s151 = sphi 0, %s137
      %s155 = sphi 0, %s155
      %s157 = sphi 0, %s155
      %s158 = sphi 0, %s157
      %s172 = sphi 0, %s158
      %s178 = sphi 0, %s180
      %s181 = sphi 0, %s178
      %s182 = sphi 0, %s181
      %s198 = sphi 0, %s182
    $region4: #{mlp_forward.1} parent=1 // loop_header_branch
      %19 = sbr.rel (%p17) target = $region8
    $region5: #{mlp_forward.1} parent=1 // loop_body
      %s21 = ssub.s32 %s16, 1
      %s22 = ssub.s32 %s16, 2
      %s23 = sadd.s32 %s16, 1
      %s24 = ssub.s32 %s16, %s23
      %p25 = scmp.eq.s32.totalorder %s24, 0
      %s27 = sadd.s32 %s26, 1
      %s28 = scalar_select %p25, %s26, %s27
      %p31 = pneg %p25
      %p32 = scmp.eq.s32.totalorder %s16, 1
      %p33 = por %p31, %p32
      %p34 = scmp.ne.s32.totalorder %s26, %s29
      %p35 = scmp.eq.s32.totalorder %s16, 0
      %p36 = por %p34, %p35
      %p37 = scmp.ne.s32.totalorder %s26, %s29
      %p38 = scmp.eq.s32.totalorder %s21, 1
      %p39 = por %p37, %p38
      %p40 = scmp.ne.s32.totalorder %s29, %s30
      %p41 = scmp.eq.s32.totalorder %s21, 0
      %p42 = por %p40, %p41
      %p43 = scmp.ne.s32.totalorder %s29, %s30
      %p44 = scmp.eq.s32.totalorder %s22, 1
      %p45 = por %p43, %p44
      %p47 = scmp.ne.s32.totalorder %s30, %s46
      %p48 = scmp.eq.s32.totalorder %s22, 0
      %p49 = por %p47, %p48
      %s51 = sadd.s32 %s50, 1
      %p54 = scmp.eq.s32.totalorder %s16, 1
      %p55 = scmp.ne.s32.totalorder %s50, %s52
      %p56 = scmp.eq.s32.totalorder %s16, 0
      %p57 = por %p55, %p56
      %p58 = scmp.ne.s32.totalorder %s50, %s52
      %p59 = scmp.eq.s32.totalorder %s21, 1
      %p60 = por %p58, %p59
      %p61 = scmp.ne.s32.totalorder %s52, %s53
      %p62 = scmp.eq.s32.totalorder %s21, 0
      %p63 = por %p61, %p62
      %p64 = scmp.ne.s32.totalorder %s52, %s53
      %p65 = scmp.eq.s32.totalorder %s22, 1
      %p66 = por %p64, %p65
      %p68 = scmp.ne.s32.totalorder %s53, %s67
      %p69 = scmp.eq.s32.totalorder %s22, 0
      %p70 = por %p68, %p69
      %s72 = sadd.s32 %s71, 1
      %p75 = scmp.eq.s32.totalorder %s16, 1
      %p76 = scmp.ne.s32.totalorder %s71, %s73
      %p77 = scmp.eq.s32.totalorder %s16, 0
      %p78 = por %p76, %p77
      %p79 = scmp.ne.s32.totalorder %s71, %s73
      %p80 = scmp.eq.s32.totalorder %s21, 1
      %p81 = por %p79, %p80
      %p82 = scmp.ne.s32.totalorder %s73, %s74
      %p83 = scmp.eq.s32.totalorder %s21, 0
      %p84 = por %p82, %p83
      %p85 = scmp.ne.s32.totalorder %s73, %s74
      %p86 = scmp.eq.s32.totalorder %s22, 1
      %p87 = por %p85, %p86
      %p89 = scmp.ne.s32.totalorder %s74, %s88
      %p90 = scmp.eq.s32.totalorder %s22, 0
      %p91 = por %p89, %p90
      %s93 = sadd.s32 %s92, 1
      %p96 = scmp.eq.s32.totalorder %s16, 1
      %p97 = scmp.ne.s32.totalorder %s92, %s94
      %p98 = scmp.eq.s32.totalorder %s16, 0
      %p99 = por %p97, %p98
      %p100 = scmp.ne.s32.totalorder %s92, %s94
      %p101 = scmp.eq.s32.totalorder %s21, 1
      %p102 = por %p100, %p101
      %p103 = scmp.ne.s32.totalorder %s94, %s95
      %p104 = scmp.eq.s32.totalorder %s21, 0
      %p105 = por %p103, %p104
      %p106 = scmp.ne.s32.totalorder %s94, %s95
      %p107 = scmp.eq.s32.totalorder %s22, 1
      %p108 = por %p106, %p107
      %p110 = scmp.ne.s32.totalorder %s95, %s109
      %p111 = scmp.eq.s32.totalorder %s22, 0
      %p112 = por %p110, %p111
      %s114 = sadd.s32 %s113, 1
      %p117 = scmp.eq.s32.totalorder %s16, 1
      %p118 = scmp.ne.s32.totalorder %s113, %s115
      %p119 = scmp.eq.s32.totalorder %s16, 0
      %p120 = por %p118, %p119
      %p121 = scmp.ne.s32.totalorder %s113, %s115
      %p122 = scmp.eq.s32.totalorder %s21, 1
      %p123 = por %p121, %p122
      %p124 = scmp.ne.s32.totalorder %s115, %s116
      %p125 = scmp.eq.s32.totalorder %s21, 0
      %p126 = por %p124, %p125
      %p127 = scmp.ne.s32.totalorder %s115, %s116
      %p128 = scmp.eq.s32.totalorder %s22, 1
      %p129 = por %p127, %p128
      %p131 = scmp.ne.s32.totalorder %s116, %s130
      %p132 = scmp.eq.s32.totalorder %s22, 0
      %p133 = por %p131, %p132
      %s135 = sadd.s32 %s134, 1
      %p138 = scmp.eq.s32.totalorder %s16, 1
      %p139 = scmp.ne.s32.totalorder %s134, %s136
      %p140 = scmp.eq.s32.totalorder %s16, 0
      %p141 = por %p139, %p140
      %p142 = scmp.ne.s32.totalorder %s134, %s136
      %p143 = scmp.eq.s32.totalorder %s21, 1
      %p144 = por %p142, %p143
      %p145 = scmp.ne.s32.totalorder %s136, %s137
      %p146 = scmp.eq.s32.totalorder %s21, 0
      %p147 = por %p145, %p146
      %p148 = scmp.ne.s32.totalorder %s136, %s137
      %p149 = scmp.eq.s32.totalorder %s22, 1
      %p150 = por %p148, %p149
      %p152 = scmp.ne.s32.totalorder %s137, %s151
      %p153 = scmp.eq.s32.totalorder %s22, 0
      %p154 = por %p152, %p153
      %s156 = sadd.s32 %s155, 1
      %p159 = scmp.eq.s32.totalorder %s16, 1
      %p160 = scmp.ne.s32.totalorder %s155, %s157
      %p161 = scmp.eq.s32.totalorder %s16, 0
      %p162 = por %p160, %p161
      %p163 = scmp.ne.s32.totalorder %s155, %s157
      %p164 = scmp.eq.s32.totalorder %s21, 1
      %p165 = por %p163, %p164
      %p166 = scmp.ne.s32.totalorder %s157, %s158
      %p167 = scmp.eq.s32.totalorder %s21, 0
      %p168 = por %p166, %p167
      %p169 = scmp.ne.s32.totalorder %s157, %s158
      %p170 = scmp.eq.s32.totalorder %s22, 1
      %p171 = por %p169, %p170
      %p173 = scmp.ne.s32.totalorder %s158, %s172
      %p174 = scmp.eq.s32.totalorder %s22, 0
      %p175 = por %p173, %p174
      %s176 = ssub.s32 %s16, %s23
      %p177 = scmp.eq.s32.totalorder %s176, 0
      %s179 = sadd.s32 %s178, 1
      %s180 = scalar_select %p177, %s178, %s179
      %p183 = pneg %p177
      %p184 = scmp.eq.s32.totalorder %s16, 1
      %p185 = por %p183, %p184
      %p186 = scmp.ne.s32.totalorder %s178, %s181
      %p187 = scmp.eq.s32.totalorder %s16, 0
      %p188 = por %p186, %p187
      %p189 = scmp.ne.s32.totalorder %s178, %s181
      %p190 = scmp.eq.s32.totalorder %s21, 1
      %p191 = por %p189, %p190
      %p192 = scmp.ne.s32.totalorder %s181, %s182
      %p193 = scmp.eq.s32.totalorder %s21, 0
      %p194 = por %p192, %p193
      %p195 = scmp.ne.s32.totalorder %s181, %s182
      %p196 = scmp.eq.s32.totalorder %s22, 1
      %p197 = por %p195, %p196
      %p199 = scmp.ne.s32.totalorder %s182, %s198
      %p200 = scmp.eq.s32.totalorder %s22, 0
      %p201 = por %p199, %p200
      %p202 = scmp.le.s32.totalorder 1, %s16
      %p203 = scmp.lt.s32.totalorder %s16, 3
      %p204 = pnand %p202, %p203
      %p205 = pneg %p204
      // Predicated region
      $region9: #{mlp_forward.1} parent=5 // pred_check
        _
      $region10: #{mlp_forward.1} parent=5 // pred_check_branch
        %207 = sbr.rel (%p204) target = $region12
      $region11: #{mlp_forward.1} parent=5 // pred_region
        %s208 = ssub.s32 %s16, 1
        // Predicated region
        $region13: #{mlp_forward.1} parent=11 // pred_check
          %p209 = pneg %p63
        $region14: #{mlp_forward.1} parent=11 // pred_check_branch
          %211 = sbr.rel (%p209) target = $region16
        $region15: #{mlp_forward.1} parent=11 // pred_region
          _
        $region16: #{mlp_forward.1} parent=11 // pred_fallthru
          _
        // Predicated region
        $region17: #{mlp_forward.1} parent=11 // pred_check
          %p212 = pneg %p84
        $region18: #{mlp_forward.1} parent=11 // pred_check_branch
          %214 = sbr.rel (%p212) target = $region20
        $region19: #{mlp_forward.1} parent=11 // pred_region
          _
        $region20: #{mlp_forward.1} parent=11 // pred_fallthru
          _
        // Predicated region
        $region21: #{mlp_forward.1} parent=11 // pred_check
          %p215 = pneg %p105
        $region22: #{mlp_forward.1} parent=11 // pred_check_branch
          %217 = sbr.rel (%p215) target = $region24
        $region23: #{mlp_forward.1} parent=11 // pred_region
          _
        $region24: #{mlp_forward.1} parent=11 // pred_fallthru
          _
        // Predicated region
        $region25: #{mlp_forward.1} parent=11 // pred_check
          %p218 = pneg %p126
        $region26: #{mlp_forward.1} parent=11 // pred_check_branch
          %220 = sbr.rel (%p218) target = $region28
        $region27: #{mlp_forward.1} parent=11 // pred_region
          _
        $region28: #{mlp_forward.1} parent=11 // pred_fallthru
          _
        // Predicated region
        $region29: #{mlp_forward.1} parent=11 // pred_check
          %p221 = pneg %p147
        $region30: #{mlp_forward.1} parent=11 // pred_check_branch
          %223 = sbr.rel (%p221) target = $region32
        $region31: #{mlp_forward.1} parent=11 // pred_region
          _
        $region32: #{mlp_forward.1} parent=11 // pred_fallthru
          _
        // Predicated region
        $region33: #{mlp_forward.1} parent=11 // pred_check
          %p224 = pneg %p168
        $region34: #{mlp_forward.1} parent=11 // pred_check_branch
          %226 = sbr.rel (%p224) target = $region36
        $region35: #{mlp_forward.1} parent=11 // pred_region
          _
        $region36: #{mlp_forward.1} parent=11 // pred_fallthru
          _
      $region12: #{mlp_forward.1} parent=5 // pred_fallthru
        _
      %p227 = scmp.lt.s32.totalorder %s16, 2
      // Predicated region
      $region37: #{mlp_forward.1} parent=5 // pred_check
        %p228 = pneg %p227
      $region38: #{mlp_forward.1} parent=5 // pred_check_branch
        %230 = sbr.rel (%p228) target = $region40
      $region39: #{mlp_forward.1} parent=5 // pred_region
        // Predicated region
        $region41: #{mlp_forward.1} parent=39 // pred_check
          %p231 = pneg %p36
        $region42: #{mlp_forward.1} parent=39 // pred_check_branch
          %233 = sbr.rel (%p231) target = $region44
        $region43: #{mlp_forward.1} parent=39 // pred_region
          %s234 = smul.u32 16, %s16
          %p235 = scmp.lt.s32.totalorder %s234, 31
          %s236 = scalar_select %p235, %s234, 31
          %s237 = smul.addr %s236, 2
          %s238 = scalar_lea.vmem %s0, %s237
          %s239 = smul.u32 16, %s16
        $region44: #{mlp_forward.1} parent=39 // pred_fallthru
          _
      $region40: #{mlp_forward.1} parent=5 // pred_fallthru
        _
      %p240 = scmp.le.s32.totalorder 1, %s16
      %p241 = scmp.lt.s32.totalorder %s16, 3
      %p242 = pnand %p240, %p241
      %p243 = pneg %p242
      // Predicated region
      $region45: #{mlp_forward.1} parent=5 // pred_check
        _
      $region46: #{mlp_forward.1} parent=5 // pred_check_branch
        %245 = sbr.rel (%p242) target = $region48
      $region47: #{mlp_forward.1} parent=5 // pred_region
        %s246 = ssub.s32 %s16, 1
        %s247 = smul.u32 16, %s21
        %p248 = scmp.lt.s32.totalorder %s247, 31
        %s249 = scalar_select %p248, %s247, 31
        %s250 = smul.addr %s249, 2
        %s251 = scalar_lea.vmem %s0, %s250
        %p252 = pneg %p42
        %p253 = pneg %p39
        %p254 = pneg %p63
        %p255 = pneg %p60
        %p256 = pneg %p84
        %p257 = pneg %p81
        %p258 = pneg %p105
        %p259 = pneg %p102
        %p260 = pneg %p126
        %p261 = pneg %p123
        %p262 = pneg %p147
        %p263 = pneg %p144
        %p264 = pneg %p168
        %p265 = pneg %p165
        %p266 = pneg %p194
        %p267 = pneg %p191
        %s268 = sand.u32 %s181, 1
        %s269 = scalar_lea.sflag [#allocation3], %s268
        %s270 = sand.u32 %s181, 1
        %s271 = smul.addr %s270, 64
        %s272 = scalar_lea.vmem [#allocation2], %s271
        %s273 = smul.u32 16, %s21
        %p274 = scmp.lt.s32.totalorder %s273, 31
        %s275 = scalar_select %p274, %s273, 31
        %s276 = smul.addr %s275, 2
        %s277 = scalar_lea.vmem %s0, %s276
        %s278 = smul.u32 16, %s21
        %s279 = smul.u32 16, %s21
        %v280 = vld [vmem:[%s277] sm:$0xff]
        %v281 = vld [vmem:[%s277 + $0x8] sm:$0xff]
        %v282 = vld [vmem:[%s277 + $0x10] sm:$0xff]
        %v283 = vld [vmem:[%s277 + $0x18] sm:$0xff]
        %v284 = vld [vmem:[%s6] sm:$0xff]
        %v285 = vld [vmem:[%s6 + $0x8] sm:$0xff]
        %v286 = vld [vmem:[%s6 + $0x10] sm:$0xff]
        %v287 = vld [vmem:[%s6 + $0x18] sm:$0xff]
        %v288 = vmul.f32 %v280, 3.1415927
        %v289 = vmul.f32 %v281, 3.1415927
        %v290 = vmul.f32 %v282, 3.1415927
        %v291 = vmul.f32 %v283, 3.1415927
        %v292 = vmul.f32 %v288, 2.0
        %v293 = vmul.f32 %v289, 2.0
        %v294 = vmul.f32 %v290, 2.0
        %v295 = vmul.f32 %v291, 2.0
        %v296 = vmul.f32 %v292, 2.0
        %v297 = vmul.f32 %v293, 2.0
        %v298 = vmul.f32 %v294, 2.0
        %v299 = vmul.f32 %v295, 2.0
        %v300 = vmul.f32 %v296, 2.0
        %v301 = vmul.f32 %v297, 2.0
        %v302 = vmul.f32 %v298, 2.0
        %v303 = vmul.f32 %v299, 2.0
        %v308 = vcombine.high %v288, %v288
        %v310 = vunpack.c.l.s4 1983009808
        %v311 = vunpack.c.0.s8 %v310
        %v312 = vlaneseq
        %v313 = vshrl.u32 %v312, 7
        %v314 = vsub.s32 %v311, %v313
        %v315 = vrot.slane %v288, %v314
        %v317 = vunpack.c.l.s4 1983009808
        %v318 = vunpack.c.0.s8 %v317
        %v319 = vlaneseq
        %v320 = vshrl.u32 %v319, 7
        %v321 = vsub.s32 %v318, %v320
        %v322 = vrot.slane %v308, %v321
        %v323 = vcombine.high %v315, %v315
        %v324 = vcombine.high %v322, %v322
        %v325 = vcombine.high %v289, %v289
        %v327 = vunpack.c.l.s4 1983009808
        %v328 = vunpack.c.0.s8 %v327
        %v329 = vlaneseq
        %v330 = vshrl.u32 %v329, 7
        %v331 = vsub.s32 %v328, %v330
        %v332 = vrot.slane %v289, %v331
        %v334 = vunpack.c.l.s4 1983009808
        %v335 = vunpack.c.0.s8 %v334
        %v336 = vlaneseq
        %v337 = vshrl.u32 %v336, 7
        %v338 = vsub.s32 %v335, %v337
        %v339 = vrot.slane %v325, %v338
        %v340 = vcombine.high %v332, %v332
        %v341 = vcombine.high %v339, %v339
        %v342 = vcombine.high %v290, %v290
        %v344 = vunpack.c.l.s4 1983009808
        %v345 = vunpack.c.0.s8 %v344
        %v346 = vlaneseq
        %v347 = vshrl.u32 %v346, 7
        %v348 = vsub.s32 %v345, %v347
        %v349 = vrot.slane %v290, %v348
        %v351 = vunpack.c.l.s4 1983009808
        %v352 = vunpack.c.0.s8 %v351
        %v353 = vlaneseq
        %v354 = vshrl.u32 %v353, 7
        %v355 = vsub.s32 %v352, %v354
        %v356 = vrot.slane %v342, %v355
        %v357 = vcombine.high %v349, %v349
        %v358 = vcombine.high %v356, %v356
        %v359 = vcombine.high %v291, %v291
        %v361 = vunpack.c.l.s4 1983009808
        %v362 = vunpack.c.0.s8 %v361
        %v363 = vlaneseq
        %v364 = vshrl.u32 %v363, 7
        %v365 = vsub.s32 %v362, %v364
        %v366 = vrot.slane %v291, %v365
        %v368 = vunpack.c.l.s4 1983009808
        %v369 = vunpack.c.0.s8 %v368
        %v370 = vlaneseq
        %v371 = vshrl.u32 %v370, 7
        %v372 = vsub.s32 %v369, %v371
        %v373 = vrot.slane %v359, %v372
        %v374 = vcombine.high %v366, %v366
        %v375 = vcombine.high %v373, %v373
        %v396 = vcombine.low %v292, %v292
        %v398 = vunpack.c.l.s4 1983009808
        %v399 = vunpack.c.0.s8 %v398
        %v400 = vlaneseq
        %v401 = vshrl.u32 %v400, 7
        %v402 = vsub.s32 %v399, %v401
        %v403 = vrot.slane %v396, %v402
        %v405 = vunpack.c.l.s4 1983009808
        %v406 = vunpack.c.0.s8 %v405
        %v407 = vlaneseq
        %v408 = vshrl.u32 %v407, 7
        %v409 = vsub.s32 %v406, %v408
        %v410 = vrot.slane %v292, %v409
        %v411 = vcombine.high %v403, %v403
        %v412 = vcombine.high %v410, %v410
        %v413 = vcombine.low %v293, %v293
        %v415 = vunpack.c.l.s4 1983009808
        %v416 = vunpack.c.0.s8 %v415
        %v417 = vlaneseq
        %v418 = vshrl.u32 %v417, 7
        %v419 = vsub.s32 %v416, %v418
        %v420 = vrot.slane %v413, %v419
        %v422 = vunpack.c.l.s4 1983009808
        %v423 = vunpack.c.0.s8 %v422
        %v424 = vlaneseq
        %v425 = vshrl.u32 %v424, 7
        %v426 = vsub.s32 %v423, %v425
        %v427 = vrot.slane %v293, %v426
        %v428 = vcombine.high %v420, %v420
        %v429 = vcombine.high %v427, %v427
        %v430 = vcombine.low %v294, %v294
        %v432 = vunpack.c.l.s4 1983009808
        %v433 = vunpack.c.0.s8 %v432
        %v434 = vlaneseq
        %v435 = vshrl.u32 %v434, 7
        %v436 = vsub.s32 %v433, %v435
        %v437 = vrot.slane %v430, %v436
        %v439 = vunpack.c.l.s4 1983009808
        %v440 = vunpack.c.0.s8 %v439
        %v441 = vlaneseq
        %v442 = vshrl.u32 %v441, 7
        %v443 = vsub.s32 %v440, %v442
        %v444 = vrot.slane %v294, %v443
        %v445 = vcombine.high %v437, %v437
        %v446 = vcombine.high %v444, %v444
        %v447 = vcombine.low %v295, %v295
        %v449 = vunpack.c.l.s4 1983009808
        %v450 = vunpack.c.0.s8 %v449
        %v451 = vlaneseq
        %v452 = vshrl.u32 %v451, 7
        %v453 = vsub.s32 %v450, %v452
        %v454 = vrot.slane %v447, %v453
        %v456 = vunpack.c.l.s4 1983009808
        %v457 = vunpack.c.0.s8 %v456
        %v458 = vlaneseq
        %v459 = vshrl.u32 %v458, 7
        %v460 = vsub.s32 %v457, %v459
        %v461 = vrot.slane %v295, %v460
        %v462 = vcombine.high %v454, %v454
        %v463 = vcombine.high %v461, %v461
        %v484 = vcombine.high %v296, %v296
        %v486 = vunpack.c.l.s4 1983009808
        %v487 = vunpack.c.0.s8 %v486
        %v488 = vlaneseq
        %v489 = vshrl.u32 %v488, 7
        %v490 = vsub.s32 %v487, %v489
        %v491 = vrot.slane %v296, %v490
        %v493 = vunpack.c.l.s4 1983009808
        %v494 = vunpack.c.0.s8 %v493
        %v495 = vlaneseq
        %v496 = vshrl.u32 %v495, 7
        %v497 = vsub.s32 %v494, %v496
        %v498 = vrot.slane %v484, %v497
        %v499 = vcombine.low %v491, %v491
        %v500 = vcombine.low %v498, %v498
        %v501 = vcombine.high %v297, %v297
        %v503 = vunpack.c.l.s4 1983009808
        %v504 = vunpack.c.0.s8 %v503
        %v505 = vlaneseq
        %v506 = vshrl.u32 %v505, 7
        %v507 = vsub.s32 %v504, %v506
        %v508 = vrot.slane %v297, %v507
        %v510 = vunpack.c.l.s4 1983009808
        %v511 = vunpack.c.0.s8 %v510
        %v512 = vlaneseq
        %v513 = vshrl.u32 %v512, 7
        %v514 = vsub.s32 %v511, %v513
        %v515 = vrot.slane %v501, %v514
        %v516 = vcombine.low %v508, %v508
        %v517 = vcombine.low %v515, %v515
        %v518 = vcombine.high %v298, %v298
        %v520 = vunpack.c.l.s4 1983009808
        %v521 = vunpack.c.0.s8 %v520
        %v522 = vlaneseq
        %v523 = vshrl.u32 %v522, 7
        %v524 = vsub.s32 %v521, %v523
        %v525 = vrot.slane %v298, %v524
        %v527 = vunpack.c.l.s4 1983009808
        %v528 = vunpack.c.0.s8 %v527
        %v529 = vlaneseq
        %v530 = vshrl.u32 %v529, 7
        %v531 = vsub.s32 %v528, %v530
        %v532 = vrot.slane %v518, %v531
        %v533 = vcombine.low %v525, %v525
        %v534 = vcombine.low %v532, %v532
        %v535 = vcombine.high %v299, %v299
        %v537 = vunpack.c.l.s4 1983009808
        %v538 = vunpack.c.0.s8 %v537
        %v539 = vlaneseq
        %v540 = vshrl.u32 %v539, 7
        %v541 = vsub.s32 %v538, %v540
        %v542 = vrot.slane %v299, %v541
        %v544 = vunpack.c.l.s4 1983009808
        %v545 = vunpack.c.0.s8 %v544
        %v546 = vlaneseq
        %v547 = vshrl.u32 %v546, 7
        %v548 = vsub.s32 %v545, %v547
        %v549 = vrot.slane %v535, %v548
        %v550 = vcombine.low %v542, %v542
        %v551 = vcombine.low %v549, %v549
        %v572 = vcombine.low %v300, %v300
        %v574 = vunpack.c.l.s4 1983009808
        %v575 = vunpack.c.0.s8 %v574
        %v576 = vlaneseq
        %v577 = vshrl.u32 %v576, 7
        %v578 = vsub.s32 %v575, %v577
        %v579 = vrot.slane %v572, %v578
        %v581 = vunpack.c.l.s4 1983009808
        %v582 = vunpack.c.0.s8 %v581
        %v583 = vlaneseq
        %v584 = vshrl.u32 %v583, 7
        %v585 = vsub.s32 %v582, %v584
        %v586 = vrot.slane %v300, %v585
        %v587 = vcombine.low %v579, %v579
        %v588 = vcombine.low %v586, %v586
        %v589 = vcombine.low %v301, %v301
        %v591 = vunpack.c.l.s4 1983009808
        %v592 = vunpack.c.0.s8 %v591
        %v593 = vlaneseq
        %v594 = vshrl.u32 %v593, 7
        %v595 = vsub.s32 %v592, %v594
        %v596 = vrot.slane %v589, %v595
        %v598 = vunpack.c.l.s4 1983009808
        %v599 = vunpack.c.0.s8 %v598
        %v600 = vlaneseq
        %v601 = vshrl.u32 %v600, 7
        %v602 = vsub.s32 %v599, %v601
        %v603 = vrot.slane %v301, %v602
        %v604 = vcombine.low %v596, %v596
        %v605 = vcombine.low %v603, %v603
        %v606 = vcombine.low %v302, %v302
        %v608 = vunpack.c.l.s4 1983009808
        %v609 = vunpack.c.0.s8 %v608
        %v610 = vlaneseq
        %v611 = vshrl.u32 %v610, 7
        %v612 = vsub.s32 %v609, %v611
        %v613 = vrot.slane %v606, %v612
        %v615 = vunpack.c.l.s4 1983009808
        %v616 = vunpack.c.0.s8 %v615
        %v617 = vlaneseq
        %v618 = vshrl.u32 %v617, 7
        %v619 = vsub.s32 %v616, %v618
        %v620 = vrot.slane %v302, %v619
        %v621 = vcombine.low %v613, %v613
        %v622 = vcombine.low %v620, %v620
        %v623 = vcombine.low %v303, %v303
        %v625 = vunpack.c.l.s4 1983009808
        %v626 = vunpack.c.0.s8 %v625
        %v627 = vlaneseq
        %v628 = vshrl.u32 %v627, 7
        %v629 = vsub.s32 %v626, %v628
        %v630 = vrot.slane %v623, %v629
        %v632 = vunpack.c.l.s4 1983009808
        %v633 = vunpack.c.0.s8 %v632
        %v634 = vlaneseq
        %v635 = vshrl.u32 %v634, 7
        %v636 = vsub.s32 %v633, %v635
        %v637 = vrot.slane %v303, %v636
        %v638 = vcombine.low %v630, %v630
        %v639 = vcombine.low %v637, %v637
        %vm656 = vcmask 1041408
        %v657 = vsel %vm656, %v315, %v403
        %v658 = vsel %vm656, %v323, %v411
        %v659 = vsel %vm656, %v322, %v410
        %v660 = vsel %vm656, %v324, %v412
        %v661 = vsel %vm656, %v332, %v420
        %v662 = vsel %vm656, %v340, %v428
        %v663 = vsel %vm656, %v339, %v427
        %v664 = vsel %vm656, %v341, %v429
        %v665 = vsel %vm656, %v349, %v437
        %v666 = vsel %vm656, %v357, %v445
        %v667 = vsel %vm656, %v356, %v444
        %v668 = vsel %vm656, %v358, %v446
        %v669 = vsel %vm656, %v366, %v454
        %v670 = vsel %vm656, %v374, %v462
        %v671 = vsel %vm656, %v373, %v461
        %v672 = vsel %vm656, %v375, %v463
        %vm673 = vcmask 1043456
        %v674 = vsel %vm673, %v657, %v499
        %v675 = vsel %vm673, %v658, %v491
        %v676 = vsel %vm673, %v659, %v500
        %v677 = vsel %vm673, %v660, %v498
        %v678 = vsel %vm673, %v661, %v516
        %v679 = vsel %vm673, %v662, %v508
        %v680 = vsel %vm673, %v663, %v517
        %v681 = vsel %vm673, %v664, %v515
        %v682 = vsel %vm673, %v665, %v533
        %v683 = vsel %vm673, %v666, %v525
        %v684 = vsel %vm673, %v667, %v534
        %v685 = vsel %vm673, %v668, %v532
        %v686 = vsel %vm673, %v669, %v550
        %v687 = vsel %vm673, %v670, %v542
        %v688 = vsel %vm673, %v671, %v551
        %v689 = vsel %vm673, %v672, %v549
        %vm690 = vcmask 1045504
        %v691 = vsel %vm690, %v674, %v587
        %v692 = vsel %vm690, %v675, %v579
        %v693 = vsel %vm690, %v676, %v588
        %v694 = vsel %vm690, %v677, %v586
        %v695 = vsel %vm690, %v678, %v604
        %v696 = vsel %vm690, %v679, %v596
        %v697 = vsel %vm690, %v680, %v605
        %v698 = vsel %vm690, %v681, %v603
        %v699 = vsel %vm690, %v682, %v621
        %v700 = vsel %vm690, %v683, %v613
        %v701 = vsel %vm690, %v684, %v622
        %v702 = vsel %vm690, %v685, %v620
        %v703 = vsel %vm690, %v686, %v638
        %v704 = vsel %vm690, %v687, %v630
        %v705 = vsel %vm690, %v688, %v639
        %v706 = vsel %vm690, %v689, %v637
        %v707 = vand.u32 2147483647, %v691
        %vm708 = vcmp.le.f32.partialorder %v707, 0.7853982
        %vm709 = vcmp.lt.s32.totalorder %v691, 0
        %v710 = vand.u32 %v691, 2139095040
        %v711 = vshrl.u32 %v710, 23
        %v712 = vsub.s32 %v711, 127
        %v713 = vand.u32 2147483647, %v691
        %v714 = vand.u32 %v713, 8388607
        %v715 = vor.u32 %v714, 8388608
        %v716 = vsub.s32 0, %v715
        %v717 = vadd.s32 %v712, 1
        %vm718 = vcmp.gt.s32.totalorder %v717, 0
        %v719 = vsel %vm718, %v717, 0
        %v720 = vshrl.u32 %v719, 5
        %v721 = vand.u32 %v719, 31
        %v722 = vsub.s32 32, %v721
        %v723 = vshrl.u32 683565275, %v722
        %v724 = vshll.u32 683565275, %v721
        %v725 = vshrl.u32 2475754826, %v722
        %v726 = vor.u32 %v724, %v725
        %v727 = vshll.u32 2475754826, %v721
        %v728 = vshrl.u32 2131351028, %v722
        %v729 = vor.u32 %v727, %v728
        %v730 = vshll.u32 2131351028, %v721
        %v731 = vshrl.u32 2102212464, %v722
        %v732 = vor.u32 %v730, %v731
        %v733 = vshll.u32 2102212464, %v721
        %v734 = vshrl.u32 920167782, %v722
        %v735 = vor.u32 %v733, %v734
        %v736 = vshll.u32 920167782, %v721
        %v737 = vshrl.u32 1326507024, %v722
        %v738 = vor.u32 %v736, %v737
        %vm739 = vcmp.lt.s32.totalorder %v720, 1
        %vm740 = vcmp.lt.s32.totalorder %v720, 2
        %vm741 = vcmp.lt.s32.totalorder %v720, 3
        %vm742 = vcmp.lt.s32.totalorder %v720, 4
        %v743 = vsel %vm739, %v723, %v726
        %v744 = vsel %vm742, %v732, 2102212464
        %v745 = vsel %vm741, %v729, %v744
        %v746 = vsel %vm740, %v743, %v745
        %v747 = vsel %vm739, %v726, %v729
        %v748 = vsel %vm742, %v735, 920167782
        %v749 = vsel %vm741, %v732, %v748
        %v750 = vsel %vm740, %v747, %v749
        %v751 = vsel %vm739, %v729, %v732
        %v752 = vsel %vm742, %v738, 1326507024
        %v753 = vsel %vm741, %v735, %v752
        %v754 = vsel %vm740, %v751, %v753
        %v755 = vshll.u32 %v715, 8
        %v756 = vmul.u32.u64.compose %v755, %v754
        %v757 = vextract.low.u32 %v756
        %v758 = vextract.high.u32 %v756
        %v759 = vmul.u32.u64.compose %v755, %v750
        %v760 = vextract.low.u32 %v759
        %v761 = vextract.high.u32 %v759
        %v762 = vmul.u32 %v755, %v746
        %v763 = vadd.s32 %v758, %v760
        %vm764 = vc.u32 %v758, %v760
        %v765 = vadd.s32 %v761, 1
        %v766 = vsel %vm764, %v765, %v761
        %v767 = vadd.s32 %v762, %v766
        %v768 = vadd.s32 %v767, 536870912
        %v769 = vshrl.u32 %v768, 30
        %v770 = vshll.u32 %v769, 30
        %v771 = vsub.s32 %v767, %v770
        %vm772 = vcmp.lt.s32.totalorder %v771, 0
        %v773 = vsub.s32 0, %v771
        %v774 = vsel %vm772, %v773, %v771
        %v775 = vclz %v774
        %v776 = vsub.s32 %v775, 2
        %vm777 = vcmp.gt.s32.totalorder 0, %v776
        %v778 = vsel %vm777, 0, %v776
        %v779 = vsub.s32 32, %v778
        %v780 = vshll.u32 %v771, %v778
        %v781 = vshrl.u32 %v763, %v779
        %v782 = vor.u32 %v780, %v781
        %v783 = vsub.s32 4294967266, %v778
        %v784 = vadd.s32 %v783, 127
        %v785 = vshll.u32 %v784, 23
        %v786 = vor.u32 4788187, %v785
        %v787 = vand.u32 2147483647, %v786
        %v789 = vcvt.s32.f32 %v782
        %v790 = vmul.f32 %v789, %v787
        %v791 = vxor.u32 %v790, 2147483648
        %v792 = vsel %vm709, %v791, %v790
        %v793 = vsub.s32 4, %v769
        %v794 = vsel %vm709, %v793, %v769
        %v795 = vsel %vm708, %v691, %v792
        %v796 = vsel %vm708, 0, %v794
        %v797 = vcosq.f32.pop %v795
        %v798 = vsinq.f32.pop %v795
        %vm799 = vweird.f32 %v691
        %v800 = vadd.s32 %v796, 3
        %v801 = vand.u32 %v800, 3
        %vm802 = vcmp.lt.s32.totalorder %v801, 2
        %vm803 = vcmp.eq.s32.totalorder %v801, 0
        %v804 = vxor.u32 %v798, 2147483648
        %v805 = vsel %vm803, %v797, %v804
        %vm806 = vcmp.eq.s32.totalorder %v801, 2
        %v807 = vxor.u32 %v797, 2147483648
        %v808 = vsel %vm806, %v807, %v798
        %v809 = vsel %vm802, %v805, %v808
        %v810 = vsel %vm799, nan, %v809
        %v811 = vand.u32 2147483647, %v692
        %vm812 = vcmp.le.f32.partialorder %v811, 0.7853982
        %vm813 = vcmp.lt.s32.totalorder %v692, 0
        %v814 = vand.u32 %v692, 2139095040
        %v815 = vshrl.u32 %v814, 23
        %v816 = vsub.s32 %v815, 127
        %v817 = vand.u32 2147483647, %v692
        %v818 = vand.u32 %v817, 8388607
        %v819 = vor.u32 %v818, 8388608
        %v820 = vsub.s32 0, %v819
        %v821 = vadd.s32 %v816, 1
        %vm822 = vcmp.gt.s32.totalorder %v821, 0
        %v823 = vsel %vm822, %v821, 0
        %v824 = vshrl.u32 %v823, 5
        %v825 = vand.u32 %v823, 31
        %v826 = vsub.s32 32, %v825
        %v827 = vshrl.u32 683565275, %v826
        %v828 = vshll.u32 683565275, %v825
        %v829 = vshrl.u32 2475754826, %v826
        %v830 = vor.u32 %v828, %v829
        %v831 = vshll.u32 2475754826, %v825
        %v832 = vshrl.u32 2131351028, %v826
        %v833 = vor.u32 %v831, %v832
        %v834 = vshll.u32 2131351028, %v825
        %v835 = vshrl.u32 2102212464, %v826
        %v836 = vor.u32 %v834, %v835
        %v837 = vshll.u32 2102212464, %v825
        %v838 = vshrl.u32 920167782, %v826
        %v839 = vor.u32 %v837, %v838
        %v840 = vshll.u32 920167782, %v825
        %v841 = vshrl.u32 1326507024, %v826
        %v842 = vor.u32 %v840, %v841
        %vm843 = vcmp.lt.s32.totalorder %v824, 1
        %vm844 = vcmp.lt.s32.totalorder %v824, 2
        %vm845 = vcmp.lt.s32.totalorder %v824, 3
        %vm846 = vcmp.lt.s32.totalorder %v824, 4
        %v847 = vsel %vm843, %v827, %v830
        %v848 = vsel %vm846, %v836, 2102212464
        %v849 = vsel %vm845, %v833, %v848
        %v850 = vsel %vm844, %v847, %v849
        %v851 = vsel %vm843, %v830, %v833
        %v852 = vsel %vm846, %v839, 920167782
        %v853 = vsel %vm845, %v836, %v852
        %v854 = vsel %vm844, %v851, %v853
        %v855 = vsel %vm843, %v833, %v836
        %v856 = vsel %vm846, %v842, 1326507024
        %v857 = vsel %vm845, %v839, %v856
        %v858 = vsel %vm844, %v855, %v857
        %v859 = vshll.u32 %v819, 8
        %v860 = vmul.u32.u64.compose %v859, %v858
        %v861 = vextract.low.u32 %v860
        %v862 = vextract.high.u32 %v860
        %v863 = vmul.u32.u64.compose %v859, %v854
        %v864 = vextract.low.u32 %v863
        %v865 = vextract.high.u32 %v863
        %v866 = vmul.u32 %v859, %v850
        %v867 = vadd.s32 %v862, %v864
        %vm868 = vc.u32 %v862, %v864
        %v869 = vadd.s32 %v865, 1
        %v870 = vsel %vm868, %v869, %v865
        %v871 = vadd.s32 %v866, %v870
        %v872 = vadd.s32 %v871, 536870912
        %v873 = vshrl.u32 %v872, 30
        %v874 = vshll.u32 %v873, 30
        %v875 = vsub.s32 %v871, %v874
        %vm876 = vcmp.lt.s32.totalorder %v875, 0
        %v877 = vsub.s32 0, %v875
        %v878 = vsel %vm876, %v877, %v875
        %v879 = vclz %v878
        %v880 = vsub.s32 %v879, 2
        %vm881 = vcmp.gt.s32.totalorder 0, %v880
        %v882 = vsel %vm881, 0, %v880
        %v883 = vsub.s32 32, %v882
        %v884 = vshll.u32 %v875, %v882
        %v885 = vshrl.u32 %v867, %v883
        %v886 = vor.u32 %v884, %v885
        %v887 = vsub.s32 4294967266, %v882
        %v888 = vadd.s32 %v887, 127
        %v889 = vshll.u32 %v888, 23
        %v890 = vor.u32 4788187, %v889
        %v891 = vand.u32 2147483647, %v890
        %v893 = vcvt.s32.f32 %v886
        %v894 = vmul.f32 %v893, %v891
        %v895 = vxor.u32 %v894, 2147483648
        %v896 = vsel %vm813, %v895, %v894
        %v897 = vsub.s32 4, %v873
        %v898 = vsel %vm813, %v897, %v873
        %v899 = vsel %vm812, %v692, %v896
        %v900 = vsel %vm812, 0, %v898
        %v901 = vcosq.f32.pop %v899
        %v902 = vsinq.f32.pop %v899
        %vm903 = vweird.f32 %v692
        %v904 = vadd.s32 %v900, 3
        %v905 = vand.u32 %v904, 3
        %vm906 = vcmp.lt.s32.totalorder %v905, 2
        %vm907 = vcmp.eq.s32.totalorder %v905, 0
        %v908 = vxor.u32 %v902, 2147483648
        %v909 = vsel %vm907, %v901, %v908
        %vm910 = vcmp.eq.s32.totalorder %v905, 2
        %v911 = vxor.u32 %v901, 2147483648
        %v912 = vsel %vm910, %v911, %v902
        %v913 = vsel %vm906, %v909, %v912
        %v914 = vsel %vm903, nan, %v913
        %v915 = vand.u32 2147483647, %v693
        %vm916 = vcmp.le.f32.partialorder %v915, 0.7853982
        %vm917 = vcmp.lt.s32.totalorder %v693, 0
        %v918 = vand.u32 %v693, 2139095040
        %v919 = vshrl.u32 %v918, 23
        %v920 = vsub.s32 %v919, 127
        %v921 = vand.u32 2147483647, %v693
        %v922 = vand.u32 %v921, 8388607
        %v923 = vor.u32 %v922, 8388608
        %v924 = vsub.s32 0, %v923
        %v925 = vadd.s32 %v920, 1
        %vm926 = vcmp.gt.s32.totalorder %v925, 0
        %v927 = vsel %vm926, %v925, 0
        %v928 = vshrl.u32 %v927, 5
        %v929 = vand.u32 %v927, 31
        %v930 = vsub.s32 32, %v929
        %v931 = vshrl.u32 683565275, %v930
        %v932 = vshll.u32 683565275, %v929
        %v933 = vshrl.u32 2475754826, %v930
        %v934 = vor.u32 %v932, %v933
        %v935 = vshll.u32 2475754826, %v929
        %v936 = vshrl.u32 2131351028, %v930
        %v937 = vor.u32 %v935, %v936
        %v938 = vshll.u32 2131351028, %v929
        %v939 = vshrl.u32 2102212464, %v930
        %v940 = vor.u32 %v938, %v939
        %v941 = vshll.u32 2102212464, %v929
        %v942 = vshrl.u32 920167782, %v930
        %v943 = vor.u32 %v941, %v942
        %v944 = vshll.u32 920167782, %v929
        %v945 = vshrl.u32 1326507024, %v930
        %v946 = vor.u32 %v944, %v945
        %vm947 = vcmp.lt.s32.totalorder %v928, 1
        %vm948 = vcmp.lt.s32.totalorder %v928, 2
        %vm949 = vcmp.lt.s32.totalorder %v928, 3
        %vm950 = vcmp.lt.s32.totalorder %v928, 4
        %v951 = vsel %vm947, %v931, %v934
        %v952 = vsel %vm950, %v940, 2102212464
        %v953 = vsel %vm949, %v937, %v952
        %v954 = vsel %vm948, %v951, %v953
        %v955 = vsel %vm947, %v934, %v937
        %v956 = vsel %vm950, %v943, 920167782
        %v957 = vsel %vm949, %v940, %v956
        %v958 = vsel %vm948, %v955, %v957
        %v959 = vsel %vm947, %v937, %v940
        %v960 = vsel %vm950, %v946, 1326507024
        %v961 = vsel %vm949, %v943, %v960
        %v962 = vsel %vm948, %v959, %v961
        %v963 = vshll.u32 %v923, 8
        %v964 = vmul.u32.u64.compose %v963, %v962
        %v965 = vextract.low.u32 %v964
        %v966 = vextract.high.u32 %v964
        %v967 = vmul.u32.u64.compose %v963, %v958
        %v968 = vextract.low.u32 %v967
        %v969 = vextract.high.u32 %v967
        %v970 = vmul.u32 %v963, %v954
        %v971 = vadd.s32 %v966, %v968
        %vm972 = vc.u32 %v966, %v968
        %v973 = vadd.s32 %v969, 1
        %v974 = vsel %vm972, %v973, %v969
        %v975 = vadd.s32 %v970, %v974
        %v976 = vadd.s32 %v975, 536870912
        %v977 = vshrl.u32 %v976, 30
        %v978 = vshll.u32 %v977, 30
        %v979 = vsub.s32 %v975, %v978
        %vm980 = vcmp.lt.s32.totalorder %v979, 0
        %v981 = vsub.s32 0, %v979
        %v982 = vsel %vm980, %v981, %v979
        %v983 = vclz %v982
        %v984 = vsub.s32 %v983, 2
        %vm985 = vcmp.gt.s32.totalorder 0, %v984
        %v986 = vsel %vm985, 0, %v984
        %v987 = vsub.s32 32, %v986
        %v988 = vshll.u32 %v979, %v986
        %v989 = vshrl.u32 %v971, %v987
        %v990 = vor.u32 %v988, %v989
        %v991 = vsub.s32 4294967266, %v986
        %v992 = vadd.s32 %v991, 127
        %v993 = vshll.u32 %v992, 23
        %v994 = vor.u32 4788187, %v993
        %v995 = vand.u32 2147483647, %v994
        %v997 = vcvt.s32.f32 %v990
        %v998 = vmul.f32 %v997, %v995
        %v999 = vxor.u32 %v998, 2147483648
        %v1000 = vsel %vm917, %v999, %v998
        %v1001 = vsub.s32 4, %v977
        %v1002 = vsel %vm917, %v1001, %v977
        %v1003 = vsel %vm916, %v693, %v1000
        %v1004 = vsel %vm916, 0, %v1002
        %v1005 = vcosq.f32.pop %v1003
        %v1006 = vsinq.f32.pop %v1003
        %vm1007 = vweird.f32 %v693
        %v1008 = vadd.s32 %v1004, 3
        %v1009 = vand.u32 %v1008, 3
        %vm1010 = vcmp.lt.s32.totalorder %v1009, 2
        %vm1011 = vcmp.eq.s32.totalorder %v1009, 0
        %v1012 = vxor.u32 %v1006, 2147483648
        %v1013 = vsel %vm1011, %v1005, %v1012
        %vm1014 = vcmp.eq.s32.totalorder %v1009, 2
        %v1015 = vxor.u32 %v1005, 2147483648
        %v1016 = vsel %vm1014, %v1015, %v1006
        %v1017 = vsel %vm1010, %v1013, %v1016
        %v1018 = vsel %vm1007, nan, %v1017
        %v1019 = vand.u32 2147483647, %v694
        %vm1020 = vcmp.le.f32.partialorder %v1019, 0.7853982
        %vm1021 = vcmp.lt.s32.totalorder %v694, 0
        %v1022 = vand.u32 %v694, 2139095040
        %v1023 = vshrl.u32 %v1022, 23
        %v1024 = vsub.s32 %v1023, 127
        %v1025 = vand.u32 2147483647, %v694
        %v1026 = vand.u32 %v1025, 8388607
        %v1027 = vor.u32 %v1026, 8388608
        %v1028 = vsub.s32 0, %v1027
        %v1029 = vadd.s32 %v1024, 1
        %vm1030 = vcmp.gt.s32.totalorder %v1029, 0
        %v1031 = vsel %vm1030, %v1029, 0
        %v1032 = vshrl.u32 %v1031, 5
        %v1033 = vand.u32 %v1031, 31
        %v1034 = vsub.s32 32, %v1033
        %v1035 = vshrl.u32 683565275, %v1034
        %v1036 = vshll.u32 683565275, %v1033
        %v1037 = vshrl.u32 2475754826, %v1034
        %v1038 = vor.u32 %v1036, %v1037
        %v1039 = vshll.u32 2475754826, %v1033
        %v1040 = vshrl.u32 2131351028, %v1034
        %v1041 = vor.u32 %v1039, %v1040
        %v1042 = vshll.u32 2131351028, %v1033
        %v1043 = vshrl.u32 2102212464, %v1034
        %v1044 = vor.u32 %v1042, %v1043
        %v1045 = vshll.u32 2102212464, %v1033
        %v1046 = vshrl.u32 920167782, %v1034
        %v1047 = vor.u32 %v1045, %v1046
        %v1048 = vshll.u32 920167782, %v1033
        %v1049 = vshrl.u32 1326507024, %v1034
        %v1050 = vor.u32 %v1048, %v1049
        %vm1051 = vcmp.lt.s32.totalorder %v1032, 1
        %vm1052 = vcmp.lt.s32.totalorder %v1032, 2
        %vm1053 = vcmp.lt.s32.totalorder %v1032, 3
        %vm1054 = vcmp.lt.s32.totalorder %v1032, 4
        %v1055 = vsel %vm1051, %v1035, %v1038
        %v1056 = vsel %vm1054, %v1044, 2102212464
        %v1057 = vsel %vm1053, %v1041, %v1056
        %v1058 = vsel %vm1052, %v1055, %v1057
        %v1059 = vsel %vm1051, %v1038, %v1041
        %v1060 = vsel %vm1054, %v1047, 920167782
        %v1061 = vsel %vm1053, %v1044, %v1060
        %v1062 = vsel %vm1052, %v1059, %v1061
        %v1063 = vsel %vm1051, %v1041, %v1044
        %v1064 = vsel %vm1054, %v1050, 1326507024
        %v1065 = vsel %vm1053, %v1047, %v1064
        %v1066 = vsel %vm1052, %v1063, %v1065
        %v1067 = vshll.u32 %v1027, 8
        %v1068 = vmul.u32.u64.compose %v1067, %v1066
        %v1069 = vextract.low.u32 %v1068
        %v1070 = vextract.high.u32 %v1068
        %v1071 = vmul.u32.u64.compose %v1067, %v1062
        %v1072 = vextract.low.u32 %v1071
        %v1073 = vextract.high.u32 %v1071
        %v1074 = vmul.u32 %v1067, %v1058
        %v1075 = vadd.s32 %v1070, %v1072
        %vm1076 = vc.u32 %v1070, %v1072
        %v1077 = vadd.s32 %v1073, 1
        %v1078 = vsel %vm1076, %v1077, %v1073
        %v1079 = vadd.s32 %v1074, %v1078
        %v1080 = vadd.s32 %v1079, 536870912
        %v1081 = vshrl.u32 %v1080, 30
        %v1082 = vshll.u32 %v1081, 30
        %v1083 = vsub.s32 %v1079, %v1082
        %vm1084 = vcmp.lt.s32.totalorder %v1083, 0
        %v1085 = vsub.s32 0, %v1083
        %v1086 = vsel %vm1084, %v1085, %v1083
        %v1087 = vclz %v1086
        %v1088 = vsub.s32 %v1087, 2
        %vm1089 = vcmp.gt.s32.totalorder 0, %v1088
        %v1090 = vsel %vm1089, 0, %v1088
        %v1091 = vsub.s32 32, %v1090
        %v1092 = vshll.u32 %v1083, %v1090
        %v1093 = vshrl.u32 %v1075, %v1091
        %v1094 = vor.u32 %v1092, %v1093
        %v1095 = vsub.s32 4294967266, %v1090
        %v1096 = vadd.s32 %v1095, 127
        %v1097 = vshll.u32 %v1096, 23
        %v1098 = vor.u32 4788187, %v1097
        %v1099 = vand.u32 2147483647, %v1098
        %v1101 = vcvt.s32.f32 %v1094
        %v1102 = vmul.f32 %v1101, %v1099
        %v1103 = vxor.u32 %v1102, 2147483648
        %v1104 = vsel %vm1021, %v1103, %v1102
        %v1105 = vsub.s32 4, %v1081
        %v1106 = vsel %vm1021, %v1105, %v1081
        %v1107 = vsel %vm1020, %v694, %v1104
        %v1108 = vsel %vm1020, 0, %v1106
        %v1109 = vcosq.f32.pop %v1107
        %v1110 = vsinq.f32.pop %v1107
        %vm1111 = vweird.f32 %v694
        %v1112 = vadd.s32 %v1108, 3
        %v1113 = vand.u32 %v1112, 3
        %vm1114 = vcmp.lt.s32.totalorder %v1113, 2
        %vm1115 = vcmp.eq.s32.totalorder %v1113, 0
        %v1116 = vxor.u32 %v1110, 2147483648
        %v1117 = vsel %vm1115, %v1109, %v1116
        %vm1118 = vcmp.eq.s32.totalorder %v1113, 2
        %v1119 = vxor.u32 %v1109, 2147483648
        %v1120 = vsel %vm1118, %v1119, %v1110
        %v1121 = vsel %vm1114, %v1117, %v1120
        %v1122 = vsel %vm1111, nan, %v1121
        %v1123 = vand.u32 2147483647, %v695
        %vm1124 = vcmp.le.f32.partialorder %v1123, 0.7853982
        %vm1125 = vcmp.lt.s32.totalorder %v695, 0
        %v1126 = vand.u32 %v695, 2139095040
        %v1127 = vshrl.u32 %v1126, 23
        %v1128 = vsub.s32 %v1127, 127
        %v1129 = vand.u32 2147483647, %v695
        %v1130 = vand.u32 %v1129, 8388607
        %v1131 = vor.u32 %v1130, 8388608
        %v1132 = vsub.s32 0, %v1131
        %v1133 = vadd.s32 %v1128, 1
        %vm1134 = vcmp.gt.s32.totalorder %v1133, 0
        %v1135 = vsel %vm1134, %v1133, 0
        %v1136 = vshrl.u32 %v1135, 5
        %v1137 = vand.u32 %v1135, 31
        %v1138 = vsub.s32 32, %v1137
        %v1139 = vshrl.u32 683565275, %v1138
        %v1140 = vshll.u32 683565275, %v1137
        %v1141 = vshrl.u32 2475754826, %v1138
        %v1142 = vor.u32 %v1140, %v1141
        %v1143 = vshll.u32 2475754826, %v1137
        %v1144 = vshrl.u32 2131351028, %v1138
        %v1145 = vor.u32 %v1143, %v1144
        %v1146 = vshll.u32 2131351028, %v1137
        %v1147 = vshrl.u32 2102212464, %v1138
        %v1148 = vor.u32 %v1146, %v1147
        %v1149 = vshll.u32 2102212464, %v1137
        %v1150 = vshrl.u32 920167782, %v1138
        %v1151 = vor.u32 %v1149, %v1150
        %v1152 = vshll.u32 920167782, %v1137
        %v1153 = vshrl.u32 1326507024, %v1138
        %v1154 = vor.u32 %v1152, %v1153
        %vm1155 = vcmp.lt.s32.totalorder %v1136, 1
        %vm1156 = vcmp.lt.s32.totalorder %v1136, 2
        %vm1157 = vcmp.lt.s32.totalorder %v1136, 3
        %vm1158 = vcmp.lt.s32.totalorder %v1136, 4
        %v1159 = vsel %vm1155, %v1139, %v1142
        %v1160 = vsel %vm1158, %v1148, 2102212464
        %v1161 = vsel %vm1157, %v1145, %v1160
        %v1162 = vsel %vm1156, %v1159, %v1161
        %v1163 = vsel %vm1155, %v1142, %v1145
        %v1164 = vsel %vm1158, %v1151, 920167782
        %v1165 = vsel %vm1157, %v1148, %v1164
        %v1166 = vsel %vm1156, %v1163, %v1165
        %v1167 = vsel %vm1155, %v1145, %v1148
        %v1168 = vsel %vm1158, %v1154, 1326507024
        %v1169 = vsel %vm1157, %v1151, %v1168
        %v1170 = vsel %vm1156, %v1167, %v1169
        %v1171 = vshll.u32 %v1131, 8
        %v1172 = vmul.u32.u64.compose %v1171, %v1170
        %v1173 = vextract.low.u32 %v1172
        %v1174 = vextract.high.u32 %v1172
        %v1175 = vmul.u32.u64.compose %v1171, %v1166
        %v1176 = vextract.low.u32 %v1175
        %v1177 = vextract.high.u32 %v1175
        %v1178 = vmul.u32 %v1171, %v1162
        %v1179 = vadd.s32 %v1174, %v1176
        %vm1180 = vc.u32 %v1174, %v1176
        %v1181 = vadd.s32 %v1177, 1
        %v1182 = vsel %vm1180, %v1181, %v1177
        %v1183 = vadd.s32 %v1178, %v1182
        %v1184 = vadd.s32 %v1183, 536870912
        %v1185 = vshrl.u32 %v1184, 30
        %v1186 = vshll.u32 %v1185, 30
        %v1187 = vsub.s32 %v1183, %v1186
        %vm1188 = vcmp.lt.s32.totalorder %v1187, 0
        %v1189 = vsub.s32 0, %v1187
        %v1190 = vsel %vm1188, %v1189, %v1187
        %v1191 = vclz %v1190
        %v1192 = vsub.s32 %v1191, 2
        %vm1193 = vcmp.gt.s32.totalorder 0, %v1192
        %v1194 = vsel %vm1193, 0, %v1192
        %v1195 = vsub.s32 32, %v1194
        %v1196 = vshll.u32 %v1187, %v1194
        %v1197 = vshrl.u32 %v1179, %v1195
        %v1198 = vor.u32 %v1196, %v1197
        %v1199 = vsub.s32 4294967266, %v1194
        %v1200 = vadd.s32 %v1199, 127
        %v1201 = vshll.u32 %v1200, 23
        %v1202 = vor.u32 4788187, %v1201
        %v1203 = vand.u32 2147483647, %v1202
        %v1205 = vcvt.s32.f32 %v1198
        %v1206 = vmul.f32 %v1205, %v1203
        %v1207 = vxor.u32 %v1206, 2147483648
        %v1208 = vsel %vm1125, %v1207, %v1206
        %v1209 = vsub.s32 4, %v1185
        %v1210 = vsel %vm1125, %v1209, %v1185
        %v1211 = vsel %vm1124, %v695, %v1208
        %v1212 = vsel %vm1124, 0, %v1210
        %v1213 = vcosq.f32.pop %v1211
        %v1214 = vsinq.f32.pop %v1211
        %vm1215 = vweird.f32 %v695
        %v1216 = vadd.s32 %v1212, 3
        %v1217 = vand.u32 %v1216, 3
        %vm1218 = vcmp.lt.s32.totalorder %v1217, 2
        %vm1219 = vcmp.eq.s32.totalorder %v1217, 0
        %v1220 = vxor.u32 %v1214, 2147483648
        %v1221 = vsel %vm1219, %v1213, %v1220
        %vm1222 = vcmp.eq.s32.totalorder %v1217, 2
        %v1223 = vxor.u32 %v1213, 2147483648
        %v1224 = vsel %vm1222, %v1223, %v1214
        %v1225 = vsel %vm1218, %v1221, %v1224
        %v1226 = vsel %vm1215, nan, %v1225
        %v1227 = vand.u32 2147483647, %v696
        %vm1228 = vcmp.le.f32.partialorder %v1227, 0.7853982
        %vm1229 = vcmp.lt.s32.totalorder %v696, 0
        %v1230 = vand.u32 %v696, 2139095040
        %v1231 = vshrl.u32 %v1230, 23
        %v1232 = vsub.s32 %v1231, 127
        %v1233 = vand.u32 2147483647, %v696
        %v1234 = vand.u32 %v1233, 8388607
        %v1235 = vor.u32 %v1234, 8388608
        %v1236 = vsub.s32 0, %v1235
        %v1237 = vadd.s32 %v1232, 1
        %vm1238 = vcmp.gt.s32.totalorder %v1237, 0
        %v1239 = vsel %vm1238, %v1237, 0
        %v1240 = vshrl.u32 %v1239, 5
        %v1241 = vand.u32 %v1239, 31
        %v1242 = vsub.s32 32, %v1241
        %v1243 = vshrl.u32 683565275, %v1242
        %v1244 = vshll.u32 683565275, %v1241
        %v1245 = vshrl.u32 2475754826, %v1242
        %v1246 = vor.u32 %v1244, %v1245
        %v1247 = vshll.u32 2475754826, %v1241
        %v1248 = vshrl.u32 2131351028, %v1242
        %v1249 = vor.u32 %v1247, %v1248
        %v1250 = vshll.u32 2131351028, %v1241
        %v1251 = vshrl.u32 2102212464, %v1242
        %v1252 = vor.u32 %v1250, %v1251
        %v1253 = vshll.u32 2102212464, %v1241
        %v1254 = vshrl.u32 920167782, %v1242
        %v1255 = vor.u32 %v1253, %v1254
        %v1256 = vshll.u32 920167782, %v1241
        %v1257 = vshrl.u32 1326507024, %v1242
        %v1258 = vor.u32 %v1256, %v1257
        %vm1259 = vcmp.lt.s32.totalorder %v1240, 1
        %vm1260 = vcmp.lt.s32.totalorder %v1240, 2
        %vm1261 = vcmp.lt.s32.totalorder %v1240, 3
        %vm1262 = vcmp.lt.s32.totalorder %v1240, 4
        %v1263 = vsel %vm1259, %v1243, %v1246
        %v1264 = vsel %vm1262, %v1252, 2102212464
        %v1265 = vsel %vm1261, %v1249, %v1264
        %v1266 = vsel %vm1260, %v1263, %v1265
        %v1267 = vsel %vm1259, %v1246, %v1249
        %v1268 = vsel %vm1262, %v1255, 920167782
        %v1269 = vsel %vm1261, %v1252, %v1268
        %v1270 = vsel %vm1260, %v1267, %v1269
        %v1271 = vsel %vm1259, %v1249, %v1252
        %v1272 = vsel %vm1262, %v1258, 1326507024
        %v1273 = vsel %vm1261, %v1255, %v1272
        %v1274 = vsel %vm1260, %v1271, %v1273
        %v1275 = vshll.u32 %v1235, 8
        %v1276 = vmul.u32.u64.compose %v1275, %v1274
        %v1277 = vextract.low.u32 %v1276
        %v1278 = vextract.high.u32 %v1276
        %v1279 = vmul.u32.u64.compose %v1275, %v1270
        %v1280 = vextract.low.u32 %v1279
        %v1281 = vextract.high.u32 %v1279
        %v1282 = vmul.u32 %v1275, %v1266
        %v1283 = vadd.s32 %v1278, %v1280
        %vm1284 = vc.u32 %v1278, %v1280
        %v1285 = vadd.s32 %v1281, 1
        %v1286 = vsel %vm1284, %v1285, %v1281
        %v1287 = vadd.s32 %v1282, %v1286
        %v1288 = vadd.s32 %v1287, 536870912
        %v1289 = vshrl.u32 %v1288, 30
        %v1290 = vshll.u32 %v1289, 30
        %v1291 = vsub.s32 %v1287, %v1290
        %vm1292 = vcmp.lt.s32.totalorder %v1291, 0
        %v1293 = vsub.s32 0, %v1291
        %v1294 = vsel %vm1292, %v1293, %v1291
        %v1295 = vclz %v1294
        %v1296 = vsub.s32 %v1295, 2
        %vm1297 = vcmp.gt.s32.totalorder 0, %v1296
        %v1298 = vsel %vm1297, 0, %v1296
        %v1299 = vsub.s32 32, %v1298
        %v1300 = vshll.u32 %v1291, %v1298
        %v1301 = vshrl.u32 %v1283, %v1299
        %v1302 = vor.u32 %v1300, %v1301
        %v1303 = vsub.s32 4294967266, %v1298
        %v1304 = vadd.s32 %v1303, 127
        %v1305 = vshll.u32 %v1304, 23
        %v1306 = vor.u32 4788187, %v1305
        %v1307 = vand.u32 2147483647, %v1306
        %v1309 = vcvt.s32.f32 %v1302
        %v1310 = vmul.f32 %v1309, %v1307
        %v1311 = vxor.u32 %v1310, 2147483648
        %v1312 = vsel %vm1229, %v1311, %v1310
        %v1313 = vsub.s32 4, %v1289
        %v1314 = vsel %vm1229, %v1313, %v1289
        %v1315 = vsel %vm1228, %v696, %v1312
        %v1316 = vsel %vm1228, 0, %v1314
        %v1317 = vcosq.f32.pop %v1315
        %v1318 = vsinq.f32.pop %v1315
        %vm1319 = vweird.f32 %v696
        %v1320 = vadd.s32 %v1316, 3
        %v1321 = vand.u32 %v1320, 3
        %vm1322 = vcmp.lt.s32.totalorder %v1321, 2
        %vm1323 = vcmp.eq.s32.totalorder %v1321, 0
        %v1324 = vxor.u32 %v1318, 2147483648
        %v1325 = vsel %vm1323, %v1317, %v1324
        %vm1326 = vcmp.eq.s32.totalorder %v1321, 2
        %v1327 = vxor.u32 %v1317, 2147483648
        %v1328 = vsel %vm1326, %v1327, %v1318
        %v1329 = vsel %vm1322, %v1325, %v1328
        %v1330 = vsel %vm1319, nan, %v1329
        %v1331 = vand.u32 2147483647, %v697
        %vm1332 = vcmp.le.f32.partialorder %v1331, 0.7853982
        %vm1333 = vcmp.lt.s32.totalorder %v697, 0
        %v1334 = vand.u32 %v697, 2139095040
        %v1335 = vshrl.u32 %v1334, 23
        %v1336 = vsub.s32 %v1335, 127
        %v1337 = vand.u32 2147483647, %v697
        %v1338 = vand.u32 %v1337, 8388607
        %v1339 = vor.u32 %v1338, 8388608
        %v1340 = vsub.s32 0, %v1339
        %v1341 = vadd.s32 %v1336, 1
        %vm1342 = vcmp.gt.s32.totalorder %v1341, 0
        %v1343 = vsel %vm1342, %v1341, 0
        %v1344 = vshrl.u32 %v1343, 5
        %v1345 = vand.u32 %v1343, 31
        %v1346 = vsub.s32 32, %v1345
        %v1347 = vshrl.u32 683565275, %v1346
        %v1348 = vshll.u32 683565275, %v1345
        %v1349 = vshrl.u32 2475754826, %v1346
        %v1350 = vor.u32 %v1348, %v1349
        %v1351 = vshll.u32 2475754826, %v1345
        %v1352 = vshrl.u32 2131351028, %v1346
        %v1353 = vor.u32 %v1351, %v1352
        %v1354 = vshll.u32 2131351028, %v1345
        %v1355 = vshrl.u32 2102212464, %v1346
        %v1356 = vor.u32 %v1354, %v1355
        %v1357 = vshll.u32 2102212464, %v1345
        %v1358 = vshrl.u32 920167782, %v1346
        %v1359 = vor.u32 %v1357, %v1358
        %v1360 = vshll.u32 920167782, %v1345
        %v1361 = vshrl.u32 1326507024, %v1346
        %v1362 = vor.u32 %v1360, %v1361
        %vm1363 = vcmp.lt.s32.totalorder %v1344, 1
        %vm1364 = vcmp.lt.s32.totalorder %v1344, 2
        %vm1365 = vcmp.lt.s32.totalorder %v1344, 3
        %vm1366 = vcmp.lt.s32.totalorder %v1344, 4
        %v1367 = vsel %vm1363, %v1347, %v1350
        %v1368 = vsel %vm1366, %v1356, 2102212464
        %v1369 = vsel %vm1365, %v1353, %v1368
        %v1370 = vsel %vm1364, %v1367, %v1369
        %v1371 = vsel %vm1363, %v1350, %v1353
        %v1372 = vsel %vm1366, %v1359, 920167782
        %v1373 = vsel %vm1365, %v1356, %v1372
        %v1374 = vsel %vm1364, %v1371, %v1373
        %v1375 = vsel %vm1363, %v1353, %v1356
        %v1376 = vsel %vm1366, %v1362, 1326507024
        %v1377 = vsel %vm1365, %v1359, %v1376
        %v1378 = vsel %vm1364, %v1375, %v1377
        %v1379 = vshll.u32 %v1339, 8
        %v1380 = vmul.u32.u64.compose %v1379, %v1378
        %v1381 = vextract.low.u32 %v1380
        %v1382 = vextract.high.u32 %v1380
        %v1383 = vmul.u32.u64.compose %v1379, %v1374
        %v1384 = vextract.low.u32 %v1383
        %v1385 = vextract.high.u32 %v1383
        %v1386 = vmul.u32 %v1379, %v1370
        %v1387 = vadd.s32 %v1382, %v1384
        %vm1388 = vc.u32 %v1382, %v1384
        %v1389 = vadd.s32 %v1385, 1
        %v1390 = vsel %vm1388, %v1389, %v1385
        %v1391 = vadd.s32 %v1386, %v1390
        %v1392 = vadd.s32 %v1391, 536870912
        %v1393 = vshrl.u32 %v1392, 30
        %v1394 = vshll.u32 %v1393, 30
        %v1395 = vsub.s32 %v1391, %v1394
        %vm1396 = vcmp.lt.s32.totalorder %v1395, 0
        %v1397 = vsub.s32 0, %v1395
        %v1398 = vsel %vm1396, %v1397, %v1395
        %v1399 = vclz %v1398
        %v1400 = vsub.s32 %v1399, 2
        %vm1401 = vcmp.gt.s32.totalorder 0, %v1400
        %v1402 = vsel %vm1401, 0, %v1400
        %v1403 = vsub.s32 32, %v1402
        %v1404 = vshll.u32 %v1395, %v1402
        %v1405 = vshrl.u32 %v1387, %v1403
        %v1406 = vor.u32 %v1404, %v1405
        %v1407 = vsub.s32 4294967266, %v1402
        %v1408 = vadd.s32 %v1407, 127
        %v1409 = vshll.u32 %v1408, 23
        %v1410 = vor.u32 4788187, %v1409
        %v1411 = vand.u32 2147483647, %v1410
        %v1413 = vcvt.s32.f32 %v1406
        %v1414 = vmul.f32 %v1413, %v1411
        %v1415 = vxor.u32 %v1414, 2147483648
        %v1416 = vsel %vm1333, %v1415, %v1414
        %v1417 = vsub.s32 4, %v1393
        %v1418 = vsel %vm1333, %v1417, %v1393
        %v1419 = vsel %vm1332, %v697, %v1416
        %v1420 = vsel %vm1332, 0, %v1418
        %v1421 = vcosq.f32.pop %v1419
        %v1422 = vsinq.f32.pop %v1419
        %vm1423 = vweird.f32 %v697
        %v1424 = vadd.s32 %v1420, 3
        %v1425 = vand.u32 %v1424, 3
        %vm1426 = vcmp.lt.s32.totalorder %v1425, 2
        %vm1427 = vcmp.eq.s32.totalorder %v1425, 0
        %v1428 = vxor.u32 %v1422, 2147483648
        %v1429 = vsel %vm1427, %v1421, %v1428
        %vm1430 = vcmp.eq.s32.totalorder %v1425, 2
        %v1431 = vxor.u32 %v1421, 2147483648
        %v1432 = vsel %vm1430, %v1431, %v1422
        %v1433 = vsel %vm1426, %v1429, %v1432
        %v1434 = vsel %vm1423, nan, %v1433
        %v1435 = vand.u32 2147483647, %v698
        %vm1436 = vcmp.le.f32.partialorder %v1435, 0.7853982
        %vm1437 = vcmp.lt.s32.totalorder %v698, 0
        %v1438 = vand.u32 %v698, 2139095040
        %v1439 = vshrl.u32 %v1438, 23
        %v1440 = vsub.s32 %v1439, 127
        %v1441 = vand.u32 2147483647, %v698
        %v1442 = vand.u32 %v1441, 8388607
        %v1443 = vor.u32 %v1442, 8388608
        %v1444 = vsub.s32 0, %v1443
        %v1445 = vadd.s32 %v1440, 1
        %vm1446 = vcmp.gt.s32.totalorder %v1445, 0
        %v1447 = vsel %vm1446, %v1445, 0
        %v1448 = vshrl.u32 %v1447, 5
        %v1449 = vand.u32 %v1447, 31
        %v1450 = vsub.s32 32, %v1449
        %v1451 = vshrl.u32 683565275, %v1450
        %v1452 = vshll.u32 683565275, %v1449
        %v1453 = vshrl.u32 2475754826, %v1450
        %v1454 = vor.u32 %v1452, %v1453
        %v1455 = vshll.u32 2475754826, %v1449
        %v1456 = vshrl.u32 2131351028, %v1450
        %v1457 = vor.u32 %v1455, %v1456
        %v1458 = vshll.u32 2131351028, %v1449
        %v1459 = vshrl.u32 2102212464, %v1450
        %v1460 = vor.u32 %v1458, %v1459
        %v1461 = vshll.u32 2102212464, %v1449
        %v1462 = vshrl.u32 920167782, %v1450
        %v1463 = vor.u32 %v1461, %v1462
        %v1464 = vshll.u32 920167782, %v1449
        %v1465 = vshrl.u32 1326507024, %v1450
        %v1466 = vor.u32 %v1464, %v1465
        %vm1467 = vcmp.lt.s32.totalorder %v1448, 1
        %vm1468 = vcmp.lt.s32.totalorder %v1448, 2
        %vm1469 = vcmp.lt.s32.totalorder %v1448, 3
        %vm1470 = vcmp.lt.s32.totalorder %v1448, 4
        %v1471 = vsel %vm1467, %v1451, %v1454
        %v1472 = vsel %vm1470, %v1460, 2102212464
        %v1473 = vsel %vm1469, %v1457, %v1472
        %v1474 = vsel %vm1468, %v1471, %v1473
        %v1475 = vsel %vm1467, %v1454, %v1457
        %v1476 = vsel %vm1470, %v1463, 920167782
        %v1477 = vsel %vm1469, %v1460, %v1476
        %v1478 = vsel %vm1468, %v1475, %v1477
        %v1479 = vsel %vm1467, %v1457, %v1460
        %v1480 = vsel %vm1470, %v1466, 1326507024
        %v1481 = vsel %vm1469, %v1463, %v1480
        %v1482 = vsel %vm1468, %v1479, %v1481
        %v1483 = vshll.u32 %v1443, 8
        %v1484 = vmul.u32.u64.compose %v1483, %v1482
        %v1485 = vextract.low.u32 %v1484
        %v1486 = vextract.high.u32 %v1484
        %v1487 = vmul.u32.u64.compose %v1483, %v1478
        %v1488 = vextract.low.u32 %v1487
        %v1489 = vextract.high.u32 %v1487
        %v1490 = vmul.u32 %v1483, %v1474
        %v1491 = vadd.s32 %v1486, %v1488
        %vm1492 = vc.u32 %v1486, %v1488
        %v1493 = vadd.s32 %v1489, 1
        %v1494 = vsel %vm1492, %v1493, %v1489
        %v1495 = vadd.s32 %v1490, %v1494
        %v1496 = vadd.s32 %v1495, 536870912
        %v1497 = vshrl.u32 %v1496, 30
        %v1498 = vshll.u32 %v1497, 30
        %v1499 = vsub.s32 %v1495, %v1498
        %vm1500 = vcmp.lt.s32.totalorder %v1499, 0
        %v1501 = vsub.s32 0, %v1499
        %v1502 = vsel %vm1500, %v1501, %v1499
        %v1503 = vclz %v1502
        %v1504 = vsub.s32 %v1503, 2
        %vm1505 = vcmp.gt.s32.totalorder 0, %v1504
        %v1506 = vsel %vm1505, 0, %v1504
        %v1507 = vsub.s32 32, %v1506
        %v1508 = vshll.u32 %v1499, %v1506
        %v1509 = vshrl.u32 %v1491, %v1507
        %v1510 = vor.u32 %v1508, %v1509
        %v1511 = vsub.s32 4294967266, %v1506
        %v1512 = vadd.s32 %v1511, 127
        %v1513 = vshll.u32 %v1512, 23
        %v1514 = vor.u32 4788187, %v1513
        %v1515 = vand.u32 2147483647, %v1514
        %v1517 = vcvt.s32.f32 %v1510
        %v1518 = vmul.f32 %v1517, %v1515
        %v1519 = vxor.u32 %v1518, 2147483648
        %v1520 = vsel %vm1437, %v1519, %v1518
        %v1521 = vsub.s32 4, %v1497
        %v1522 = vsel %vm1437, %v1521, %v1497
        %v1523 = vsel %vm1436, %v698, %v1520
        %v1524 = vsel %vm1436, 0, %v1522
        %v1525 = vcosq.f32.pop %v1523
        %v1526 = vsinq.f32.pop %v1523
        %vm1527 = vweird.f32 %v698
        %v1528 = vadd.s32 %v1524, 3
        %v1529 = vand.u32 %v1528, 3
        %vm1530 = vcmp.lt.s32.totalorder %v1529, 2
        %vm1531 = vcmp.eq.s32.totalorder %v1529, 0
        %v1532 = vxor.u32 %v1526, 2147483648
        %v1533 = vsel %vm1531, %v1525, %v1532
        %vm1534 = vcmp.eq.s32.totalorder %v1529, 2
        %v1535 = vxor.u32 %v1525, 2147483648
        %v1536 = vsel %vm1534, %v1535, %v1526
        %v1537 = vsel %vm1530, %v1533, %v1536
        %v1538 = vsel %vm1527, nan, %v1537
        %v1539 = vand.u32 2147483647, %v699
        %vm1540 = vcmp.le.f32.partialorder %v1539, 0.7853982
        %vm1541 = vcmp.lt.s32.totalorder %v699, 0
        %v1542 = vand.u32 %v699, 2139095040
        %v1543 = vshrl.u32 %v1542, 23
        %v1544 = vsub.s32 %v1543, 127
        %v1545 = vand.u32 2147483647, %v699
        %v1546 = vand.u32 %v1545, 8388607
        %v1547 = vor.u32 %v1546, 8388608
        %v1548 = vsub.s32 0, %v1547
        %v1549 = vadd.s32 %v1544, 1
        %vm1550 = vcmp.gt.s32.totalorder %v1549, 0
        %v1551 = vsel %vm1550, %v1549, 0
        %v1552 = vshrl.u32 %v1551, 5
        %v1553 = vand.u32 %v1551, 31
        %v1554 = vsub.s32 32, %v1553
        %v1555 = vshrl.u32 683565275, %v1554
        %v1556 = vshll.u32 683565275, %v1553
        %v1557 = vshrl.u32 2475754826, %v1554
        %v1558 = vor.u32 %v1556, %v1557
        %v1559 = vshll.u32 2475754826, %v1553
        %v1560 = vshrl.u32 2131351028, %v1554
        %v1561 = vor.u32 %v1559, %v1560
        %v1562 = vshll.u32 2131351028, %v1553
        %v1563 = vshrl.u32 2102212464, %v1554
        %v1564 = vor.u32 %v1562, %v1563
        %v1565 = vshll.u32 2102212464, %v1553
        %v1566 = vshrl.u32 920167782, %v1554
        %v1567 = vor.u32 %v1565, %v1566
        %v1568 = vshll.u32 920167782, %v1553
        %v1569 = vshrl.u32 1326507024, %v1554
        %v1570 = vor.u32 %v1568, %v1569
        %vm1571 = vcmp.lt.s32.totalorder %v1552, 1
        %vm1572 = vcmp.lt.s32.totalorder %v1552, 2
        %vm1573 = vcmp.lt.s32.totalorder %v1552, 3
        %vm1574 = vcmp.lt.s32.totalorder %v1552, 4
        %v1575 = vsel %vm1571, %v1555, %v1558
        %v1576 = vsel %vm1574, %v1564, 2102212464
        %v1577 = vsel %vm1573, %v1561, %v1576
        %v1578 = vsel %vm1572, %v1575, %v1577
        %v1579 = vsel %vm1571, %v1558, %v1561
        %v1580 = vsel %vm1574, %v1567, 920167782
        %v1581 = vsel %vm1573, %v1564, %v1580
        %v1582 = vsel %vm1572, %v1579, %v1581
        %v1583 = vsel %vm1571, %v1561, %v1564
        %v1584 = vsel %vm1574, %v1570, 1326507024
        %v1585 = vsel %vm1573, %v1567, %v1584
        %v1586 = vsel %vm1572, %v1583, %v1585
        %v1587 = vshll.u32 %v1547, 8
        %v1588 = vmul.u32.u64.compose %v1587, %v1586
        %v1589 = vextract.low.u32 %v1588
        %v1590 = vextract.high.u32 %v1588
        %v1591 = vmul.u32.u64.compose %v1587, %v1582
        %v1592 = vextract.low.u32 %v1591
        %v1593 = vextract.high.u32 %v1591
        %v1594 = vmul.u32 %v1587, %v1578
        %v1595 = vadd.s32 %v1590, %v1592
        %vm1596 = vc.u32 %v1590, %v1592
        %v1597 = vadd.s32 %v1593, 1
        %v1598 = vsel %vm1596, %v1597, %v1593
        %v1599 = vadd.s32 %v1594, %v1598
        %v1600 = vadd.s32 %v1599, 536870912
        %v1601 = vshrl.u32 %v1600, 30
        %v1602 = vshll.u32 %v1601, 30
        %v1603 = vsub.s32 %v1599, %v1602
        %vm1604 = vcmp.lt.s32.totalorder %v1603, 0
        %v1605 = vsub.s32 0, %v1603
        %v1606 = vsel %vm1604, %v1605, %v1603
        %v1607 = vclz %v1606
        %v1608 = vsub.s32 %v1607, 2
        %vm1609 = vcmp.gt.s32.totalorder 0, %v1608
        %v1610 = vsel %vm1609, 0, %v1608
        %v1611 = vsub.s32 32, %v1610
        %v1612 = vshll.u32 %v1603, %v1610
        %v1613 = vshrl.u32 %v1595, %v1611
        %v1614 = vor.u32 %v1612, %v1613
        %v1615 = vsub.s32 4294967266, %v1610
        %v1616 = vadd.s32 %v1615, 127
        %v1617 = vshll.u32 %v1616, 23
        %v1618 = vor.u32 4788187, %v1617
        %v1619 = vand.u32 2147483647, %v1618
        %v1621 = vcvt.s32.f32 %v1614
        %v1622 = vmul.f32 %v1621, %v1619
        %v1623 = vxor.u32 %v1622, 2147483648
        %v1624 = vsel %vm1541, %v1623, %v1622
        %v1625 = vsub.s32 4, %v1601
        %v1626 = vsel %vm1541, %v1625, %v1601
        %v1627 = vsel %vm1540, %v699, %v1624
        %v1628 = vsel %vm1540, 0, %v1626
        %v1629 = vcosq.f32.pop %v1627
        %v1630 = vsinq.f32.pop %v1627
        %vm1631 = vweird.f32 %v699
        %v1632 = vadd.s32 %v1628, 3
        %v1633 = vand.u32 %v1632, 3
        %vm1634 = vcmp.lt.s32.totalorder %v1633, 2
        %vm1635 = vcmp.eq.s32.totalorder %v1633, 0
        %v1636 = vxor.u32 %v1630, 2147483648
        %v1637 = vsel %vm1635, %v1629, %v1636
        %vm1638 = vcmp.eq.s32.totalorder %v1633, 2
        %v1639 = vxor.u32 %v1629, 2147483648
        %v1640 = vsel %vm1638, %v1639, %v1630
        %v1641 = vsel %vm1634, %v1637, %v1640
        %v1642 = vsel %vm1631, nan, %v1641
        %v1643 = vand.u32 2147483647, %v700
        %vm1644 = vcmp.le.f32.partialorder %v1643, 0.7853982
        %vm1645 = vcmp.lt.s32.totalorder %v700, 0
        %v1646 = vand.u32 %v700, 2139095040
        %v1647 = vshrl.u32 %v1646, 23
        %v1648 = vsub.s32 %v1647, 127
        %v1649 = vand.u32 2147483647, %v700
        %v1650 = vand.u32 %v1649, 8388607
        %v1651 = vor.u32 %v1650, 8388608
        %v1652 = vsub.s32 0, %v1651
        %v1653 = vadd.s32 %v1648, 1
        %vm1654 = vcmp.gt.s32.totalorder %v1653, 0
        %v1655 = vsel %vm1654, %v1653, 0
        %v1656 = vshrl.u32 %v1655, 5
        %v1657 = vand.u32 %v1655, 31
        %v1658 = vsub.s32 32, %v1657
        %v1659 = vshrl.u32 683565275, %v1658
        %v1660 = vshll.u32 683565275, %v1657
        %v1661 = vshrl.u32 2475754826, %v1658
        %v1662 = vor.u32 %v1660, %v1661
        %v1663 = vshll.u32 2475754826, %v1657
        %v1664 = vshrl.u32 2131351028, %v1658
        %v1665 = vor.u32 %v1663, %v1664
        %v1666 = vshll.u32 2131351028, %v1657
        %v1667 = vshrl.u32 2102212464, %v1658
        %v1668 = vor.u32 %v1666, %v1667
        %v1669 = vshll.u32 2102212464, %v1657
        %v1670 = vshrl.u32 920167782, %v1658
        %v1671 = vor.u32 %v1669, %v1670
        %v1672 = vshll.u32 920167782, %v1657
        %v1673 = vshrl.u32 1326507024, %v1658
        %v1674 = vor.u32 %v1672, %v1673
        %vm1675 = vcmp.lt.s32.totalorder %v1656, 1
        %vm1676 = vcmp.lt.s32.totalorder %v1656, 2
        %vm1677 = vcmp.lt.s32.totalorder %v1656, 3
        %vm1678 = vcmp.lt.s32.totalorder %v1656, 4
        %v1679 = vsel %vm1675, %v1659, %v1662
        %v1680 = vsel %vm1678, %v1668, 2102212464
        %v1681 = vsel %vm1677, %v1665, %v1680
        %v1682 = vsel %vm1676, %v1679, %v1681
        %v1683 = vsel %vm1675, %v1662, %v1665
        %v1684 = vsel %vm1678, %v1671, 920167782
        %v1685 = vsel %vm1677, %v1668, %v1684
        %v1686 = vsel %vm1676, %v1683, %v1685
        %v1687 = vsel %vm1675, %v1665, %v1668
        %v1688 = vsel %vm1678, %v1674, 1326507024
        %v1689 = vsel %vm1677, %v1671, %v1688
        %v1690 = vsel %vm1676, %v1687, %v1689
        %v1691 = vshll.u32 %v1651, 8
        %v1692 = vmul.u32.u64.compose %v1691, %v1690
        %v1693 = vextract.low.u32 %v1692
        %v1694 = vextract.high.u32 %v1692
        %v1695 = vmul.u32.u64.compose %v1691, %v1686
        %v1696 = vextract.low.u32 %v1695
        %v1697 = vextract.high.u32 %v1695
        %v1698 = vmul.u32 %v1691, %v1682
        %v1699 = vadd.s32 %v1694, %v1696
        %vm1700 = vc.u32 %v1694, %v1696
        %v1701 = vadd.s32 %v1697, 1
        %v1702 = vsel %vm1700, %v1701, %v1697
        %v1703 = vadd.s32 %v1698, %v1702
        %v1704 = vadd.s32 %v1703, 536870912
        %v1705 = vshrl.u32 %v1704, 30
        %v1706 = vshll.u32 %v1705, 30
        %v1707 = vsub.s32 %v1703, %v1706
        %vm1708 = vcmp.lt.s32.totalorder %v1707, 0
        %v1709 = vsub.s32 0, %v1707
        %v1710 = vsel %vm1708, %v1709, %v1707
        %v1711 = vclz %v1710
        %v1712 = vsub.s32 %v1711, 2
        %vm1713 = vcmp.gt.s32.totalorder 0, %v1712
        %v1714 = vsel %vm1713, 0, %v1712
        %v1715 = vsub.s32 32, %v1714
        %v1716 = vshll.u32 %v1707, %v1714
        %v1717 = vshrl.u32 %v1699, %v1715
        %v1718 = vor.u32 %v1716, %v1717
        %v1719 = vsub.s32 4294967266, %v1714
        %v1720 = vadd.s32 %v1719, 127
        %v1721 = vshll.u32 %v1720, 23
        %v1722 = vor.u32 4788187, %v1721
        %v1723 = vand.u32 2147483647, %v1722
        %v1725 = vcvt.s32.f32 %v1718
        %v1726 = vmul.f32 %v1725, %v1723
        %v1727 = vxor.u32 %v1726, 2147483648
        %v1728 = vsel %vm1645, %v1727, %v1726
        %v1729 = vsub.s32 4, %v1705
        %v1730 = vsel %vm1645, %v1729, %v1705
        %v1731 = vsel %vm1644, %v700, %v1728
        %v1732 = vsel %vm1644, 0, %v1730
        %v1733 = vcosq.f32.pop %v1731
        %v1734 = vsinq.f32.pop %v1731
        %vm1735 = vweird.f32 %v700
        %v1736 = vadd.s32 %v1732, 3
        %v1737 = vand.u32 %v1736, 3
        %vm1738 = vcmp.lt.s32.totalorder %v1737, 2
        %vm1739 = vcmp.eq.s32.totalorder %v1737, 0
        %v1740 = vxor.u32 %v1734, 2147483648
        %v1741 = vsel %vm1739, %v1733, %v1740
        %vm1742 = vcmp.eq.s32.totalorder %v1737, 2
        %v1743 = vxor.u32 %v1733, 2147483648
        %v1744 = vsel %vm1742, %v1743, %v1734
        %v1745 = vsel %vm1738, %v1741, %v1744
        %v1746 = vsel %vm1735, nan, %v1745
        %v1747 = vand.u32 2147483647, %v701
        %vm1748 = vcmp.le.f32.partialorder %v1747, 0.7853982
        %vm1749 = vcmp.lt.s32.totalorder %v701, 0
        %v1750 = vand.u32 %v701, 2139095040
        %v1751 = vshrl.u32 %v1750, 23
        %v1752 = vsub.s32 %v1751, 127
        %v1753 = vand.u32 2147483647, %v701
        %v1754 = vand.u32 %v1753, 8388607
        %v1755 = vor.u32 %v1754, 8388608
        %v1756 = vsub.s32 0, %v1755
        %v1757 = vadd.s32 %v1752, 1
        %vm1758 = vcmp.gt.s32.totalorder %v1757, 0
        %v1759 = vsel %vm1758, %v1757, 0
        %v1760 = vshrl.u32 %v1759, 5
        %v1761 = vand.u32 %v1759, 31
        %v1762 = vsub.s32 32, %v1761
        %v1763 = vshrl.u32 683565275, %v1762
        %v1764 = vshll.u32 683565275, %v1761
        %v1765 = vshrl.u32 2475754826, %v1762
        %v1766 = vor.u32 %v1764, %v1765
        %v1767 = vshll.u32 2475754826, %v1761
        %v1768 = vshrl.u32 2131351028, %v1762
        %v1769 = vor.u32 %v1767, %v1768
        %v1770 = vshll.u32 2131351028, %v1761
        %v1771 = vshrl.u32 2102212464, %v1762
        %v1772 = vor.u32 %v1770, %v1771
        %v1773 = vshll.u32 2102212464, %v1761
        %v1774 = vshrl.u32 920167782, %v1762
        %v1775 = vor.u32 %v1773, %v1774
        %v1776 = vshll.u32 920167782, %v1761
        %v1777 = vshrl.u32 1326507024, %v1762
        %v1778 = vor.u32 %v1776, %v1777
        %vm1779 = vcmp.lt.s32.totalorder %v1760, 1
        %vm1780 = vcmp.lt.s32.totalorder %v1760, 2
        %vm1781 = vcmp.lt.s32.totalorder %v1760, 3
        %vm1782 = vcmp.lt.s32.totalorder %v1760, 4
        %v1783 = vsel %vm1779, %v1763, %v1766
        %v1784 = vsel %vm1782, %v1772, 2102212464
        %v1785 = vsel %vm1781, %v1769, %v1784
        %v1786 = vsel %vm1780, %v1783, %v1785
        %v1787 = vsel %vm1779, %v1766, %v1769
        %v1788 = vsel %vm1782, %v1775, 920167782
        %v1789 = vsel %vm1781, %v1772, %v1788
        %v1790 = vsel %vm1780, %v1787, %v1789
        %v1791 = vsel %vm1779, %v1769, %v1772
        %v1792 = vsel %vm1782, %v1778, 1326507024
        %v1793 = vsel %vm1781, %v1775, %v1792
        %v1794 = vsel %vm1780, %v1791, %v1793
        %v1795 = vshll.u32 %v1755, 8
        %v1796 = vmul.u32.u64.compose %v1795, %v1794
        %v1797 = vextract.low.u32 %v1796
        %v1798 = vextract.high.u32 %v1796
        %v1799 = vmul.u32.u64.compose %v1795, %v1790
        %v1800 = vextract.low.u32 %v1799
        %v1801 = vextract.high.u32 %v1799
        %v1802 = vmul.u32 %v1795, %v1786
        %v1803 = vadd.s32 %v1798, %v1800
        %vm1804 = vc.u32 %v1798, %v1800
        %v1805 = vadd.s32 %v1801, 1
        %v1806 = vsel %vm1804, %v1805, %v1801
        %v1807 = vadd.s32 %v1802, %v1806
        %v1808 = vadd.s32 %v1807, 536870912
        %v1809 = vshrl.u32 %v1808, 30
        %v1810 = vshll.u32 %v1809, 30
        %v1811 = vsub.s32 %v1807, %v1810
        %vm1812 = vcmp.lt.s32.totalorder %v1811, 0
        %v1813 = vsub.s32 0, %v1811
        %v1814 = vsel %vm1812, %v1813, %v1811
        %v1815 = vclz %v1814
        %v1816 = vsub.s32 %v1815, 2
        %vm1817 = vcmp.gt.s32.totalorder 0, %v1816
        %v1818 = vsel %vm1817, 0, %v1816
        %v1819 = vsub.s32 32, %v1818
        %v1820 = vshll.u32 %v1811, %v1818
        %v1821 = vshrl.u32 %v1803, %v1819
        %v1822 = vor.u32 %v1820, %v1821
        %v1823 = vsub.s32 4294967266, %v1818
        %v1824 = vadd.s32 %v1823, 127
        %v1825 = vshll.u32 %v1824, 23
        %v1826 = vor.u32 4788187, %v1825
        %v1827 = vand.u32 2147483647, %v1826
        %v1829 = vcvt.s32.f32 %v1822
        %v1830 = vmul.f32 %v1829, %v1827
        %v1831 = vxor.u32 %v1830, 2147483648
        %v1832 = vsel %vm1749, %v1831, %v1830
        %v1833 = vsub.s32 4, %v1809
        %v1834 = vsel %vm1749, %v1833, %v1809
        %v1835 = vsel %vm1748, %v701, %v1832
        %v1836 = vsel %vm1748, 0, %v1834
        %v1837 = vcosq.f32.pop %v1835
        %v1838 = vsinq.f32.pop %v1835
        %vm1839 = vweird.f32 %v701
        %v1840 = vadd.s32 %v1836, 3
        %v1841 = vand.u32 %v1840, 3
        %vm1842 = vcmp.lt.s32.totalorder %v1841, 2
        %vm1843 = vcmp.eq.s32.totalorder %v1841, 0
        %v1844 = vxor.u32 %v1838, 2147483648
        %v1845 = vsel %vm1843, %v1837, %v1844
        %vm1846 = vcmp.eq.s32.totalorder %v1841, 2
        %v1847 = vxor.u32 %v1837, 2147483648
        %v1848 = vsel %vm1846, %v1847, %v1838
        %v1849 = vsel %vm1842, %v1845, %v1848
        %v1850 = vsel %vm1839, nan, %v1849
        %v1851 = vand.u32 2147483647, %v702
        %vm1852 = vcmp.le.f32.partialorder %v1851, 0.7853982
        %vm1853 = vcmp.lt.s32.totalorder %v702, 0
        %v1854 = vand.u32 %v702, 2139095040
        %v1855 = vshrl.u32 %v1854, 23
        %v1856 = vsub.s32 %v1855, 127
        %v1857 = vand.u32 2147483647, %v702
        %v1858 = vand.u32 %v1857, 8388607
        %v1859 = vor.u32 %v1858, 8388608
        %v1860 = vsub.s32 0, %v1859
        %v1861 = vadd.s32 %v1856, 1
        %vm1862 = vcmp.gt.s32.totalorder %v1861, 0
        %v1863 = vsel %vm1862, %v1861, 0
        %v1864 = vshrl.u32 %v1863, 5
        %v1865 = vand.u32 %v1863, 31
        %v1866 = vsub.s32 32, %v1865
        %v1867 = vshrl.u32 683565275, %v1866
        %v1868 = vshll.u32 683565275, %v1865
        %v1869 = vshrl.u32 2475754826, %v1866
        %v1870 = vor.u32 %v1868, %v1869
        %v1871 = vshll.u32 2475754826, %v1865
        %v1872 = vshrl.u32 2131351028, %v1866
        %v1873 = vor.u32 %v1871, %v1872
        %v1874 = vshll.u32 2131351028, %v1865
        %v1875 = vshrl.u32 2102212464, %v1866
        %v1876 = vor.u32 %v1874, %v1875
        %v1877 = vshll.u32 2102212464, %v1865
        %v1878 = vshrl.u32 920167782, %v1866
        %v1879 = vor.u32 %v1877, %v1878
        %v1880 = vshll.u32 920167782, %v1865
        %v1881 = vshrl.u32 1326507024, %v1866
        %v1882 = vor.u32 %v1880, %v1881
        %vm1883 = vcmp.lt.s32.totalorder %v1864, 1
        %vm1884 = vcmp.lt.s32.totalorder %v1864, 2
        %vm1885 = vcmp.lt.s32.totalorder %v1864, 3
        %vm1886 = vcmp.lt.s32.totalorder %v1864, 4
        %v1887 = vsel %vm1883, %v1867, %v1870
        %v1888 = vsel %vm1886, %v1876, 2102212464
        %v1889 = vsel %vm1885, %v1873, %v1888
        %v1890 = vsel %vm1884, %v1887, %v1889
        %v1891 = vsel %vm1883, %v1870, %v1873
        %v1892 = vsel %vm1886, %v1879, 920167782
        %v1893 = vsel %vm1885, %v1876, %v1892
        %v1894 = vsel %vm1884, %v1891, %v1893
        %v1895 = vsel %vm1883, %v1873, %v1876
        %v1896 = vsel %vm1886, %v1882, 1326507024
        %v1897 = vsel %vm1885, %v1879, %v1896
        %v1898 = vsel %vm1884, %v1895, %v1897
        %v1899 = vshll.u32 %v1859, 8
        %v1900 = vmul.u32.u64.compose %v1899, %v1898
        %v1901 = vextract.low.u32 %v1900
        %v1902 = vextract.high.u32 %v1900
        %v1903 = vmul.u32.u64.compose %v1899, %v1894
        %v1904 = vextract.low.u32 %v1903
        %v1905 = vextract.high.u32 %v1903
        %v1906 = vmul.u32 %v1899, %v1890
        %v1907 = vadd.s32 %v1902, %v1904
        %vm1908 = vc.u32 %v1902, %v1904
        %v1909 = vadd.s32 %v1905, 1
        %v1910 = vsel %vm1908, %v1909, %v1905
        %v1911 = vadd.s32 %v1906, %v1910
        %v1912 = vadd.s32 %v1911, 536870912
        %v1913 = vshrl.u32 %v1912, 30
        %v1914 = vshll.u32 %v1913, 30
        %v1915 = vsub.s32 %v1911, %v1914
        %vm1916 = vcmp.lt.s32.totalorder %v1915, 0
        %v1917 = vsub.s32 0, %v1915
        %v1918 = vsel %vm1916, %v1917, %v1915
        %v1919 = vclz %v1918
        %v1920 = vsub.s32 %v1919, 2
        %vm1921 = vcmp.gt.s32.totalorder 0, %v1920
        %v1922 = vsel %vm1921, 0, %v1920
        %v1923 = vsub.s32 32, %v1922
        %v1924 = vshll.u32 %v1915, %v1922
        %v1925 = vshrl.u32 %v1907, %v1923
        %v1926 = vor.u32 %v1924, %v1925
        %v1927 = vsub.s32 4294967266, %v1922
        %v1928 = vadd.s32 %v1927, 127
        %v1929 = vshll.u32 %v1928, 23
        %v1930 = vor.u32 4788187, %v1929
        %v1931 = vand.u32 2147483647, %v1930
        %v1933 = vcvt.s32.f32 %v1926
        %v1934 = vmul.f32 %v1933, %v1931
        %v1935 = vxor.u32 %v1934, 2147483648
        %v1936 = vsel %vm1853, %v1935, %v1934
        %v1937 = vsub.s32 4, %v1913
        %v1938 = vsel %vm1853, %v1937, %v1913
        %v1939 = vsel %vm1852, %v702, %v1936
        %v1940 = vsel %vm1852, 0, %v1938
        %v1941 = vcosq.f32.pop %v1939
        %v1942 = vsinq.f32.pop %v1939
        %vm1943 = vweird.f32 %v702
        %v1944 = vadd.s32 %v1940, 3
        %v1945 = vand.u32 %v1944, 3
        %vm1946 = vcmp.lt.s32.totalorder %v1945, 2
        %vm1947 = vcmp.eq.s32.totalorder %v1945, 0
        %v1948 = vxor.u32 %v1942, 2147483648
        %v1949 = vsel %vm1947, %v1941, %v1948
        %vm1950 = vcmp.eq.s32.totalorder %v1945, 2
        %v1951 = vxor.u32 %v1941, 2147483648
        %v1952 = vsel %vm1950, %v1951, %v1942
        %v1953 = vsel %vm1946, %v1949, %v1952
        %v1954 = vsel %vm1943, nan, %v1953
        %v1955 = vand.u32 2147483647, %v703
        %vm1956 = vcmp.le.f32.partialorder %v1955, 0.7853982
        %vm1957 = vcmp.lt.s32.totalorder %v703, 0
        %v1958 = vand.u32 %v703, 2139095040
        %v1959 = vshrl.u32 %v1958, 23
        %v1960 = vsub.s32 %v1959, 127
        %v1961 = vand.u32 2147483647, %v703
        %v1962 = vand.u32 %v1961, 8388607
        %v1963 = vor.u32 %v1962, 8388608
        %v1964 = vsub.s32 0, %v1963
        %v1965 = vadd.s32 %v1960, 1
        %vm1966 = vcmp.gt.s32.totalorder %v1965, 0
        %v1967 = vsel %vm1966, %v1965, 0
        %v1968 = vshrl.u32 %v1967, 5
        %v1969 = vand.u32 %v1967, 31
        %v1970 = vsub.s32 32, %v1969
        %v1971 = vshrl.u32 683565275, %v1970
        %v1972 = vshll.u32 683565275, %v1969
        %v1973 = vshrl.u32 2475754826, %v1970
        %v1974 = vor.u32 %v1972, %v1973
        %v1975 = vshll.u32 2475754826, %v1969
        %v1976 = vshrl.u32 2131351028, %v1970
        %v1977 = vor.u32 %v1975, %v1976
        %v1978 = vshll.u32 2131351028, %v1969
        %v1979 = vshrl.u32 2102212464, %v1970
        %v1980 = vor.u32 %v1978, %v1979
        %v1981 = vshll.u32 2102212464, %v1969
        %v1982 = vshrl.u32 920167782, %v1970
        %v1983 = vor.u32 %v1981, %v1982
        %v1984 = vshll.u32 920167782, %v1969
        %v1985 = vshrl.u32 1326507024, %v1970
        %v1986 = vor.u32 %v1984, %v1985
        %vm1987 = vcmp.lt.s32.totalorder %v1968, 1
        %vm1988 = vcmp.lt.s32.totalorder %v1968, 2
        %vm1989 = vcmp.lt.s32.totalorder %v1968, 3
        %vm1990 = vcmp.lt.s32.totalorder %v1968, 4
        %v1991 = vsel %vm1987, %v1971, %v1974
        %v1992 = vsel %vm1990, %v1980, 2102212464
        %v1993 = vsel %vm1989, %v1977, %v1992
        %v1994 = vsel %vm1988, %v1991, %v1993
        %v1995 = vsel %vm1987, %v1974, %v1977
        %v1996 = vsel %vm1990, %v1983, 920167782
        %v1997 = vsel %vm1989, %v1980, %v1996
        %v1998 = vsel %vm1988, %v1995, %v1997
        %v1999 = vsel %vm1987, %v1977, %v1980
        %v2000 = vsel %vm1990, %v1986, 1326507024
        %v2001 = vsel %vm1989, %v1983, %v2000
        %v2002 = vsel %vm1988, %v1999, %v2001
        %v2003 = vshll.u32 %v1963, 8
        %v2004 = vmul.u32.u64.compose %v2003, %v2002
        %v2005 = vextract.low.u32 %v2004
        %v2006 = vextract.high.u32 %v2004
        %v2007 = vmul.u32.u64.compose %v2003, %v1998
        %v2008 = vextract.low.u32 %v2007
        %v2009 = vextract.high.u32 %v2007
        %v2010 = vmul.u32 %v2003, %v1994
        %v2011 = vadd.s32 %v2006, %v2008
        %vm2012 = vc.u32 %v2006, %v2008
        %v2013 = vadd.s32 %v2009, 1
        %v2014 = vsel %vm2012, %v2013, %v2009
        %v2015 = vadd.s32 %v2010, %v2014
        %v2016 = vadd.s32 %v2015, 536870912
        %v2017 = vshrl.u32 %v2016, 30
        %v2018 = vshll.u32 %v2017, 30
        %v2019 = vsub.s32 %v2015, %v2018
        %vm2020 = vcmp.lt.s32.totalorder %v2019, 0
        %v2021 = vsub.s32 0, %v2019
        %v2022 = vsel %vm2020, %v2021, %v2019
        %v2023 = vclz %v2022
        %v2024 = vsub.s32 %v2023, 2
        %vm2025 = vcmp.gt.s32.totalorder 0, %v2024
        %v2026 = vsel %vm2025, 0, %v2024
        %v2027 = vsub.s32 32, %v2026
        %v2028 = vshll.u32 %v2019, %v2026
        %v2029 = vshrl.u32 %v2011, %v2027
        %v2030 = vor.u32 %v2028, %v2029
        %v2031 = vsub.s32 4294967266, %v2026
        %v2032 = vadd.s32 %v2031, 127
        %v2033 = vshll.u32 %v2032, 23
        %v2034 = vor.u32 4788187, %v2033
        %v2035 = vand.u32 2147483647, %v2034
        %v2037 = vcvt.s32.f32 %v2030
        %v2038 = vmul.f32 %v2037, %v2035
        %v2039 = vxor.u32 %v2038, 2147483648
        %v2040 = vsel %vm1957, %v2039, %v2038
        %v2041 = vsub.s32 4, %v2017
        %v2042 = vsel %vm1957, %v2041, %v2017
        %v2043 = vsel %vm1956, %v703, %v2040
        %v2044 = vsel %vm1956, 0, %v2042
        %v2045 = vcosq.f32.pop %v2043
        %v2046 = vsinq.f32.pop %v2043
        %vm2047 = vweird.f32 %v703
        %v2048 = vadd.s32 %v2044, 3
        %v2049 = vand.u32 %v2048, 3
        %vm2050 = vcmp.lt.s32.totalorder %v2049, 2
        %vm2051 = vcmp.eq.s32.totalorder %v2049, 0
        %v2052 = vxor.u32 %v2046, 2147483648
        %v2053 = vsel %vm2051, %v2045, %v2052
        %vm2054 = vcmp.eq.s32.totalorder %v2049, 2
        %v2055 = vxor.u32 %v2045, 2147483648
        %v2056 = vsel %vm2054, %v2055, %v2046
        %v2057 = vsel %vm2050, %v2053, %v2056
        %v2058 = vsel %vm2047, nan, %v2057
        %v2059 = vand.u32 2147483647, %v704
        %vm2060 = vcmp.le.f32.partialorder %v2059, 0.7853982
        %vm2061 = vcmp.lt.s32.totalorder %v704, 0
        %v2062 = vand.u32 %v704, 2139095040
        %v2063 = vshrl.u32 %v2062, 23
        %v2064 = vsub.s32 %v2063, 127
        %v2065 = vand.u32 2147483647, %v704
        %v2066 = vand.u32 %v2065, 8388607
        %v2067 = vor.u32 %v2066, 8388608
        %v2068 = vsub.s32 0, %v2067
        %v2069 = vadd.s32 %v2064, 1
        %vm2070 = vcmp.gt.s32.totalorder %v2069, 0
        %v2071 = vsel %vm2070, %v2069, 0
        %v2072 = vshrl.u32 %v2071, 5
        %v2073 = vand.u32 %v2071, 31
        %v2074 = vsub.s32 32, %v2073
        %v2075 = vshrl.u32 683565275, %v2074
        %v2076 = vshll.u32 683565275, %v2073
        %v2077 = vshrl.u32 2475754826, %v2074
        %v2078 = vor.u32 %v2076, %v2077
        %v2079 = vshll.u32 2475754826, %v2073
        %v2080 = vshrl.u32 2131351028, %v2074
        %v2081 = vor.u32 %v2079, %v2080
        %v2082 = vshll.u32 2131351028, %v2073
        %v2083 = vshrl.u32 2102212464, %v2074
        %v2084 = vor.u32 %v2082, %v2083
        %v2085 = vshll.u32 2102212464, %v2073
        %v2086 = vshrl.u32 920167782, %v2074
        %v2087 = vor.u32 %v2085, %v2086
        %v2088 = vshll.u32 920167782, %v2073
        %v2089 = vshrl.u32 1326507024, %v2074
        %v2090 = vor.u32 %v2088, %v2089
        %vm2091 = vcmp.lt.s32.totalorder %v2072, 1
        %vm2092 = vcmp.lt.s32.totalorder %v2072, 2
        %vm2093 = vcmp.lt.s32.totalorder %v2072, 3
        %vm2094 = vcmp.lt.s32.totalorder %v2072, 4
        %v2095 = vsel %vm2091, %v2075, %v2078
        %v2096 = vsel %vm2094, %v2084, 2102212464
        %v2097 = vsel %vm2093, %v2081, %v2096
        %v2098 = vsel %vm2092, %v2095, %v2097
        %v2099 = vsel %vm2091, %v2078, %v2081
        %v2100 = vsel %vm2094, %v2087, 920167782
        %v2101 = vsel %vm2093, %v2084, %v2100
        %v2102 = vsel %vm2092, %v2099, %v2101
        %v2103 = vsel %vm2091, %v2081, %v2084
        %v2104 = vsel %vm2094, %v2090, 1326507024
        %v2105 = vsel %vm2093, %v2087, %v2104
        %v2106 = vsel %vm2092, %v2103, %v2105
        %v2107 = vshll.u32 %v2067, 8
        %v2108 = vmul.u32.u64.compose %v2107, %v2106
        %v2109 = vextract.low.u32 %v2108
        %v2110 = vextract.high.u32 %v2108
        %v2111 = vmul.u32.u64.compose %v2107, %v2102
        %v2112 = vextract.low.u32 %v2111
        %v2113 = vextract.high.u32 %v2111
        %v2114 = vmul.u32 %v2107, %v2098
        %v2115 = vadd.s32 %v2110, %v2112
        %vm2116 = vc.u32 %v2110, %v2112
        %v2117 = vadd.s32 %v2113, 1
        %v2118 = vsel %vm2116, %v2117, %v2113
        %v2119 = vadd.s32 %v2114, %v2118
        %v2120 = vadd.s32 %v2119, 536870912
        %v2121 = vshrl.u32 %v2120, 30
        %v2122 = vshll.u32 %v2121, 30
        %v2123 = vsub.s32 %v2119, %v2122
        %vm2124 = vcmp.lt.s32.totalorder %v2123, 0
        %v2125 = vsub.s32 0, %v2123
        %v2126 = vsel %vm2124, %v2125, %v2123
        %v2127 = vclz %v2126
        %v2128 = vsub.s32 %v2127, 2
        %vm2129 = vcmp.gt.s32.totalorder 0, %v2128
        %v2130 = vsel %vm2129, 0, %v2128
        %v2131 = vsub.s32 32, %v2130
        %v2132 = vshll.u32 %v2123, %v2130
        %v2133 = vshrl.u32 %v2115, %v2131
        %v2134 = vor.u32 %v2132, %v2133
        %v2135 = vsub.s32 4294967266, %v2130
        %v2136 = vadd.s32 %v2135, 127
        %v2137 = vshll.u32 %v2136, 23
        %v2138 = vor.u32 4788187, %v2137
        %v2139 = vand.u32 2147483647, %v2138
        %v2141 = vcvt.s32.f32 %v2134
        %v2142 = vmul.f32 %v2141, %v2139
        %v2143 = vxor.u32 %v2142, 2147483648
        %v2144 = vsel %vm2061, %v2143, %v2142
        %v2145 = vsub.s32 4, %v2121
        %v2146 = vsel %vm2061, %v2145, %v2121
        %v2147 = vsel %vm2060, %v704, %v2144
        %v2148 = vsel %vm2060, 0, %v2146
        %v2149 = vcosq.f32.pop %v2147
        %v2150 = vsinq.f32.pop %v2147
        %vm2151 = vweird.f32 %v704
        %v2152 = vadd.s32 %v2148, 3
        %v2153 = vand.u32 %v2152, 3
        %vm2154 = vcmp.lt.s32.totalorder %v2153, 2
        %vm2155 = vcmp.eq.s32.totalorder %v2153, 0
        %v2156 = vxor.u32 %v2150, 2147483648
        %v2157 = vsel %vm2155, %v2149, %v2156
        %vm2158 = vcmp.eq.s32.totalorder %v2153, 2
        %v2159 = vxor.u32 %v2149, 2147483648
        %v2160 = vsel %vm2158, %v2159, %v2150
        %v2161 = vsel %vm2154, %v2157, %v2160
        %v2162 = vsel %vm2151, nan, %v2161
        %v2163 = vand.u32 2147483647, %v705
        %vm2164 = vcmp.le.f32.partialorder %v2163, 0.7853982
        %vm2165 = vcmp.lt.s32.totalorder %v705, 0
        %v2166 = vand.u32 %v705, 2139095040
        %v2167 = vshrl.u32 %v2166, 23
        %v2168 = vsub.s32 %v2167, 127
        %v2169 = vand.u32 2147483647, %v705
        %v2170 = vand.u32 %v2169, 8388607
        %v2171 = vor.u32 %v2170, 8388608
        %v2172 = vsub.s32 0, %v2171
        %v2173 = vadd.s32 %v2168, 1
        %vm2174 = vcmp.gt.s32.totalorder %v2173, 0
        %v2175 = vsel %vm2174, %v2173, 0
        %v2176 = vshrl.u32 %v2175, 5
        %v2177 = vand.u32 %v2175, 31
        %v2178 = vsub.s32 32, %v2177
        %v2179 = vshrl.u32 683565275, %v2178
        %v2180 = vshll.u32 683565275, %v2177
        %v2181 = vshrl.u32 2475754826, %v2178
        %v2182 = vor.u32 %v2180, %v2181
        %v2183 = vshll.u32 2475754826, %v2177
        %v2184 = vshrl.u32 2131351028, %v2178
        %v2185 = vor.u32 %v2183, %v2184
        %v2186 = vshll.u32 2131351028, %v2177
        %v2187 = vshrl.u32 2102212464, %v2178
        %v2188 = vor.u32 %v2186, %v2187
        %v2189 = vshll.u32 2102212464, %v2177
        %v2190 = vshrl.u32 920167782, %v2178
        %v2191 = vor.u32 %v2189, %v2190
        %v2192 = vshll.u32 920167782, %v2177
        %v2193 = vshrl.u32 1326507024, %v2178
        %v2194 = vor.u32 %v2192, %v2193
        %vm2195 = vcmp.lt.s32.totalorder %v2176, 1
        %vm2196 = vcmp.lt.s32.totalorder %v2176, 2
        %vm2197 = vcmp.lt.s32.totalorder %v2176, 3
        %vm2198 = vcmp.lt.s32.totalorder %v2176, 4
        %v2199 = vsel %vm2195, %v2179, %v2182
        %v2200 = vsel %vm2198, %v2188, 2102212464
        %v2201 = vsel %vm2197, %v2185, %v2200
        %v2202 = vsel %vm2196, %v2199, %v2201
        %v2203 = vsel %vm2195, %v2182, %v2185
        %v2204 = vsel %vm2198, %v2191, 920167782
        %v2205 = vsel %vm2197, %v2188, %v2204
        %v2206 = vsel %vm2196, %v2203, %v2205
        %v2207 = vsel %vm2195, %v2185, %v2188
        %v2208 = vsel %vm2198, %v2194, 1326507024
        %v2209 = vsel %vm2197, %v2191, %v2208
        %v2210 = vsel %vm2196, %v2207, %v2209
        %v2211 = vshll.u32 %v2171, 8
        %v2212 = vmul.u32.u64.compose %v2211, %v2210
        %v2213 = vextract.low.u32 %v2212
        %v2214 = vextract.high.u32 %v2212
        %v2215 = vmul.u32.u64.compose %v2211, %v2206
        %v2216 = vextract.low.u32 %v2215
        %v2217 = vextract.high.u32 %v2215
        %v2218 = vmul.u32 %v2211, %v2202
        %v2219 = vadd.s32 %v2214, %v2216
        %vm2220 = vc.u32 %v2214, %v2216
        %v2221 = vadd.s32 %v2217, 1
        %v2222 = vsel %vm2220, %v2221, %v2217
        %v2223 = vadd.s32 %v2218, %v2222
        %v2224 = vadd.s32 %v2223, 536870912
        %v2225 = vshrl.u32 %v2224, 30
        %v2226 = vshll.u32 %v2225, 30
        %v2227 = vsub.s32 %v2223, %v2226
        %vm2228 = vcmp.lt.s32.totalorder %v2227, 0
        %v2229 = vsub.s32 0, %v2227
        %v2230 = vsel %vm2228, %v2229, %v2227
        %v2231 = vclz %v2230
        %v2232 = vsub.s32 %v2231, 2
        %vm2233 = vcmp.gt.s32.totalorder 0, %v2232
        %v2234 = vsel %vm2233, 0, %v2232
        %v2235 = vsub.s32 32, %v2234
        %v2236 = vshll.u32 %v2227, %v2234
        %v2237 = vshrl.u32 %v2219, %v2235
        %v2238 = vor.u32 %v2236, %v2237
        %v2239 = vsub.s32 4294967266, %v2234
        %v2240 = vadd.s32 %v2239, 127
        %v2241 = vshll.u32 %v2240, 23
        %v2242 = vor.u32 4788187, %v2241
        %v2243 = vand.u32 2147483647, %v2242
        %v2245 = vcvt.s32.f32 %v2238
        %v2246 = vmul.f32 %v2245, %v2243
        %v2247 = vxor.u32 %v2246, 2147483648
        %v2248 = vsel %vm2165, %v2247, %v2246
        %v2249 = vsub.s32 4, %v2225
        %v2250 = vsel %vm2165, %v2249, %v2225
        %v2251 = vsel %vm2164, %v705, %v2248
        %v2252 = vsel %vm2164, 0, %v2250
        %v2253 = vcosq.f32.pop %v2251
        %v2254 = vsinq.f32.pop %v2251
        %vm2255 = vweird.f32 %v705
        %v2256 = vadd.s32 %v2252, 3
        %v2257 = vand.u32 %v2256, 3
        %vm2258 = vcmp.lt.s32.totalorder %v2257, 2
        %vm2259 = vcmp.eq.s32.totalorder %v2257, 0
        %v2260 = vxor.u32 %v2254, 2147483648
        %v2261 = vsel %vm2259, %v2253, %v2260
        %vm2262 = vcmp.eq.s32.totalorder %v2257, 2
        %v2263 = vxor.u32 %v2253, 2147483648
        %v2264 = vsel %vm2262, %v2263, %v2254
        %v2265 = vsel %vm2258, %v2261, %v2264
        %v2266 = vsel %vm2255, nan, %v2265
        %v2267 = vand.u32 2147483647, %v706
        %vm2268 = vcmp.le.f32.partialorder %v2267, 0.7853982
        %vm2269 = vcmp.lt.s32.totalorder %v706, 0
        %v2270 = vand.u32 %v706, 2139095040
        %v2271 = vshrl.u32 %v2270, 23
        %v2272 = vsub.s32 %v2271, 127
        %v2273 = vand.u32 2147483647, %v706
        %v2274 = vand.u32 %v2273, 8388607
        %v2275 = vor.u32 %v2274, 8388608
        %v2276 = vsub.s32 0, %v2275
        %v2277 = vadd.s32 %v2272, 1
        %vm2278 = vcmp.gt.s32.totalorder %v2277, 0
        %v2279 = vsel %vm2278, %v2277, 0
        %v2280 = vshrl.u32 %v2279, 5
        %v2281 = vand.u32 %v2279, 31
        %v2282 = vsub.s32 32, %v2281
        %v2283 = vshrl.u32 683565275, %v2282
        %v2284 = vshll.u32 683565275, %v2281
        %v2285 = vshrl.u32 2475754826, %v2282
        %v2286 = vor.u32 %v2284, %v2285
        %v2287 = vshll.u32 2475754826, %v2281
        %v2288 = vshrl.u32 2131351028, %v2282
        %v2289 = vor.u32 %v2287, %v2288
        %v2290 = vshll.u32 2131351028, %v2281
        %v2291 = vshrl.u32 2102212464, %v2282
        %v2292 = vor.u32 %v2290, %v2291
        %v2293 = vshll.u32 2102212464, %v2281
        %v2294 = vshrl.u32 920167782, %v2282
        %v2295 = vor.u32 %v2293, %v2294
        %v2296 = vshll.u32 920167782, %v2281
        %v2297 = vshrl.u32 1326507024, %v2282
        %v2298 = vor.u32 %v2296, %v2297
        %vm2299 = vcmp.lt.s32.totalorder %v2280, 1
        %vm2300 = vcmp.lt.s32.totalorder %v2280, 2
        %vm2301 = vcmp.lt.s32.totalorder %v2280, 3
        %vm2302 = vcmp.lt.s32.totalorder %v2280, 4
        %v2303 = vsel %vm2299, %v2283, %v2286
        %v2304 = vsel %vm2302, %v2292, 2102212464
        %v2305 = vsel %vm2301, %v2289, %v2304
        %v2306 = vsel %vm2300, %v2303, %v2305
        %v2307 = vsel %vm2299, %v2286, %v2289
        %v2308 = vsel %vm2302, %v2295, 920167782
        %v2309 = vsel %vm2301, %v2292, %v2308
        %v2310 = vsel %vm2300, %v2307, %v2309
        %v2311 = vsel %vm2299, %v2289, %v2292
        %v2312 = vsel %vm2302, %v2298, 1326507024
        %v2313 = vsel %vm2301, %v2295, %v2312
        %v2314 = vsel %vm2300, %v2311, %v2313
        %v2315 = vshll.u32 %v2275, 8
        %v2316 = vmul.u32.u64.compose %v2315, %v2314
        %v2317 = vextract.low.u32 %v2316
        %v2318 = vextract.high.u32 %v2316
        %v2319 = vmul.u32.u64.compose %v2315, %v2310
        %v2320 = vextract.low.u32 %v2319
        %v2321 = vextract.high.u32 %v2319
        %v2322 = vmul.u32 %v2315, %v2306
        %v2323 = vadd.s32 %v2318, %v2320
        %vm2324 = vc.u32 %v2318, %v2320
        %v2325 = vadd.s32 %v2321, 1
        %v2326 = vsel %vm2324, %v2325, %v2321
        %v2327 = vadd.s32 %v2322, %v2326
        %v2328 = vadd.s32 %v2327, 536870912
        %v2329 = vshrl.u32 %v2328, 30
        %v2330 = vshll.u32 %v2329, 30
        %v2331 = vsub.s32 %v2327, %v2330
        %vm2332 = vcmp.lt.s32.totalorder %v2331, 0
        %v2333 = vsub.s32 0, %v2331
        %v2334 = vsel %vm2332, %v2333, %v2331
        %v2335 = vclz %v2334
        %v2336 = vsub.s32 %v2335, 2
        %vm2337 = vcmp.gt.s32.totalorder 0, %v2336
        %v2338 = vsel %vm2337, 0, %v2336
        %v2339 = vsub.s32 32, %v2338
        %v2340 = vshll.u32 %v2331, %v2338
        %v2341 = vshrl.u32 %v2323, %v2339
        %v2342 = vor.u32 %v2340, %v2341
        %v2343 = vsub.s32 4294967266, %v2338
        %v2344 = vadd.s32 %v2343, 127
        %v2345 = vshll.u32 %v2344, 23
        %v2346 = vor.u32 4788187, %v2345
        %v2347 = vand.u32 2147483647, %v2346
        %v2349 = vcvt.s32.f32 %v2342
        %v2350 = vmul.f32 %v2349, %v2347
        %v2351 = vxor.u32 %v2350, 2147483648
        %v2352 = vsel %vm2269, %v2351, %v2350
        %v2353 = vsub.s32 4, %v2329
        %v2354 = vsel %vm2269, %v2353, %v2329
        %v2355 = vsel %vm2268, %v706, %v2352
        %v2356 = vsel %vm2268, 0, %v2354
        %v2357 = vcosq.f32.pop %v2355
        %v2358 = vsinq.f32.pop %v2355
        %vm2359 = vweird.f32 %v706
        %v2360 = vadd.s32 %v2356, 3
        %v2361 = vand.u32 %v2360, 3
        %vm2362 = vcmp.lt.s32.totalorder %v2361, 2
        %vm2363 = vcmp.eq.s32.totalorder %v2361, 0
        %v2364 = vxor.u32 %v2358, 2147483648
        %v2365 = vsel %vm2363, %v2357, %v2364
        %vm2366 = vcmp.eq.s32.totalorder %v2361, 2
        %v2367 = vxor.u32 %v2357, 2147483648
        %v2368 = vsel %vm2366, %v2367, %v2358
        %v2369 = vsel %vm2362, %v2365, %v2368
        %v2370 = vsel %vm2359, nan, %v2369
        %v2371 = vand.u32 2147483647, %v691
        %vm2372 = vcmp.le.f32.partialorder %v2371, 0.7853982
        %vm2373 = vcmp.lt.s32.totalorder %v691, 0
        %v2374 = vand.u32 %v691, 2139095040
        %v2375 = vshrl.u32 %v2374, 23
        %v2376 = vsub.s32 %v2375, 127
        %v2377 = vand.u32 2147483647, %v691
        %v2378 = vand.u32 %v2377, 8388607
        %v2379 = vor.u32 %v2378, 8388608
        %v2380 = vsub.s32 0, %v2379
        %v2381 = vadd.s32 %v2376, 1
        %vm2382 = vcmp.gt.s32.totalorder %v2381, 0
        %v2383 = vsel %vm2382, %v2381, 0
        %v2384 = vshrl.u32 %v2383, 5
        %v2385 = vand.u32 %v2383, 31
        %v2386 = vsub.s32 32, %v2385
        %v2387 = vshrl.u32 683565275, %v2386
        %v2388 = vshll.u32 683565275, %v2385
        %v2389 = vshrl.u32 2475754826, %v2386
        %v2390 = vor.u32 %v2388, %v2389
        %v2391 = vshll.u32 2475754826, %v2385
        %v2392 = vshrl.u32 2131351028, %v2386
        %v2393 = vor.u32 %v2391, %v2392
        %v2394 = vshll.u32 2131351028, %v2385
        %v2395 = vshrl.u32 2102212464, %v2386
        %v2396 = vor.u32 %v2394, %v2395
        %v2397 = vshll.u32 2102212464, %v2385
        %v2398 = vshrl.u32 920167782, %v2386
        %v2399 = vor.u32 %v2397, %v2398
        %v2400 = vshll.u32 920167782, %v2385
        %v2401 = vshrl.u32 1326507024, %v2386
        %v2402 = vor.u32 %v2400, %v2401
        %vm2403 = vcmp.lt.s32.totalorder %v2384, 1
        %vm2404 = vcmp.lt.s32.totalorder %v2384, 2
        %vm2405 = vcmp.lt.s32.totalorder %v2384, 3
        %vm2406 = vcmp.lt.s32.totalorder %v2384, 4
        %v2407 = vsel %vm2403, %v2387, %v2390
        %v2408 = vsel %vm2406, %v2396, 2102212464
        %v2409 = vsel %vm2405, %v2393, %v2408
        %v2410 = vsel %vm2404, %v2407, %v2409
        %v2411 = vsel %vm2403, %v2390, %v2393
        %v2412 = vsel %vm2406, %v2399, 920167782
        %v2413 = vsel %vm2405, %v2396, %v2412
        %v2414 = vsel %vm2404, %v2411, %v2413
        %v2415 = vsel %vm2403, %v2393, %v2396
        %v2416 = vsel %vm2406, %v2402, 1326507024
        %v2417 = vsel %vm2405, %v2399, %v2416
        %v2418 = vsel %vm2404, %v2415, %v2417
        %v2419 = vshll.u32 %v2379, 8
        %v2420 = vmul.u32.u64.compose %v2419, %v2418
        %v2421 = vextract.low.u32 %v2420
        %v2422 = vextract.high.u32 %v2420
        %v2423 = vmul.u32.u64.compose %v2419, %v2414
        %v2424 = vextract.low.u32 %v2423
        %v2425 = vextract.high.u32 %v2423
        %v2426 = vmul.u32 %v2419, %v2410
        %v2427 = vadd.s32 %v2422, %v2424
        %vm2428 = vc.u32 %v2422, %v2424
        %v2429 = vadd.s32 %v2425, 1
        %v2430 = vsel %vm2428, %v2429, %v2425
        %v2431 = vadd.s32 %v2426, %v2430
        %v2432 = vadd.s32 %v2431, 536870912
        %v2433 = vshrl.u32 %v2432, 30
        %v2434 = vshll.u32 %v2433, 30
        %v2435 = vsub.s32 %v2431, %v2434
        %vm2436 = vcmp.lt.s32.totalorder %v2435, 0
        %v2437 = vsub.s32 0, %v2435
        %v2438 = vsel %vm2436, %v2437, %v2435
        %v2439 = vclz %v2438
        %v2440 = vsub.s32 %v2439, 2
        %vm2441 = vcmp.gt.s32.totalorder 0, %v2440
        %v2442 = vsel %vm2441, 0, %v2440
        %v2443 = vsub.s32 32, %v2442
        %v2444 = vshll.u32 %v2435, %v2442
        %v2445 = vshrl.u32 %v2427, %v2443
        %v2446 = vor.u32 %v2444, %v2445
        %v2447 = vsub.s32 4294967266, %v2442
        %v2448 = vadd.s32 %v2447, 127
        %v2449 = vshll.u32 %v2448, 23
        %v2450 = vor.u32 4788187, %v2449
        %v2451 = vand.u32 2147483647, %v2450
        %v2453 = vcvt.s32.f32 %v2446
        %v2454 = vmul.f32 %v2453, %v2451
        %v2455 = vxor.u32 %v2454, 2147483648
        %v2456 = vsel %vm2373, %v2455, %v2454
        %v2457 = vsub.s32 4, %v2433
        %v2458 = vsel %vm2373, %v2457, %v2433
        %v2459 = vsel %vm2372, %v691, %v2456
        %v2460 = vsel %vm2372, 0, %v2458
        %v2461 = vcosq.f32.pop %v2459
        %v2462 = vsinq.f32.pop %v2459
        %vm2463 = vweird.f32 %v691
        %v2464 = vand.u32 %v2460, 3
        %vm2465 = vcmp.lt.s32.totalorder %v2464, 2
        %vm2466 = vcmp.eq.s32.totalorder %v2464, 0
        %v2467 = vxor.u32 %v2462, 2147483648
        %v2468 = vsel %vm2466, %v2461, %v2467
        %vm2469 = vcmp.eq.s32.totalorder %v2464, 2
        %v2470 = vxor.u32 %v2461, 2147483648
        %v2471 = vsel %vm2469, %v2470, %v2462
        %v2472 = vsel %vm2465, %v2468, %v2471
        %v2473 = vsel %vm2463, nan, %v2472
        %v2474 = vand.u32 2147483647, %v692
        %vm2475 = vcmp.le.f32.partialorder %v2474, 0.7853982
        %vm2476 = vcmp.lt.s32.totalorder %v692, 0
        %v2477 = vand.u32 %v692, 2139095040
        %v2478 = vshrl.u32 %v2477, 23
        %v2479 = vsub.s32 %v2478, 127
        %v2480 = vand.u32 2147483647, %v692
        %v2481 = vand.u32 %v2480, 8388607
        %v2482 = vor.u32 %v2481, 8388608
        %v2483 = vsub.s32 0, %v2482
        %v2484 = vadd.s32 %v2479, 1
        %vm2485 = vcmp.gt.s32.totalorder %v2484, 0
        %v2486 = vsel %vm2485, %v2484, 0
        %v2487 = vshrl.u32 %v2486, 5
        %v2488 = vand.u32 %v2486, 31
        %v2489 = vsub.s32 32, %v2488
        %v2490 = vshrl.u32 683565275, %v2489
        %v2491 = vshll.u32 683565275, %v2488
        %v2492 = vshrl.u32 2475754826, %v2489
        %v2493 = vor.u32 %v2491, %v2492
        %v2494 = vshll.u32 2475754826, %v2488
        %v2495 = vshrl.u32 2131351028, %v2489
        %v2496 = vor.u32 %v2494, %v2495
        %v2497 = vshll.u32 2131351028, %v2488
        %v2498 = vshrl.u32 2102212464, %v2489
        %v2499 = vor.u32 %v2497, %v2498
        %v2500 = vshll.u32 2102212464, %v2488
        %v2501 = vshrl.u32 920167782, %v2489
        %v2502 = vor.u32 %v2500, %v2501
        %v2503 = vshll.u32 920167782, %v2488
        %v2504 = vshrl.u32 1326507024, %v2489
        %v2505 = vor.u32 %v2503, %v2504
        %vm2506 = vcmp.lt.s32.totalorder %v2487, 1
        %vm2507 = vcmp.lt.s32.totalorder %v2487, 2
        %vm2508 = vcmp.lt.s32.totalorder %v2487, 3
        %vm2509 = vcmp.lt.s32.totalorder %v2487, 4
        %v2510 = vsel %vm2506, %v2490, %v2493
        %v2511 = vsel %vm2509, %v2499, 2102212464
        %v2512 = vsel %vm2508, %v2496, %v2511
        %v2513 = vsel %vm2507, %v2510, %v2512
        %v2514 = vsel %vm2506, %v2493, %v2496
        %v2515 = vsel %vm2509, %v2502, 920167782
        %v2516 = vsel %vm2508, %v2499, %v2515
        %v2517 = vsel %vm2507, %v2514, %v2516
        %v2518 = vsel %vm2506, %v2496, %v2499
        %v2519 = vsel %vm2509, %v2505, 1326507024
        %v2520 = vsel %vm2508, %v2502, %v2519
        %v2521 = vsel %vm2507, %v2518, %v2520
        %v2522 = vshll.u32 %v2482, 8
        %v2523 = vmul.u32.u64.compose %v2522, %v2521
        %v2524 = vextract.low.u32 %v2523
        %v2525 = vextract.high.u32 %v2523
        %v2526 = vmul.u32.u64.compose %v2522, %v2517
        %v2527 = vextract.low.u32 %v2526
        %v2528 = vextract.high.u32 %v2526
        %v2529 = vmul.u32 %v2522, %v2513
        %v2530 = vadd.s32 %v2525, %v2527
        %vm2531 = vc.u32 %v2525, %v2527
        %v2532 = vadd.s32 %v2528, 1
        %v2533 = vsel %vm2531, %v2532, %v2528
        %v2534 = vadd.s32 %v2529, %v2533
        %v2535 = vadd.s32 %v2534, 536870912
        %v2536 = vshrl.u32 %v2535, 30
        %v2537 = vshll.u32 %v2536, 30
        %v2538 = vsub.s32 %v2534, %v2537
        %vm2539 = vcmp.lt.s32.totalorder %v2538, 0
        %v2540 = vsub.s32 0, %v2538
        %v2541 = vsel %vm2539, %v2540, %v2538
        %v2542 = vclz %v2541
        %v2543 = vsub.s32 %v2542, 2
        %vm2544 = vcmp.gt.s32.totalorder 0, %v2543
        %v2545 = vsel %vm2544, 0, %v2543
        %v2546 = vsub.s32 32, %v2545
        %v2547 = vshll.u32 %v2538, %v2545
        %v2548 = vshrl.u32 %v2530, %v2546
        %v2549 = vor.u32 %v2547, %v2548
        %v2550 = vsub.s32 4294967266, %v2545
        %v2551 = vadd.s32 %v2550, 127
        %v2552 = vshll.u32 %v2551, 23
        %v2553 = vor.u32 4788187, %v2552
        %v2554 = vand.u32 2147483647, %v2553
        %v2556 = vcvt.s32.f32 %v2549
        %v2557 = vmul.f32 %v2556, %v2554
        %v2558 = vxor.u32 %v2557, 2147483648
        %v2559 = vsel %vm2476, %v2558, %v2557
        %v2560 = vsub.s32 4, %v2536
        %v2561 = vsel %vm2476, %v2560, %v2536
        %v2562 = vsel %vm2475, %v692, %v2559
        %v2563 = vsel %vm2475, 0, %v2561
        %v2564 = vcosq.f32.pop %v2562
        %v2565 = vsinq.f32.pop %v2562
        %vm2566 = vweird.f32 %v692
        %v2567 = vand.u32 %v2563, 3
        %vm2568 = vcmp.lt.s32.totalorder %v2567, 2
        %vm2569 = vcmp.eq.s32.totalorder %v2567, 0
        %v2570 = vxor.u32 %v2565, 2147483648
        %v2571 = vsel %vm2569, %v2564, %v2570
        %vm2572 = vcmp.eq.s32.totalorder %v2567, 2
        %v2573 = vxor.u32 %v2564, 2147483648
        %v2574 = vsel %vm2572, %v2573, %v2565
        %v2575 = vsel %vm2568, %v2571, %v2574
        %v2576 = vsel %vm2566, nan, %v2575
        %v2577 = vand.u32 2147483647, %v693
        %vm2578 = vcmp.le.f32.partialorder %v2577, 0.7853982
        %vm2579 = vcmp.lt.s32.totalorder %v693, 0
        %v2580 = vand.u32 %v693, 2139095040
        %v2581 = vshrl.u32 %v2580, 23
        %v2582 = vsub.s32 %v2581, 127
        %v2583 = vand.u32 2147483647, %v693
        %v2584 = vand.u32 %v2583, 8388607
        %v2585 = vor.u32 %v2584, 8388608
        %v2586 = vsub.s32 0, %v2585
        %v2587 = vadd.s32 %v2582, 1
        %vm2588 = vcmp.gt.s32.totalorder %v2587, 0
        %v2589 = vsel %vm2588, %v2587, 0
        %v2590 = vshrl.u32 %v2589, 5
        %v2591 = vand.u32 %v2589, 31
        %v2592 = vsub.s32 32, %v2591
        %v2593 = vshrl.u32 683565275, %v2592
        %v2594 = vshll.u32 683565275, %v2591
        %v2595 = vshrl.u32 2475754826, %v2592
        %v2596 = vor.u32 %v2594, %v2595
        %v2597 = vshll.u32 2475754826, %v2591
        %v2598 = vshrl.u32 2131351028, %v2592
        %v2599 = vor.u32 %v2597, %v2598
        %v2600 = vshll.u32 2131351028, %v2591
        %v2601 = vshrl.u32 2102212464, %v2592
        %v2602 = vor.u32 %v2600, %v2601
        %v2603 = vshll.u32 2102212464, %v2591
        %v2604 = vshrl.u32 920167782, %v2592
        %v2605 = vor.u32 %v2603, %v2604
        %v2606 = vshll.u32 920167782, %v2591
        %v2607 = vshrl.u32 1326507024, %v2592
        %v2608 = vor.u32 %v2606, %v2607
        %vm2609 = vcmp.lt.s32.totalorder %v2590, 1
        %vm2610 = vcmp.lt.s32.totalorder %v2590, 2
        %vm2611 = vcmp.lt.s32.totalorder %v2590, 3
        %vm2612 = vcmp.lt.s32.totalorder %v2590, 4
        %v2613 = vsel %vm2609, %v2593, %v2596
        %v2614 = vsel %vm2612, %v2602, 2102212464
        %v2615 = vsel %vm2611, %v2599, %v2614
        %v2616 = vsel %vm2610, %v2613, %v2615
        %v2617 = vsel %vm2609, %v2596, %v2599
        %v2618 = vsel %vm2612, %v2605, 920167782
        %v2619 = vsel %vm2611, %v2602, %v2618
        %v2620 = vsel %vm2610, %v2617, %v2619
        %v2621 = vsel %vm2609, %v2599, %v2602
        %v2622 = vsel %vm2612, %v2608, 1326507024
        %v2623 = vsel %vm2611, %v2605, %v2622
        %v2624 = vsel %vm2610, %v2621, %v2623
        %v2625 = vshll.u32 %v2585, 8
        %v2626 = vmul.u32.u64.compose %v2625, %v2624
        %v2627 = vextract.low.u32 %v2626
        %v2628 = vextract.high.u32 %v2626
        %v2629 = vmul.u32.u64.compose %v2625, %v2620
        %v2630 = vextract.low.u32 %v2629
        %v2631 = vextract.high.u32 %v2629
        %v2632 = vmul.u32 %v2625, %v2616
        %v2633 = vadd.s32 %v2628, %v2630
        %vm2634 = vc.u32 %v2628, %v2630
        %v2635 = vadd.s32 %v2631, 1
        %v2636 = vsel %vm2634, %v2635, %v2631
        %v2637 = vadd.s32 %v2632, %v2636
        %v2638 = vadd.s32 %v2637, 536870912
        %v2639 = vshrl.u32 %v2638, 30
        %v2640 = vshll.u32 %v2639, 30
        %v2641 = vsub.s32 %v2637, %v2640
        %vm2642 = vcmp.lt.s32.totalorder %v2641, 0
        %v2643 = vsub.s32 0, %v2641
        %v2644 = vsel %vm2642, %v2643, %v2641
        %v2645 = vclz %v2644
        %v2646 = vsub.s32 %v2645, 2
        %vm2647 = vcmp.gt.s32.totalorder 0, %v2646
        %v2648 = vsel %vm2647, 0, %v2646
        %v2649 = vsub.s32 32, %v2648
        %v2650 = vshll.u32 %v2641, %v2648
        %v2651 = vshrl.u32 %v2633, %v2649
        %v2652 = vor.u32 %v2650, %v2651
        %v2653 = vsub.s32 4294967266, %v2648
        %v2654 = vadd.s32 %v2653, 127
        %v2655 = vshll.u32 %v2654, 23
        %v2656 = vor.u32 4788187, %v2655
        %v2657 = vand.u32 2147483647, %v2656
        %v2659 = vcvt.s32.f32 %v2652
        %v2660 = vmul.f32 %v2659, %v2657
        %v2661 = vxor.u32 %v2660, 2147483648
        %v2662 = vsel %vm2579, %v2661, %v2660
        %v2663 = vsub.s32 4, %v2639
        %v2664 = vsel %vm2579, %v2663, %v2639
        %v2665 = vsel %vm2578, %v693, %v2662
        %v2666 = vsel %vm2578, 0, %v2664
        %v2667 = vcosq.f32.pop %v2665
        %v2668 = vsinq.f32.pop %v2665
        %vm2669 = vweird.f32 %v693
        %v2670 = vand.u32 %v2666, 3
        %vm2671 = vcmp.lt.s32.totalorder %v2670, 2
        %vm2672 = vcmp.eq.s32.totalorder %v2670, 0
        %v2673 = vxor.u32 %v2668, 2147483648
        %v2674 = vsel %vm2672, %v2667, %v2673
        %vm2675 = vcmp.eq.s32.totalorder %v2670, 2
        %v2676 = vxor.u32 %v2667, 2147483648
        %v2677 = vsel %vm2675, %v2676, %v2668
        %v2678 = vsel %vm2671, %v2674, %v2677
        %v2679 = vsel %vm2669, nan, %v2678
        %v2680 = vand.u32 2147483647, %v694
        %vm2681 = vcmp.le.f32.partialorder %v2680, 0.7853982
        %vm2682 = vcmp.lt.s32.totalorder %v694, 0
        %v2683 = vand.u32 %v694, 2139095040
        %v2684 = vshrl.u32 %v2683, 23
        %v2685 = vsub.s32 %v2684, 127
        %v2686 = vand.u32 2147483647, %v694
        %v2687 = vand.u32 %v2686, 8388607
        %v2688 = vor.u32 %v2687, 8388608
        %v2689 = vsub.s32 0, %v2688
        %v2690 = vadd.s32 %v2685, 1
        %vm2691 = vcmp.gt.s32.totalorder %v2690, 0
        %v2692 = vsel %vm2691, %v2690, 0
        %v2693 = vshrl.u32 %v2692, 5
        %v2694 = vand.u32 %v2692, 31
        %v2695 = vsub.s32 32, %v2694
        %v2696 = vshrl.u32 683565275, %v2695
        %v2697 = vshll.u32 683565275, %v2694
        %v2698 = vshrl.u32 2475754826, %v2695
        %v2699 = vor.u32 %v2697, %v2698
        %v2700 = vshll.u32 2475754826, %v2694
        %v2701 = vshrl.u32 2131351028, %v2695
        %v2702 = vor.u32 %v2700, %v2701
        %v2703 = vshll.u32 2131351028, %v2694
        %v2704 = vshrl.u32 2102212464, %v2695
        %v2705 = vor.u32 %v2703, %v2704
        %v2706 = vshll.u32 2102212464, %v2694
        %v2707 = vshrl.u32 920167782, %v2695
        %v2708 = vor.u32 %v2706, %v2707
        %v2709 = vshll.u32 920167782, %v2694
        %v2710 = vshrl.u32 1326507024, %v2695
        %v2711 = vor.u32 %v2709, %v2710
        %vm2712 = vcmp.lt.s32.totalorder %v2693, 1
        %vm2713 = vcmp.lt.s32.totalorder %v2693, 2
        %vm2714 = vcmp.lt.s32.totalorder %v2693, 3
        %vm2715 = vcmp.lt.s32.totalorder %v2693, 4
        %v2716 = vsel %vm2712, %v2696, %v2699
        %v2717 = vsel %vm2715, %v2705, 2102212464
        %v2718 = vsel %vm2714, %v2702, %v2717
        %v2719 = vsel %vm2713, %v2716, %v2718
        %v2720 = vsel %vm2712, %v2699, %v2702
        %v2721 = vsel %vm2715, %v2708, 920167782
        %v2722 = vsel %vm2714, %v2705, %v2721
        %v2723 = vsel %vm2713, %v2720, %v2722
        %v2724 = vsel %vm2712, %v2702, %v2705
        %v2725 = vsel %vm2715, %v2711, 1326507024
        %v2726 = vsel %vm2714, %v2708, %v2725
        %v2727 = vsel %vm2713, %v2724, %v2726
        %v2728 = vshll.u32 %v2688, 8
        %v2729 = vmul.u32.u64.compose %v2728, %v2727
        %v2730 = vextract.low.u32 %v2729
        %v2731 = vextract.high.u32 %v2729
        %v2732 = vmul.u32.u64.compose %v2728, %v2723
        %v2733 = vextract.low.u32 %v2732
        %v2734 = vextract.high.u32 %v2732
        %v2735 = vmul.u32 %v2728, %v2719
        %v2736 = vadd.s32 %v2731, %v2733
        %vm2737 = vc.u32 %v2731, %v2733
        %v2738 = vadd.s32 %v2734, 1
        %v2739 = vsel %vm2737, %v2738, %v2734
        %v2740 = vadd.s32 %v2735, %v2739
        %v2741 = vadd.s32 %v2740, 536870912
        %v2742 = vshrl.u32 %v2741, 30
        %v2743 = vshll.u32 %v2742, 30
        %v2744 = vsub.s32 %v2740, %v2743
        %vm2745 = vcmp.lt.s32.totalorder %v2744, 0
        %v2746 = vsub.s32 0, %v2744
        %v2747 = vsel %vm2745, %v2746, %v2744
        %v2748 = vclz %v2747
        %v2749 = vsub.s32 %v2748, 2
        %vm2750 = vcmp.gt.s32.totalorder 0, %v2749
        %v2751 = vsel %vm2750, 0, %v2749
        %v2752 = vsub.s32 32, %v2751
        %v2753 = vshll.u32 %v2744, %v2751
        %v2754 = vshrl.u32 %v2736, %v2752
        %v2755 = vor.u32 %v2753, %v2754
        %v2756 = vsub.s32 4294967266, %v2751
        %v2757 = vadd.s32 %v2756, 127
        %v2758 = vshll.u32 %v2757, 23
        %v2759 = vor.u32 4788187, %v2758
        %v2760 = vand.u32 2147483647, %v2759
        %v2762 = vcvt.s32.f32 %v2755
        %v2763 = vmul.f32 %v2762, %v2760
        %v2764 = vxor.u32 %v2763, 2147483648
        %v2765 = vsel %vm2682, %v2764, %v2763
        %v2766 = vsub.s32 4, %v2742
        %v2767 = vsel %vm2682, %v2766, %v2742
        %v2768 = vsel %vm2681, %v694, %v2765
        %v2769 = vsel %vm2681, 0, %v2767
        %v2770 = vcosq.f32.pop %v2768
        %v2771 = vsinq.f32.pop %v2768
        %vm2772 = vweird.f32 %v694
        %v2773 = vand.u32 %v2769, 3
        %vm2774 = vcmp.lt.s32.totalorder %v2773, 2
        %vm2775 = vcmp.eq.s32.totalorder %v2773, 0
        %v2776 = vxor.u32 %v2771, 2147483648
        %v2777 = vsel %vm2775, %v2770, %v2776
        %vm2778 = vcmp.eq.s32.totalorder %v2773, 2
        %v2779 = vxor.u32 %v2770, 2147483648
        %v2780 = vsel %vm2778, %v2779, %v2771
        %v2781 = vsel %vm2774, %v2777, %v2780
        %v2782 = vsel %vm2772, nan, %v2781
        %v2783 = vand.u32 2147483647, %v695
        %vm2784 = vcmp.le.f32.partialorder %v2783, 0.7853982
        %vm2785 = vcmp.lt.s32.totalorder %v695, 0
        %v2786 = vand.u32 %v695, 2139095040
        %v2787 = vshrl.u32 %v2786, 23
        %v2788 = vsub.s32 %v2787, 127
        %v2789 = vand.u32 2147483647, %v695
        %v2790 = vand.u32 %v2789, 8388607
        %v2791 = vor.u32 %v2790, 8388608
        %v2792 = vsub.s32 0, %v2791
        %v2793 = vadd.s32 %v2788, 1
        %vm2794 = vcmp.gt.s32.totalorder %v2793, 0
        %v2795 = vsel %vm2794, %v2793, 0
        %v2796 = vshrl.u32 %v2795, 5
        %v2797 = vand.u32 %v2795, 31
        %v2798 = vsub.s32 32, %v2797
        %v2799 = vshrl.u32 683565275, %v2798
        %v2800 = vshll.u32 683565275, %v2797
        %v2801 = vshrl.u32 2475754826, %v2798
        %v2802 = vor.u32 %v2800, %v2801
        %v2803 = vshll.u32 2475754826, %v2797
        %v2804 = vshrl.u32 2131351028, %v2798
        %v2805 = vor.u32 %v2803, %v2804
        %v2806 = vshll.u32 2131351028, %v2797
        %v2807 = vshrl.u32 2102212464, %v2798
        %v2808 = vor.u32 %v2806, %v2807
        %v2809 = vshll.u32 2102212464, %v2797
        %v2810 = vshrl.u32 920167782, %v2798
        %v2811 = vor.u32 %v2809, %v2810
        %v2812 = vshll.u32 920167782, %v2797
        %v2813 = vshrl.u32 1326507024, %v2798
        %v2814 = vor.u32 %v2812, %v2813
        %vm2815 = vcmp.lt.s32.totalorder %v2796, 1
        %vm2816 = vcmp.lt.s32.totalorder %v2796, 2
        %vm2817 = vcmp.lt.s32.totalorder %v2796, 3
        %vm2818 = vcmp.lt.s32.totalorder %v2796, 4
        %v2819 = vsel %vm2815, %v2799, %v2802
        %v2820 = vsel %vm2818, %v2808, 2102212464
        %v2821 = vsel %vm2817, %v2805, %v2820
        %v2822 = vsel %vm2816, %v2819, %v2821
        %v2823 = vsel %vm2815, %v2802, %v2805
        %v2824 = vsel %vm2818, %v2811, 920167782
        %v2825 = vsel %vm2817, %v2808, %v2824
        %v2826 = vsel %vm2816, %v2823, %v2825
        %v2827 = vsel %vm2815, %v2805, %v2808
        %v2828 = vsel %vm2818, %v2814, 1326507024
        %v2829 = vsel %vm2817, %v2811, %v2828
        %v2830 = vsel %vm2816, %v2827, %v2829
        %v2831 = vshll.u32 %v2791, 8
        %v2832 = vmul.u32.u64.compose %v2831, %v2830
        %v2833 = vextract.low.u32 %v2832
        %v2834 = vextract.high.u32 %v2832
        %v2835 = vmul.u32.u64.compose %v2831, %v2826
        %v2836 = vextract.low.u32 %v2835
        %v2837 = vextract.high.u32 %v2835
        %v2838 = vmul.u32 %v2831, %v2822
        %v2839 = vadd.s32 %v2834, %v2836
        %vm2840 = vc.u32 %v2834, %v2836
        %v2841 = vadd.s32 %v2837, 1
        %v2842 = vsel %vm2840, %v2841, %v2837
        %v2843 = vadd.s32 %v2838, %v2842
        %v2844 = vadd.s32 %v2843, 536870912
        %v2845 = vshrl.u32 %v2844, 30
        %v2846 = vshll.u32 %v2845, 30
        %v2847 = vsub.s32 %v2843, %v2846
        %vm2848 = vcmp.lt.s32.totalorder %v2847, 0
        %v2849 = vsub.s32 0, %v2847
        %v2850 = vsel %vm2848, %v2849, %v2847
        %v2851 = vclz %v2850
        %v2852 = vsub.s32 %v2851, 2
        %vm2853 = vcmp.gt.s32.totalorder 0, %v2852
        %v2854 = vsel %vm2853, 0, %v2852
        %v2855 = vsub.s32 32, %v2854
        %v2856 = vshll.u32 %v2847, %v2854
        %v2857 = vshrl.u32 %v2839, %v2855
        %v2858 = vor.u32 %v2856, %v2857
        %v2859 = vsub.s32 4294967266, %v2854
        %v2860 = vadd.s32 %v2859, 127
        %v2861 = vshll.u32 %v2860, 23
        %v2862 = vor.u32 4788187, %v2861
        %v2863 = vand.u32 2147483647, %v2862
        %v2865 = vcvt.s32.f32 %v2858
        %v2866 = vmul.f32 %v2865, %v2863
        %v2867 = vxor.u32 %v2866, 2147483648
        %v2868 = vsel %vm2785, %v2867, %v2866
        %v2869 = vsub.s32 4, %v2845
        %v2870 = vsel %vm2785, %v2869, %v2845
        %v2871 = vsel %vm2784, %v695, %v2868
        %v2872 = vsel %vm2784, 0, %v2870
        %v2873 = vcosq.f32.pop %v2871
        %v2874 = vsinq.f32.pop %v2871
        %vm2875 = vweird.f32 %v695
        %v2876 = vand.u32 %v2872, 3
        %vm2877 = vcmp.lt.s32.totalorder %v2876, 2
        %vm2878 = vcmp.eq.s32.totalorder %v2876, 0
        %v2879 = vxor.u32 %v2874, 2147483648
        %v2880 = vsel %vm2878, %v2873, %v2879
        %vm2881 = vcmp.eq.s32.totalorder %v2876, 2
        %v2882 = vxor.u32 %v2873, 2147483648
        %v2883 = vsel %vm2881, %v2882, %v2874
        %v2884 = vsel %vm2877, %v2880, %v2883
        %v2885 = vsel %vm2875, nan, %v2884
        %v2886 = vand.u32 2147483647, %v696
        %vm2887 = vcmp.le.f32.partialorder %v2886, 0.7853982
        %vm2888 = vcmp.lt.s32.totalorder %v696, 0
        %v2889 = vand.u32 %v696, 2139095040
        %v2890 = vshrl.u32 %v2889, 23
        %v2891 = vsub.s32 %v2890, 127
        %v2892 = vand.u32 2147483647, %v696
        %v2893 = vand.u32 %v2892, 8388607
        %v2894 = vor.u32 %v2893, 8388608
        %v2895 = vsub.s32 0, %v2894
        %v2896 = vadd.s32 %v2891, 1
        %vm2897 = vcmp.gt.s32.totalorder %v2896, 0
        %v2898 = vsel %vm2897, %v2896, 0
        %v2899 = vshrl.u32 %v2898, 5
        %v2900 = vand.u32 %v2898, 31
        %v2901 = vsub.s32 32, %v2900
        %v2902 = vshrl.u32 683565275, %v2901
        %v2903 = vshll.u32 683565275, %v2900
        %v2904 = vshrl.u32 2475754826, %v2901
        %v2905 = vor.u32 %v2903, %v2904
        %v2906 = vshll.u32 2475754826, %v2900
        %v2907 = vshrl.u32 2131351028, %v2901
        %v2908 = vor.u32 %v2906, %v2907
        %v2909 = vshll.u32 2131351028, %v2900
        %v2910 = vshrl.u32 2102212464, %v2901
        %v2911 = vor.u32 %v2909, %v2910
        %v2912 = vshll.u32 2102212464, %v2900
        %v2913 = vshrl.u32 920167782, %v2901
        %v2914 = vor.u32 %v2912, %v2913
        %v2915 = vshll.u32 920167782, %v2900
        %v2916 = vshrl.u32 1326507024, %v2901
        %v2917 = vor.u32 %v2915, %v2916
        %vm2918 = vcmp.lt.s32.totalorder %v2899, 1
        %vm2919 = vcmp.lt.s32.totalorder %v2899, 2
        %vm2920 = vcmp.lt.s32.totalorder %v2899, 3
        %vm2921 = vcmp.lt.s32.totalorder %v2899, 4
        %v2922 = vsel %vm2918, %v2902, %v2905
        %v2923 = vsel %vm2921, %v2911, 2102212464
        %v2924 = vsel %vm2920, %v2908, %v2923
        %v2925 = vsel %vm2919, %v2922, %v2924
        %v2926 = vsel %vm2918, %v2905, %v2908
        %v2927 = vsel %vm2921, %v2914, 920167782
        %v2928 = vsel %vm2920, %v2911, %v2927
        %v2929 = vsel %vm2919, %v2926, %v2928
        %v2930 = vsel %vm2918, %v2908, %v2911
        %v2931 = vsel %vm2921, %v2917, 1326507024
        %v2932 = vsel %vm2920, %v2914, %v2931
        %v2933 = vsel %vm2919, %v2930, %v2932
        %v2934 = vshll.u32 %v2894, 8
        %v2935 = vmul.u32.u64.compose %v2934, %v2933
        %v2936 = vextract.low.u32 %v2935
        %v2937 = vextract.high.u32 %v2935
        %v2938 = vmul.u32.u64.compose %v2934, %v2929
        %v2939 = vextract.low.u32 %v2938
        %v2940 = vextract.high.u32 %v2938
        %v2941 = vmul.u32 %v2934, %v2925
        %v2942 = vadd.s32 %v2937, %v2939
        %vm2943 = vc.u32 %v2937, %v2939
        %v2944 = vadd.s32 %v2940, 1
        %v2945 = vsel %vm2943, %v2944, %v2940
        %v2946 = vadd.s32 %v2941, %v2945
        %v2947 = vadd.s32 %v2946, 536870912
        %v2948 = vshrl.u32 %v2947, 30
        %v2949 = vshll.u32 %v2948, 30
        %v2950 = vsub.s32 %v2946, %v2949
        %vm2951 = vcmp.lt.s32.totalorder %v2950, 0
        %v2952 = vsub.s32 0, %v2950
        %v2953 = vsel %vm2951, %v2952, %v2950
        %v2954 = vclz %v2953
        %v2955 = vsub.s32 %v2954, 2
        %vm2956 = vcmp.gt.s32.totalorder 0, %v2955
        %v2957 = vsel %vm2956, 0, %v2955
        %v2958 = vsub.s32 32, %v2957
        %v2959 = vshll.u32 %v2950, %v2957
        %v2960 = vshrl.u32 %v2942, %v2958
        %v2961 = vor.u32 %v2959, %v2960
        %v2962 = vsub.s32 4294967266, %v2957
        %v2963 = vadd.s32 %v2962, 127
        %v2964 = vshll.u32 %v2963, 23
        %v2965 = vor.u32 4788187, %v2964
        %v2966 = vand.u32 2147483647, %v2965
        %v2968 = vcvt.s32.f32 %v2961
        %v2969 = vmul.f32 %v2968, %v2966
        %v2970 = vxor.u32 %v2969, 2147483648
        %v2971 = vsel %vm2888, %v2970, %v2969
        %v2972 = vsub.s32 4, %v2948
        %v2973 = vsel %vm2888, %v2972, %v2948
        %v2974 = vsel %vm2887, %v696, %v2971
        %v2975 = vsel %vm2887, 0, %v2973
        %v2976 = vcosq.f32.pop %v2974
        %v2977 = vsinq.f32.pop %v2974
        %vm2978 = vweird.f32 %v696
        %v2979 = vand.u32 %v2975, 3
        %vm2980 = vcmp.lt.s32.totalorder %v2979, 2
        %vm2981 = vcmp.eq.s32.totalorder %v2979, 0
        %v2982 = vxor.u32 %v2977, 2147483648
        %v2983 = vsel %vm2981, %v2976, %v2982
        %vm2984 = vcmp.eq.s32.totalorder %v2979, 2
        %v2985 = vxor.u32 %v2976, 2147483648
        %v2986 = vsel %vm2984, %v2985, %v2977
        %v2987 = vsel %vm2980, %v2983, %v2986
        %v2988 = vsel %vm2978, nan, %v2987
        %v2989 = vand.u32 2147483647, %v697
        %vm2990 = vcmp.le.f32.partialorder %v2989, 0.7853982
        %vm2991 = vcmp.lt.s32.totalorder %v697, 0
        %v2992 = vand.u32 %v697, 2139095040
        %v2993 = vshrl.u32 %v2992, 23
        %v2994 = vsub.s32 %v2993, 127
        %v2995 = vand.u32 2147483647, %v697
        %v2996 = vand.u32 %v2995, 8388607
        %v2997 = vor.u32 %v2996, 8388608
        %v2998 = vsub.s32 0, %v2997
        %v2999 = vadd.s32 %v2994, 1
        %vm3000 = vcmp.gt.s32.totalorder %v2999, 0
        %v3001 = vsel %vm3000, %v2999, 0
        %v3002 = vshrl.u32 %v3001, 5
        %v3003 = vand.u32 %v3001, 31
        %v3004 = vsub.s32 32, %v3003
        %v3005 = vshrl.u32 683565275, %v3004
        %v3006 = vshll.u32 683565275, %v3003
        %v3007 = vshrl.u32 2475754826, %v3004
        %v3008 = vor.u32 %v3006, %v3007
        %v3009 = vshll.u32 2475754826, %v3003
        %v3010 = vshrl.u32 2131351028, %v3004
        %v3011 = vor.u32 %v3009, %v3010
        %v3012 = vshll.u32 2131351028, %v3003
        %v3013 = vshrl.u32 2102212464, %v3004
        %v3014 = vor.u32 %v3012, %v3013
        %v3015 = vshll.u32 2102212464, %v3003
        %v3016 = vshrl.u32 920167782, %v3004
        %v3017 = vor.u32 %v3015, %v3016
        %v3018 = vshll.u32 920167782, %v3003
        %v3019 = vshrl.u32 1326507024, %v3004
        %v3020 = vor.u32 %v3018, %v3019
        %vm3021 = vcmp.lt.s32.totalorder %v3002, 1
        %vm3022 = vcmp.lt.s32.totalorder %v3002, 2
        %vm3023 = vcmp.lt.s32.totalorder %v3002, 3
        %vm3024 = vcmp.lt.s32.totalorder %v3002, 4
        %v3025 = vsel %vm3021, %v3005, %v3008
        %v3026 = vsel %vm3024, %v3014, 2102212464
        %v3027 = vsel %vm3023, %v3011, %v3026
        %v3028 = vsel %vm3022, %v3025, %v3027
        %v3029 = vsel %vm3021, %v3008, %v3011
        %v3030 = vsel %vm3024, %v3017, 920167782
        %v3031 = vsel %vm3023, %v3014, %v3030
        %v3032 = vsel %vm3022, %v3029, %v3031
        %v3033 = vsel %vm3021, %v3011, %v3014
        %v3034 = vsel %vm3024, %v3020, 1326507024
        %v3035 = vsel %vm3023, %v3017, %v3034
        %v3036 = vsel %vm3022, %v3033, %v3035
        %v3037 = vshll.u32 %v2997, 8
        %v3038 = vmul.u32.u64.compose %v3037, %v3036
        %v3039 = vextract.low.u32 %v3038
        %v3040 = vextract.high.u32 %v3038
        %v3041 = vmul.u32.u64.compose %v3037, %v3032
        %v3042 = vextract.low.u32 %v3041
        %v3043 = vextract.high.u32 %v3041
        %v3044 = vmul.u32 %v3037, %v3028
        %v3045 = vadd.s32 %v3040, %v3042
        %vm3046 = vc.u32 %v3040, %v3042
        %v3047 = vadd.s32 %v3043, 1
        %v3048 = vsel %vm3046, %v3047, %v3043
        %v3049 = vadd.s32 %v3044, %v3048
        %v3050 = vadd.s32 %v3049, 536870912
        %v3051 = vshrl.u32 %v3050, 30
        %v3052 = vshll.u32 %v3051, 30
        %v3053 = vsub.s32 %v3049, %v3052
        %vm3054 = vcmp.lt.s32.totalorder %v3053, 0
        %v3055 = vsub.s32 0, %v3053
        %v3056 = vsel %vm3054, %v3055, %v3053
        %v3057 = vclz %v3056
        %v3058 = vsub.s32 %v3057, 2
        %vm3059 = vcmp.gt.s32.totalorder 0, %v3058
        %v3060 = vsel %vm3059, 0, %v3058
        %v3061 = vsub.s32 32, %v3060
        %v3062 = vshll.u32 %v3053, %v3060
        %v3063 = vshrl.u32 %v3045, %v3061
        %v3064 = vor.u32 %v3062, %v3063
        %v3065 = vsub.s32 4294967266, %v3060
        %v3066 = vadd.s32 %v3065, 127
        %v3067 = vshll.u32 %v3066, 23
        %v3068 = vor.u32 4788187, %v3067
        %v3069 = vand.u32 2147483647, %v3068
        %v3071 = vcvt.s32.f32 %v3064
        %v3072 = vmul.f32 %v3071, %v3069
        %v3073 = vxor.u32 %v3072, 2147483648
        %v3074 = vsel %vm2991, %v3073, %v3072
        %v3075 = vsub.s32 4, %v3051
        %v3076 = vsel %vm2991, %v3075, %v3051
        %v3077 = vsel %vm2990, %v697, %v3074
        %v3078 = vsel %vm2990, 0, %v3076
        %v3079 = vcosq.f32.pop %v3077
        %v3080 = vsinq.f32.pop %v3077
        %vm3081 = vweird.f32 %v697
        %v3082 = vand.u32 %v3078, 3
        %vm3083 = vcmp.lt.s32.totalorder %v3082, 2
        %vm3084 = vcmp.eq.s32.totalorder %v3082, 0
        %v3085 = vxor.u32 %v3080, 2147483648
        %v3086 = vsel %vm3084, %v3079, %v3085
        %vm3087 = vcmp.eq.s32.totalorder %v3082, 2
        %v3088 = vxor.u32 %v3079, 2147483648
        %v3089 = vsel %vm3087, %v3088, %v3080
        %v3090 = vsel %vm3083, %v3086, %v3089
        %v3091 = vsel %vm3081, nan, %v3090
        %v3092 = vand.u32 2147483647, %v698
        %vm3093 = vcmp.le.f32.partialorder %v3092, 0.7853982
        %vm3094 = vcmp.lt.s32.totalorder %v698, 0
        %v3095 = vand.u32 %v698, 2139095040
        %v3096 = vshrl.u32 %v3095, 23
        %v3097 = vsub.s32 %v3096, 127
        %v3098 = vand.u32 2147483647, %v698
        %v3099 = vand.u32 %v3098, 8388607
        %v3100 = vor.u32 %v3099, 8388608
        %v3101 = vsub.s32 0, %v3100
        %v3102 = vadd.s32 %v3097, 1
        %vm3103 = vcmp.gt.s32.totalorder %v3102, 0
        %v3104 = vsel %vm3103, %v3102, 0
        %v3105 = vshrl.u32 %v3104, 5
        %v3106 = vand.u32 %v3104, 31
        %v3107 = vsub.s32 32, %v3106
        %v3108 = vshrl.u32 683565275, %v3107
        %v3109 = vshll.u32 683565275, %v3106
        %v3110 = vshrl.u32 2475754826, %v3107
        %v3111 = vor.u32 %v3109, %v3110
        %v3112 = vshll.u32 2475754826, %v3106
        %v3113 = vshrl.u32 2131351028, %v3107
        %v3114 = vor.u32 %v3112, %v3113
        %v3115 = vshll.u32 2131351028, %v3106
        %v3116 = vshrl.u32 2102212464, %v3107
        %v3117 = vor.u32 %v3115, %v3116
        %v3118 = vshll.u32 2102212464, %v3106
        %v3119 = vshrl.u32 920167782, %v3107
        %v3120 = vor.u32 %v3118, %v3119
        %v3121 = vshll.u32 920167782, %v3106
        %v3122 = vshrl.u32 1326507024, %v3107
        %v3123 = vor.u32 %v3121, %v3122
        %vm3124 = vcmp.lt.s32.totalorder %v3105, 1
        %vm3125 = vcmp.lt.s32.totalorder %v3105, 2
        %vm3126 = vcmp.lt.s32.totalorder %v3105, 3
        %vm3127 = vcmp.lt.s32.totalorder %v3105, 4
        %v3128 = vsel %vm3124, %v3108, %v3111
        %v3129 = vsel %vm3127, %v3117, 2102212464
        %v3130 = vsel %vm3126, %v3114, %v3129
        %v3131 = vsel %vm3125, %v3128, %v3130
        %v3132 = vsel %vm3124, %v3111, %v3114
        %v3133 = vsel %vm3127, %v3120, 920167782
        %v3134 = vsel %vm3126, %v3117, %v3133
        %v3135 = vsel %vm3125, %v3132, %v3134
        %v3136 = vsel %vm3124, %v3114, %v3117
        %v3137 = vsel %vm3127, %v3123, 1326507024
        %v3138 = vsel %vm3126, %v3120, %v3137
        %v3139 = vsel %vm3125, %v3136, %v3138
        %v3140 = vshll.u32 %v3100, 8
        %v3141 = vmul.u32.u64.compose %v3140, %v3139
        %v3142 = vextract.low.u32 %v3141
        %v3143 = vextract.high.u32 %v3141
        %v3144 = vmul.u32.u64.compose %v3140, %v3135
        %v3145 = vextract.low.u32 %v3144
        %v3146 = vextract.high.u32 %v3144
        %v3147 = vmul.u32 %v3140, %v3131
        %v3148 = vadd.s32 %v3143, %v3145
        %vm3149 = vc.u32 %v3143, %v3145
        %v3150 = vadd.s32 %v3146, 1
        %v3151 = vsel %vm3149, %v3150, %v3146
        %v3152 = vadd.s32 %v3147, %v3151
        %v3153 = vadd.s32 %v3152, 536870912
        %v3154 = vshrl.u32 %v3153, 30
        %v3155 = vshll.u32 %v3154, 30
        %v3156 = vsub.s32 %v3152, %v3155
        %vm3157 = vcmp.lt.s32.totalorder %v3156, 0
        %v3158 = vsub.s32 0, %v3156
        %v3159 = vsel %vm3157, %v3158, %v3156
        %v3160 = vclz %v3159
        %v3161 = vsub.s32 %v3160, 2
        %vm3162 = vcmp.gt.s32.totalorder 0, %v3161
        %v3163 = vsel %vm3162, 0, %v3161
        %v3164 = vsub.s32 32, %v3163
        %v3165 = vshll.u32 %v3156, %v3163
        %v3166 = vshrl.u32 %v3148, %v3164
        %v3167 = vor.u32 %v3165, %v3166
        %v3168 = vsub.s32 4294967266, %v3163
        %v3169 = vadd.s32 %v3168, 127
        %v3170 = vshll.u32 %v3169, 23
        %v3171 = vor.u32 4788187, %v3170
        %v3172 = vand.u32 2147483647, %v3171
        %v3174 = vcvt.s32.f32 %v3167
        %v3175 = vmul.f32 %v3174, %v3172
        %v3176 = vxor.u32 %v3175, 2147483648
        %v3177 = vsel %vm3094, %v3176, %v3175
        %v3178 = vsub.s32 4, %v3154
        %v3179 = vsel %vm3094, %v3178, %v3154
        %v3180 = vsel %vm3093, %v698, %v3177
        %v3181 = vsel %vm3093, 0, %v3179
        %v3182 = vcosq.f32.pop %v3180
        %v3183 = vsinq.f32.pop %v3180
        %vm3184 = vweird.f32 %v698
        %v3185 = vand.u32 %v3181, 3
        %vm3186 = vcmp.lt.s32.totalorder %v3185, 2
        %vm3187 = vcmp.eq.s32.totalorder %v3185, 0
        %v3188 = vxor.u32 %v3183, 2147483648
        %v3189 = vsel %vm3187, %v3182, %v3188
        %vm3190 = vcmp.eq.s32.totalorder %v3185, 2
        %v3191 = vxor.u32 %v3182, 2147483648
        %v3192 = vsel %vm3190, %v3191, %v3183
        %v3193 = vsel %vm3186, %v3189, %v3192
        %v3194 = vsel %vm3184, nan, %v3193
        %v3195 = vand.u32 2147483647, %v699
        %vm3196 = vcmp.le.f32.partialorder %v3195, 0.7853982
        %vm3197 = vcmp.lt.s32.totalorder %v699, 0
        %v3198 = vand.u32 %v699, 2139095040
        %v3199 = vshrl.u32 %v3198, 23
        %v3200 = vsub.s32 %v3199, 127
        %v3201 = vand.u32 2147483647, %v699
        %v3202 = vand.u32 %v3201, 8388607
        %v3203 = vor.u32 %v3202, 8388608
        %v3204 = vsub.s32 0, %v3203
        %v3205 = vadd.s32 %v3200, 1
        %vm3206 = vcmp.gt.s32.totalorder %v3205, 0
        %v3207 = vsel %vm3206, %v3205, 0
        %v3208 = vshrl.u32 %v3207, 5
        %v3209 = vand.u32 %v3207, 31
        %v3210 = vsub.s32 32, %v3209
        %v3211 = vshrl.u32 683565275, %v3210
        %v3212 = vshll.u32 683565275, %v3209
        %v3213 = vshrl.u32 2475754826, %v3210
        %v3214 = vor.u32 %v3212, %v3213
        %v3215 = vshll.u32 2475754826, %v3209
        %v3216 = vshrl.u32 2131351028, %v3210
        %v3217 = vor.u32 %v3215, %v3216
        %v3218 = vshll.u32 2131351028, %v3209
        %v3219 = vshrl.u32 2102212464, %v3210
        %v3220 = vor.u32 %v3218, %v3219
        %v3221 = vshll.u32 2102212464, %v3209
        %v3222 = vshrl.u32 920167782, %v3210
        %v3223 = vor.u32 %v3221, %v3222
        %v3224 = vshll.u32 920167782, %v3209
        %v3225 = vshrl.u32 1326507024, %v3210
        %v3226 = vor.u32 %v3224, %v3225
        %vm3227 = vcmp.lt.s32.totalorder %v3208, 1
        %vm3228 = vcmp.lt.s32.totalorder %v3208, 2
        %vm3229 = vcmp.lt.s32.totalorder %v3208, 3
        %vm3230 = vcmp.lt.s32.totalorder %v3208, 4
        %v3231 = vsel %vm3227, %v3211, %v3214
        %v3232 = vsel %vm3230, %v3220, 2102212464
        %v3233 = vsel %vm3229, %v3217, %v3232
        %v3234 = vsel %vm3228, %v3231, %v3233
        %v3235 = vsel %vm3227, %v3214, %v3217
        %v3236 = vsel %vm3230, %v3223, 920167782
        %v3237 = vsel %vm3229, %v3220, %v3236
        %v3238 = vsel %vm3228, %v3235, %v3237
        %v3239 = vsel %vm3227, %v3217, %v3220
        %v3240 = vsel %vm3230, %v3226, 1326507024
        %v3241 = vsel %vm3229, %v3223, %v3240
        %v3242 = vsel %vm3228, %v3239, %v3241
        %v3243 = vshll.u32 %v3203, 8
        %v3244 = vmul.u32.u64.compose %v3243, %v3242
        %v3245 = vextract.low.u32 %v3244
        %v3246 = vextract.high.u32 %v3244
        %v3247 = vmul.u32.u64.compose %v3243, %v3238
        %v3248 = vextract.low.u32 %v3247
        %v3249 = vextract.high.u32 %v3247
        %v3250 = vmul.u32 %v3243, %v3234
        %v3251 = vadd.s32 %v3246, %v3248
        %vm3252 = vc.u32 %v3246, %v3248
        %v3253 = vadd.s32 %v3249, 1
        %v3254 = vsel %vm3252, %v3253, %v3249
        %v3255 = vadd.s32 %v3250, %v3254
        %v3256 = vadd.s32 %v3255, 536870912
        %v3257 = vshrl.u32 %v3256, 30
        %v3258 = vshll.u32 %v3257, 30
        %v3259 = vsub.s32 %v3255, %v3258
        %vm3260 = vcmp.lt.s32.totalorder %v3259, 0
        %v3261 = vsub.s32 0, %v3259
        %v3262 = vsel %vm3260, %v3261, %v3259
        %v3263 = vclz %v3262
        %v3264 = vsub.s32 %v3263, 2
        %vm3265 = vcmp.gt.s32.totalorder 0, %v3264
        %v3266 = vsel %vm3265, 0, %v3264
        %v3267 = vsub.s32 32, %v3266
        %v3268 = vshll.u32 %v3259, %v3266
        %v3269 = vshrl.u32 %v3251, %v3267
        %v3270 = vor.u32 %v3268, %v3269
        %v3271 = vsub.s32 4294967266, %v3266
        %v3272 = vadd.s32 %v3271, 127
        %v3273 = vshll.u32 %v3272, 23
        %v3274 = vor.u32 4788187, %v3273
        %v3275 = vand.u32 2147483647, %v3274
        %v3277 = vcvt.s32.f32 %v3270
        %v3278 = vmul.f32 %v3277, %v3275
        %v3279 = vxor.u32 %v3278, 2147483648
        %v3280 = vsel %vm3197, %v3279, %v3278
        %v3281 = vsub.s32 4, %v3257
        %v3282 = vsel %vm3197, %v3281, %v3257
        %v3283 = vsel %vm3196, %v699, %v3280
        %v3284 = vsel %vm3196, 0, %v3282
        %v3285 = vcosq.f32.pop %v3283
        %v3286 = vsinq.f32.pop %v3283
        %vm3287 = vweird.f32 %v699
        %v3288 = vand.u32 %v3284, 3
        %vm3289 = vcmp.lt.s32.totalorder %v3288, 2
        %vm3290 = vcmp.eq.s32.totalorder %v3288, 0
        %v3291 = vxor.u32 %v3286, 2147483648
        %v3292 = vsel %vm3290, %v3285, %v3291
        %vm3293 = vcmp.eq.s32.totalorder %v3288, 2
        %v3294 = vxor.u32 %v3285, 2147483648
        %v3295 = vsel %vm3293, %v3294, %v3286
        %v3296 = vsel %vm3289, %v3292, %v3295
        %v3297 = vsel %vm3287, nan, %v3296
        %v3298 = vand.u32 2147483647, %v700
        %vm3299 = vcmp.le.f32.partialorder %v3298, 0.7853982
        %vm3300 = vcmp.lt.s32.totalorder %v700, 0
        %v3301 = vand.u32 %v700, 2139095040
        %v3302 = vshrl.u32 %v3301, 23
        %v3303 = vsub.s32 %v3302, 127
        %v3304 = vand.u32 2147483647, %v700
        %v3305 = vand.u32 %v3304, 8388607
        %v3306 = vor.u32 %v3305, 8388608
        %v3307 = vsub.s32 0, %v3306
        %v3308 = vadd.s32 %v3303, 1
        %vm3309 = vcmp.gt.s32.totalorder %v3308, 0
        %v3310 = vsel %vm3309, %v3308, 0
        %v3311 = vshrl.u32 %v3310, 5
        %v3312 = vand.u32 %v3310, 31
        %v3313 = vsub.s32 32, %v3312
        %v3314 = vshrl.u32 683565275, %v3313
        %v3315 = vshll.u32 683565275, %v3312
        %v3316 = vshrl.u32 2475754826, %v3313
        %v3317 = vor.u32 %v3315, %v3316
        %v3318 = vshll.u32 2475754826, %v3312
        %v3319 = vshrl.u32 2131351028, %v3313
        %v3320 = vor.u32 %v3318, %v3319
        %v3321 = vshll.u32 2131351028, %v3312
        %v3322 = vshrl.u32 2102212464, %v3313
        %v3323 = vor.u32 %v3321, %v3322
        %v3324 = vshll.u32 2102212464, %v3312
        %v3325 = vshrl.u32 920167782, %v3313
        %v3326 = vor.u32 %v3324, %v3325
        %v3327 = vshll.u32 920167782, %v3312
        %v3328 = vshrl.u32 1326507024, %v3313
        %v3329 = vor.u32 %v3327, %v3328
        %vm3330 = vcmp.lt.s32.totalorder %v3311, 1
        %vm3331 = vcmp.lt.s32.totalorder %v3311, 2
        %vm3332 = vcmp.lt.s32.totalorder %v3311, 3
        %vm3333 = vcmp.lt.s32.totalorder %v3311, 4
        %v3334 = vsel %vm3330, %v3314, %v3317
        %v3335 = vsel %vm3333, %v3323, 2102212464
        %v3336 = vsel %vm3332, %v3320, %v3335
        %v3337 = vsel %vm3331, %v3334, %v3336
        %v3338 = vsel %vm3330, %v3317, %v3320
        %v3339 = vsel %vm3333, %v3326, 920167782
        %v3340 = vsel %vm3332, %v3323, %v3339
        %v3341 = vsel %vm3331, %v3338, %v3340
        %v3342 = vsel %vm3330, %v3320, %v3323
        %v3343 = vsel %vm3333, %v3329, 1326507024
        %v3344 = vsel %vm3332, %v3326, %v3343
        %v3345 = vsel %vm3331, %v3342, %v3344
        %v3346 = vshll.u32 %v3306, 8
        %v3347 = vmul.u32.u64.compose %v3346, %v3345
        %v3348 = vextract.low.u32 %v3347
        %v3349 = vextract.high.u32 %v3347
        %v3350 = vmul.u32.u64.compose %v3346, %v3341
        %v3351 = vextract.low.u32 %v3350
        %v3352 = vextract.high.u32 %v3350
        %v3353 = vmul.u32 %v3346, %v3337
        %v3354 = vadd.s32 %v3349, %v3351
        %vm3355 = vc.u32 %v3349, %v3351
        %v3356 = vadd.s32 %v3352, 1
        %v3357 = vsel %vm3355, %v3356, %v3352
        %v3358 = vadd.s32 %v3353, %v3357
        %v3359 = vadd.s32 %v3358, 536870912
        %v3360 = vshrl.u32 %v3359, 30
        %v3361 = vshll.u32 %v3360, 30
        %v3362 = vsub.s32 %v3358, %v3361
        %vm3363 = vcmp.lt.s32.totalorder %v3362, 0
        %v3364 = vsub.s32 0, %v3362
        %v3365 = vsel %vm3363, %v3364, %v3362
        %v3366 = vclz %v3365
        %v3367 = vsub.s32 %v3366, 2
        %vm3368 = vcmp.gt.s32.totalorder 0, %v3367
        %v3369 = vsel %vm3368, 0, %v3367
        %v3370 = vsub.s32 32, %v3369
        %v3371 = vshll.u32 %v3362, %v3369
        %v3372 = vshrl.u32 %v3354, %v3370
        %v3373 = vor.u32 %v3371, %v3372
        %v3374 = vsub.s32 4294967266, %v3369
        %v3375 = vadd.s32 %v3374, 127
        %v3376 = vshll.u32 %v3375, 23
        %v3377 = vor.u32 4788187, %v3376
        %v3378 = vand.u32 2147483647, %v3377
        %v3380 = vcvt.s32.f32 %v3373
        %v3381 = vmul.f32 %v3380, %v3378
        %v3382 = vxor.u32 %v3381, 2147483648
        %v3383 = vsel %vm3300, %v3382, %v3381
        %v3384 = vsub.s32 4, %v3360
        %v3385 = vsel %vm3300, %v3384, %v3360
        %v3386 = vsel %vm3299, %v700, %v3383
        %v3387 = vsel %vm3299, 0, %v3385
        %v3388 = vcosq.f32.pop %v3386
        %v3389 = vsinq.f32.pop %v3386
        %vm3390 = vweird.f32 %v700
        %v3391 = vand.u32 %v3387, 3
        %vm3392 = vcmp.lt.s32.totalorder %v3391, 2
        %vm3393 = vcmp.eq.s32.totalorder %v3391, 0
        %v3394 = vxor.u32 %v3389, 2147483648
        %v3395 = vsel %vm3393, %v3388, %v3394
        %vm3396 = vcmp.eq.s32.totalorder %v3391, 2
        %v3397 = vxor.u32 %v3388, 2147483648
        %v3398 = vsel %vm3396, %v3397, %v3389
        %v3399 = vsel %vm3392, %v3395, %v3398
        %v3400 = vsel %vm3390, nan, %v3399
        %v3401 = vand.u32 2147483647, %v701
        %vm3402 = vcmp.le.f32.partialorder %v3401, 0.7853982
        %vm3403 = vcmp.lt.s32.totalorder %v701, 0
        %v3404 = vand.u32 %v701, 2139095040
        %v3405 = vshrl.u32 %v3404, 23
        %v3406 = vsub.s32 %v3405, 127
        %v3407 = vand.u32 2147483647, %v701
        %v3408 = vand.u32 %v3407, 8388607
        %v3409 = vor.u32 %v3408, 8388608
        %v3410 = vsub.s32 0, %v3409
        %v3411 = vadd.s32 %v3406, 1
        %vm3412 = vcmp.gt.s32.totalorder %v3411, 0
        %v3413 = vsel %vm3412, %v3411, 0
        %v3414 = vshrl.u32 %v3413, 5
        %v3415 = vand.u32 %v3413, 31
        %v3416 = vsub.s32 32, %v3415
        %v3417 = vshrl.u32 683565275, %v3416
        %v3418 = vshll.u32 683565275, %v3415
        %v3419 = vshrl.u32 2475754826, %v3416
        %v3420 = vor.u32 %v3418, %v3419
        %v3421 = vshll.u32 2475754826, %v3415
        %v3422 = vshrl.u32 2131351028, %v3416
        %v3423 = vor.u32 %v3421, %v3422
        %v3424 = vshll.u32 2131351028, %v3415
        %v3425 = vshrl.u32 2102212464, %v3416
        %v3426 = vor.u32 %v3424, %v3425
        %v3427 = vshll.u32 2102212464, %v3415
        %v3428 = vshrl.u32 920167782, %v3416
        %v3429 = vor.u32 %v3427, %v3428
        %v3430 = vshll.u32 920167782, %v3415
        %v3431 = vshrl.u32 1326507024, %v3416
        %v3432 = vor.u32 %v3430, %v3431
        %vm3433 = vcmp.lt.s32.totalorder %v3414, 1
        %vm3434 = vcmp.lt.s32.totalorder %v3414, 2
        %vm3435 = vcmp.lt.s32.totalorder %v3414, 3
        %vm3436 = vcmp.lt.s32.totalorder %v3414, 4
        %v3437 = vsel %vm3433, %v3417, %v3420
        %v3438 = vsel %vm3436, %v3426, 2102212464
        %v3439 = vsel %vm3435, %v3423, %v3438
        %v3440 = vsel %vm3434, %v3437, %v3439
        %v3441 = vsel %vm3433, %v3420, %v3423
        %v3442 = vsel %vm3436, %v3429, 920167782
        %v3443 = vsel %vm3435, %v3426, %v3442
        %v3444 = vsel %vm3434, %v3441, %v3443
        %v3445 = vsel %vm3433, %v3423, %v3426
        %v3446 = vsel %vm3436, %v3432, 1326507024
        %v3447 = vsel %vm3435, %v3429, %v3446
        %v3448 = vsel %vm3434, %v3445, %v3447
        %v3449 = vshll.u32 %v3409, 8
        %v3450 = vmul.u32.u64.compose %v3449, %v3448
        %v3451 = vextract.low.u32 %v3450
        %v3452 = vextract.high.u32 %v3450
        %v3453 = vmul.u32.u64.compose %v3449, %v3444
        %v3454 = vextract.low.u32 %v3453
        %v3455 = vextract.high.u32 %v3453
        %v3456 = vmul.u32 %v3449, %v3440
        %v3457 = vadd.s32 %v3452, %v3454
        %vm3458 = vc.u32 %v3452, %v3454
        %v3459 = vadd.s32 %v3455, 1
        %v3460 = vsel %vm3458, %v3459, %v3455
        %v3461 = vadd.s32 %v3456, %v3460
        %v3462 = vadd.s32 %v3461, 536870912
        %v3463 = vshrl.u32 %v3462, 30
        %v3464 = vshll.u32 %v3463, 30
        %v3465 = vsub.s32 %v3461, %v3464
        %vm3466 = vcmp.lt.s32.totalorder %v3465, 0
        %v3467 = vsub.s32 0, %v3465
        %v3468 = vsel %vm3466, %v3467, %v3465
        %v3469 = vclz %v3468
        %v3470 = vsub.s32 %v3469, 2
        %vm3471 = vcmp.gt.s32.totalorder 0, %v3470
        %v3472 = vsel %vm3471, 0, %v3470
        %v3473 = vsub.s32 32, %v3472
        %v3474 = vshll.u32 %v3465, %v3472
        %v3475 = vshrl.u32 %v3457, %v3473
        %v3476 = vor.u32 %v3474, %v3475
        %v3477 = vsub.s32 4294967266, %v3472
        %v3478 = vadd.s32 %v3477, 127
        %v3479 = vshll.u32 %v3478, 23
        %v3480 = vor.u32 4788187, %v3479
        %v3481 = vand.u32 2147483647, %v3480
        %v3483 = vcvt.s32.f32 %v3476
        %v3484 = vmul.f32 %v3483, %v3481
        %v3485 = vxor.u32 %v3484, 2147483648
        %v3486 = vsel %vm3403, %v3485, %v3484
        %v3487 = vsub.s32 4, %v3463
        %v3488 = vsel %vm3403, %v3487, %v3463
        %v3489 = vsel %vm3402, %v701, %v3486
        %v3490 = vsel %vm3402, 0, %v3488
        %v3491 = vcosq.f32.pop %v3489
        %v3492 = vsinq.f32.pop %v3489
        %vm3493 = vweird.f32 %v701
        %v3494 = vand.u32 %v3490, 3
        %vm3495 = vcmp.lt.s32.totalorder %v3494, 2
        %vm3496 = vcmp.eq.s32.totalorder %v3494, 0
        %v3497 = vxor.u32 %v3492, 2147483648
        %v3498 = vsel %vm3496, %v3491, %v3497
        %vm3499 = vcmp.eq.s32.totalorder %v3494, 2
        %v3500 = vxor.u32 %v3491, 2147483648
        %v3501 = vsel %vm3499, %v3500, %v3492
        %v3502 = vsel %vm3495, %v3498, %v3501
        %v3503 = vsel %vm3493, nan, %v3502
        %v3504 = vand.u32 2147483647, %v702
        %vm3505 = vcmp.le.f32.partialorder %v3504, 0.7853982
        %vm3506 = vcmp.lt.s32.totalorder %v702, 0
        %v3507 = vand.u32 %v702, 2139095040
        %v3508 = vshrl.u32 %v3507, 23
        %v3509 = vsub.s32 %v3508, 127
        %v3510 = vand.u32 2147483647, %v702
        %v3511 = vand.u32 %v3510, 8388607
        %v3512 = vor.u32 %v3511, 8388608
        %v3513 = vsub.s32 0, %v3512
        %v3514 = vadd.s32 %v3509, 1
        %vm3515 = vcmp.gt.s32.totalorder %v3514, 0
        %v3516 = vsel %vm3515, %v3514, 0
        %v3517 = vshrl.u32 %v3516, 5
        %v3518 = vand.u32 %v3516, 31
        %v3519 = vsub.s32 32, %v3518
        %v3520 = vshrl.u32 683565275, %v3519
        %v3521 = vshll.u32 683565275, %v3518
        %v3522 = vshrl.u32 2475754826, %v3519
        %v3523 = vor.u32 %v3521, %v3522
        %v3524 = vshll.u32 2475754826, %v3518
        %v3525 = vshrl.u32 2131351028, %v3519
        %v3526 = vor.u32 %v3524, %v3525
        %v3527 = vshll.u32 2131351028, %v3518
        %v3528 = vshrl.u32 2102212464, %v3519
        %v3529 = vor.u32 %v3527, %v3528
        %v3530 = vshll.u32 2102212464, %v3518
        %v3531 = vshrl.u32 920167782, %v3519
        %v3532 = vor.u32 %v3530, %v3531
        %v3533 = vshll.u32 920167782, %v3518
        %v3534 = vshrl.u32 1326507024, %v3519
        %v3535 = vor.u32 %v3533, %v3534
        %vm3536 = vcmp.lt.s32.totalorder %v3517, 1
        %vm3537 = vcmp.lt.s32.totalorder %v3517, 2
        %vm3538 = vcmp.lt.s32.totalorder %v3517, 3
        %vm3539 = vcmp.lt.s32.totalorder %v3517, 4
        %v3540 = vsel %vm3536, %v3520, %v3523
        %v3541 = vsel %vm3539, %v3529, 2102212464
        %v3542 = vsel %vm3538, %v3526, %v3541
        %v3543 = vsel %vm3537, %v3540, %v3542
        %v3544 = vsel %vm3536, %v3523, %v3526
        %v3545 = vsel %vm3539, %v3532, 920167782
        %v3546 = vsel %vm3538, %v3529, %v3545
        %v3547 = vsel %vm3537, %v3544, %v3546
        %v3548 = vsel %vm3536, %v3526, %v3529
        %v3549 = vsel %vm3539, %v3535, 1326507024
        %v3550 = vsel %vm3538, %v3532, %v3549
        %v3551 = vsel %vm3537, %v3548, %v3550
        %v3552 = vshll.u32 %v3512, 8
        %v3553 = vmul.u32.u64.compose %v3552, %v3551
        %v3554 = vextract.low.u32 %v3553
        %v3555 = vextract.high.u32 %v3553
        %v3556 = vmul.u32.u64.compose %v3552, %v3547
        %v3557 = vextract.low.u32 %v3556
        %v3558 = vextract.high.u32 %v3556
        %v3559 = vmul.u32 %v3552, %v3543
        %v3560 = vadd.s32 %v3555, %v3557
        %vm3561 = vc.u32 %v3555, %v3557
        %v3562 = vadd.s32 %v3558, 1
        %v3563 = vsel %vm3561, %v3562, %v3558
        %v3564 = vadd.s32 %v3559, %v3563
        %v3565 = vadd.s32 %v3564, 536870912
        %v3566 = vshrl.u32 %v3565, 30
        %v3567 = vshll.u32 %v3566, 30
        %v3568 = vsub.s32 %v3564, %v3567
        %vm3569 = vcmp.lt.s32.totalorder %v3568, 0
        %v3570 = vsub.s32 0, %v3568
        %v3571 = vsel %vm3569, %v3570, %v3568
        %v3572 = vclz %v3571
        %v3573 = vsub.s32 %v3572, 2
        %vm3574 = vcmp.gt.s32.totalorder 0, %v3573
        %v3575 = vsel %vm3574, 0, %v3573
        %v3576 = vsub.s32 32, %v3575
        %v3577 = vshll.u32 %v3568, %v3575
        %v3578 = vshrl.u32 %v3560, %v3576
        %v3579 = vor.u32 %v3577, %v3578
        %v3580 = vsub.s32 4294967266, %v3575
        %v3581 = vadd.s32 %v3580, 127
        %v3582 = vshll.u32 %v3581, 23
        %v3583 = vor.u32 4788187, %v3582
        %v3584 = vand.u32 2147483647, %v3583
        %v3586 = vcvt.s32.f32 %v3579
        %v3587 = vmul.f32 %v3586, %v3584
        %v3588 = vxor.u32 %v3587, 2147483648
        %v3589 = vsel %vm3506, %v3588, %v3587
        %v3590 = vsub.s32 4, %v3566
        %v3591 = vsel %vm3506, %v3590, %v3566
        %v3592 = vsel %vm3505, %v702, %v3589
        %v3593 = vsel %vm3505, 0, %v3591
        %v3594 = vcosq.f32.pop %v3592
        %v3595 = vsinq.f32.pop %v3592
        %vm3596 = vweird.f32 %v702
        %v3597 = vand.u32 %v3593, 3
        %vm3598 = vcmp.lt.s32.totalorder %v3597, 2
        %vm3599 = vcmp.eq.s32.totalorder %v3597, 0
        %v3600 = vxor.u32 %v3595, 2147483648
        %v3601 = vsel %vm3599, %v3594, %v3600
        %vm3602 = vcmp.eq.s32.totalorder %v3597, 2
        %v3603 = vxor.u32 %v3594, 2147483648
        %v3604 = vsel %vm3602, %v3603, %v3595
        %v3605 = vsel %vm3598, %v3601, %v3604
        %v3606 = vsel %vm3596, nan, %v3605
        %v3607 = vand.u32 2147483647, %v703
        %vm3608 = vcmp.le.f32.partialorder %v3607, 0.7853982
        %vm3609 = vcmp.lt.s32.totalorder %v703, 0
        %v3610 = vand.u32 %v703, 2139095040
        %v3611 = vshrl.u32 %v3610, 23
        %v3612 = vsub.s32 %v3611, 127
        %v3613 = vand.u32 2147483647, %v703
        %v3614 = vand.u32 %v3613, 8388607
        %v3615 = vor.u32 %v3614, 8388608
        %v3616 = vsub.s32 0, %v3615
        %v3617 = vadd.s32 %v3612, 1
        %vm3618 = vcmp.gt.s32.totalorder %v3617, 0
        %v3619 = vsel %vm3618, %v3617, 0
        %v3620 = vshrl.u32 %v3619, 5
        %v3621 = vand.u32 %v3619, 31
        %v3622 = vsub.s32 32, %v3621
        %v3623 = vshrl.u32 683565275, %v3622
        %v3624 = vshll.u32 683565275, %v3621
        %v3625 = vshrl.u32 2475754826, %v3622
        %v3626 = vor.u32 %v3624, %v3625
        %v3627 = vshll.u32 2475754826, %v3621
        %v3628 = vshrl.u32 2131351028, %v3622
        %v3629 = vor.u32 %v3627, %v3628
        %v3630 = vshll.u32 2131351028, %v3621
        %v3631 = vshrl.u32 2102212464, %v3622
        %v3632 = vor.u32 %v3630, %v3631
        %v3633 = vshll.u32 2102212464, %v3621
        %v3634 = vshrl.u32 920167782, %v3622
        %v3635 = vor.u32 %v3633, %v3634
        %v3636 = vshll.u32 920167782, %v3621
        %v3637 = vshrl.u32 1326507024, %v3622
        %v3638 = vor.u32 %v3636, %v3637
        %vm3639 = vcmp.lt.s32.totalorder %v3620, 1
        %vm3640 = vcmp.lt.s32.totalorder %v3620, 2
        %vm3641 = vcmp.lt.s32.totalorder %v3620, 3
        %vm3642 = vcmp.lt.s32.totalorder %v3620, 4
        %v3643 = vsel %vm3639, %v3623, %v3626
        %v3644 = vsel %vm3642, %v3632, 2102212464
        %v3645 = vsel %vm3641, %v3629, %v3644
        %v3646 = vsel %vm3640, %v3643, %v3645
        %v3647 = vsel %vm3639, %v3626, %v3629
        %v3648 = vsel %vm3642, %v3635, 920167782
        %v3649 = vsel %vm3641, %v3632, %v3648
        %v3650 = vsel %vm3640, %v3647, %v3649
        %v3651 = vsel %vm3639, %v3629, %v3632
        %v3652 = vsel %vm3642, %v3638, 1326507024
        %v3653 = vsel %vm3641, %v3635, %v3652
        %v3654 = vsel %vm3640, %v3651, %v3653
        %v3655 = vshll.u32 %v3615, 8
        %v3656 = vmul.u32.u64.compose %v3655, %v3654
        %v3657 = vextract.low.u32 %v3656
        %v3658 = vextract.high.u32 %v3656
        %v3659 = vmul.u32.u64.compose %v3655, %v3650
        %v3660 = vextract.low.u32 %v3659
        %v3661 = vextract.high.u32 %v3659
        %v3662 = vmul.u32 %v3655, %v3646
        %v3663 = vadd.s32 %v3658, %v3660
        %vm3664 = vc.u32 %v3658, %v3660
        %v3665 = vadd.s32 %v3661, 1
        %v3666 = vsel %vm3664, %v3665, %v3661
        %v3667 = vadd.s32 %v3662, %v3666
        %v3668 = vadd.s32 %v3667, 536870912
        %v3669 = vshrl.u32 %v3668, 30
        %v3670 = vshll.u32 %v3669, 30
        %v3671 = vsub.s32 %v3667, %v3670
        %vm3672 = vcmp.lt.s32.totalorder %v3671, 0
        %v3673 = vsub.s32 0, %v3671
        %v3674 = vsel %vm3672, %v3673, %v3671
        %v3675 = vclz %v3674
        %v3676 = vsub.s32 %v3675, 2
        %vm3677 = vcmp.gt.s32.totalorder 0, %v3676
        %v3678 = vsel %vm3677, 0, %v3676
        %v3679 = vsub.s32 32, %v3678
        %v3680 = vshll.u32 %v3671, %v3678
        %v3681 = vshrl.u32 %v3663, %v3679
        %v3682 = vor.u32 %v3680, %v3681
        %v3683 = vsub.s32 4294967266, %v3678
        %v3684 = vadd.s32 %v3683, 127
        %v3685 = vshll.u32 %v3684, 23
        %v3686 = vor.u32 4788187, %v3685
        %v3687 = vand.u32 2147483647, %v3686
        %v3689 = vcvt.s32.f32 %v3682
        %v3690 = vmul.f32 %v3689, %v3687
        %v3691 = vxor.u32 %v3690, 2147483648
        %v3692 = vsel %vm3609, %v3691, %v3690
        %v3693 = vsub.s32 4, %v3669
        %v3694 = vsel %vm3609, %v3693, %v3669
        %v3695 = vsel %vm3608, %v703, %v3692
        %v3696 = vsel %vm3608, 0, %v3694
        %v3697 = vcosq.f32.pop %v3695
        %v3698 = vsinq.f32.pop %v3695
        %vm3699 = vweird.f32 %v703
        %v3700 = vand.u32 %v3696, 3
        %vm3701 = vcmp.lt.s32.totalorder %v3700, 2
        %vm3702 = vcmp.eq.s32.totalorder %v3700, 0
        %v3703 = vxor.u32 %v3698, 2147483648
        %v3704 = vsel %vm3702, %v3697, %v3703
        %vm3705 = vcmp.eq.s32.totalorder %v3700, 2
        %v3706 = vxor.u32 %v3697, 2147483648
        %v3707 = vsel %vm3705, %v3706, %v3698
        %v3708 = vsel %vm3701, %v3704, %v3707
        %v3709 = vsel %vm3699, nan, %v3708
        %v3710 = vand.u32 2147483647, %v704
        %vm3711 = vcmp.le.f32.partialorder %v3710, 0.7853982
        %vm3712 = vcmp.lt.s32.totalorder %v704, 0
        %v3713 = vand.u32 %v704, 2139095040
        %v3714 = vshrl.u32 %v3713, 23
        %v3715 = vsub.s32 %v3714, 127
        %v3716 = vand.u32 2147483647, %v704
        %v3717 = vand.u32 %v3716, 8388607
        %v3718 = vor.u32 %v3717, 8388608
        %v3719 = vsub.s32 0, %v3718
        %v3720 = vadd.s32 %v3715, 1
        %vm3721 = vcmp.gt.s32.totalorder %v3720, 0
        %v3722 = vsel %vm3721, %v3720, 0
        %v3723 = vshrl.u32 %v3722, 5
        %v3724 = vand.u32 %v3722, 31
        %v3725 = vsub.s32 32, %v3724
        %v3726 = vshrl.u32 683565275, %v3725
        %v3727 = vshll.u32 683565275, %v3724
        %v3728 = vshrl.u32 2475754826, %v3725
        %v3729 = vor.u32 %v3727, %v3728
        %v3730 = vshll.u32 2475754826, %v3724
        %v3731 = vshrl.u32 2131351028, %v3725
        %v3732 = vor.u32 %v3730, %v3731
        %v3733 = vshll.u32 2131351028, %v3724
        %v3734 = vshrl.u32 2102212464, %v3725
        %v3735 = vor.u32 %v3733, %v3734
        %v3736 = vshll.u32 2102212464, %v3724
        %v3737 = vshrl.u32 920167782, %v3725
        %v3738 = vor.u32 %v3736, %v3737
        %v3739 = vshll.u32 920167782, %v3724
        %v3740 = vshrl.u32 1326507024, %v3725
        %v3741 = vor.u32 %v3739, %v3740
        %vm3742 = vcmp.lt.s32.totalorder %v3723, 1
        %vm3743 = vcmp.lt.s32.totalorder %v3723, 2
        %vm3744 = vcmp.lt.s32.totalorder %v3723, 3
        %vm3745 = vcmp.lt.s32.totalorder %v3723, 4
        %v3746 = vsel %vm3742, %v3726, %v3729
        %v3747 = vsel %vm3745, %v3735, 2102212464
        %v3748 = vsel %vm3744, %v3732, %v3747
        %v3749 = vsel %vm3743, %v3746, %v3748
        %v3750 = vsel %vm3742, %v3729, %v3732
        %v3751 = vsel %vm3745, %v3738, 920167782
        %v3752 = vsel %vm3744, %v3735, %v3751
        %v3753 = vsel %vm3743, %v3750, %v3752
        %v3754 = vsel %vm3742, %v3732, %v3735
        %v3755 = vsel %vm3745, %v3741, 1326507024
        %v3756 = vsel %vm3744, %v3738, %v3755
        %v3757 = vsel %vm3743, %v3754, %v3756
        %v3758 = vshll.u32 %v3718, 8
        %v3759 = vmul.u32.u64.compose %v3758, %v3757
        %v3760 = vextract.low.u32 %v3759
        %v3761 = vextract.high.u32 %v3759
        %v3762 = vmul.u32.u64.compose %v3758, %v3753
        %v3763 = vextract.low.u32 %v3762
        %v3764 = vextract.high.u32 %v3762
        %v3765 = vmul.u32 %v3758, %v3749
        %v3766 = vadd.s32 %v3761, %v3763
        %vm3767 = vc.u32 %v3761, %v3763
        %v3768 = vadd.s32 %v3764, 1
        %v3769 = vsel %vm3767, %v3768, %v3764
        %v3770 = vadd.s32 %v3765, %v3769
        %v3771 = vadd.s32 %v3770, 536870912
        %v3772 = vshrl.u32 %v3771, 30
        %v3773 = vshll.u32 %v3772, 30
        %v3774 = vsub.s32 %v3770, %v3773
        %vm3775 = vcmp.lt.s32.totalorder %v3774, 0
        %v3776 = vsub.s32 0, %v3774
        %v3777 = vsel %vm3775, %v3776, %v3774
        %v3778 = vclz %v3777
        %v3779 = vsub.s32 %v3778, 2
        %vm3780 = vcmp.gt.s32.totalorder 0, %v3779
        %v3781 = vsel %vm3780, 0, %v3779
        %v3782 = vsub.s32 32, %v3781
        %v3783 = vshll.u32 %v3774, %v3781
        %v3784 = vshrl.u32 %v3766, %v3782
        %v3785 = vor.u32 %v3783, %v3784
        %v3786 = vsub.s32 4294967266, %v3781
        %v3787 = vadd.s32 %v3786, 127
        %v3788 = vshll.u32 %v3787, 23
        %v3789 = vor.u32 4788187, %v3788
        %v3790 = vand.u32 2147483647, %v3789
        %v3792 = vcvt.s32.f32 %v3785
        %v3793 = vmul.f32 %v3792, %v3790
        %v3794 = vxor.u32 %v3793, 2147483648
        %v3795 = vsel %vm3712, %v3794, %v3793
        %v3796 = vsub.s32 4, %v3772
        %v3797 = vsel %vm3712, %v3796, %v3772
        %v3798 = vsel %vm3711, %v704, %v3795
        %v3799 = vsel %vm3711, 0, %v3797
        %v3800 = vcosq.f32.pop %v3798
        %v3801 = vsinq.f32.pop %v3798
        %vm3802 = vweird.f32 %v704
        %v3803 = vand.u32 %v3799, 3
        %vm3804 = vcmp.lt.s32.totalorder %v3803, 2
        %vm3805 = vcmp.eq.s32.totalorder %v3803, 0
        %v3806 = vxor.u32 %v3801, 2147483648
        %v3807 = vsel %vm3805, %v3800, %v3806
        %vm3808 = vcmp.eq.s32.totalorder %v3803, 2
        %v3809 = vxor.u32 %v3800, 2147483648
        %v3810 = vsel %vm3808, %v3809, %v3801
        %v3811 = vsel %vm3804, %v3807, %v3810
        %v3812 = vsel %vm3802, nan, %v3811
        %v3813 = vand.u32 2147483647, %v705
        %vm3814 = vcmp.le.f32.partialorder %v3813, 0.7853982
        %vm3815 = vcmp.lt.s32.totalorder %v705, 0
        %v3816 = vand.u32 %v705, 2139095040
        %v3817 = vshrl.u32 %v3816, 23
        %v3818 = vsub.s32 %v3817, 127
        %v3819 = vand.u32 2147483647, %v705
        %v3820 = vand.u32 %v3819, 8388607
        %v3821 = vor.u32 %v3820, 8388608
        %v3822 = vsub.s32 0, %v3821
        %v3823 = vadd.s32 %v3818, 1
        %vm3824 = vcmp.gt.s32.totalorder %v3823, 0
        %v3825 = vsel %vm3824, %v3823, 0
        %v3826 = vshrl.u32 %v3825, 5
        %v3827 = vand.u32 %v3825, 31
        %v3828 = vsub.s32 32, %v3827
        %v3829 = vshrl.u32 683565275, %v3828
        %v3830 = vshll.u32 683565275, %v3827
        %v3831 = vshrl.u32 2475754826, %v3828
        %v3832 = vor.u32 %v3830, %v3831
        %v3833 = vshll.u32 2475754826, %v3827
        %v3834 = vshrl.u32 2131351028, %v3828
        %v3835 = vor.u32 %v3833, %v3834
        %v3836 = vshll.u32 2131351028, %v3827
        %v3837 = vshrl.u32 2102212464, %v3828
        %v3838 = vor.u32 %v3836, %v3837
        %v3839 = vshll.u32 2102212464, %v3827
        %v3840 = vshrl.u32 920167782, %v3828
        %v3841 = vor.u32 %v3839, %v3840
        %v3842 = vshll.u32 920167782, %v3827
        %v3843 = vshrl.u32 1326507024, %v3828
        %v3844 = vor.u32 %v3842, %v3843
        %vm3845 = vcmp.lt.s32.totalorder %v3826, 1
        %vm3846 = vcmp.lt.s32.totalorder %v3826, 2
        %vm3847 = vcmp.lt.s32.totalorder %v3826, 3
        %vm3848 = vcmp.lt.s32.totalorder %v3826, 4
        %v3849 = vsel %vm3845, %v3829, %v3832
        %v3850 = vsel %vm3848, %v3838, 2102212464
        %v3851 = vsel %vm3847, %v3835, %v3850
        %v3852 = vsel %vm3846, %v3849, %v3851
        %v3853 = vsel %vm3845, %v3832, %v3835
        %v3854 = vsel %vm3848, %v3841, 920167782
        %v3855 = vsel %vm3847, %v3838, %v3854
        %v3856 = vsel %vm3846, %v3853, %v3855
        %v3857 = vsel %vm3845, %v3835, %v3838
        %v3858 = vsel %vm3848, %v3844, 1326507024
        %v3859 = vsel %vm3847, %v3841, %v3858
        %v3860 = vsel %vm3846, %v3857, %v3859
        %v3861 = vshll.u32 %v3821, 8
        %v3862 = vmul.u32.u64.compose %v3861, %v3860
        %v3863 = vextract.low.u32 %v3862
        %v3864 = vextract.high.u32 %v3862
        %v3865 = vmul.u32.u64.compose %v3861, %v3856
        %v3866 = vextract.low.u32 %v3865
        %v3867 = vextract.high.u32 %v3865
        %v3868 = vmul.u32 %v3861, %v3852
        %v3869 = vadd.s32 %v3864, %v3866
        %vm3870 = vc.u32 %v3864, %v3866
        %v3871 = vadd.s32 %v3867, 1
        %v3872 = vsel %vm3870, %v3871, %v3867
        %v3873 = vadd.s32 %v3868, %v3872
        %v3874 = vadd.s32 %v3873, 536870912
        %v3875 = vshrl.u32 %v3874, 30
        %v3876 = vshll.u32 %v3875, 30
        %v3877 = vsub.s32 %v3873, %v3876
        %vm3878 = vcmp.lt.s32.totalorder %v3877, 0
        %v3879 = vsub.s32 0, %v3877
        %v3880 = vsel %vm3878, %v3879, %v3877
        %v3881 = vclz %v3880
        %v3882 = vsub.s32 %v3881, 2
        %vm3883 = vcmp.gt.s32.totalorder 0, %v3882
        %v3884 = vsel %vm3883, 0, %v3882
        %v3885 = vsub.s32 32, %v3884
        %v3886 = vshll.u32 %v3877, %v3884
        %v3887 = vshrl.u32 %v3869, %v3885
        %v3888 = vor.u32 %v3886, %v3887
        %v3889 = vsub.s32 4294967266, %v3884
        %v3890 = vadd.s32 %v3889, 127
        %v3891 = vshll.u32 %v3890, 23
        %v3892 = vor.u32 4788187, %v3891
        %v3893 = vand.u32 2147483647, %v3892
        %v3895 = vcvt.s32.f32 %v3888
        %v3896 = vmul.f32 %v3895, %v3893
        %v3897 = vxor.u32 %v3896, 2147483648
        %v3898 = vsel %vm3815, %v3897, %v3896
        %v3899 = vsub.s32 4, %v3875
        %v3900 = vsel %vm3815, %v3899, %v3875
        %v3901 = vsel %vm3814, %v705, %v3898
        %v3902 = vsel %vm3814, 0, %v3900
        %v3903 = vcosq.f32.pop %v3901
        %v3904 = vsinq.f32.pop %v3901
        %vm3905 = vweird.f32 %v705
        %v3906 = vand.u32 %v3902, 3
        %vm3907 = vcmp.lt.s32.totalorder %v3906, 2
        %vm3908 = vcmp.eq.s32.totalorder %v3906, 0
        %v3909 = vxor.u32 %v3904, 2147483648
        %v3910 = vsel %vm3908, %v3903, %v3909
        %vm3911 = vcmp.eq.s32.totalorder %v3906, 2
        %v3912 = vxor.u32 %v3903, 2147483648
        %v3913 = vsel %vm3911, %v3912, %v3904
        %v3914 = vsel %vm3907, %v3910, %v3913
        %v3915 = vsel %vm3905, nan, %v3914
        %v3916 = vand.u32 2147483647, %v706
        %vm3917 = vcmp.le.f32.partialorder %v3916, 0.7853982
        %vm3918 = vcmp.lt.s32.totalorder %v706, 0
        %v3919 = vand.u32 %v706, 2139095040
        %v3920 = vshrl.u32 %v3919, 23
        %v3921 = vsub.s32 %v3920, 127
        %v3922 = vand.u32 2147483647, %v706
        %v3923 = vand.u32 %v3922, 8388607
        %v3924 = vor.u32 %v3923, 8388608
        %v3925 = vsub.s32 0, %v3924
        %v3926 = vadd.s32 %v3921, 1
        %vm3927 = vcmp.gt.s32.totalorder %v3926, 0
        %v3928 = vsel %vm3927, %v3926, 0
        %v3929 = vshrl.u32 %v3928, 5
        %v3930 = vand.u32 %v3928, 31
        %v3931 = vsub.s32 32, %v3930
        %v3932 = vshrl.u32 683565275, %v3931
        %v3933 = vshll.u32 683565275, %v3930
        %v3934 = vshrl.u32 2475754826, %v3931
        %v3935 = vor.u32 %v3933, %v3934
        %v3936 = vshll.u32 2475754826, %v3930
        %v3937 = vshrl.u32 2131351028, %v3931
        %v3938 = vor.u32 %v3936, %v3937
        %v3939 = vshll.u32 2131351028, %v3930
        %v3940 = vshrl.u32 2102212464, %v3931
        %v3941 = vor.u32 %v3939, %v3940
        %v3942 = vshll.u32 2102212464, %v3930
        %v3943 = vshrl.u32 920167782, %v3931
        %v3944 = vor.u32 %v3942, %v3943
        %v3945 = vshll.u32 920167782, %v3930
        %v3946 = vshrl.u32 1326507024, %v3931
        %v3947 = vor.u32 %v3945, %v3946
        %vm3948 = vcmp.lt.s32.totalorder %v3929, 1
        %vm3949 = vcmp.lt.s32.totalorder %v3929, 2
        %vm3950 = vcmp.lt.s32.totalorder %v3929, 3
        %vm3951 = vcmp.lt.s32.totalorder %v3929, 4
        %v3952 = vsel %vm3948, %v3932, %v3935
        %v3953 = vsel %vm3951, %v3941, 2102212464
        %v3954 = vsel %vm3950, %v3938, %v3953
        %v3955 = vsel %vm3949, %v3952, %v3954
        %v3956 = vsel %vm3948, %v3935, %v3938
        %v3957 = vsel %vm3951, %v3944, 920167782
        %v3958 = vsel %vm3950, %v3941, %v3957
        %v3959 = vsel %vm3949, %v3956, %v3958
        %v3960 = vsel %vm3948, %v3938, %v3941
        %v3961 = vsel %vm3951, %v3947, 1326507024
        %v3962 = vsel %vm3950, %v3944, %v3961
        %v3963 = vsel %vm3949, %v3960, %v3962
        %v3964 = vshll.u32 %v3924, 8
        %v3965 = vmul.u32.u64.compose %v3964, %v3963
        %v3966 = vextract.low.u32 %v3965
        %v3967 = vextract.high.u32 %v3965
        %v3968 = vmul.u32.u64.compose %v3964, %v3959
        %v3969 = vextract.low.u32 %v3968
        %v3970 = vextract.high.u32 %v3968
        %v3971 = vmul.u32 %v3964, %v3955
        %v3972 = vadd.s32 %v3967, %v3969
        %vm3973 = vc.u32 %v3967, %v3969
        %v3974 = vadd.s32 %v3970, 1
        %v3975 = vsel %vm3973, %v3974, %v3970
        %v3976 = vadd.s32 %v3971, %v3975
        %v3977 = vadd.s32 %v3976, 536870912
        %v3978 = vshrl.u32 %v3977, 30
        %v3979 = vshll.u32 %v3978, 30
        %v3980 = vsub.s32 %v3976, %v3979
        %vm3981 = vcmp.lt.s32.totalorder %v3980, 0
        %v3982 = vsub.s32 0, %v3980
        %v3983 = vsel %vm3981, %v3982, %v3980
        %v3984 = vclz %v3983
        %v3985 = vsub.s32 %v3984, 2
        %vm3986 = vcmp.gt.s32.totalorder 0, %v3985
        %v3987 = vsel %vm3986, 0, %v3985
        %v3988 = vsub.s32 32, %v3987
        %v3989 = vshll.u32 %v3980, %v3987
        %v3990 = vshrl.u32 %v3972, %v3988
        %v3991 = vor.u32 %v3989, %v3990
        %v3992 = vsub.s32 4294967266, %v3987
        %v3993 = vadd.s32 %v3992, 127
        %v3994 = vshll.u32 %v3993, 23
        %v3995 = vor.u32 4788187, %v3994
        %v3996 = vand.u32 2147483647, %v3995
        %v3998 = vcvt.s32.f32 %v3991
        %v3999 = vmul.f32 %v3998, %v3996
        %v4000 = vxor.u32 %v3999, 2147483648
        %v4001 = vsel %vm3918, %v4000, %v3999
        %v4002 = vsub.s32 4, %v3978
        %v4003 = vsel %vm3918, %v4002, %v3978
        %v4004 = vsel %vm3917, %v706, %v4001
        %v4005 = vsel %vm3917, 0, %v4003
        %v4006 = vcosq.f32.pop %v4004
        %v4007 = vsinq.f32.pop %v4004
        %vm4008 = vweird.f32 %v706
        %v4009 = vand.u32 %v4005, 3
        %vm4010 = vcmp.lt.s32.totalorder %v4009, 2
        %vm4011 = vcmp.eq.s32.totalorder %v4009, 0
        %v4012 = vxor.u32 %v4007, 2147483648
        %v4013 = vsel %vm4011, %v4006, %v4012
        %vm4014 = vcmp.eq.s32.totalorder %v4009, 2
        %v4015 = vxor.u32 %v4006, 2147483648
        %v4016 = vsel %vm4014, %v4015, %v4007
        %v4017 = vsel %vm4010, %v4013, %v4016
        %v4018 = vsel %vm4008, nan, %v4017
        %v4019 = vmul.f32 %v810, 2.0
        %v4020 = vmul.f32 %v914, 2.0
        %v4021 = vmul.f32 %v1018, 2.0
        %v4022 = vmul.f32 %v1122, 2.0
        %v4023 = vmul.f32 %v1226, 2.0
        %v4024 = vmul.f32 %v1330, 2.0
        %v4025 = vmul.f32 %v1434, 2.0
        %v4026 = vmul.f32 %v1538, 2.0
        %v4027 = vmul.f32 %v1642, 2.0
        %v4028 = vmul.f32 %v1746, 2.0
        %v4029 = vmul.f32 %v1850, 2.0
        %v4030 = vmul.f32 %v1954, 2.0
        %v4031 = vmul.f32 %v2058, 2.0
        %v4032 = vmul.f32 %v2162, 2.0
        %v4033 = vmul.f32 %v2266, 2.0
        %v4034 = vmul.f32 %v2370, 2.0
        %v4035 = vmul.f32 %v4019, %v2473
        %v4036 = vmul.f32 %v4020, %v2576
        %v4037 = vmul.f32 %v4021, %v2679
        %v4038 = vmul.f32 %v4022, %v2782
        %v4039 = vmul.f32 %v4023, %v2885
        %v4040 = vmul.f32 %v4024, %v2988
        %v4041 = vmul.f32 %v4025, %v3091
        %v4042 = vmul.f32 %v4026, %v3194
        %v4043 = vmul.f32 %v4027, %v3297
        %v4044 = vmul.f32 %v4028, %v3400
        %v4045 = vmul.f32 %v4029, %v3503
        %v4046 = vmul.f32 %v4030, %v3606
        %v4047 = vmul.f32 %v4031, %v3709
        %v4048 = vmul.f32 %v4032, %v3812
        %v4049 = vmul.f32 %v4033, %v3915
        %v4050 = vmul.f32 %v4034, %v4018
        %v4051 = vmul.f32 %v4019, %v810
        %v4052 = vmul.f32 %v4020, %v914
        %v4053 = vmul.f32 %v4021, %v1018
        %v4054 = vmul.f32 %v4022, %v1122
        %v4055 = vmul.f32 %v4023, %v1226
        %v4056 = vmul.f32 %v4024, %v1330
        %v4057 = vmul.f32 %v4025, %v1434
        %v4058 = vmul.f32 %v4026, %v1538
        %v4059 = vmul.f32 %v4027, %v1642
        %v4060 = vmul.f32 %v4028, %v1746
        %v4061 = vmul.f32 %v4029, %v1850
        %v4062 = vmul.f32 %v4030, %v1954
        %v4063 = vmul.f32 %v4031, %v2058
        %v4064 = vmul.f32 %v4032, %v2162
        %v4065 = vmul.f32 %v4033, %v2266
        %v4066 = vmul.f32 %v4034, %v2370
        %v4067 = vsub.f32 1.0, %v4051
        %v4068 = vsub.f32 1.0, %v4052
        %v4069 = vsub.f32 1.0, %v4053
        %v4070 = vsub.f32 1.0, %v4054
        %v4071 = vsub.f32 1.0, %v4055
        %v4072 = vsub.f32 1.0, %v4056
        %v4073 = vsub.f32 1.0, %v4057
        %v4074 = vsub.f32 1.0, %v4058
        %v4075 = vsub.f32 1.0, %v4059
        %v4076 = vsub.f32 1.0, %v4060
        %v4077 = vsub.f32 1.0, %v4061
        %v4078 = vsub.f32 1.0, %v4062
        %v4079 = vsub.f32 1.0, %v4063
        %v4080 = vsub.f32 1.0, %v4064
        %v4081 = vsub.f32 1.0, %v4065
        %v4082 = vsub.f32 1.0, %v4066
        %v4083 = vmul.f32 %v4035, 2.0
        %v4084 = vmul.f32 %v4036, 2.0
        %v4085 = vmul.f32 %v4037, 2.0
        %v4086 = vmul.f32 %v4038, 2.0
        %v4087 = vmul.f32 %v4039, 2.0
        %v4088 = vmul.f32 %v4040, 2.0
        %v4089 = vmul.f32 %v4041, 2.0
        %v4090 = vmul.f32 %v4042, 2.0
        %v4091 = vmul.f32 %v4043, 2.0
        %v4092 = vmul.f32 %v4044, 2.0
        %v4093 = vmul.f32 %v4045, 2.0
        %v4094 = vmul.f32 %v4046, 2.0
        %v4095 = vmul.f32 %v4047, 2.0
        %v4096 = vmul.f32 %v4048, 2.0
        %v4097 = vmul.f32 %v4049, 2.0
        %v4098 = vmul.f32 %v4050, 2.0
        %v4099 = vmul.f32 %v4083, %v4067
        %v4100 = vmul.f32 %v4084, %v4068
        %v4101 = vmul.f32 %v4085, %v4069
        %v4102 = vmul.f32 %v4086, %v4070
        %v4103 = vmul.f32 %v4087, %v4071
        %v4104 = vmul.f32 %v4088, %v4072
        %v4105 = vmul.f32 %v4089, %v4073
        %v4106 = vmul.f32 %v4090, %v4074
        %v4107 = vmul.f32 %v4091, %v4075
        %v4108 = vmul.f32 %v4092, %v4076
        %v4109 = vmul.f32 %v4093, %v4077
        %v4110 = vmul.f32 %v4094, %v4078
        %v4111 = vmul.f32 %v4095, %v4079
        %v4112 = vmul.f32 %v4096, %v4080
        %v4113 = vmul.f32 %v4097, %v4081
        %v4114 = vmul.f32 %v4098, %v4082
        %v4115 = vmul.f32 %v4083, %v4035
        %v4116 = vmul.f32 %v4084, %v4036
        %v4117 = vmul.f32 %v4085, %v4037
        %v4118 = vmul.f32 %v4086, %v4038
        %v4119 = vmul.f32 %v4087, %v4039
        %v4120 = vmul.f32 %v4088, %v4040
        %v4121 = vmul.f32 %v4089, %v4041
        %v4122 = vmul.f32 %v4090, %v4042
        %v4123 = vmul.f32 %v4091, %v4043
        %v4124 = vmul.f32 %v4092, %v4044
        %v4125 = vmul.f32 %v4093, %v4045
        %v4126 = vmul.f32 %v4094, %v4046
        %v4127 = vmul.f32 %v4095, %v4047
        %v4128 = vmul.f32 %v4096, %v4048
        %v4129 = vmul.f32 %v4097, %v4049
        %v4130 = vmul.f32 %v4098, %v4050
        %v4131 = vsub.f32 1.0, %v4115
        %v4132 = vsub.f32 1.0, %v4116
        %v4133 = vsub.f32 1.0, %v4117
        %v4134 = vsub.f32 1.0, %v4118
        %v4135 = vsub.f32 1.0, %v4119
        %v4136 = vsub.f32 1.0, %v4120
        %v4137 = vsub.f32 1.0, %v4121
        %v4138 = vsub.f32 1.0, %v4122
        %v4139 = vsub.f32 1.0, %v4123
        %v4140 = vsub.f32 1.0, %v4124
        %v4141 = vsub.f32 1.0, %v4125
        %v4142 = vsub.f32 1.0, %v4126
        %v4143 = vsub.f32 1.0, %v4127
        %v4144 = vsub.f32 1.0, %v4128
        %v4145 = vsub.f32 1.0, %v4129
        %v4146 = vsub.f32 1.0, %v4130
        %v4147 = vmul.f32 %v4099, 2.0
        %v4148 = vmul.f32 %v4100, 2.0
        %v4149 = vmul.f32 %v4101, 2.0
        %v4150 = vmul.f32 %v4102, 2.0
        %v4151 = vmul.f32 %v4103, 2.0
        %v4152 = vmul.f32 %v4104, 2.0
        %v4153 = vmul.f32 %v4105, 2.0
        %v4154 = vmul.f32 %v4106, 2.0
        %v4155 = vmul.f32 %v4107, 2.0
        %v4156 = vmul.f32 %v4108, 2.0
        %v4157 = vmul.f32 %v4109, 2.0
        %v4158 = vmul.f32 %v4110, 2.0
        %v4159 = vmul.f32 %v4111, 2.0
        %v4160 = vmul.f32 %v4112, 2.0
        %v4161 = vmul.f32 %v4113, 2.0
        %v4162 = vmul.f32 %v4114, 2.0
        %v4163 = vmul.f32 %v4147, %v4131
        %v4164 = vmul.f32 %v4148, %v4132
        %v4165 = vmul.f32 %v4149, %v4133
        %v4166 = vmul.f32 %v4150, %v4134
        %v4167 = vmul.f32 %v4151, %v4135
        %v4168 = vmul.f32 %v4152, %v4136
        %v4169 = vmul.f32 %v4153, %v4137
        %v4170 = vmul.f32 %v4154, %v4138
        %v4171 = vmul.f32 %v4155, %v4139
        %v4172 = vmul.f32 %v4156, %v4140
        %v4173 = vmul.f32 %v4157, %v4141
        %v4174 = vmul.f32 %v4158, %v4142
        %v4175 = vmul.f32 %v4159, %v4143
        %v4176 = vmul.f32 %v4160, %v4144
        %v4177 = vmul.f32 %v4161, %v4145
        %v4178 = vmul.f32 %v4162, %v4146
        %v4179 = vmul.f32 %v4147, %v4099
        %v4180 = vmul.f32 %v4148, %v4100
        %v4181 = vmul.f32 %v4149, %v4101
        %v4182 = vmul.f32 %v4150, %v4102
        %v4183 = vmul.f32 %v4151, %v4103
        %v4184 = vmul.f32 %v4152, %v4104
        %v4185 = vmul.f32 %v4153, %v4105
        %v4186 = vmul.f32 %v4154, %v4106
        %v4187 = vmul.f32 %v4155, %v4107
        %v4188 = vmul.f32 %v4156, %v4108
        %v4189 = vmul.f32 %v4157, %v4109
        %v4190 = vmul.f32 %v4158, %v4110
        %v4191 = vmul.f32 %v4159, %v4111
        %v4192 = vmul.f32 %v4160, %v4112
        %v4193 = vmul.f32 %v4161, %v4113
        %v4194 = vmul.f32 %v4162, %v4114
        %v4195 = vsub.f32 1.0, %v4179
        %v4196 = vsub.f32 1.0, %v4180
        %v4197 = vsub.f32 1.0, %v4181
        %v4198 = vsub.f32 1.0, %v4182
        %v4199 = vsub.f32 1.0, %v4183
        %v4200 = vsub.f32 1.0, %v4184
        %v4201 = vsub.f32 1.0, %v4185
        %v4202 = vsub.f32 1.0, %v4186
        %v4203 = vsub.f32 1.0, %v4187
        %v4204 = vsub.f32 1.0, %v4188
        %v4205 = vsub.f32 1.0, %v4189
        %v4206 = vsub.f32 1.0, %v4190
        %v4207 = vsub.f32 1.0, %v4191
        %v4208 = vsub.f32 1.0, %v4192
        %v4209 = vsub.f32 1.0, %v4193
        %v4210 = vsub.f32 1.0, %v4194
        %v4211 = vmul.f32 %v4163, 2.0
        %v4212 = vmul.f32 %v4164, 2.0
        %v4213 = vmul.f32 %v4165, 2.0
        %v4214 = vmul.f32 %v4166, 2.0
        %v4215 = vmul.f32 %v4167, 2.0
        %v4216 = vmul.f32 %v4168, 2.0
        %v4217 = vmul.f32 %v4169, 2.0
        %v4218 = vmul.f32 %v4170, 2.0
        %v4219 = vmul.f32 %v4171, 2.0
        %v4220 = vmul.f32 %v4172, 2.0
        %v4221 = vmul.f32 %v4173, 2.0
        %v4222 = vmul.f32 %v4174, 2.0
        %v4223 = vmul.f32 %v4175, 2.0
        %v4224 = vmul.f32 %v4176, 2.0
        %v4225 = vmul.f32 %v4177, 2.0
        %v4226 = vmul.f32 %v4178, 2.0
        %v4227 = vmul.f32 %v4211, %v4195
        %v4228 = vmul.f32 %v4212, %v4196
        %v4229 = vmul.f32 %v4213, %v4197
        %v4230 = vmul.f32 %v4214, %v4198
        %v4231 = vmul.f32 %v4215, %v4199
        %v4232 = vmul.f32 %v4216, %v4200
        %v4233 = vmul.f32 %v4217, %v4201
        %v4234 = vmul.f32 %v4218, %v4202
        %v4235 = vmul.f32 %v4219, %v4203
        %v4236 = vmul.f32 %v4220, %v4204
        %v4237 = vmul.f32 %v4221, %v4205
        %v4238 = vmul.f32 %v4222, %v4206
        %v4239 = vmul.f32 %v4223, %v4207
        %v4240 = vmul.f32 %v4224, %v4208
        %v4241 = vmul.f32 %v4225, %v4209
        %v4242 = vmul.f32 %v4226, %v4210
        %v4243 = vmul.f32 %v4211, %v4163
        %v4244 = vmul.f32 %v4212, %v4164
        %v4245 = vmul.f32 %v4213, %v4165
        %v4246 = vmul.f32 %v4214, %v4166
        %v4247 = vmul.f32 %v4215, %v4167
        %v4248 = vmul.f32 %v4216, %v4168
        %v4249 = vmul.f32 %v4217, %v4169
        %v4250 = vmul.f32 %v4218, %v4170
        %v4251 = vmul.f32 %v4219, %v4171
        %v4252 = vmul.f32 %v4220, %v4172
        %v4253 = vmul.f32 %v4221, %v4173
        %v4254 = vmul.f32 %v4222, %v4174
        %v4255 = vmul.f32 %v4223, %v4175
        %v4256 = vmul.f32 %v4224, %v4176
        %v4257 = vmul.f32 %v4225, %v4177
        %v4258 = vmul.f32 %v4226, %v4178
        %v4259 = vsub.f32 1.0, %v4243
        %v4260 = vsub.f32 1.0, %v4244
        %v4261 = vsub.f32 1.0, %v4245
        %v4262 = vsub.f32 1.0, %v4246
        %v4263 = vsub.f32 1.0, %v4247
        %v4264 = vsub.f32 1.0, %v4248
        %v4265 = vsub.f32 1.0, %v4249
        %v4266 = vsub.f32 1.0, %v4250
        %v4267 = vsub.f32 1.0, %v4251
        %v4268 = vsub.f32 1.0, %v4252
        %v4269 = vsub.f32 1.0, %v4253
        %v4270 = vsub.f32 1.0, %v4254
        %v4271 = vsub.f32 1.0, %v4255
        %v4272 = vsub.f32 1.0, %v4256
        %v4273 = vsub.f32 1.0, %v4257
        %v4274 = vsub.f32 1.0, %v4258
        %v4275 = vmul.f32 %v4227, 2.0
        %v4276 = vmul.f32 %v4228, 2.0
        %v4277 = vmul.f32 %v4229, 2.0
        %v4278 = vmul.f32 %v4230, 2.0
        %v4279 = vmul.f32 %v4231, 2.0
        %v4280 = vmul.f32 %v4232, 2.0
        %v4281 = vmul.f32 %v4233, 2.0
        %v4282 = vmul.f32 %v4234, 2.0
        %v4283 = vmul.f32 %v4235, 2.0
        %v4284 = vmul.f32 %v4236, 2.0
        %v4285 = vmul.f32 %v4237, 2.0
        %v4286 = vmul.f32 %v4238, 2.0
        %v4287 = vmul.f32 %v4239, 2.0
        %v4288 = vmul.f32 %v4240, 2.0
        %v4289 = vmul.f32 %v4241, 2.0
        %v4290 = vmul.f32 %v4242, 2.0
        %v4291 = vmul.f32 %v4275, %v4259
        %v4292 = vmul.f32 %v4276, %v4260
        %v4293 = vmul.f32 %v4277, %v4261
        %v4294 = vmul.f32 %v4278, %v4262
        %v4295 = vmul.f32 %v4279, %v4263
        %v4296 = vmul.f32 %v4280, %v4264
        %v4297 = vmul.f32 %v4281, %v4265
        %v4298 = vmul.f32 %v4282, %v4266
        %v4299 = vmul.f32 %v4283, %v4267
        %v4300 = vmul.f32 %v4284, %v4268
        %v4301 = vmul.f32 %v4285, %v4269
        %v4302 = vmul.f32 %v4286, %v4270
        %v4303 = vmul.f32 %v4287, %v4271
        %v4304 = vmul.f32 %v4288, %v4272
        %v4305 = vmul.f32 %v4289, %v4273
        %v4306 = vmul.f32 %v4290, %v4274
        %v4307 = vmul.f32 %v4275, %v4227
        %v4308 = vmul.f32 %v4276, %v4228
        %v4309 = vmul.f32 %v4277, %v4229
        %v4310 = vmul.f32 %v4278, %v4230
        %v4311 = vmul.f32 %v4279, %v4231
        %v4312 = vmul.f32 %v4280, %v4232
        %v4313 = vmul.f32 %v4281, %v4233
        %v4314 = vmul.f32 %v4282, %v4234
        %v4315 = vmul.f32 %v4283, %v4235
        %v4316 = vmul.f32 %v4284, %v4236
        %v4317 = vmul.f32 %v4285, %v4237
        %v4318 = vmul.f32 %v4286, %v4238
        %v4319 = vmul.f32 %v4287, %v4239
        %v4320 = vmul.f32 %v4288, %v4240
        %v4321 = vmul.f32 %v4289, %v4241
        %v4322 = vmul.f32 %v4290, %v4242
        %v4323 = vsub.f32 1.0, %v4307
        %v4324 = vsub.f32 1.0, %v4308
        %v4325 = vsub.f32 1.0, %v4309
        %v4326 = vsub.f32 1.0, %v4310
        %v4327 = vsub.f32 1.0, %v4311
        %v4328 = vsub.f32 1.0, %v4312
        %v4329 = vsub.f32 1.0, %v4313
        %v4330 = vsub.f32 1.0, %v4314
        %v4331 = vsub.f32 1.0, %v4315
        %v4332 = vsub.f32 1.0, %v4316
        %v4333 = vsub.f32 1.0, %v4317
        %v4334 = vsub.f32 1.0, %v4318
        %v4335 = vsub.f32 1.0, %v4319
        %v4336 = vsub.f32 1.0, %v4320
        %v4337 = vsub.f32 1.0, %v4321
        %v4338 = vsub.f32 1.0, %v4322
        %v4339 = vmul.f32 %v4291, 2.0
        %v4340 = vmul.f32 %v4292, 2.0
        %v4341 = vmul.f32 %v4293, 2.0
        %v4342 = vmul.f32 %v4294, 2.0
        %v4343 = vmul.f32 %v4295, 2.0
        %v4344 = vmul.f32 %v4296, 2.0
        %v4345 = vmul.f32 %v4297, 2.0
        %v4346 = vmul.f32 %v4298, 2.0
        %v4347 = vmul.f32 %v4299, 2.0
        %v4348 = vmul.f32 %v4300, 2.0
        %v4349 = vmul.f32 %v4301, 2.0
        %v4350 = vmul.f32 %v4302, 2.0
        %v4351 = vmul.f32 %v4303, 2.0
        %v4352 = vmul.f32 %v4304, 2.0
        %v4353 = vmul.f32 %v4305, 2.0
        %v4354 = vmul.f32 %v4306, 2.0
        %v4355 = vmul.f32 %v4339, %v4323
        %v4356 = vmul.f32 %v4340, %v4324
        %v4357 = vmul.f32 %v4341, %v4325
        %v4358 = vmul.f32 %v4342, %v4326
        %v4359 = vmul.f32 %v4343, %v4327
        %v4360 = vmul.f32 %v4344, %v4328
        %v4361 = vmul.f32 %v4345, %v4329
        %v4362 = vmul.f32 %v4346, %v4330
        %v4363 = vmul.f32 %v4347, %v4331
        %v4364 = vmul.f32 %v4348, %v4332
        %v4365 = vmul.f32 %v4349, %v4333
        %v4366 = vmul.f32 %v4350, %v4334
        %v4367 = vmul.f32 %v4351, %v4335
        %v4368 = vmul.f32 %v4352, %v4336
        %v4369 = vmul.f32 %v4353, %v4337
        %v4370 = vmul.f32 %v4354, %v4338
        %v4371 = vmul.f32 %v4339, %v4291
        %v4372 = vmul.f32 %v4340, %v4292
        %v4373 = vmul.f32 %v4341, %v4293
        %v4374 = vmul.f32 %v4342, %v4294
        %v4375 = vmul.f32 %v4343, %v4295
        %v4376 = vmul.f32 %v4344, %v4296
        %v4377 = vmul.f32 %v4345, %v4297
        %v4378 = vmul.f32 %v4346, %v4298
        %v4379 = vmul.f32 %v4347, %v4299
        %v4380 = vmul.f32 %v4348, %v4300
        %v4381 = vmul.f32 %v4349, %v4301
        %v4382 = vmul.f32 %v4350, %v4302
        %v4383 = vmul.f32 %v4351, %v4303
        %v4384 = vmul.f32 %v4352, %v4304
        %v4385 = vmul.f32 %v4353, %v4305
        %v4386 = vmul.f32 %v4354, %v4306
        %v4387 = vsub.f32 1.0, %v4371
        %v4388 = vsub.f32 1.0, %v4372
        %v4389 = vsub.f32 1.0, %v4373
        %v4390 = vsub.f32 1.0, %v4374
        %v4391 = vsub.f32 1.0, %v4375
        %v4392 = vsub.f32 1.0, %v4376
        %v4393 = vsub.f32 1.0, %v4377
        %v4394 = vsub.f32 1.0, %v4378
        %v4395 = vsub.f32 1.0, %v4379
        %v4396 = vsub.f32 1.0, %v4380
        %v4397 = vsub.f32 1.0, %v4381
        %v4398 = vsub.f32 1.0, %v4382
        %v4399 = vsub.f32 1.0, %v4383
        %v4400 = vsub.f32 1.0, %v4384
        %v4401 = vsub.f32 1.0, %v4385
        %v4402 = vsub.f32 1.0, %v4386
        %v4419 = vrot.slane %v4355, 4
        %v4420 = vrot.slane %v4356, 4
        %v4421 = vrot.slane %v4357, 4
        %v4422 = vrot.slane %v4358, 4
        %v4423 = vrot.slane %v4359, 4
        %v4424 = vrot.slane %v4360, 4
        %v4425 = vrot.slane %v4361, 4
        %v4426 = vrot.slane %v4362, 4
        %v4427 = vrot.slane %v4363, 4
        %v4428 = vrot.slane %v4364, 4
        %v4429 = vrot.slane %v4365, 4
        %v4430 = vrot.slane %v4366, 4
        %v4431 = vrot.slane %v4367, 4
        %v4432 = vrot.slane %v4368, 4
        %v4433 = vrot.slane %v4369, 4
        %v4434 = vrot.slane %v4370, 4
        %v4451 = vrot.slane %v4387, 4
        %v4452 = vrot.slane %v4388, 4
        %v4453 = vrot.slane %v4389, 4
        %v4454 = vrot.slane %v4390, 4
        %v4455 = vrot.slane %v4391, 4
        %v4456 = vrot.slane %v4392, 4
        %v4457 = vrot.slane %v4393, 4
        %v4458 = vrot.slane %v4394, 4
        %v4459 = vrot.slane %v4395, 4
        %v4460 = vrot.slane %v4396, 4
        %v4461 = vrot.slane %v4397, 4
        %v4462 = vrot.slane %v4398, 4
        %v4463 = vrot.slane %v4399, 4
        %v4464 = vrot.slane %v4400, 4
        %v4465 = vrot.slane %v4401, 4
        %v4466 = vrot.slane %v4402, 4
        %v4467 = vld [vmem:[%s1] sm:$0xff]
        %v4468 = vld [vmem:[%s1 + $0x8] sm:$0xff]
        %v4469 = vld [vmem:[%s1 + $0x10] sm:$0xff]
        %v4470 = vld [vmem:[%s1 + $0x18] sm:$0xff]
        %v4471 = vld [vmem:[%s2] sm:$0xff]
        %v4472 = vld [vmem:[%s2 + $0x8] sm:$0xff]
        %v4473 = vld [vmem:[%s2 + $0x10] sm:$0xff]
        %v4474 = vld [vmem:[%s2 + $0x18] sm:$0xff]
        %vm4475 = vcmask 162816
        %v4477 = vsel %vm4475, %v4471, 0
        %v4480 = vsel %vm4475, %v4472, 0
        %v4483 = vsel %vm4475, %v4473, 0
        %v4486 = vsel %vm4475, %v4474, 0
        %v4488 = vsel %vm673, %v4419, 0
        %v4490 = vsel %vm673, %v4420, 0
        %v4492 = vsel %vm673, %v4421, 0
        %v4494 = vsel %vm673, %v4422, 0
        %v4496 = vsel %vm673, %v4423, 0
        %v4498 = vsel %vm673, %v4424, 0
        %v4500 = vsel %vm673, %v4425, 0
        %v4502 = vsel %vm673, %v4426, 0
        %v4504 = vsel %vm673, %v4427, 0
        %v4506 = vsel %vm673, %v4428, 0
        %v4508 = vsel %vm673, %v4429, 0
        %v4510 = vsel %vm673, %v4430, 0
        %v4512 = vsel %vm673, %v4431, 0
        %v4514 = vsel %vm673, %v4432, 0
        %v4516 = vsel %vm673, %v4433, 0
        %v4518 = vsel %vm673, %v4434, 0
        %4520 = vmatprep.subr.mxu0 %v914
        %4521 = vmatpush1.msra.mxu0 %v810
        %4522 = vmatprep.subr.mxu0 %v4228
        %4523 = vmatpush1.msra.mxu0 %v4227
        %4524 = vmatprep.subr.mxu0 %v4490
        %4525 = vmatpush1.msra.mxu0 %v4488
        %4526 = vmatprep.subr.mxu0 0.0
        %4527 = vmatpush1.msra.mxu0 0.0
        %4528 = vmatprep.subr.mxu0 0.0
        %4529 = vmatpush1.msra.mxu0 0.0
        %4530 = vmatprep.subr.mxu0 0.0
        %4531 = vmatpush1.msra.mxu0 0.0
        %4532 = vmatprep.subr.mxu0 0.0
        %4533 = vmatpush1.msra.mxu0 0.0
        %4534 = vmatprep.subr.mxu0 0.0
        %4535 = vmatpush1.msra.mxu0 0.0
        %4536 = vmatprep.subr.mxu0 0.0
        %4537 = vmatpush1.msra.mxu0 0.0
        %4538 = vmatprep.subr.mxu0 0.0
        %4539 = vmatpush1.msra.mxu0 0.0
        %4540 = vmatprep.subr.mxu0 0.0
        %4541 = vmatpush1.msra.mxu0 0.0
        %4542 = vmatprep.subr.mxu0 0.0
        %4543 = vmatpush1.msra.mxu0 0.0
        %4544 = vmatprep.subr.mxu0 0.0
        %4545 = vmatpush1.msra.mxu0 0.0
        %4546 = vmatprep.subr.mxu0 0.0
        %4547 = vmatpush1.msra.mxu0 0.0
        %4548 = vmatprep.subr.mxu0 0.0
        %4549 = vmatpush1.msra.mxu0 0.0
        %4550 = vmatprep.subr.mxu0 0.0
        %4551 = vmatpush1.msra.mxu0 0.0
        %4552 = vmatprep.subr.mxu0 0.0
        %4553 = vmatpush1.msra.mxu0 0.0
        %4554 = vmatprep.subr.mxu0 0.0
        %4555 = vmatpush1.msra.mxu0 0.0
        %4556 = vmatprep.subr.mxu0 0.0
        %4557 = vmatpush1.msra.mxu0 0.0
        %4558 = vmatprep.subr.mxu0 0.0
        %4559 = vmatpush1.msra.mxu0 0.0
        %4560 = vmatprep.subr.mxu0 0.0
        %4561 = vmatpush1.msra.mxu0 0.0
        %4562 = vmatprep.subr.mxu0 0.0
        %4563 = vmatpush1.msra.mxu0 0.0
        %4564 = vmatprep.subr.mxu0 0.0
        %4565 = vmatpush1.msra.mxu0 0.0
        %4566 = vmatprep.subr.mxu0 0.0
        %4567 = vmatpush1.msra.mxu0 0.0
        %4568 = vmatprep.subr.mxu0 0.0
        %4569 = vmatpush1.msra.mxu0 0.0
        %4570 = vmatprep.subr.mxu0 0.0
        %4571 = vmatpush1.msra.mxu0 0.0
        %4572 = vmatprep.subr.mxu0 0.0
        %4573 = vmatpush1.msra.mxu0 0.0
        %4574 = vmatprep.subr.mxu0 0.0
        %4575 = vmatpush1.msra.mxu0 0.0
        %4576 = vmatprep.subr.mxu0 0.0
        %4577 = vmatpush1.msra.mxu0 0.0
        %4578 = vmatprep.subr.mxu0 0.0
        %4579 = vmatpush1.msra.mxu0 0.0
        %4580 = vmatprep.subr.mxu0 0.0
        %4581 = vmatpush1.msra.mxu0 0.0
        %4582 = vmatprep.subr.mxu0 0.0
        %4583 = vmatpush1.msra.mxu0 0.0
        %4584 = vmatprep.mubr.f32.mxu0 0.0
        %4585 = vmatmul.mubr.f32.gmra.mrb[0].mxu0 %v4477
        %v4586 = vpop.f32.mrb[0].mxu0
        %v4587 = vadd.f32 0.0, %v4586
        %v4588 = vpop.f32.mrb[0].mxu0
        %v4589 = vadd.f32 0.0, %v4588
        %4590 = vmatprep.mubr.f32.mxu0 0.0
        %4591 = vmatmul.mubr.f32.gmra.mrb[0].mxu0 %v4480
        %v4592 = vpop.f32.mrb[0].mxu0
        %v4593 = vadd.f32 0.0, %v4592
        %v4594 = vpop.f32.mrb[0].mxu0
        %v4595 = vadd.f32 0.0, %v4594
        %4596 = vmatprep.mubr.f32.mxu0 0.0
        %4597 = vmatmul.mubr.f32.gmra.mrb[0].mxu0 %v4483
        %v4598 = vpop.f32.mrb[0].mxu0
        %v4599 = vadd.f32 0.0, %v4598
        %v4600 = vpop.f32.mrb[0].mxu0
        %v4601 = vadd.f32 0.0, %v4600
        %4602 = vmatprep.mubr.f32.mxu0 0.0
        %4603 = vmatmul.mubr.f32.gmra.mrb[0].mxu0 %v4486
        %v4604 = vpop.f32.mrb[0].mxu0
        %v4605 = vadd.f32 0.0, %v4604
        %v4606 = vpop.f32.mrb[0].mxu0
        %v4607 = vadd.f32 0.0, %v4606
        %4608 = vdwg.mxu0
        %4609 = vmatprep.subr.mxu0 %v1122
        %4610 = vmatpush1.msra.mxu0 %v1018
        %4611 = vmatprep.subr.mxu0 %v4230
        %4612 = vmatpush1.msra.mxu0 %v4229
        %4613 = vmatprep.subr.mxu0 %v4494
        %4614 = vmatpush1.msra.mxu0 %v4492
        %4615 = vmatprep.subr.mxu0 0.0
        %4616 = vmatpush1.msra.mxu0 0.0
        %4617 = vmatprep.subr.mxu0 0.0
        %4618 = vmatpush1.msra.mxu0 0.0
        %4619 = vmatprep.subr.mxu0 0.0
        %4620 = vmatpush1.msra.mxu0 0.0
        %4621 = vmatprep.subr.mxu0 0.0
        %4622 = vmatpush1.msra.mxu0 0.0
        %4623 = vmatprep.subr.mxu0 0.0
        %4624 = vmatpush1.msra.mxu0 0.0
        %4625 = vmatprep.subr.mxu0 0.0
        %4626 = vmatpush1.msra.mxu0 0.0
        %4627 = vmatprep.subr.mxu0 0.0
        %4628 = vmatpush1.msra.mxu0 0.0
        %4629 = vmatprep.subr.mxu0 0.0
        %4630 = vmatpush1.msra.mxu0 0.0
        %4631 = vmatprep.subr.mxu0 0.0
        %4632 = vmatpush1.msra.mxu0 0.0
        %4633 = vmatprep.subr.mxu0 0.0
        %4634 = vmatpush1.msra.mxu0 0.0
        %4635 = vmatprep.subr.mxu0 0.0
        %4636 = vmatpush1.msra.mxu0 0.0
        %4637 = vmatprep.subr.mxu0 0.0
        %4638 = vmatpush1.msra.mxu0 0.0
        %4639 = vmatprep.subr.mxu0 0.0
        %4640 = vmatpush1.msra.mxu0 0.0
        %4641 = vmatprep.subr.mxu0 0.0
        %4642 = vmatpush1.msra.mxu0 0.0
        %4643 = vmatprep.subr.mxu0 0.0
        %4644 = vmatpush1.msra.mxu0 0.0
        %4645 = vmatprep.subr.mxu0 0.0
        %4646 = vmatpush1.msra.mxu0 0.0
        %4647 = vmatprep.subr.mxu0 0.0
        %4648 = vmatpush1.msra.mxu0 0.0
        %4649 = vmatprep.subr.mxu0 0.0
        %4650 = vmatpush1.msra.mxu0 0.0
        %4651 = vmatprep.subr.mxu0 0.0
        %4652 = vmatpush1.msra.mxu0 0.0
        %4653 = vmatprep.subr.mxu0 0.0
        %4654 = vmatpush1.msra.mxu0 0.0
        %4655 = vmatprep.subr.mxu0 0.0
        %4656 = vmatpush1.msra.mxu0 0.0
        %4657 = vmatprep.subr.mxu0 0.0
        %4658 = vmatpush1.msra.mxu0 0.0
        %4659 = vmatprep.subr.mxu0 0.0
        %4660 = vmatpush1.msra.mxu0 0.0
        %4661 = vmatprep.subr.mxu0 0.0
        %4662 = vmatpush1.msra.mxu0 0.0
        %4663 = vmatprep.subr.mxu0 0.0
        %4664 = vmatpush1.msra.mxu0 0.0
        %4665 = vmatprep.subr.mxu0 0.0
        %4666 = vmatpush1.msra.mxu0 0.0
        %4667 = vmatprep.subr.mxu0 0.0
        %4668 = vmatpush1.msra.mxu0 0.0
        %4669 = vmatprep.subr.mxu0 0.0
        %4670 = vmatpush1.msra.mxu0 0.0
        %4671 = vmatprep.subr.mxu0 0.0
        %4672 = vmatpush1.msra.mxu0 0.0
        %4673 = vmatprep.mubr.f32.mxu0 0.0
        %4674 = vmatmul.mubr.f32.gmra.mrb[0].mxu0 %v4477
        %v4675 = vpop.f32.mrb[0].mxu0
        %v4676 = vadd.f32 0.0, %v4675
        %v4677 = vpop.f32.mrb[0].mxu0
        %v4678 = vadd.f32 0.0, %v4677
        %4679 = vmatprep.mubr.f32.mxu0 0.0
        %4680 = vmatmul.mubr.f32.gmra.mrb[0].mxu0 %v4480
        %v4681 = vpop.f32.mrb[0].mxu0
        %v4682 = vadd.f32 0.0, %v4681
        %v4683 = vpop.f32.mrb[0].mxu0
        %v4684 = vadd.f32 0.0, %v4683
        %4685 = vmatprep.mubr.f32.mxu0 0.0
        %4686 = vmatmul.mubr.f32.gmra.mrb[0].mxu0 %v4483
        %v4687 = vpop.f32.mrb[0].mxu0
        %v4688 = vadd.f32 0.0, %v4687
        %v4689 = vpop.f32.mrb[0].mxu0
        %v4690 = vadd.f32 0.0, %v4689
        %4691 = vmatprep.mubr.f32.mxu0 0.0
        %4692 = vmatmul.mubr.f32.gmra.mrb[0].mxu0 %v4486
        %v4693 = vpop.f32.mrb[0].mxu0
        %v4694 = vadd.f32 0.0, %v4693
        %v4695 = vpop.f32.mrb[0].mxu0
        %v4696 = vadd.f32 0.0, %v4695
        %4697 = vdwg.mxu0
        %4698 = vmatprep.subr.mxu0 %v1330
        %4699 = vmatpush1.msra.mxu0 %v1226
        %4700 = vmatprep.subr.mxu0 %v4232
        %4701 = vmatpush1.msra.mxu0 %v4231
        %4702 = vmatprep.subr.mxu0 %v4498
        %4703 = vmatpush1.msra.mxu0 %v4496
        %4704 = vmatprep.subr.mxu0 0.0
        %4705 = vmatpush1.msra.mxu0 0.0
        %4706 = vmatprep.subr.mxu0 0.0
        %4707 = vmatpush1.msra.mxu0 0.0
        %4708 = vmatprep.subr.mxu0 0.0
        %4709 = vmatpush1.msra.mxu0 0.0
        %4710 = vmatprep.subr.mxu0 0.0
        %4711 = vmatpush1.msra.mxu0 0.0
        %4712 = vmatprep.subr.mxu0 0.0
        %4713 = vmatpush1.msra.mxu0 0.0
        %4714 = vmatprep.subr.mxu0 0.0
        %4715 = vmatpush1.msra.mxu0 0.0
        %4716 = vmatprep.subr.mxu0 0.0
        %4717 = vmatpush1.msra.mxu0 0.0
        %4718 = vmatprep.subr.mxu0 0.0
        %4719 = vmatpush1.msra.mxu0 0.0
        %4720 = vmatprep.subr.mxu0 0.0
        %4721 = vmatpush1.msra.mxu0 0.0
        %4722 = vmatprep.subr.mxu0 0.0
        %4723 = vmatpush1.msra.mxu0 0.0
        %4724 = vmatprep.subr.mxu0 0.0
        %4725 = vmatpush1.msra.mxu0 0.0
        %4726 = vmatprep.subr.mxu0 0.0
        %4727 = vmatpush1.msra.mxu0 0.0
        %4728 = vmatprep.subr.mxu0 0.0
        %4729 = vmatpush1.msra.mxu0 0.0
        %4730 = vmatprep.subr.mxu0 0.0
        %4731 = vmatpush1.msra.mxu0 0.0
        %4732 = vmatprep.subr.mxu0 0.0
        %4733 = vmatpush1.msra.mxu0 0.0
        %4734 = vmatprep.subr.mxu0 0.0
        %4735 = vmatpush1.msra.mxu0 0.0
        %4736 = vmatprep.subr.mxu0 0.0
        %4737 = vmatpush1.msra.mxu0 0.0
        %4738 = vmatprep.subr.mxu0 0.0
        %4739 = vmatpush1.msra.mxu0 0.0
        %4740 = vmatprep.subr.mxu0 0.0
        %4741 = vmatpush1.msra.mxu0 0.0
        %4742 = vmatprep.subr.mxu0 0.0
        %4743 = vmatpush1.msra.mxu0 0.0
        %4744 = vmatprep.subr.mxu0 0.0
        %4745 = vmatpush1.msra.mxu0 0.0
        %4746 = vmatprep.subr.mxu0 0.0
        %4747 = vmatpush1.msra.mxu0 0.0
        %4748 = vmatprep.subr.mxu0 0.0
        %4749 = vmatpush1.msra.mxu0 0.0
        %4750 = vmatprep.subr.mxu0 0.0
        %4751 = vmatpush1.msra.mxu0 0.0
        %4752 = vmatprep.subr.mxu0 0.0
        %4753 = vmatpush1.msra.mxu0 0.0
        %4754 = vmatprep.subr.mxu0 0.0
        %4755 = vmatpush1.msra.mxu0 0.0
        %4756 = vmatprep.subr.mxu0 0.0
        %4757 = vmatpush1.msra.mxu0 0.0
        %4758 = vmatprep.subr.mxu0 0.0
        %4759 = vmatpush1.msra.mxu0 0.0
        %4760 = vmatprep.subr.mxu0 0.0
        %4761 = vmatpush1.msra.mxu0 0.0
        %4762 = vmatprep.mubr.f32.mxu0 0.0
        %4763 = vmatmul.mubr.f32.gmra.mrb[0].mxu0 %v4477
        %v4764 = vpop.f32.mrb[0].mxu0
        %v4765 = vadd.f32 0.0, %v4764
        %v4766 = vpop.f32.mrb[0].mxu0
        %v4767 = vadd.f32 0.0, %v4766
        %4768 = vmatprep.mubr.f32.mxu0 0.0
        %4769 = vmatmul.mubr.f32.gmra.mrb[0].mxu0 %v4480
        %v4770 = vpop.f32.mrb[0].mxu0
        %v4771 = vadd.f32 0.0, %v4770
        %v4772 = vpop.f32.mrb[0].mxu0
        %v4773 = vadd.f32 0.0, %v4772
        %4774 = vmatprep.mubr.f32.mxu0 0.0
        %4775 = vmatmul.mubr.f32.gmra.mrb[0].mxu0 %v4483
        %v4776 = vpop.f32.mrb[0].mxu0
        %v4777 = vadd.f32 0.0, %v4776
        %v4778 = vpop.f32.mrb[0].mxu0
        %v4779 = vadd.f32 0.0, %v4778
        %4780 = vmatprep.mubr.f32.mxu0 0.0
        %4781 = vmatmul.mubr.f32.gmra.mrb[0].mxu0 %v4486
        %v4782 = vpop.f32.mrb[0].mxu0
        %v4783 = vadd.f32 0.0, %v4782
        %v4784 = vpop.f32.mrb[0].mxu0
        %v4785 = vadd.f32 0.0, %v4784
        %4786 = vdwg.mxu0
        %4787 = vmatprep.subr.mxu0 %v1538
        %4788 = vmatpush1.msra.mxu0 %v1434
        %4789 = vmatprep.subr.mxu0 %v4234
        %4790 = vmatpush1.msra.mxu0 %v4233
        %4791 = vmatprep.subr.mxu0 %v4502
        %4792 = vmatpush1.msra.mxu0 %v4500
        %4793 = vmatprep.subr.mxu0 0.0
        %4794 = vmatpush1.msra.mxu0 0.0
        %4795 = vmatprep.subr.mxu0 0.0
        %4796 = vmatpush1.msra.mxu0 0.0
        %4797 = vmatprep.subr.mxu0 0.0
        %4798 = vmatpush1.msra.mxu0 0.0
        %4799 = vmatprep.subr.mxu0 0.0
        %4800 = vmatpush1.msra.mxu0 0.0
        %4801 = vmatprep.subr.mxu0 0.0
        %4802 = vmatpush1.msra.mxu0 0.0
        %4803 = vmatprep.subr.mxu0 0.0
        %4804 = vmatpush1.msra.mxu0 0.0
        %4805 = vmatprep.subr.mxu0 0.0
        %4806 = vmatpush1.msra.mxu0 0.0
        %4807 = vmatprep.subr.mxu0 0.0
        %4808 = vmatpush1.msra.mxu0 0.0
        %4809 = vmatprep.subr.mxu0 0.0
        %4810 = vmatpush1.msra.mxu0 0.0
        %4811 = vmatprep.subr.mxu0 0.0
        %4812 = vmatpush1.msra.mxu0 0.0
        %4813 = vmatprep.subr.mxu0 0.0
        %4814 = vmatpush1.msra.mxu0 0.0
        %4815 = vmatprep.subr.mxu0 0.0
        %4816 = vmatpush1.msra.mxu0 0.0
        %4817 = vmatprep.subr.mxu0 0.0
        %4818 = vmatpush1.msra.mxu0 0.0
        %4819 = vmatprep.subr.mxu0 0.0
        %4820 = vmatpush1.msra.mxu0 0.0
        %4821 = vmatprep.subr.mxu0 0.0
        %4822 = vmatpush1.msra.mxu0 0.0
        %4823 = vmatprep.subr.mxu0 0.0
        %4824 = vmatpush1.msra.mxu0 0.0
        %4825 = vmatprep.subr.mxu0 0.0
        %4826 = vmatpush1.msra.mxu0 0.0
        %4827 = vmatprep.subr.mxu0 0.0
        %4828 = vmatpush1.msra.mxu0 0.0
        %4829 = vmatprep.subr.mxu0 0.0
        %4830 = vmatpush1.msra.mxu0 0.0
        %4831 = vmatprep.subr.mxu0 0.0
        %4832 = vmatpush1.msra.mxu0 0.0
        %4833 = vmatprep.subr.mxu0 0.0
        %4834 = vmatpush1.msra.mxu0 0.0
        %4835 = vmatprep.subr.mxu0 0.0
        %4836 = vmatpush1.msra.mxu0 0.0
        %4837 = vmatprep.subr.mxu0 0.0
        %4838 = vmatpush1.msra.mxu0 0.0
        %4839 = vmatprep.subr.mxu0 0.0
        %4840 = vmatpush1.msra.mxu0 0.0
        %4841 = vmatprep.subr.mxu0 0.0
        %4842 = vmatpush1.msra.mxu0 0.0
        %4843 = vmatprep.subr.mxu0 0.0
        %4844 = vmatpush1.msra.mxu0 0.0
        %4845 = vmatprep.subr.mxu0 0.0
        %4846 = vmatpush1.msra.mxu0 0.0
        %4847 = vmatprep.subr.mxu0 0.0
        %4848 = vmatpush1.msra.mxu0 0.0
        %4849 = vmatprep.subr.mxu0 0.0
        %4850 = vmatpush1.msra.mxu0 0.0
        %4851 = vmatprep.mubr.f32.mxu0 0.0
        %4852 = vmatmul.mubr.f32.gmra.mrb[0].mxu0 %v4477
        %v4853 = vpop.f32.mrb[0].mxu0
        %v4854 = vadd.f32 0.0, %v4853
        %v4855 = vpop.f32.mrb[0].mxu0
        %v4856 = vadd.f32 0.0, %v4855
        %4857 = vmatprep.mubr.f32.mxu0 0.0
        %4858 = vmatmul.mubr.f32.gmra.mrb[0].mxu0 %v4480
        %v4859 = vpop.f32.mrb[0].mxu0
        %v4860 = vadd.f32 0.0, %v4859
        %v4861 = vpop.f32.mrb[0].mxu0
        %v4862 = vadd.f32 0.0, %v4861
        %4863 = vmatprep.mubr.f32.mxu0 0.0
        %4864 = vmatmul.mubr.f32.gmra.mrb[0].mxu0 %v4483
        %v4865 = vpop.f32.mrb[0].mxu0
        %v4866 = vadd.f32 0.0, %v4865
        %v4867 = vpop.f32.mrb[0].mxu0
        %v4868 = vadd.f32 0.0, %v4867
        %4869 = vmatprep.mubr.f32.mxu0 0.0
        %4870 = vmatmul.mubr.f32.gmra.mrb[0].mxu0 %v4486
        %v4871 = vpop.f32.mrb[0].mxu0
        %v4872 = vadd.f32 0.0, %v4871
        %v4873 = vpop.f32.mrb[0].mxu0
        %v4874 = vadd.f32 0.0, %v4873
        %4875 = vdwg.mxu0
        %4876 = vmatprep.subr.mxu0 %v1746
        %4877 = vmatpush1.msra.mxu0 %v1642
        %4878 = vmatprep.subr.mxu0 %v4236
        %4879 = vmatpush1.msra.mxu0 %v4235
        %4880 = vmatprep.subr.mxu0 %v4506
        %4881 = vmatpush1.msra.mxu0 %v4504
        %4882 = vmatprep.subr.mxu0 0.0
        %4883 = vmatpush1.msra.mxu0 0.0
        %4884 = vmatprep.subr.mxu0 0.0
        %4885 = vmatpush1.msra.mxu0 0.0
        %4886 = vmatprep.subr.mxu0 0.0
        %4887 = vmatpush1.msra.mxu0 0.0
        %4888 = vmatprep.subr.mxu0 0.0
        %4889 = vmatpush1.msra.mxu0 0.0
        %4890 = vmatprep.subr.mxu0 0.0
        %4891 = vmatpush1.msra.mxu0 0.0
        %4892 = vmatprep.subr.mxu0 0.0
        %4893 = vmatpush1.msra.mxu0 0.0
        %4894 = vmatprep.subr.mxu0 0.0
        %4895 = vmatpush1.msra.mxu0 0.0
        %4896 = vmatprep.subr.mxu0 0.0
        %4897 = vmatpush1.msra.mxu0 0.0
        %4898 = vmatprep.subr.mxu0 0.0
        %4899 = vmatpush1.msra.mxu0 0.0
        %4900 = vmatprep.subr.mxu0 0.0
        %4901 = vmatpush1.msra.mxu0 0.0
        %4902 = vmatprep.subr.mxu0 0.0
        %4903 = vmatpush1.msra.mxu0 0.0
        %4904 = vmatprep.subr.mxu0 0.0
        %4905 = vmatpush1.msra.mxu0 0.0
        %4906 = vmatprep.subr.mxu0 0.0
        %4907 = vmatpush1.msra.mxu0 0.0
        %4908 = vmatprep.subr.mxu0 0.0
        %4909 = vmatpush1.msra.mxu0 0.0
        %4910 = vmatprep.subr.mxu0 0.0
        %4911 = vmatpush1.msra.mxu0 0.0
        %4912 = vmatprep.subr.mxu0 0.0
        %4913 = vmatpush1.msra.mxu0 0.0
        %4914 = vmatprep.subr.mxu0 0.0
        %4915 = vmatpush1.msra.mxu0 0.0
        %4916 = vmatprep.subr.mxu0 0.0
        %4917 = vmatpush1.msra.mxu0 0.0
        %4918 = vmatprep.subr.mxu0 0.0
        %4919 = vmatpush1.msra.mxu0 0.0
        %4920 = vmatprep.subr.mxu0 0.0
        %4921 = vmatpush1.msra.mxu0 0.0
        %4922 = vmatprep.subr.mxu0 0.0
        %4923 = vmatpush1.msra.mxu0 0.0
        %4924 = vmatprep.subr.mxu0 0.0
        %4925 = vmatpush1.msra.mxu0 0.0
        %4926 = vmatprep.subr.mxu0 0.0
        %4927 = vmatpush1.msra.mxu0 0.0
        %4928 = vmatprep.subr.mxu0 0.0
        %4929 = vmatpush1.msra.mxu0 0.0
        %4930 = vmatprep.subr.mxu0 0.0
        %4931 = vmatpush1.msra.mxu0 0.0
        %4932 = vmatprep.subr.mxu0 0.0
        %4933 = vmatpush1.msra.mxu0 0.0
        %4934 = vmatprep.subr.mxu0 0.0
        %4935 = vmatpush1.msra.mxu0 0.0
        %4936 = vmatprep.subr.mxu0 0.0
        %4937 = vmatpush1.msra.mxu0 0.0
        %4938 = vmatprep.subr.mxu0 0.0
        %4939 = vmatpush1.msra.mxu0 0.0
        %4940 = vmatprep.mubr.f32.mxu0 0.0
        %4941 = vmatmul.mubr.f32.gmra.mrb[0].mxu0 %v4477
        %v4942 = vpop.f32.mrb[0].mxu0
        %v4943 = vadd.f32 0.0, %v4942
        %v4944 = vpop.f32.mrb[0].mxu0
        %v4945 = vadd.f32 0.0, %v4944
        %4946 = vmatprep.mubr.f32.mxu0 0.0
        %4947 = vmatmul.mubr.f32.gmra.mrb[0].mxu0 %v4480
        %v4948 = vpop.f32.mrb[0].mxu0
        %v4949 = vadd.f32 0.0, %v4948
        %v4950 = vpop.f32.mrb[0].mxu0
        %v4951 = vadd.f32 0.0, %v4950
        %4952 = vmatprep.mubr.f32.mxu0 0.0
        %4953 = vmatmul.mubr.f32.gmra.mrb[0].mxu0 %v4483
        %v4954 = vpop.f32.mrb[0].mxu0
        %v4955 = vadd.f32 0.0, %v4954
        %v4956 = vpop.f32.mrb[0].mxu0
        %v4957 = vadd.f32 0.0, %v4956
        %4958 = vmatprep.mubr.f32.mxu0 0.0
        %4959 = vmatmul.mubr.f32.gmra.mrb[0].mxu0 %v4486
        %v4960 = vpop.f32.mrb[0].mxu0
        %v4961 = vadd.f32 0.0, %v4960
        %v4962 = vpop.f32.mrb[0].mxu0
        %v4963 = vadd.f32 0.0, %v4962
        %4964 = vdwg.mxu0
        %4965 = vmatprep.subr.mxu0 %v1954
        %4966 = vmatpush1.msra.mxu0 %v1850
        %4967 = vmatprep.subr.mxu0 %v4238
        %4968 = vmatpush1.msra.mxu0 %v4237
        %4969 = vmatprep.subr.mxu0 %v4510
        %4970 = vmatpush1.msra.mxu0 %v4508
        %4971 = vmatprep.subr.mxu0 0.0
        %4972 = vmatpush1.msra.mxu0 0.0
        %4973 = vmatprep.subr.mxu0 0.0
        %4974 = vmatpush1.msra.mxu0 0.0
        %4975 = vmatprep.subr.mxu0 0.0
        %4976 = vmatpush1.msra.mxu0 0.0
        %4977 = vmatprep.subr.mxu0 0.0
        %4978 = vmatpush1.msra.mxu0 0.0
        %4979 = vmatprep.subr.mxu0 0.0
        %4980 = vmatpush1.msra.mxu0 0.0
        %4981 = vmatprep.subr.mxu0 0.0
        %4982 = vmatpush1.msra.mxu0 0.0
        %4983 = vmatprep.subr.mxu0 0.0
        %4984 = vmatpush1.msra.mxu0 0.0
        %4985 = vmatprep.subr.mxu0 0.0
        %4986 = vmatpush1.msra.mxu0 0.0
        %4987 = vmatprep.subr.mxu0 0.0
        %4988 = vmatpush1.msra.mxu0 0.0
        %4989 = vmatprep.subr.mxu0 0.0
        %4990 = vmatpush1.msra.mxu0 0.0
        %4991 = vmatprep.subr.mxu0 0.0
        %4992 = vmatpush1.msra.mxu0 0.0
        %4993 = vmatprep.subr.mxu0 0.0
        %4994 = vmatpush1.msra.mxu0 0.0
        %4995 = vmatprep.subr.mxu0 0.0
        %4996 = vmatpush1.msra.mxu0 0.0
        %4997 = vmatprep.subr.mxu0 0.0
        %4998 = vmatpush1.msra.mxu0 0.0
        %4999 = vmatprep.subr.mxu0 0.0
        %5000 = vmatpush1.msra.mxu0 0.0
        %5001 = vmatprep.subr.mxu0 0.0
        %5002 = vmatpush1.msra.mxu0 0.0
        %5003 = vmatprep.subr.mxu0 0.0
        %5004 = vmatpush1.msra.mxu0 0.0
        %5005 = vmatprep.subr.mxu0 0.0
        %5006 = vmatpush1.msra.mxu0 0.0
        %5007 = vmatprep.subr.mxu0 0.0
        %5008 = vmatpush1.msra.mxu0 0.0
        %5009 = vmatprep.subr.mxu0 0.0
        %5010 = vmatpush1.msra.mxu0 0.0
        %5011 = vmatprep.subr.mxu0 0.0
        %5012 = vmatpush1.msra.mxu0 0.0
        %5013 = vmatprep.subr.mxu0 0.0
        %5014 = vmatpush1.msra.mxu0 0.0
        %5015 = vmatprep.subr.mxu0 0.0
        %5016 = vmatpush1.msra.mxu0 0.0
        %5017 = vmatprep.subr.mxu0 0.0
        %5018 = vmatpush1.msra.mxu0 0.0
        %5019 = vmatprep.subr.mxu0 0.0
        %5020 = vmatpush1.msra.mxu0 0.0
        %5021 = vmatprep.subr.mxu0 0.0
        %5022 = vmatpush1.msra.mxu0 0.0
        %5023 = vmatprep.subr.mxu0 0.0
        %5024 = vmatpush1.msra.mxu0 0.0
        %5025 = vmatprep.subr.mxu0 0.0
        %5026 = vmatpush1.msra.mxu0 0.0
        %5027 = vmatprep.subr.mxu0 0.0
        %5028 = vmatpush1.msra.mxu0 0.0
        %5029 = vmatprep.mubr.f32.mxu0 0.0
        %5030 = vmatmul.mubr.f32.gmra.mrb[0].mxu0 %v4477
        %v5031 = vpop.f32.mrb[0].mxu0
        %v5032 = vadd.f32 0.0, %v5031
        %v5033 = vpop.f32.mrb[0].mxu0
        %v5034 = vadd.f32 0.0, %v5033
        %5035 = vmatprep.mubr.f32.mxu0 0.0
        %5036 = vmatmul.mubr.f32.gmra.mrb[0].mxu0 %v4480
        %v5037 = vpop.f32.mrb[0].mxu0
        %v5038 = vadd.f32 0.0, %v5037
        %v5039 = vpop.f32.mrb[0].mxu0
        %v5040 = vadd.f32 0.0, %v5039
        %5041 = vmatprep.mubr.f32.mxu0 0.0
        %5042 = vmatmul.mubr.f32.gmra.mrb[0].mxu0 %v4483
        %v5043 = vpop.f32.mrb[0].mxu0
        %v5044 = vadd.f32 0.0, %v5043
        %v5045 = vpop.f32.mrb[0].mxu0
        %v5046 = vadd.f32 0.0, %v5045
        %5047 = vmatprep.mubr.f32.mxu0 0.0
        %5048 = vmatmul.mubr.f32.gmra.mrb[0].mxu0 %v4486
        %v5049 = vpop.f32.mrb[0].mxu0
        %v5050 = vadd.f32 0.0, %v5049
        %v5051 = vpop.f32.mrb[0].mxu0
        %v5052 = vadd.f32 0.0, %v5051
        %5053 = vdwg.mxu0
        %5054 = vmatprep.subr.mxu0 %v2162
        %5055 = vmatpush1.msra.mxu0 %v2058
        %5056 = vmatprep.subr.mxu0 %v4240
        %5057 = vmatpush1.msra.mxu0 %v4239
        %5058 = vmatprep.subr.mxu0 %v4514
        %5059 = vmatpush1.msra.mxu0 %v4512
        %5060 = vmatprep.subr.mxu0 0.0
        %5061 = vmatpush1.msra.mxu0 0.0
        %5062 = vmatprep.subr.mxu0 0.0
        %5063 = vmatpush1.msra.mxu0 0.0
        %5064 = vmatprep.subr.mxu0 0.0
        %5065 = vmatpush1.msra.mxu0 0.0
        %5066 = vmatprep.subr.mxu0 0.0
        %5067 = vmatpush1.msra.mxu0 0.0
        %5068 = vmatprep.subr.mxu0 0.0
        %5069 = vmatpush1.msra.mxu0 0.0
        %5070 = vmatprep.subr.mxu0 0.0
        %5071 = vmatpush1.msra.mxu0 0.0
        %5072 = vmatprep.subr.mxu0 0.0
        %5073 = vmatpush1.msra.mxu0 0.0
        %5074 = vmatprep.subr.mxu0 0.0
        %5075 = vmatpush1.msra.mxu0 0.0
        %5076 = vmatprep.subr.mxu0 0.0
        %5077 = vmatpush1.msra.mxu0 0.0
        %5078 = vmatprep.subr.mxu0 0.0
        %5079 = vmatpush1.msra.mxu0 0.0
        %5080 = vmatprep.subr.mxu0 0.0
        %5081 = vmatpush1.msra.mxu0 0.0
        %5082 = vmatprep.subr.mxu0 0.0
        %5083 = vmatpush1.msra.mxu0 0.0
        %5084 = vmatprep.subr.mxu0 0.0
        %5085 = vmatpush1.msra.mxu0 0.0
        %5086 = vmatprep.subr.mxu0 0.0
        %5087 = vmatpush1.msra.mxu0 0.0
        %5088 = vmatprep.subr.mxu0 0.0
        %5089 = vmatpush1.msra.mxu0 0.0
        %5090 = vmatprep.subr.mxu0 0.0
        %5091 = vmatpush1.msra.mxu0 0.0
        %5092 = vmatprep.subr.mxu0 0.0
        %5093 = vmatpush1.msra.mxu0 0.0
        %5094 = vmatprep.subr.mxu0 0.0
        %5095 = vmatpush1.msra.mxu0 0.0
        %5096 = vmatprep.subr.mxu0 0.0
        %5097 = vmatpush1.msra.mxu0 0.0
        %5098 = vmatprep.subr.mxu0 0.0
        %5099 = vmatpush1.msra.mxu0 0.0
        %5100 = vmatprep.subr.mxu0 0.0
        %5101 = vmatpush1.msra.mxu0 0.0
        %5102 = vmatprep.subr.mxu0 0.0
        %5103 = vmatpush1.msra.mxu0 0.0
        %5104 = vmatprep.subr.mxu0 0.0
        %5105 = vmatpush1.msra.mxu0 0.0
        %5106 = vmatprep.subr.mxu0 0.0
        %5107 = vmatpush1.msra.mxu0 0.0
        %5108 = vmatprep.subr.mxu0 0.0
        %5109 = vmatpush1.msra.mxu0 0.0
        %5110 = vmatprep.subr.mxu0 0.0
        %5111 = vmatpush1.msra.mxu0 0.0
        %5112 = vmatprep.subr.mxu0 0.0
        %5113 = vmatpush1.msra.mxu0 0.0
        %5114 = vmatprep.subr.mxu0 0.0
        %5115 = vmatpush1.msra.mxu0 0.0
        %5116 = vmatprep.subr.mxu0 0.0
        %5117 = vmatpush1.msra.mxu0 0.0
        %5118 = vmatprep.mubr.f32.mxu0 0.0
        %5119 = vmatmul.mubr.f32.gmra.mrb[0].mxu0 %v4477
        %v5120 = vpop.f32.mrb[0].mxu0
        %v5121 = vadd.f32 0.0, %v5120
        %v5122 = vpop.f32.mrb[0].mxu0
        %v5123 = vadd.f32 0.0, %v5122
        %5124 = vmatprep.mubr.f32.mxu0 0.0
        %5125 = vmatmul.mubr.f32.gmra.mrb[0].mxu0 %v4480
        %v5126 = vpop.f32.mrb[0].mxu0
        %v5127 = vadd.f32 0.0, %v5126
        %v5128 = vpop.f32.mrb[0].mxu0
        %v5129 = vadd.f32 0.0, %v5128
        %5130 = vmatprep.mubr.f32.mxu0 0.0
        %5131 = vmatmul.mubr.f32.gmra.mrb[0].mxu0 %v4483
        %v5132 = vpop.f32.mrb[0].mxu0
        %v5133 = vadd.f32 0.0, %v5132
        %v5134 = vpop.f32.mrb[0].mxu0
        %v5135 = vadd.f32 0.0, %v5134
        %5136 = vmatprep.mubr.f32.mxu0 0.0
        %5137 = vmatmul.mubr.f32.gmra.mrb[0].mxu0 %v4486
        %v5138 = vpop.f32.mrb[0].mxu0
        %v5139 = vadd.f32 0.0, %v5138
        %v5140 = vpop.f32.mrb[0].mxu0
        %v5141 = vadd.f32 0.0, %v5140
        %5142 = vdwg.mxu0
        %5143 = vmatprep.subr.mxu0 %v2370
        %5144 = vmatpush1.msra.mxu0 %v2266
        %5145 = vmatprep.subr.mxu0 %v4242
        %5146 = vmatpush1.msra.mxu0 %v4241
        %5147 = vmatprep.subr.mxu0 %v4518
        %5148 = vmatpush1.msra.mxu0 %v4516
        %5149 = vmatprep.subr.mxu0 0.0
        %5150 = vmatpush1.msra.mxu0 0.0
        %5151 = vmatprep.subr.mxu0 0.0
        %5152 = vmatpush1.msra.mxu0 0.0
        %5153 = vmatprep.subr.mxu0 0.0
        %5154 = vmatpush1.msra.mxu0 0.0
        %5155 = vmatprep.subr.mxu0 0.0
        %5156 = vmatpush1.msra.mxu0 0.0
        %5157 = vmatprep.subr.mxu0 0.0
        %5158 = vmatpush1.msra.mxu0 0.0
        %5159 = vmatprep.subr.mxu0 0.0
        %5160 = vmatpush1.msra.mxu0 0.0
        %5161 = vmatprep.subr.mxu0 0.0
        %5162 = vmatpush1.msra.mxu0 0.0
        %5163 = vmatprep.subr.mxu0 0.0
        %5164 = vmatpush1.msra.mxu0 0.0
        %5165 = vmatprep.subr.mxu0 0.0
        %5166 = vmatpush1.msra.mxu0 0.0
        %5167 = vmatprep.subr.mxu0 0.0
        %5168 = vmatpush1.msra.mxu0 0.0
        %5169 = vmatprep.subr.mxu0 0.0
        %5170 = vmatpush1.msra.mxu0 0.0
        %5171 = vmatprep.subr.mxu0 0.0
        %5172 = vmatpush1.msra.mxu0 0.0
        %5173 = vmatprep.subr.mxu0 0.0
        %5174 = vmatpush1.msra.mxu0 0.0
        %5175 = vmatprep.subr.mxu0 0.0
        %5176 = vmatpush1.msra.mxu0 0.0
        %5177 = vmatprep.subr.mxu0 0.0
        %5178 = vmatpush1.msra.mxu0 0.0
        %5179 = vmatprep.subr.mxu0 0.0
        %5180 = vmatpush1.msra.mxu0 0.0
        %5181 = vmatprep.subr.mxu0 0.0
        %5182 = vmatpush1.msra.mxu0 0.0
        %5183 = vmatprep.subr.mxu0 0.0
        %5184 = vmatpush1.msra.mxu0 0.0
        %5185 = vmatprep.subr.mxu0 0.0
        %5186 = vmatpush1.msra.mxu0 0.0
        %5187 = vmatprep.subr.mxu0 0.0
        %5188 = vmatpush1.msra.mxu0 0.0
        %5189 = vmatprep.subr.mxu0 0.0
        %5190 = vmatpush1.msra.mxu0 0.0
        %5191 = vmatprep.subr.mxu0 0.0
        %5192 = vmatpush1.msra.mxu0 0.0
        %5193 = vmatprep.subr.mxu0 0.0
        %5194 = vmatpush1.msra.mxu0 0.0
        %5195 = vmatprep.subr.mxu0 0.0
        %5196 = vmatpush1.msra.mxu0 0.0
        %5197 = vmatprep.subr.mxu0 0.0
        %5198 = vmatpush1.msra.mxu0 0.0
        %5199 = vmatprep.subr.mxu0 0.0
        %5200 = vmatpush1.msra.mxu0 0.0
        %5201 = vmatprep.subr.mxu0 0.0
        %5202 = vmatpush1.msra.mxu0 0.0
        %5203 = vmatprep.subr.mxu0 0.0
        %5204 = vmatpush1.msra.mxu0 0.0
        %5205 = vmatprep.subr.mxu0 0.0
        %5206 = vmatpush1.msra.mxu0 0.0
        %5207 = vmatprep.mubr.f32.mxu0 0.0
        %5208 = vmatmul.mubr.f32.gmra.mrb[0].mxu0 %v4477
        %v5209 = vpop.f32.mrb[0].mxu0
        %v5210 = vadd.f32 0.0, %v5209
        %v5211 = vpop.f32.mrb[0].mxu0
        %v5212 = vadd.f32 0.0, %v5211
        %5213 = vmatprep.mubr.f32.mxu0 0.0
        %5214 = vmatmul.mubr.f32.gmra.mrb[0].mxu0 %v4480
        %v5215 = vpop.f32.mrb[0].mxu0
        %v5216 = vadd.f32 0.0, %v5215
        %v5217 = vpop.f32.mrb[0].mxu0
        %v5218 = vadd.f32 0.0, %v5217
        %5219 = vmatprep.mubr.f32.mxu0 0.0
        %5220 = vmatmul.mubr.f32.gmra.mrb[0].mxu0 %v4483
        %v5221 = vpop.f32.mrb[0].mxu0
        %v5222 = vadd.f32 0.0, %v5221
        %v5223 = vpop.f32.mrb[0].mxu0
        %v5224 = vadd.f32 0.0, %v5223
        %5225 = vmatprep.mubr.f32.mxu0 0.0
        %5226 = vmatmul.mubr.f32.gmra.mrb[0].mxu0 %v4486
        %v5227 = vpop.f32.mrb[0].mxu0
        %v5228 = vadd.f32 0.0, %v5227
        %v5229 = vpop.f32.mrb[0].mxu0
        %v5230 = vadd.f32 0.0, %v5229
        %5231 = vdwg.mxu0
        %v5236 = vcombine.high %v280, %v280
        %v5238 = vunpack.c.l.s4 1983009808
        %v5239 = vunpack.c.0.s8 %v5238
        %v5240 = vlaneseq
        %v5241 = vshrl.u32 %v5240, 7
        %v5242 = vsub.s32 %v5239, %v5241
        %v5243 = vrot.slane %v280, %v5242
        %v5245 = vunpack.c.l.s4 1983009808
        %v5246 = vunpack.c.0.s8 %v5245
        %v5247 = vlaneseq
        %v5248 = vshrl.u32 %v5247, 7
        %v5249 = vsub.s32 %v5246, %v5248
        %v5250 = vrot.slane %v5236, %v5249
        %v5251 = vcombine.high %v5243, %v5243
        %v5252 = vcombine.high %v5250, %v5250
        %v5253 = vcombine.high %v281, %v281
        %v5255 = vunpack.c.l.s4 1983009808
        %v5256 = vunpack.c.0.s8 %v5255
        %v5257 = vlaneseq
        %v5258 = vshrl.u32 %v5257, 7
        %v5259 = vsub.s32 %v5256, %v5258
        %v5260 = vrot.slane %v281, %v5259
        %v5262 = vunpack.c.l.s4 1983009808
        %v5263 = vunpack.c.0.s8 %v5262
        %v5264 = vlaneseq
        %v5265 = vshrl.u32 %v5264, 7
        %v5266 = vsub.s32 %v5263, %v5265
        %v5267 = vrot.slane %v5253, %v5266
        %v5268 = vcombine.high %v5260, %v5260
        %v5269 = vcombine.high %v5267, %v5267
        %v5270 = vcombine.high %v282, %v282
        %v5272 = vunpack.c.l.s4 1983009808
        %v5273 = vunpack.c.0.s8 %v5272
        %v5274 = vlaneseq
        %v5275 = vshrl.u32 %v5274, 7
        %v5276 = vsub.s32 %v5273, %v5275
        %v5277 = vrot.slane %v282, %v5276
        %v5279 = vunpack.c.l.s4 1983009808
        %v5280 = vunpack.c.0.s8 %v5279
        %v5281 = vlaneseq
        %v5282 = vshrl.u32 %v5281, 7
        %v5283 = vsub.s32 %v5280, %v5282
        %v5284 = vrot.slane %v5270, %v5283
        %v5285 = vcombine.high %v5277, %v5277
        %v5286 = vcombine.high %v5284, %v5284
        %v5287 = vcombine.high %v283, %v283
        %v5289 = vunpack.c.l.s4 1983009808
        %v5290 = vunpack.c.0.s8 %v5289
        %v5291 = vlaneseq
        %v5292 = vshrl.u32 %v5291, 7
        %v5293 = vsub.s32 %v5290, %v5292
        %v5294 = vrot.slane %v283, %v5293
        %v5296 = vunpack.c.l.s4 1983009808
        %v5297 = vunpack.c.0.s8 %v5296
        %v5298 = vlaneseq
        %v5299 = vshrl.u32 %v5298, 7
        %v5300 = vsub.s32 %v5297, %v5299
        %v5301 = vrot.slane %v5287, %v5300
        %v5302 = vcombine.high %v5294, %v5294
        %v5303 = vcombine.high %v5301, %v5301
        %vm5304 = vcmask 15360
        %v5306 = vsel %vm5304, %v4467, 0
        %v5309 = vsel %vm5304, %v4468, 0
        %v5312 = vsel %vm5304, %v4469, 0
        %v5315 = vsel %vm5304, %v4470, 0
        %v5317 = vsel %vm656, %v5243, 0
        %v5319 = vsel %vm656, %v5251, 0
        %v5321 = vsel %vm656, %v5250, 0
        %v5323 = vsel %vm656, %v5252, 0
        %v5325 = vsel %vm656, %v5260, 0
        %v5327 = vsel %vm656, %v5268, 0
        %v5329 = vsel %vm656, %v5267, 0
        %v5331 = vsel %vm656, %v5269, 0
        %v5333 = vsel %vm656, %v5277, 0
        %v5335 = vsel %vm656, %v5285, 0
        %v5337 = vsel %vm656, %v5284, 0
        %v5339 = vsel %vm656, %v5286, 0
        %v5341 = vsel %vm656, %v5294, 0
        %v5343 = vsel %vm656, %v5302, 0
        %v5345 = vsel %vm656, %v5301, 0
        %v5347 = vsel %vm656, %v5303, 0
        %5349 = vmatprep.subr.mxu0 %v5319
        %5350 = vmatpush1.msra.mxu0 %v5317
        %5351 = vmatprep.subr.mxu0 0.0
        %5352 = vmatpush1.msra.mxu0 0.0
        %5353 = vmatprep.subr.mxu0 0.0
        %5354 = vmatpush1.msra.mxu0 0.0
        %5355 = vmatprep.subr.mxu0 0.0
        %5356 = vmatpush1.msra.mxu0 0.0
        %5357 = vmatprep.subr.mxu0 0.0
        %5358 = vmatpush1.msra.mxu0 0.0
        %5359 = vmatprep.subr.mxu0 0.0
        %5360 = vmatpush1.msra.mxu0 0.0
        %5361 = vmatprep.subr.mxu0 0.0
        %5362 = vmatpush1.msra.mxu0 0.0
        %5363 = vmatprep.subr.mxu0 0.0
        %5364 = vmatpush1.msra.mxu0 0.0
        %5365 = vmatprep.subr.mxu0 0.0
        %5366 = vmatpush1.msra.mxu0 0.0
        %5367 = vmatprep.subr.mxu0 0.0
        %5368 = vmatpush1.msra.mxu0 0.0
        %5369 = vmatprep.subr.mxu0 0.0
        %5370 = vmatpush1.msra.mxu0 0.0
        %5371 = vmatprep.subr.mxu0 0.0
        %5372 = vmatpush1.msra.mxu0 0.0
        %5373 = vmatprep.subr.mxu0 0.0
        %5374 = vmatpush1.msra.mxu0 0.0
        %5375 = vmatprep.subr.mxu0 0.0
        %5376 = vmatpush1.msra.mxu0 0.0
        %5377 = vmatprep.subr.mxu0 0.0
        %5378 = vmatpush1.msra.mxu0 0.0
        %5379 = vmatprep.subr.mxu0 0.0
        %5380 = vmatpush1.msra.mxu0 0.0
        %5381 = vmatprep.subr.mxu0 0.0
        %5382 = vmatpush1.msra.mxu0 0.0
        %5383 = vmatprep.subr.mxu0 0.0
        %5384 = vmatpush1.msra.mxu0 0.0
        %5385 = vmatprep.subr.mxu0 0.0
        %5386 = vmatpush1.msra.mxu0 0.0
        %5387 = vmatprep.subr.mxu0 0.0
        %5388 = vmatpush1.msra.mxu0 0.0
        %5389 = vmatprep.subr.mxu0 0.0
        %5390 = vmatpush1.msra.mxu0 0.0
        %5391 = vmatprep.subr.mxu0 0.0
        %5392 = vmatpush1.msra.mxu0 0.0
        %5393 = vmatprep.subr.mxu0 0.0
        %5394 = vmatpush1.msra.mxu0 0.0
        %5395 = vmatprep.subr.mxu0 0.0
        %5396 = vmatpush1.msra.mxu0 0.0
        %5397 = vmatprep.subr.mxu0 0.0
        %5398 = vmatpush1.msra.mxu0 0.0
        %5399 = vmatprep.subr.mxu0 0.0
        %5400 = vmatpush1.msra.mxu0 0.0
        %5401 = vmatprep.subr.mxu0 0.0
        %5402 = vmatpush1.msra.mxu0 0.0
        %5403 = vmatprep.subr.mxu0 0.0
        %5404 = vmatpush1.msra.mxu0 0.0
        %5405 = vmatprep.subr.mxu0 0.0
        %5406 = vmatpush1.msra.mxu0 0.0
        %5407 = vmatprep.subr.mxu0 0.0
        %5408 = vmatpush1.msra.mxu0 0.0
        %5409 = vmatprep.subr.mxu0 0.0
        %5410 = vmatpush1.msra.mxu0 0.0
        %5411 = vmatprep.subr.mxu0 0.0
        %5412 = vmatpush1.msra.mxu0 0.0
        %5413 = vmatprep.mubr.f32.mxu0 0.0
        %5414 = vmatmul.mubr.f32.gmra.mrb[0].mxu0 %v5306
        %v5415 = vpop.f32.mrb[0].mxu0
        %v5416 = vadd.f32 %v4587, %v5415
        %v5417 = vpop.f32.mrb[0].mxu0
        %v5418 = vadd.f32 %v4589, %v5417
        %5419 = vmatprep.mubr.f32.mxu0 0.0
        %5420 = vmatmul.mubr.f32.gmra.mrb[0].mxu0 %v5309
        %v5421 = vpop.f32.mrb[0].mxu0
        %v5422 = vadd.f32 %v4593, %v5421
        %v5423 = vpop.f32.mrb[0].mxu0
        %v5424 = vadd.f32 %v4595, %v5423
        %5425 = vmatprep.mubr.f32.mxu0 0.0
        %5426 = vmatmul.mubr.f32.gmra.mrb[0].mxu0 %v5312
        %v5427 = vpop.f32.mrb[0].mxu0
        %v5428 = vadd.f32 %v4599, %v5427
        %v5429 = vpop.f32.mrb[0].mxu0
        %v5430 = vadd.f32 %v4601, %v5429
        %5431 = vmatprep.mubr.f32.mxu0 0.0
        %5432 = vmatmul.mubr.f32.gmra.mrb[0].mxu0 %v5315
        %v5433 = vpop.f32.mrb[0].mxu0
        %v5434 = vadd.f32 %v4605, %v5433
        %v5435 = vpop.f32.mrb[0].mxu0
        %v5436 = vadd.f32 %v4607, %v5435
        %5437 = vdwg.mxu0
        %5438 = vmatprep.subr.mxu0 %v5323
        %5439 = vmatpush1.msra.mxu0 %v5321
        %5440 = vmatprep.subr.mxu0 0.0
        %5441 = vmatpush1.msra.mxu0 0.0
        %5442 = vmatprep.subr.mxu0 0.0
        %5443 = vmatpush1.msra.mxu0 0.0
        %5444 = vmatprep.subr.mxu0 0.0
        %5445 = vmatpush1.msra.mxu0 0.0
        %5446 = vmatprep.subr.mxu0 0.0
        %5447 = vmatpush1.msra.mxu0 0.0
        %5448 = vmatprep.subr.mxu0 0.0
        %5449 = vmatpush1.msra.mxu0 0.0
        %5450 = vmatprep.subr.mxu0 0.0
        %5451 = vmatpush1.msra.mxu0 0.0
        %5452 = vmatprep.subr.mxu0 0.0
        %5453 = vmatpush1.msra.mxu0 0.0
        %5454 = vmatprep.subr.mxu0 0.0
        %5455 = vmatpush1.msra.mxu0 0.0
        %5456 = vmatprep.subr.mxu0 0.0
        %5457 = vmatpush1.msra.mxu0 0.0
        %5458 = vmatprep.subr.mxu0 0.0
        %5459 = vmatpush1.msra.mxu0 0.0
        %5460 = vmatprep.subr.mxu0 0.0
        %5461 = vmatpush1.msra.mxu0 0.0
        %5462 = vmatprep.subr.mxu0 0.0
        %5463 = vmatpush1.msra.mxu0 0.0
        %5464 = vmatprep.subr.mxu0 0.0
        %5465 = vmatpush1.msra.mxu0 0.0
        %5466 = vmatprep.subr.mxu0 0.0
        %5467 = vmatpush1.msra.mxu0 0.0
        %5468 = vmatprep.subr.mxu0 0.0
        %5469 = vmatpush1.msra.mxu0 0.0
        %5470 = vmatprep.subr.mxu0 0.0
        %5471 = vmatpush1.msra.mxu0 0.0
        %5472 = vmatprep.subr.mxu0 0.0
        %5473 = vmatpush1.msra.mxu0 0.0
        %5474 = vmatprep.subr.mxu0 0.0
        %5475 = vmatpush1.msra.mxu0 0.0
        %5476 = vmatprep.subr.mxu0 0.0
        %5477 = vmatpush1.msra.mxu0 0.0
        %5478 = vmatprep.subr.mxu0 0.0
        %5479 = vmatpush1.msra.mxu0 0.0
        %5480 = vmatprep.subr.mxu0 0.0
        %5481 = vmatpush1.msra.mxu0 0.0
        %5482 = vmatprep.subr.mxu0 0.0
        %5483 = vmatpush1.msra.mxu0 0.0
        %5484 = vmatprep.subr.mxu0 0.0
        %5485 = vmatpush1.msra.mxu0 0.0
        %5486 = vmatprep.subr.mxu0 0.0
        %5487 = vmatpush1.msra.mxu0 0.0
        %5488 = vmatprep.subr.mxu0 0.0
        %5489 = vmatpush1.msra.mxu0 0.0
        %5490 = vmatprep.subr.mxu0 0.0
        %5491 = vmatpush1.msra.mxu0 0.0
        %5492 = vmatprep.subr.mxu0 0.0
        %5493 = vmatpush1.msra.mxu0 0.0
        %5494 = vmatprep.subr.mxu0 0.0
        %5495 = vmatpush1.msra.mxu0 0.0
        %5496 = vmatprep.subr.mxu0 0.0
        %5497 = vmatpush1.msra.mxu0 0.0
        %5498 = vmatprep.subr.mxu0 0.0
        %5499 = vmatpush1.msra.mxu0 0.0
        %5500 = vmatprep.subr.mxu0 0.0
        %5501 = vmatpush1.msra.mxu0 0.0
        %5502 = vmatprep.mubr.f32.mxu0 0.0
        %5503 = vmatmul.mubr.f32.gmra.mrb[0].mxu0 %v5306
        %v5504 = vpop.f32.mrb[0].mxu0
        %v5505 = vadd.f32 %v4676, %v5504
        %v5506 = vpop.f32.mrb[0].mxu0
        %v5507 = vadd.f32 %v4678, %v5506
        %5508 = vmatprep.mubr.f32.mxu0 0.0
        %5509 = vmatmul.mubr.f32.gmra.mrb[0].mxu0 %v5309
        %v5510 = vpop.f32.mrb[0].mxu0
        %v5511 = vadd.f32 %v4682, %v5510
        %v5512 = vpop.f32.mrb[0].mxu0
        %v5513 = vadd.f32 %v4684, %v5512
        %5514 = vmatprep.mubr.f32.mxu0 0.0
        %5515 = vmatmul.mubr.f32.gmra.mrb[0].mxu0 %v5312
        %v5516 = vpop.f32.mrb[0].mxu0
        %v5517 = vadd.f32 %v4688, %v5516
        %v5518 = vpop.f32.mrb[0].mxu0
        %v5519 = vadd.f32 %v4690, %v5518
        %5520 = vmatprep.mubr.f32.mxu0 0.0
        %5521 = vmatmul.mubr.f32.gmra.mrb[0].mxu0 %v5315
        %v5522 = vpop.f32.mrb[0].mxu0
        %v5523 = vadd.f32 %v4694, %v5522
        %v5524 = vpop.f32.mrb[0].mxu0
        %v5525 = vadd.f32 %v4696, %v5524
        %5526 = vdwg.mxu0
        %5527 = vmatprep.subr.mxu0 %v5327
        %5528 = vmatpush1.msra.mxu0 %v5325
        %5529 = vmatprep.subr.mxu0 0.0
        %5530 = vmatpush1.msra.mxu0 0.0
        %5531 = vmatprep.subr.mxu0 0.0
        %5532 = vmatpush1.msra.mxu0 0.0
        %5533 = vmatprep.subr.mxu0 0.0
        %5534 = vmatpush1.msra.mxu0 0.0
        %5535 = vmatprep.subr.mxu0 0.0
        %5536 = vmatpush1.msra.mxu0 0.0
        %5537 = vmatprep.subr.mxu0 0.0
        %5538 = vmatpush1.msra.mxu0 0.0
        %5539 = vmatprep.subr.mxu0 0.0
        %5540 = vmatpush1.msra.mxu0 0.0
        %5541 = vmatprep.subr.mxu0 0.0
        %5542 = vmatpush1.msra.mxu0 0.0
        %5543 = vmatprep.subr.mxu0 0.0
        %5544 = vmatpush1.msra.mxu0 0.0
        %5545 = vmatprep.subr.mxu0 0.0
        %5546 = vmatpush1.msra.mxu0 0.0
        %5547 = vmatprep.subr.mxu0 0.0
        %5548 = vmatpush1.msra.mxu0 0.0
        %5549 = vmatprep.subr.mxu0 0.0
        %5550 = vmatpush1.msra.mxu0 0.0
        %5551 = vmatprep.subr.mxu0 0.0
        %5552 = vmatpush1.msra.mxu0 0.0
        %5553 = vmatprep.subr.mxu0 0.0
        %5554 = vmatpush1.msra.mxu0 0.0
        %5555 = vmatprep.subr.mxu0 0.0
        %5556 = vmatpush1.msra.mxu0 0.0
        %5557 = vmatprep.subr.mxu0 0.0
        %5558 = vmatpush1.msra.mxu0 0.0
        %5559 = vmatprep.subr.mxu0 0.0
        %5560 = vmatpush1.msra.mxu0 0.0
        %5561 = vmatprep.subr.mxu0 0.0
        %5562 = vmatpush1.msra.mxu0 0.0
        %5563 = vmatprep.subr.mxu0 0.0
        %5564 = vmatpush1.msra.mxu0 0.0
        %5565 = vmatprep.subr.mxu0 0.0
        %5566 = vmatpush1.msra.mxu0 0.0
        %5567 = vmatprep.subr.mxu0 0.0
        %5568 = vmatpush1.msra.mxu0 0.0
        %5569 = vmatprep.subr.mxu0 0.0
        %5570 = vmatpush1.msra.mxu0 0.0
        %5571 = vmatprep.subr.mxu0 0.0
        %5572 = vmatpush1.msra.mxu0 0.0
        %5573 = vmatprep.subr.mxu0 0.0
        %5574 = vmatpush1.msra.mxu0 0.0
        %5575 = vmatprep.subr.mxu0 0.0
        %5576 = vmatpush1.msra.mxu0 0.0
        %5577 = vmatprep.subr.mxu0 0.0
        %5578 = vmatpush1.msra.mxu0 0.0
        %5579 = vmatprep.subr.mxu0 0.0
        %5580 = vmatpush1.msra.mxu0 0.0
        %5581 = vmatprep.subr.mxu0 0.0
        %5582 = vmatpush1.msra.mxu0 0.0
        %5583 = vmatprep.subr.mxu0 0.0
        %5584 = vmatpush1.msra.mxu0 0.0
        %5585 = vmatprep.subr.mxu0 0.0
        %5586 = vmatpush1.msra.mxu0 0.0
        %5587 = vmatprep.subr.mxu0 0.0
        %5588 = vmatpush1.msra.mxu0 0.0
        %5589 = vmatprep.subr.mxu0 0.0
        %5590 = vmatpush1.msra.mxu0 0.0
        %5591 = vmatprep.mubr.f32.mxu0 0.0
        %5592 = vmatmul.mubr.f32.gmra.mrb[0].mxu0 %v5306
        %v5593 = vpop.f32.mrb[0].mxu0
        %v5594 = vadd.f32 %v4765, %v5593
        %v5595 = vpop.f32.mrb[0].mxu0
        %v5596 = vadd.f32 %v4767, %v5595
        %5597 = vmatprep.mubr.f32.mxu0 0.0
        %5598 = vmatmul.mubr.f32.gmra.mrb[0].mxu0 %v5309
        %v5599 = vpop.f32.mrb[0].mxu0
        %v5600 = vadd.f32 %v4771, %v5599
        %v5601 = vpop.f32.mrb[0].mxu0
        %v5602 = vadd.f32 %v4773, %v5601
        %5603 = vmatprep.mubr.f32.mxu0 0.0
        %5604 = vmatmul.mubr.f32.gmra.mrb[0].mxu0 %v5312
        %v5605 = vpop.f32.mrb[0].mxu0
        %v5606 = vadd.f32 %v4777, %v5605
        %v5607 = vpop.f32.mrb[0].mxu0
        %v5608 = vadd.f32 %v4779, %v5607
        %5609 = vmatprep.mubr.f32.mxu0 0.0
        %5610 = vmatmul.mubr.f32.gmra.mrb[0].mxu0 %v5315
        %v5611 = vpop.f32.mrb[0].mxu0
        %v5612 = vadd.f32 %v4783, %v5611
        %v5613 = vpop.f32.mrb[0].mxu0
        %v5614 = vadd.f32 %v4785, %v5613
        %5615 = vdwg.mxu0
        %5616 = vmatprep.subr.mxu0 %v5331
        %5617 = vmatpush1.msra.mxu0 %v5329
        %5618 = vmatprep.subr.mxu0 0.0
        %5619 = vmatpush1.msra.mxu0 0.0
        %5620 = vmatprep.subr.mxu0 0.0
        %5621 = vmatpush1.msra.mxu0 0.0
        %5622 = vmatprep.subr.mxu0 0.0
        %5623 = vmatpush1.msra.mxu0 0.0
        %5624 = vmatprep.subr.mxu0 0.0
        %5625 = vmatpush1.msra.mxu0 0.0
        %5626 = vmatprep.subr.mxu0 0.0
        %5627 = vmatpush1.msra.mxu0 0.0
        %5628 = vmatprep.subr.mxu0 0.0
        %5629 = vmatpush1.msra.mxu0 0.0
        %5630 = vmatprep.subr.mxu0 0.0
        %5631 = vmatpush1.msra.mxu0 0.0
        %5632 = vmatprep.subr.mxu0 0.0
        %5633 = vmatpush1.msra.mxu0 0.0
        %5634 = vmatprep.subr.mxu0 0.0
        %5635 = vmatpush1.msra.mxu0 0.0
        %5636 = vmatprep.subr.mxu0 0.0
        %5637 = vmatpush1.msra.mxu0 0.0
        %5638 = vmatprep.subr.mxu0 0.0
        %5639 = vmatpush1.msra.mxu0 0.0
        %5640 = vmatprep.subr.mxu0 0.0
        %5641 = vmatpush1.msra.mxu0 0.0
        %5642 = vmatprep.subr.mxu0 0.0
        %5643 = vmatpush1.msra.mxu0 0.0
        %5644 = vmatprep.subr.mxu0 0.0
        %5645 = vmatpush1.msra.mxu0 0.0
        %5646 = vmatprep.subr.mxu0 0.0
        %5647 = vmatpush1.msra.mxu0 0.0
        %5648 = vmatprep.subr.mxu0 0.0
        %5649 = vmatpush1.msra.mxu0 0.0
        %5650 = vmatprep.subr.mxu0 0.0
        %5651 = vmatpush1.msra.mxu0 0.0
        %5652 = vmatprep.subr.mxu0 0.0
        %5653 = vmatpush1.msra.mxu0 0.0
        %5654 = vmatprep.subr.mxu0 0.0
        %5655 = vmatpush1.msra.mxu0 0.0
        %5656 = vmatprep.subr.mxu0 0.0
        %5657 = vmatpush1.msra.mxu0 0.0
        %5658 = vmatprep.subr.mxu0 0.0
        %5659 = vmatpush1.msra.mxu0 0.0
        %5660 = vmatprep.subr.mxu0 0.0
        %5661 = vmatpush1.msra.mxu0 0.0
        %5662 = vmatprep.subr.mxu0 0.0
        %5663 = vmatpush1.msra.mxu0 0.0
        %5664 = vmatprep.subr.mxu0 0.0
        %5665 = vmatpush1.msra.mxu0 0.0
        %5666 = vmatprep.subr.mxu0 0.0
        %5667 = vmatpush1.msra.mxu0 0.0
        %5668 = vmatprep.subr.mxu0 0.0
        %5669 = vmatpush1.msra.mxu0 0.0
        %5670 = vmatprep.subr.mxu0 0.0
        %5671 = vmatpush1.msra.mxu0 0.0
        %5672 = vmatprep.subr.mxu0 0.0
        %5673 = vmatpush1.msra.mxu0 0.0
        %5674 = vmatprep.subr.mxu0 0.0
        %5675 = vmatpush1.msra.mxu0 0.0
        %5676 = vmatprep.subr.mxu0 0.0
        %5677 = vmatpush1.msra.mxu0 0.0
        %5678 = vmatprep.subr.mxu0 0.0
        %5679 = vmatpush1.msra.mxu0 0.0
        %5680 = vmatprep.mubr.f32.mxu0 0.0
        %5681 = vmatmul.mubr.f32.gmra.mrb[0].mxu0 %v5306
        %v5682 = vpop.f32.mrb[0].mxu0
        %v5683 = vadd.f32 %v4854, %v5682
        %v5684 = vpop.f32.mrb[0].mxu0
        %v5685 = vadd.f32 %v4856, %v5684
        %5686 = vmatprep.mubr.f32.mxu0 0.0
        %5687 = vmatmul.mubr.f32.gmra.mrb[0].mxu0 %v5309
        %v5688 = vpop.f32.mrb[0].mxu0
        %v5689 = vadd.f32 %v4860, %v5688
        %v5690 = vpop.f32.mrb[0].mxu0
        %v5691 = vadd.f32 %v4862, %v5690
        %5692 = vmatprep.mubr.f32.mxu0 0.0
        %5693 = vmatmul.mubr.f32.gmra.mrb[0].mxu0 %v5312
        %v5694 = vpop.f32.mrb[0].mxu0
        %v5695 = vadd.f32 %v4866, %v5694
        %v5696 = vpop.f32.mrb[0].mxu0
        %v5697 = vadd.f32 %v4868, %v5696
        %5698 = vmatprep.mubr.f32.mxu0 0.0
        %5699 = vmatmul.mubr.f32.gmra.mrb[0].mxu0 %v5315
        %v5700 = vpop.f32.mrb[0].mxu0
        %v5701 = vadd.f32 %v4872, %v5700
        %v5702 = vpop.f32.mrb[0].mxu0
        %v5703 = vadd.f32 %v4874, %v5702
        %5704 = vdwg.mxu0
        %5705 = vmatprep.subr.mxu0 %v5335
        %5706 = vmatpush1.msra.mxu0 %v5333
        %5707 = vmatprep.subr.mxu0 0.0
        %5708 = vmatpush1.msra.mxu0 0.0
        %5709 = vmatprep.subr.mxu0 0.0
        %5710 = vmatpush1.msra.mxu0 0.0
        %5711 = vmatprep.subr.mxu0 0.0
        %5712 = vmatpush1.msra.mxu0 0.0
        %5713 = vmatprep.subr.mxu0 0.0
        %5714 = vmatpush1.msra.mxu0 0.0
        %5715 = vmatprep.subr.mxu0 0.0
        %5716 = vmatpush1.msra.mxu0 0.0
        %5717 = vmatprep.subr.mxu0 0.0
        %5718 = vmatpush1.msra.mxu0 0.0
        %5719 = vmatprep.subr.mxu0 0.0
        %5720 = vmatpush1.msra.mxu0 0.0
        %5721 = vmatprep.subr.mxu0 0.0
        %5722 = vmatpush1.msra.mxu0 0.0
        %5723 = vmatprep.subr.mxu0 0.0
        %5724 = vmatpush1.msra.mxu0 0.0
        %5725 = vmatprep.subr.mxu0 0.0
        %5726 = vmatpush1.msra.mxu0 0.0
        %5727 = vmatprep.subr.mxu0 0.0
        %5728 = vmatpush1.msra.mxu0 0.0
        %5729 = vmatprep.subr.mxu0 0.0
        %5730 = vmatpush1.msra.mxu0 0.0
        %5731 = vmatprep.subr.mxu0 0.0
        %5732 = vmatpush1.msra.mxu0 0.0
        %5733 = vmatprep.subr.mxu0 0.0
        %5734 = vmatpush1.msra.mxu0 0.0
        %5735 = vmatprep.subr.mxu0 0.0
        %5736 = vmatpush1.msra.mxu0 0.0
        %5737 = vmatprep.subr.mxu0 0.0
        %5738 = vmatpush1.msra.mxu0 0.0
        %5739 = vmatprep.subr.mxu0 0.0
        %5740 = vmatpush1.msra.mxu0 0.0
        %5741 = vmatprep.subr.mxu0 0.0
        %5742 = vmatpush1.msra.mxu0 0.0
        %5743 = vmatprep.subr.mxu0 0.0
        %5744 = vmatpush1.msra.mxu0 0.0
        %5745 = vmatprep.subr.mxu0 0.0
        %5746 = vmatpush1.msra.mxu0 0.0
        %5747 = vmatprep.subr.mxu0 0.0
        %5748 = vmatpush1.msra.mxu0 0.0
        %5749 = vmatprep.subr.mxu0 0.0
        %5750 = vmatpush1.msra.mxu0 0.0
        %5751 = vmatprep.subr.mxu0 0.0
        %5752 = vmatpush1.msra.mxu0 0.0
        %5753 = vmatprep.subr.mxu0 0.0
        %5754 = vmatpush1.msra.mxu0 0.0
        %5755 = vmatprep.subr.mxu0 0.0
        %5756 = vmatpush1.msra.mxu0 0.0
        %5757 = vmatprep.subr.mxu0 0.0
        %5758 = vmatpush1.msra.mxu0 0.0
        %5759 = vmatprep.subr.mxu0 0.0
        %5760 = vmatpush1.msra.mxu0 0.0
        %5761 = vmatprep.subr.mxu0 0.0
        %5762 = vmatpush1.msra.mxu0 0.0
        %5763 = vmatprep.subr.mxu0 0.0
        %5764 = vmatpush1.msra.mxu0 0.0
        %5765 = vmatprep.subr.mxu0 0.0
        %5766 = vmatpush1.msra.mxu0 0.0
        %5767 = vmatprep.subr.mxu0 0.0
        %5768 = vmatpush1.msra.mxu0 0.0
        %5769 = vmatprep.mubr.f32.mxu0 0.0
        %5770 = vmatmul.mubr.f32.gmra.mrb[0].mxu0 %v5306
        %v5771 = vpop.f32.mrb[0].mxu0
        %v5772 = vadd.f32 %v4943, %v5771
        %v5773 = vpop.f32.mrb[0].mxu0
        %v5774 = vadd.f32 %v4945, %v5773
        %5775 = vmatprep.mubr.f32.mxu0 0.0
        %5776 = vmatmul.mubr.f32.gmra.mrb[0].mxu0 %v5309
        %v5777 = vpop.f32.mrb[0].mxu0
        %v5778 = vadd.f32 %v4949, %v5777
        %v5779 = vpop.f32.mrb[0].mxu0
        %v5780 = vadd.f32 %v4951, %v5779
        %5781 = vmatprep.mubr.f32.mxu0 0.0
        %5782 = vmatmul.mubr.f32.gmra.mrb[0].mxu0 %v5312
        %v5783 = vpop.f32.mrb[0].mxu0
        %v5784 = vadd.f32 %v4955, %v5783
        %v5785 = vpop.f32.mrb[0].mxu0
        %v5786 = vadd.f32 %v4957, %v5785
        %5787 = vmatprep.mubr.f32.mxu0 0.0
        %5788 = vmatmul.mubr.f32.gmra.mrb[0].mxu0 %v5315
        %v5789 = vpop.f32.mrb[0].mxu0
        %v5790 = vadd.f32 %v4961, %v5789
        %v5791 = vpop.f32.mrb[0].mxu0
        %v5792 = vadd.f32 %v4963, %v5791
        %5793 = vdwg.mxu0
        %5794 = vmatprep.subr.mxu0 %v5339
        %5795 = vmatpush1.msra.mxu0 %v5337
        %5796 = vmatprep.subr.mxu0 0.0
        %5797 = vmatpush1.msra.mxu0 0.0
        %5798 = vmatprep.subr.mxu0 0.0
        %5799 = vmatpush1.msra.mxu0 0.0
        %5800 = vmatprep.subr.mxu0 0.0
        %5801 = vmatpush1.msra.mxu0 0.0
        %5802 = vmatprep.subr.mxu0 0.0
        %5803 = vmatpush1.msra.mxu0 0.0
        %5804 = vmatprep.subr.mxu0 0.0
        %5805 = vmatpush1.msra.mxu0 0.0
        %5806 = vmatprep.subr.mxu0 0.0
        %5807 = vmatpush1.msra.mxu0 0.0
        %5808 = vmatprep.subr.mxu0 0.0
        %5809 = vmatpush1.msra.mxu0 0.0
        %5810 = vmatprep.subr.mxu0 0.0
        %5811 = vmatpush1.msra.mxu0 0.0
        %5812 = vmatprep.subr.mxu0 0.0
        %5813 = vmatpush1.msra.mxu0 0.0
        %5814 = vmatprep.subr.mxu0 0.0
        %5815 = vmatpush1.msra.mxu0 0.0
        %5816 = vmatprep.subr.mxu0 0.0
        %5817 = vmatpush1.msra.mxu0 0.0
        %5818 = vmatprep.subr.mxu0 0.0
        %5819 = vmatpush1.msra.mxu0 0.0
        %5820 = vmatprep.subr.mxu0 0.0
        %5821 = vmatpush1.msra.mxu0 0.0
        %5822 = vmatprep.subr.mxu0 0.0
        %5823 = vmatpush1.msra.mxu0 0.0
        %5824 = vmatprep.subr.mxu0 0.0
        %5825 = vmatpush1.msra.mxu0 0.0
        %5826 = vmatprep.subr.mxu0 0.0
        %5827 = vmatpush1.msra.mxu0 0.0
        %5828 = vmatprep.subr.mxu0 0.0
        %5829 = vmatpush1.msra.mxu0 0.0
        %5830 = vmatprep.subr.mxu0 0.0
        %5831 = vmatpush1.msra.mxu0 0.0
        %5832 = vmatprep.subr.mxu0 0.0
        %5833 = vmatpush1.msra.mxu0 0.0
        %5834 = vmatprep.subr.mxu0 0.0
        %5835 = vmatpush1.msra.mxu0 0.0
        %5836 = vmatprep.subr.mxu0 0.0
        %5837 = vmatpush1.msra.mxu0 0.0
        %5838 = vmatprep.subr.mxu0 0.0
        %5839 = vmatpush1.msra.mxu0 0.0
        %5840 = vmatprep.subr.mxu0 0.0
        %5841 = vmatpush1.msra.mxu0 0.0
        %5842 = vmatprep.subr.mxu0 0.0
        %5843 = vmatpush1.msra.mxu0 0.0
        %5844 = vmatprep.subr.mxu0 0.0
        %5845 = vmatpush1.msra.mxu0 0.0
        %5846 = vmatprep.subr.mxu0 0.0
        %5847 = vmatpush1.msra.mxu0 0.0
        %5848 = vmatprep.subr.mxu0 0.0
        %5849 = vmatpush1.msra.mxu0 0.0
        %5850 = vmatprep.subr.mxu0 0.0
        %5851 = vmatpush1.msra.mxu0 0.0
        %5852 = vmatprep.subr.mxu0 0.0
        %5853 = vmatpush1.msra.mxu0 0.0
        %5854 = vmatprep.subr.mxu0 0.0
        %5855 = vmatpush1.msra.mxu0 0.0
        %5856 = vmatprep.subr.mxu0 0.0
        %5857 = vmatpush1.msra.mxu0 0.0
        %5858 = vmatprep.mubr.f32.mxu0 0.0
        %5859 = vmatmul.mubr.f32.gmra.mrb[0].mxu0 %v5306
        %v5860 = vpop.f32.mrb[0].mxu0
        %v5861 = vadd.f32 %v5032, %v5860
        %v5862 = vpop.f32.mrb[0].mxu0
        %v5863 = vadd.f32 %v5034, %v5862
        %5864 = vmatprep.mubr.f32.mxu0 0.0
        %5865 = vmatmul.mubr.f32.gmra.mrb[0].mxu0 %v5309
        %v5866 = vpop.f32.mrb[0].mxu0
        %v5867 = vadd.f32 %v5038, %v5866
        %v5868 = vpop.f32.mrb[0].mxu0
        %v5869 = vadd.f32 %v5040, %v5868
        %5870 = vmatprep.mubr.f32.mxu0 0.0
        %5871 = vmatmul.mubr.f32.gmra.mrb[0].mxu0 %v5312
        %v5872 = vpop.f32.mrb[0].mxu0
        %v5873 = vadd.f32 %v5044, %v5872
        %v5874 = vpop.f32.mrb[0].mxu0
        %v5875 = vadd.f32 %v5046, %v5874
        %5876 = vmatprep.mubr.f32.mxu0 0.0
        %5877 = vmatmul.mubr.f32.gmra.mrb[0].mxu0 %v5315
        %v5878 = vpop.f32.mrb[0].mxu0
        %v5879 = vadd.f32 %v5050, %v5878
        %v5880 = vpop.f32.mrb[0].mxu0
        %v5881 = vadd.f32 %v5052, %v5880
        %5882 = vdwg.mxu0
        %5883 = vmatprep.subr.mxu0 %v5343
        %5884 = vmatpush1.msra.mxu0 %v5341
        %5885 = vmatprep.subr.mxu0 0.0
        %5886 = vmatpush1.msra.mxu0 0.0
        %5887 = vmatprep.subr.mxu0 0.0
        %5888 = vmatpush1.msra.mxu0 0.0
        %5889 = vmatprep.subr.mxu0 0.0
        %5890 = vmatpush1.msra.mxu0 0.0
        %5891 = vmatprep.subr.mxu0 0.0
        %5892 = vmatpush1.msra.mxu0 0.0
        %5893 = vmatprep.subr.mxu0 0.0
        %5894 = vmatpush1.msra.mxu0 0.0
        %5895 = vmatprep.subr.mxu0 0.0
        %5896 = vmatpush1.msra.mxu0 0.0
        %5897 = vmatprep.subr.mxu0 0.0
        %5898 = vmatpush1.msra.mxu0 0.0
        %5899 = vmatprep.subr.mxu0 0.0
        %5900 = vmatpush1.msra.mxu0 0.0
        %5901 = vmatprep.subr.mxu0 0.0
        %5902 = vmatpush1.msra.mxu0 0.0
        %5903 = vmatprep.subr.mxu0 0.0
        %5904 = vmatpush1.msra.mxu0 0.0
        %5905 = vmatprep.subr.mxu0 0.0
        %5906 = vmatpush1.msra.mxu0 0.0
        %5907 = vmatprep.subr.mxu0 0.0
        %5908 = vmatpush1.msra.mxu0 0.0
        %5909 = vmatprep.subr.mxu0 0.0
        %5910 = vmatpush1.msra.mxu0 0.0
        %5911 = vmatprep.subr.mxu0 0.0
        %5912 = vmatpush1.msra.mxu0 0.0
        %5913 = vmatprep.subr.mxu0 0.0
        %5914 = vmatpush1.msra.mxu0 0.0
        %5915 = vmatprep.subr.mxu0 0.0
        %5916 = vmatpush1.msra.mxu0 0.0
        %5917 = vmatprep.subr.mxu0 0.0
        %5918 = vmatpush1.msra.mxu0 0.0
        %5919 = vmatprep.subr.mxu0 0.0
        %5920 = vmatpush1.msra.mxu0 0.0
        %5921 = vmatprep.subr.mxu0 0.0
        %5922 = vmatpush1.msra.mxu0 0.0
        %5923 = vmatprep.subr.mxu0 0.0
        %5924 = vmatpush1.msra.mxu0 0.0
        %5925 = vmatprep.subr.mxu0 0.0
        %5926 = vmatpush1.msra.mxu0 0.0
        %5927 = vmatprep.subr.mxu0 0.0
        %5928 = vmatpush1.msra.mxu0 0.0
        %5929 = vmatprep.subr.mxu0 0.0
        %5930 = vmatpush1.msra.mxu0 0.0
        %5931 = vmatprep.subr.mxu0 0.0
        %5932 = vmatpush1.msra.mxu0 0.0
        %5933 = vmatprep.subr.mxu0 0.0
        %5934 = vmatpush1.msra.mxu0 0.0
        %5935 = vmatprep.subr.mxu0 0.0
        %5936 = vmatpush1.msra.mxu0 0.0
        %5937 = vmatprep.subr.mxu0 0.0
        %5938 = vmatpush1.msra.mxu0 0.0
        %5939 = vmatprep.subr.mxu0 0.0
        %5940 = vmatpush1.msra.mxu0 0.0
        %5941 = vmatprep.subr.mxu0 0.0
        %5942 = vmatpush1.msra.mxu0 0.0
        %5943 = vmatprep.subr.mxu0 0.0
        %5944 = vmatpush1.msra.mxu0 0.0
        %5945 = vmatprep.subr.mxu0 0.0
        %5946 = vmatpush1.msra.mxu0 0.0
        %5947 = vmatprep.mubr.f32.mxu0 0.0
        %5948 = vmatmul.mubr.f32.gmra.mrb[0].mxu0 %v5306
        %v5949 = vpop.f32.mrb[0].mxu0
        %v5950 = vadd.f32 %v5121, %v5949
        %v5951 = vpop.f32.mrb[0].mxu0
        %v5952 = vadd.f32 %v5123, %v5951
        %5953 = vmatprep.mubr.f32.mxu0 0.0
        %5954 = vmatmul.mubr.f32.gmra.mrb[0].mxu0 %v5309
        %v5955 = vpop.f32.mrb[0].mxu0
        %v5956 = vadd.f32 %v5127, %v5955
        %v5957 = vpop.f32.mrb[0].mxu0
        %v5958 = vadd.f32 %v5129, %v5957
        %5959 = vmatprep.mubr.f32.mxu0 0.0
        %5960 = vmatmul.mubr.f32.gmra.mrb[0].mxu0 %v5312
        %v5961 = vpop.f32.mrb[0].mxu0
        %v5962 = vadd.f32 %v5133, %v5961
        %v5963 = vpop.f32.mrb[0].mxu0
        %v5964 = vadd.f32 %v5135, %v5963
        %5965 = vmatprep.mubr.f32.mxu0 0.0
        %5966 = vmatmul.mubr.f32.gmra.mrb[0].mxu0 %v5315
        %v5967 = vpop.f32.mrb[0].mxu0
        %v5968 = vadd.f32 %v5139, %v5967
        %v5969 = vpop.f32.mrb[0].mxu0
        %v5970 = vadd.f32 %v5141, %v5969
        %5971 = vdwg.mxu0
        %5972 = vmatprep.subr.mxu0 %v5347
        %5973 = vmatpush1.msra.mxu0 %v5345
        %5974 = vmatprep.subr.mxu0 0.0
        %5975 = vmatpush1.msra.mxu0 0.0
        %5976 = vmatprep.subr.mxu0 0.0
        %5977 = vmatpush1.msra.mxu0 0.0
        %5978 = vmatprep.subr.mxu0 0.0
        %5979 = vmatpush1.msra.mxu0 0.0
        %5980 = vmatprep.subr.mxu0 0.0
        %5981 = vmatpush1.msra.mxu0 0.0
        %5982 = vmatprep.subr.mxu0 0.0
        %5983 = vmatpush1.msra.mxu0 0.0
        %5984 = vmatprep.subr.mxu0 0.0
        %5985 = vmatpush1.msra.mxu0 0.0
        %5986 = vmatprep.subr.mxu0 0.0
        %5987 = vmatpush1.msra.mxu0 0.0
        %5988 = vmatprep.subr.mxu0 0.0
        %5989 = vmatpush1.msra.mxu0 0.0
        %5990 = vmatprep.subr.mxu0 0.0
        %5991 = vmatpush1.msra.mxu0 0.0
        %5992 = vmatprep.subr.mxu0 0.0
        %5993 = vmatpush1.msra.mxu0 0.0
        %5994 = vmatprep.subr.mxu0 0.0
        %5995 = vmatpush1.msra.mxu0 0.0
        %5996 = vmatprep.subr.mxu0 0.0
        %5997 = vmatpush1.msra.mxu0 0.0
        %5998 = vmatprep.subr.mxu0 0.0
        %5999 = vmatpush1.msra.mxu0 0.0
        %6000 = vmatprep.subr.mxu0 0.0
        %6001 = vmatpush1.msra.mxu0 0.0
        %6002 = vmatprep.subr.mxu0 0.0
        %6003 = vmatpush1.msra.mxu0 0.0
        %6004 = vmatprep.subr.mxu0 0.0
        %6005 = vmatpush1.msra.mxu0 0.0
        %6006 = vmatprep.subr.mxu0 0.0
        %6007 = vmatpush1.msra.mxu0 0.0
        %6008 = vmatprep.subr.mxu0 0.0
        %6009 = vmatpush1.msra.mxu0 0.0
        %6010 = vmatprep.subr.mxu0 0.0
        %6011 = vmatpush1.msra.mxu0 0.0
        %6012 = vmatprep.subr.mxu0 0.0
        %6013 = vmatpush1.msra.mxu0 0.0
        %6014 = vmatprep.subr.mxu0 0.0
        %6015 = vmatpush1.msra.mxu0 0.0
        %6016 = vmatprep.subr.mxu0 0.0
        %6017 = vmatpush1.msra.mxu0 0.0
        %6018 = vmatprep.subr.mxu0 0.0
        %6019 = vmatpush1.msra.mxu0 0.0
        %6020 = vmatprep.subr.mxu0 0.0
        %6021 = vmatpush1.msra.mxu0 0.0
        %6022 = vmatprep.subr.mxu0 0.0
        %6023 = vmatpush1.msra.mxu0 0.0
        %6024 = vmatprep.subr.mxu0 0.0
        %6025 = vmatpush1.msra.mxu0 0.0
        %6026 = vmatprep.subr.mxu0 0.0
        %6027 = vmatpush1.msra.mxu0 0.0
        %6028 = vmatprep.subr.mxu0 0.0
        %6029 = vmatpush1.msra.mxu0 0.0
        %6030 = vmatprep.subr.mxu0 0.0
        %6031 = vmatpush1.msra.mxu0 0.0
        %6032 = vmatprep.subr.mxu0 0.0
        %6033 = vmatpush1.msra.mxu0 0.0
        %6034 = vmatprep.subr.mxu0 0.0
        %6035 = vmatpush1.msra.mxu0 0.0
        %6036 = vmatprep.mubr.f32.mxu0 0.0
        %6037 = vmatmul.mubr.f32.gmra.mrb[0].mxu0 %v5306
        %v6038 = vpop.f32.mrb[0].mxu0
        %v6039 = vadd.f32 %v5210, %v6038
        %v6040 = vpop.f32.mrb[0].mxu0
        %v6041 = vadd.f32 %v5212, %v6040
        %6042 = vmatprep.mubr.f32.mxu0 0.0
        %6043 = vmatmul.mubr.f32.gmra.mrb[0].mxu0 %v5309
        %v6044 = vpop.f32.mrb[0].mxu0
        %v6045 = vadd.f32 %v5216, %v6044
        %v6046 = vpop.f32.mrb[0].mxu0
        %v6047 = vadd.f32 %v5218, %v6046
        %6048 = vmatprep.mubr.f32.mxu0 0.0
        %6049 = vmatmul.mubr.f32.gmra.mrb[0].mxu0 %v5312
        %v6050 = vpop.f32.mrb[0].mxu0
        %v6051 = vadd.f32 %v5222, %v6050
        %v6052 = vpop.f32.mrb[0].mxu0
        %v6053 = vadd.f32 %v5224, %v6052
        %6054 = vmatprep.mubr.f32.mxu0 0.0
        %6055 = vmatmul.mubr.f32.gmra.mrb[0].mxu0 %v5315
        %v6056 = vpop.f32.mrb[0].mxu0
        %v6057 = vadd.f32 %v5228, %v6056
        %v6058 = vpop.f32.mrb[0].mxu0
        %v6059 = vadd.f32 %v5230, %v6058
        %6060 = vdwg.mxu0
        %v6061 = vld [vmem:[%s3] sm:$0xff]
        %v6062 = vld [vmem:[%s3 + $0x8] sm:$0xff]
        %v6063 = vld [vmem:[%s3 + $0x10] sm:$0xff]
        %v6064 = vld [vmem:[%s3 + $0x18] sm:$0xff]
        %v6066 = vsel %vm4475, %v6061, 0
        %v6069 = vsel %vm4475, %v6062, 0
        %v6072 = vsel %vm4475, %v6063, 0
        %v6075 = vsel %vm4475, %v6064, 0
        %v6077 = vsel %vm673, %v4451, 0
        %v6079 = vsel %vm673, %v4452, 0
        %v6081 = vsel %vm673, %v4453, 0
        %v6083 = vsel %vm673, %v4454, 0
        %v6085 = vsel %vm673, %v4455, 0
        %v6087 = vsel %vm673, %v4456, 0
        %v6089 = vsel %vm673, %v4457, 0
        %v6091 = vsel %vm673, %v4458, 0
        %v6093 = vsel %vm673, %v4459, 0
        %v6095 = vsel %vm673, %v4460, 0
        %v6097 = vsel %vm673, %v4461, 0
        %v6099 = vsel %vm673, %v4462, 0
        %v6101 = vsel %vm673, %v4463, 0
        %v6103 = vsel %vm673, %v4464, 0
        %v6105 = vsel %vm673, %v4465, 0
        %v6107 = vsel %vm673, %v4466, 0
        %6109 = vmatprep.subr.mxu0 %v2576
        %6110 = vmatpush1.msra.mxu0 %v2473
        %6111 = vmatprep.subr.mxu0 %v4260
        %6112 = vmatpush1.msra.mxu0 %v4259
        %6113 = vmatprep.subr.mxu0 %v6079
        %6114 = vmatpush1.msra.mxu0 %v6077
        %6115 = vmatprep.subr.mxu0 0.0
        %6116 = vmatpush1.msra.mxu0 0.0
        %6117 = vmatprep.subr.mxu0 0.0
        %6118 = vmatpush1.msra.mxu0 0.0
        %6119 = vmatprep.subr.mxu0 0.0
        %6120 = vmatpush1.msra.mxu0 0.0
        %6121 = vmatprep.subr.mxu0 0.0
        %6122 = vmatpush1.msra.mxu0 0.0
        %6123 = vmatprep.subr.mxu0 0.0
        %6124 = vmatpush1.msra.mxu0 0.0
        %6125 = vmatprep.subr.mxu0 0.0
        %6126 = vmatpush1.msra.mxu0 0.0
        %6127 = vmatprep.subr.mxu0 0.0
        %6128 = vmatpush1.msra.mxu0 0.0
        %6129 = vmatprep.subr.mxu0 0.0
        %6130 = vmatpush1.msra.mxu0 0.0
        %6131 = vmatprep.subr.mxu0 0.0
        %6132 = vmatpush1.msra.mxu0 0.0
        %6133 = vmatprep.subr.mxu0 0.0
        %6134 = vmatpush1.msra.mxu0 0.0
        %6135 = vmatprep.subr.mxu0 0.0
        %6136 = vmatpush1.msra.mxu0 0.0
        %6137 = vmatprep.subr.mxu0 0.0
        %6138 = vmatpush1.msra.mxu0 0.0
        %6139 = vmatprep.subr.mxu0 0.0
        %6140 = vmatpush1.msra.mxu0 0.0
        %6141 = vmatprep.subr.mxu0 0.0
        %6142 = vmatpush1.msra.mxu0 0.0
        %6143 = vmatprep.subr.mxu0 0.0
        %6144 = vmatpush1.msra.mxu0 0.0
        %6145 = vmatprep.subr.mxu0 0.0
        %6146 = vmatpush1.msra.mxu0 0.0
        %6147 = vmatprep.subr.mxu0 0.0
        %6148 = vmatpush1.msra.mxu0 0.0
        %6149 = vmatprep.subr.mxu0 0.0
        %6150 = vmatpush1.msra.mxu0 0.0
        %6151 = vmatprep.subr.mxu0 0.0
        %6152 = vmatpush1.msra.mxu0 0.0
        %6153 = vmatprep.subr.mxu0 0.0
        %6154 = vmatpush1.msra.mxu0 0.0
        %6155 = vmatprep.subr.mxu0 0.0
        %6156 = vmatpush1.msra.mxu0 0.0
        %6157 = vmatprep.subr.mxu0 0.0
        %6158 = vmatpush1.msra.mxu0 0.0
        %6159 = vmatprep.subr.mxu0 0.0
        %6160 = vmatpush1.msra.mxu0 0.0
        %6161 = vmatprep.subr.mxu0 0.0
        %6162 = vmatpush1.msra.mxu0 0.0
        %6163 = vmatprep.subr.mxu0 0.0
        %6164 = vmatpush1.msra.mxu0 0.0
        %6165 = vmatprep.subr.mxu0 0.0
        %6166 = vmatpush1.msra.mxu0 0.0
        %6167 = vmatprep.subr.mxu0 0.0
        %6168 = vmatpush1.msra.mxu0 0.0
        %6169 = vmatprep.subr.mxu0 0.0
        %6170 = vmatpush1.msra.mxu0 0.0
        %6171 = vmatprep.subr.mxu0 0.0
        %6172 = vmatpush1.msra.mxu0 0.0
        %6173 = vmatprep.mubr.f32.mxu0 0.0
        %6174 = vmatmul.mubr.f32.gmra.mrb[0].mxu0 %v6066
        %v6175 = vpop.f32.mrb[0].mxu0
        %v6176 = vadd.f32 0.0, %v6175
        %v6177 = vpop.f32.mrb[0].mxu0
        %v6178 = vadd.f32 0.0, %v6177
        %6179 = vmatprep.mubr.f32.mxu0 0.0
        %6180 = vmatmul.mubr.f32.gmra.mrb[0].mxu0 %v6069
        %v6181 = vpop.f32.mrb[0].mxu0
        %v6182 = vadd.f32 0.0, %v6181
        %v6183 = vpop.f32.mrb[0].mxu0
        %v6184 = vadd.f32 0.0, %v6183
        %6185 = vmatprep.mubr.f32.mxu0 0.0
        %6186 = vmatmul.mubr.f32.gmra.mrb[0].mxu0 %v6072
        %v6187 = vpop.f32.mrb[0].mxu0
        %v6188 = vadd.f32 0.0, %v6187
        %v6189 = vpop.f32.mrb[0].mxu0
        %v6190 = vadd.f32 0.0, %v6189
        %6191 = vmatprep.mubr.f32.mxu0 0.0
        %6192 = vmatmul.mubr.f32.gmra.mrb[0].mxu0 %v6075
        %v6193 = vpop.f32.mrb[0].mxu0
        %v6194 = vadd.f32 0.0, %v6193
        %v6195 = vpop.f32.mrb[0].mxu0
        %v6196 = vadd.f32 0.0, %v6195
        %6197 = vdwg.mxu0
        %6198 = vmatprep.subr.mxu0 %v2782
        %6199 = vmatpush1.msra.mxu0 %v2679
        %6200 = vmatprep.subr.mxu0 %v4262
        %6201 = vmatpush1.msra.mxu0 %v4261
        %6202 = vmatprep.subr.mxu0 %v6083
        %6203 = vmatpush1.msra.mxu0 %v6081
        %6204 = vmatprep.subr.mxu0 0.0
        %6205 = vmatpush1.msra.mxu0 0.0
        %6206 = vmatprep.subr.mxu0 0.0
        %6207 = vmatpush1.msra.mxu0 0.0
        %6208 = vmatprep.subr.mxu0 0.0
        %6209 = vmatpush1.msra.mxu0 0.0
        %6210 = vmatprep.subr.mxu0 0.0
        %6211 = vmatpush1.msra.mxu0 0.0
        %6212 = vmatprep.subr.mxu0 0.0
        %6213 = vmatpush1.msra.mxu0 0.0
        %6214 = vmatprep.subr.mxu0 0.0
        %6215 = vmatpush1.msra.mxu0 0.0
        %6216 = vmatprep.subr.mxu0 0.0
        %6217 = vmatpush1.msra.mxu0 0.0
        %6218 = vmatprep.subr.mxu0 0.0
        %6219 = vmatpush1.msra.mxu0 0.0
        %6220 = vmatprep.subr.mxu0 0.0
        %6221 = vmatpush1.msra.mxu0 0.0
        %6222 = vmatprep.subr.mxu0 0.0
        %6223 = vmatpush1.msra.mxu0 0.0
        %6224 = vmatprep.subr.mxu0 0.0
        %6225 = vmatpush1.msra.mxu0 0.0
        %6226 = vmatprep.subr.mxu0 0.0
        %6227 = vmatpush1.msra.mxu0 0.0
        %6228 = vmatprep.subr.mxu0 0.0
        %6229 = vmatpush1.msra.mxu0 0.0
        %6230 = vmatprep.subr.mxu0 0.0
        %6231 = vmatpush1.msra.mxu0 0.0
        %6232 = vmatprep.subr.mxu0 0.0
        %6233 = vmatpush1.msra.mxu0 0.0
        %6234 = vmatprep.subr.mxu0 0.0
        %6235 = vmatpush1.msra.mxu0 0.0
        %6236 = vmatprep.subr.mxu0 0.0
        %6237 = vmatpush1.msra.mxu0 0.0
        %6238 = vmatprep.subr.mxu0 0.0
        %6239 = vmatpush1.msra.mxu0 0.0
        %6240 = vmatprep.subr.mxu0 0.0
        %6241 = vmatpush1.msra.mxu0 0.0
        %6242 = vmatprep.subr.mxu0 0.0
        %6243 = vmatpush1.msra.mxu0 0.0
        %6244 = vmatprep.subr.mxu0 0.0
        %6245 = vmatpush1.msra.mxu0 0.0
        %6246 = vmatprep.subr.mxu0 0.0
        %6247 = vmatpush1.msra.mxu0 0.0
        %6248 = vmatprep.subr.mxu0 0.0
        %6249 = vmatpush1.msra.mxu0 0.0
        %6250 = vmatprep.subr.mxu0 0.0
        %6251 = vmatpush1.msra.mxu0 0.0
        %6252 = vmatprep.subr.mxu0 0.0
        %6253 = vmatpush1.msra.mxu0 0.0
        %6254 = vmatprep.subr.mxu0 0.0
        %6255 = vmatpush1.msra.mxu0 0.0
        %6256 = vmatprep.subr.mxu0 0.0
        %6257 = vmatpush1.msra.mxu0 0.0
        %6258 = vmatprep.subr.mxu0 0.0
        %6259 = vmatpush1.msra.mxu0 0.0
        %6260 = vmatprep.subr.mxu0 0.0
        %6261 = vmatpush1.msra.mxu0 0.0
        %6262 = vmatprep.mubr.f32.mxu0 0.0
        %6263 = vmatmul.mubr.f32.gmra.mrb[0].mxu0 %v6066
        %v6264 = vpop.f32.mrb[0].mxu0
        %v6265 = vadd.f32 0.0, %v6264
        %v6266 = vpop.f32.mrb[0].mxu0
        %v6267 = vadd.f32 0.0, %v6266
        %6268 = vmatprep.mubr.f32.mxu0 0.0
        %6269 = vmatmul.mubr.f32.gmra.mrb[0].mxu0 %v6069
        %v6270 = vpop.f32.mrb[0].mxu0
        %v6271 = vadd.f32 0.0, %v6270
        %v6272 = vpop.f32.mrb[0].mxu0
        %v6273 = vadd.f32 0.0, %v6272
        %6274 = vmatprep.mubr.f32.mxu0 0.0
        %6275 = vmatmul.mubr.f32.gmra.mrb[0].mxu0 %v6072
        %v6276 = vpop.f32.mrb[0].mxu0
        %v6277 = vadd.f32 0.0, %v6276
        %v6278 = vpop.f32.mrb[0].mxu0
        %v6279 = vadd.f32 0.0, %v6278
        %6280 = vmatprep.mubr.f32.mxu0 0.0
        %6281 = vmatmul.mubr.f32.gmra.mrb[0].mxu0 %v6075
        %v6282 = vpop.f32.mrb[0].mxu0
        %v6283 = vadd.f32 0.0, %v6282
        %v6284 = vpop.f32.mrb[0].mxu0
        %v6285 = vadd.f32 0.0, %v6284
        %6286 = vdwg.mxu0
        %6287 = vmatprep.subr.mxu0 %v2988
        %6288 = vmatpush1.msra.mxu0 %v2885
        %6289 = vmatprep.subr.mxu0 %v4264
        %6290 = vmatpush1.msra.mxu0 %v4263
        %6291 = vmatprep.subr.mxu0 %v6087
        %6292 = vmatpush1.msra.mxu0 %v6085
        %6293 = vmatprep.subr.mxu0 0.0
        %6294 = vmatpush1.msra.mxu0 0.0
        %6295 = vmatprep.subr.mxu0 0.0
        %6296 = vmatpush1.msra.mxu0 0.0
        %6297 = vmatprep.subr.mxu0 0.0
        %6298 = vmatpush1.msra.mxu0 0.0
        %6299 = vmatprep.subr.mxu0 0.0
        %6300 = vmatpush1.msra.mxu0 0.0
        %6301 = vmatprep.subr.mxu0 0.0
        %6302 = vmatpush1.msra.mxu0 0.0
        %6303 = vmatprep.subr.mxu0 0.0
        %6304 = vmatpush1.msra.mxu0 0.0
        %6305 = vmatprep.subr.mxu0 0.0
        %6306 = vmatpush1.msra.mxu0 0.0
        %6307 = vmatprep.subr.mxu0 0.0
        %6308 = vmatpush1.msra.mxu0 0.0
        %6309 = vmatprep.subr.mxu0 0.0
        %6310 = vmatpush1.msra.mxu0 0.0
        %6311 = vmatprep.subr.mxu0 0.0
        %6312 = vmatpush1.msra.mxu0 0.0
        %6313 = vmatprep.subr.mxu0 0.0
        %6314 = vmatpush1.msra.mxu0 0.0
        %6315 = vmatprep.subr.mxu0 0.0
        %6316 = vmatpush1.msra.mxu0 0.0
        %6317 = vmatprep.subr.mxu0 0.0
        %6318 = vmatpush1.msra.mxu0 0.0
        %6319 = vmatprep.subr.mxu0 0.0
        %6320 = vmatpush1.msra.mxu0 0.0
        %6321 = vmatprep.subr.mxu0 0.0
        %6322 = vmatpush1.msra.mxu0 0.0
        %6323 = vmatprep.subr.mxu0 0.0
        %6324 = vmatpush1.msra.mxu0 0.0
        %6325 = vmatprep.subr.mxu0 0.0
        %6326 = vmatpush1.msra.mxu0 0.0
        %6327 = vmatprep.subr.mxu0 0.0
        %6328 = vmatpush1.msra.mxu0 0.0
        %6329 = vmatprep.subr.mxu0 0.0
        %6330 = vmatpush1.msra.mxu0 0.0
        %6331 = vmatprep.subr.mxu0 0.0
        %6332 = vmatpush1.msra.mxu0 0.0
        %6333 = vmatprep.subr.mxu0 0.0
        %6334 = vmatpush1.msra.mxu0 0.0
        %6335 = vmatprep.subr.mxu0 0.0
        %6336 = vmatpush1.msra.mxu0 0.0
        %6337 = vmatprep.subr.mxu0 0.0
        %6338 = vmatpush1.msra.mxu0 0.0
        %6339 = vmatprep.subr.mxu0 0.0
        %6340 = vmatpush1.msra.mxu0 0.0
        %6341 = vmatprep.subr.mxu0 0.0
        %6342 = vmatpush1.msra.mxu0 0.0
        %6343 = vmatprep.subr.mxu0 0.0
        %6344 = vmatpush1.msra.mxu0 0.0
        %6345 = vmatprep.subr.mxu0 0.0
        %6346 = vmatpush1.msra.mxu0 0.0
        %6347 = vmatprep.subr.mxu0 0.0
        %6348 = vmatpush1.msra.mxu0 0.0
        %6349 = vmatprep.subr.mxu0 0.0
        %6350 = vmatpush1.msra.mxu0 0.0
        %6351 = vmatprep.mubr.f32.mxu0 0.0
        %6352 = vmatmul.mubr.f32.gmra.mrb[0].mxu0 %v6066
        %v6353 = vpop.f32.mrb[0].mxu0
        %v6354 = vadd.f32 0.0, %v6353
        %v6355 = vpop.f32.mrb[0].mxu0
        %v6356 = vadd.f32 0.0, %v6355
        %6357 = vmatprep.mubr.f32.mxu0 0.0
        %6358 = vmatmul.mubr.f32.gmra.mrb[0].mxu0 %v6069
        %v6359 = vpop.f32.mrb[0].mxu0
        %v6360 = vadd.f32 0.0, %v6359
        %v6361 = vpop.f32.mrb[0].mxu0
        %v6362 = vadd.f32 0.0, %v6361
        %6363 = vmatprep.mubr.f32.mxu0 0.0
        %6364 = vmatmul.mubr.f32.gmra.mrb[0].mxu0 %v6072
        %v6365 = vpop.f32.mrb[0].mxu0
        %v6366 = vadd.f32 0.0, %v6365
        %v6367 = vpop.f32.mrb[0].mxu0
        %v6368 = vadd.f32 0.0, %v6367
        %6369 = vmatprep.mubr.f32.mxu0 0.0
        %6370 = vmatmul.mubr.f32.gmra.mrb[0].mxu0 %v6075
        %v6371 = vpop.f32.mrb[0].mxu0
        %v6372 = vadd.f32 0.0, %v6371
        %v6373 = vpop.f32.mrb[0].mxu0
        %v6374 = vadd.f32 0.0, %v6373
        %6375 = vdwg.mxu0
        %6376 = vmatprep.subr.mxu0 %v3194
        %6377 = vmatpush1.msra.mxu0 %v3091
        %6378 = vmatprep.subr.mxu0 %v4266
        %6379 = vmatpush1.msra.mxu0 %v4265
        %6380 = vmatprep.subr.mxu0 %v6091
        %6381 = vmatpush1.msra.mxu0 %v6089
        %6382 = vmatprep.subr.mxu0 0.0
        %6383 = vmatpush1.msra.mxu0 0.0
        %6384 = vmatprep.subr.mxu0 0.0
        %6385 = vmatpush1.msra.mxu0 0.0
        %6386 = vmatprep.subr.mxu0 0.0
        %6387 = vmatpush1.msra.mxu0 0.0
        %6388 = vmatprep.subr.mxu0 0.0
        %6389 = vmatpush1.msra.mxu0 0.0
        %6390 = vmatprep.subr.mxu0 0.0
        %6391 = vmatpush1.msra.mxu0 0.0
        %6392 = vmatprep.subr.mxu0 0.0
        %6393 = vmatpush1.msra.mxu0 0.0
        %6394 = vmatprep.subr.mxu0 0.0
        %6395 = vmatpush1.msra.mxu0 0.0
        %6396 = vmatprep.subr.mxu0 0.0
        %6397 = vmatpush1.msra.mxu0 0.0
        %6398 = vmatprep.subr.mxu0 0.0
        %6399 = vmatpush1.msra.mxu0 0.0
        %6400 = vmatprep.subr.mxu0 0.0
        %6401 = vmatpush1.msra.mxu0 0.0
        %6402 = vmatprep.subr.mxu0 0.0
        %6403 = vmatpush1.msra.mxu0 0.0
        %6404 = vmatprep.subr.mxu0 0.0
        %6405 = vmatpush1.msra.mxu0 0.0
        %6406 = vmatprep.subr.mxu0 0.0
        %6407 = vmatpush1.msra.mxu0 0.0
        %6408 = vmatprep.subr.mxu0 0.0
        %6409 = vmatpush1.msra.mxu0 0.0
        %6410 = vmatprep.subr.mxu0 0.0
        %6411 = vmatpush1.msra.mxu0 0.0
        %6412 = vmatprep.subr.mxu0 0.0
        %6413 = vmatpush1.msra.mxu0 0.0
        %6414 = vmatprep.subr.mxu0 0.0
        %6415 = vmatpush1.msra.mxu0 0.0
        %6416 = vmatprep.subr.mxu0 0.0
        %6417 = vmatpush1.msra.mxu0 0.0
        %6418 = vmatprep.subr.mxu0 0.0
        %6419 = vmatpush1.msra.mxu0 0.0
        %6420 = vmatprep.subr.mxu0 0.0
        %6421 = vmatpush1.msra.mxu0 0.0
        %6422 = vmatprep.subr.mxu0 0.0
        %6423 = vmatpush1.msra.mxu0 0.0
        %6424 = vmatprep.subr.mxu0 0.0
        %6425 = vmatpush1.msra.mxu0 0.0
        %6426 = vmatprep.subr.mxu0 0.0
        %6427 = vmatpush1.msra.mxu0 0.0
        %6428 = vmatprep.subr.mxu0 0.0
        %6429 = vmatpush1.msra.mxu0 0.0
        %6430 = vmatprep.subr.mxu0 0.0
        %6431 = vmatpush1.msra.mxu0 0.0
        %6432 = vmatprep.subr.mxu0 0.0
        %6433 = vmatpush1.msra.mxu0 0.0
        %6434 = vmatprep.subr.mxu0 0.0
        %6435 = vmatpush1.msra.mxu0 0.0
        %6436 = vmatprep.subr.mxu0 0.0
        %6437 = vmatpush1.msra.mxu0 0.0
        %6438 = vmatprep.subr.mxu0 0.0
        %6439 = vmatpush1.msra.mxu0 0.0
        %6440 = vmatprep.mubr.f32.mxu0 0.0
        %6441 = vmatmul.mubr.f32.gmra.mrb[0].mxu0 %v6066
        %v6442 = vpop.f32.mrb[0].mxu0
        %v6443 = vadd.f32 0.0, %v6442
        %v6444 = vpop.f32.mrb[0].mxu0
        %v6445 = vadd.f32 0.0, %v6444
        %6446 = vmatprep.mubr.f32.mxu0 0.0
        %6447 = vmatmul.mubr.f32.gmra.mrb[0].mxu0 %v6069
        %v6448 = vpop.f32.mrb[0].mxu0
        %v6449 = vadd.f32 0.0, %v6448
        %v6450 = vpop.f32.mrb[0].mxu0
        %v6451 = vadd.f32 0.0, %v6450
        %6452 = vmatprep.mubr.f32.mxu0 0.0
        %6453 = vmatmul.mubr.f32.gmra.mrb[0].mxu0 %v6072
        %v6454 = vpop.f32.mrb[0].mxu0
        %v6455 = vadd.f32 0.0, %v6454
        %v6456 = vpop.f32.mrb[0].mxu0
        %v6457 = vadd.f32 0.0, %v6456
        %6458 = vmatprep.mubr.f32.mxu0 0.0
        %6459 = vmatmul.mubr.f32.gmra.mrb[0].mxu0 %v6075
        %v6460 = vpop.f32.mrb[0].mxu0
        %v6461 = vadd.f32 0.0, %v6460
        %v6462 = vpop.f32.mrb[0].mxu0
        %v6463 = vadd.f32 0.0, %v6462
        %6464 = vdwg.mxu0
        %6465 = vmatprep.subr.mxu0 %v3400
        %6466 = vmatpush1.msra.mxu0 %v3297
        %6467 = vmatprep.subr.mxu0 %v4268
        %6468 = vmatpush1.msra.mxu0 %v4267
        %6469 = vmatprep.subr.mxu0 %v6095
        %6470 = vmatpush1.msra.mxu0 %v6093
        %6471 = vmatprep.subr.mxu0 0.0
        %6472 = vmatpush1.msra.mxu0 0.0
        %6473 = vmatprep.subr.mxu0 0.0
        %6474 = vmatpush1.msra.mxu0 0.0
        %6475 = vmatprep.subr.mxu0 0.0
        %6476 = vmatpush1.msra.mxu0 0.0
        %6477 = vmatprep.subr.mxu0 0.0
        %6478 = vmatpush1.msra.mxu0 0.0
        %6479 = vmatprep.subr.mxu0 0.0
        %6480 = vmatpush1.msra.mxu0 0.0
        %6481 = vmatprep.subr.mxu0 0.0
        %6482 = vmatpush1.msra.mxu0 0.0
        %6483 = vmatprep.subr.mxu0 0.0
        %6484 = vmatpush1.msra.mxu0 0.0
        %6485 = vmatprep.subr.mxu0 0.0
        %6486 = vmatpush1.msra.mxu0 0.0
        %6487 = vmatprep.subr.mxu0 0.0
        %6488 = vmatpush1.msra.mxu0 0.0
        %6489 = vmatprep.subr.mxu0 0.0
        %6490 = vmatpush1.msra.mxu0 0.0
        %6491 = vmatprep.subr.mxu0 0.0
        %6492 = vmatpush1.msra.mxu0 0.0
        %6493 = vmatprep.subr.mxu0 0.0
        %6494 = vmatpush1.msra.mxu0 0.0
        %6495 = vmatprep.subr.mxu0 0.0
        %6496 = vmatpush1.msra.mxu0 0.0
        %6497 = vmatprep.subr.mxu0 0.0
        %6498 = vmatpush1.msra.mxu0 0.0
        %6499 = vmatprep.subr.mxu0 0.0
        %6500 = vmatpush1.msra.mxu0 0.0
        %6501 = vmatprep.subr.mxu0 0.0
        %6502 = vmatpush1.msra.mxu0 0.0
        %6503 = vmatprep.subr.mxu0 0.0
        %6504 = vmatpush1.msra.mxu0 0.0
        %6505 = vmatprep.subr.mxu0 0.0
        %6506 = vmatpush1.msra.mxu0 0.0
        %6507 = vmatprep.subr.mxu0 0.0
        %6508 = vmatpush1.msra.mxu0 0.0
        %6509 = vmatprep.subr.mxu0 0.0
        %6510 = vmatpush1.msra.mxu0 0.0
        %6511 = vmatprep.subr.mxu0 0.0
        %6512 = vmatpush1.msra.mxu0 0.0
        %6513 = vmatprep.subr.mxu0 0.0
        %6514 = vmatpush1.msra.mxu0 0.0
        %6515 = vmatprep.subr.mxu0 0.0
        %6516 = vmatpush1.msra.mxu0 0.0
        %6517 = vmatprep.subr.mxu0 0.0
        %6518 = vmatpush1.msra.mxu0 0.0
        %6519 = vmatprep.subr.mxu0 0.0
        %6520 = vmatpush1.msra.mxu0 0.0
        %6521 = vmatprep.subr.mxu0 0.0
        %6522 = vmatpush1.msra.mxu0 0.0
        %6523 = vmatprep.subr.mxu0 0.0
        %6524 = vmatpush1.msra.mxu0 0.0
        %6525 = vmatprep.subr.mxu0 0.0
        %6526 = vmatpush1.msra.mxu0 0.0
        %6527 = vmatprep.subr.mxu0 0.0
        %6528 = vmatpush1.msra.mxu0 0.0
        %6529 = vmatprep.mubr.f32.mxu0 0.0
        %6530 = vmatmul.mubr.f32.gmra.mrb[0].mxu0 %v6066
        %v6531 = vpop.f32.mrb[0].mxu0
        %v6532 = vadd.f32 0.0, %v6531
        %v6533 = vpop.f32.mrb[0].mxu0
        %v6534 = vadd.f32 0.0, %v6533
        %6535 = vmatprep.mubr.f32.mxu0 0.0
        %6536 = vmatmul.mubr.f32.gmra.mrb[0].mxu0 %v6069
        %v6537 = vpop.f32.mrb[0].mxu0
        %v6538 = vadd.f32 0.0, %v6537
        %v6539 = vpop.f32.mrb[0].mxu0
        %v6540 = vadd.f32 0.0, %v6539
        %6541 = vmatprep.mubr.f32.mxu0 0.0
        %6542 = vmatmul.mubr.f32.gmra.mrb[0].mxu0 %v6072
        %v6543 = vpop.f32.mrb[0].mxu0
        %v6544 = vadd.f32 0.0, %v6543
        %v6545 = vpop.f32.mrb[0].mxu0
        %v6546 = vadd.f32 0.0, %v6545
        %6547 = vmatprep.mubr.f32.mxu0 0.0
        %6548 = vmatmul.mubr.f32.gmra.mrb[0].mxu0 %v6075
        %v6549 = vpop.f32.mrb[0].mxu0
        %v6550 = vadd.f32 0.0, %v6549
        %v6551 = vpop.f32.mrb[0].mxu0
        %v6552 = vadd.f32 0.0, %v6551
        %6553 = vdwg.mxu0
        %6554 = vmatprep.subr.mxu0 %v3606
        %6555 = vmatpush1.msra.mxu0 %v3503
        %6556 = vmatprep.subr.mxu0 %v4270
        %6557 = vmatpush1.msra.mxu0 %v4269
        %6558 = vmatprep.subr.mxu0 %v6099
        %6559 = vmatpush1.msra.mxu0 %v6097
        %6560 = vmatprep.subr.mxu0 0.0
        %6561 = vmatpush1.msra.mxu0 0.0
        %6562 = vmatprep.subr.mxu0 0.0
        %6563 = vmatpush1.msra.mxu0 0.0
        %6564 = vmatprep.subr.mxu0 0.0
        %6565 = vmatpush1.msra.mxu0 0.0
        %6566 = vmatprep.subr.mxu0 0.0
        %6567 = vmatpush1.msra.mxu0 0.0
        %6568 = vmatprep.subr.mxu0 0.0
        %6569 = vmatpush1.msra.mxu0 0.0
        %6570 = vmatprep.subr.mxu0 0.0
        %6571 = vmatpush1.msra.mxu0 0.0
        %6572 = vmatprep.subr.mxu0 0.0
        %6573 = vmatpush1.msra.mxu0 0.0
        %6574 = vmatprep.subr.mxu0 0.0
        %6575 = vmatpush1.msra.mxu0 0.0
        %6576 = vmatprep.subr.mxu0 0.0
        %6577 = vmatpush1.msra.mxu0 0.0
        %6578 = vmatprep.subr.mxu0 0.0
        %6579 = vmatpush1.msra.mxu0 0.0
        %6580 = vmatprep.subr.mxu0 0.0
        %6581 = vmatpush1.msra.mxu0 0.0
        %6582 = vmatprep.subr.mxu0 0.0
        %6583 = vmatpush1.msra.mxu0 0.0
        %6584 = vmatprep.subr.mxu0 0.0
        %6585 = vmatpush1.msra.mxu0 0.0
        %6586 = vmatprep.subr.mxu0 0.0
        %6587 = vmatpush1.msra.mxu0 0.0
        %6588 = vmatprep.subr.mxu0 0.0
        %6589 = vmatpush1.msra.mxu0 0.0
        %6590 = vmatprep.subr.mxu0 0.0
        %6591 = vmatpush1.msra.mxu0 0.0
        %6592 = vmatprep.subr.mxu0 0.0
        %6593 = vmatpush1.msra.mxu0 0.0
        %6594 = vmatprep.subr.mxu0 0.0
        %6595 = vmatpush1.msra.mxu0 0.0
        %6596 = vmatprep.subr.mxu0 0.0
        %6597 = vmatpush1.msra.mxu0 0.0
        %6598 = vmatprep.subr.mxu0 0.0
        %6599 = vmatpush1.msra.mxu0 0.0
        %6600 = vmatprep.subr.mxu0 0.0
        %6601 = vmatpush1.msra.mxu0 0.0
        %6602 = vmatprep.subr.mxu0 0.0
        %6603 = vmatpush1.msra.mxu0 0.0
        %6604 = vmatprep.subr.mxu0 0.0
        %6605 = vmatpush1.msra.mxu0 0.0
        %6606 = vmatprep.subr.mxu0 0.0
        %6607 = vmatpush1.msra.mxu0 0.0
        %6608 = vmatprep.subr.mxu0 0.0
        %6609 = vmatpush1.msra.mxu0 0.0
        %6610 = vmatprep.subr.mxu0 0.0
        %6611 = vmatpush1.msra.mxu0 0.0
        %6612 = vmatprep.subr.mxu0 0.0
        %6613 = vmatpush1.msra.mxu0 0.0
        %6614 = vmatprep.subr.mxu0 0.0
        %6615 = vmatpush1.msra.mxu0 0.0
        %6616 = vmatprep.subr.mxu0 0.0
        %6617 = vmatpush1.msra.mxu0 0.0
        %6618 = vmatprep.mubr.f32.mxu0 0.0
        %6619 = vmatmul.mubr.f32.gmra.mrb[0].mxu0 %v6066
        %v6620 = vpop.f32.mrb[0].mxu0
        %v6621 = vadd.f32 0.0, %v6620
        %v6622 = vpop.f32.mrb[0].mxu0
        %v6623 = vadd.f32 0.0, %v6622
        %6624 = vmatprep.mubr.f32.mxu0 0.0
        %6625 = vmatmul.mubr.f32.gmra.mrb[0].mxu0 %v6069
        %v6626 = vpop.f32.mrb[0].mxu0
        %v6627 = vadd.f32 0.0, %v6626
        %v6628 = vpop.f32.mrb[0].mxu0
        %v6629 = vadd.f32 0.0, %v6628
        %6630 = vmatprep.mubr.f32.mxu0 0.0
        %6631 = vmatmul.mubr.f32.gmra.mrb[0].mxu0 %v6072
        %v6632 = vpop.f32.mrb[0].mxu0
        %v6633 = vadd.f32 0.0, %v6632
        %v6634 = vpop.f32.mrb[0].mxu0
        %v6635 = vadd.f32 0.0, %v6634
        %6636 = vmatprep.mubr.f32.mxu0 0.0
        %6637 = vmatmul.mubr.f32.gmra.mrb[0].mxu0 %v6075
        %v6638 = vpop.f32.mrb[0].mxu0
        %v6639 = vadd.f32 0.0, %v6638
        %v6640 = vpop.f32.mrb[0].mxu0
        %v6641 = vadd.f32 0.0, %v6640
        %6642 = vdwg.mxu0
        %6643 = vmatprep.subr.mxu0 %v3812
        %6644 = vmatpush1.msra.mxu0 %v3709
        %6645 = vmatprep.subr.mxu0 %v4272
        %6646 = vmatpush1.msra.mxu0 %v4271
        %6647 = vmatprep.subr.mxu0 %v6103
        %6648 = vmatpush1.msra.mxu0 %v6101
        %6649 = vmatprep.subr.mxu0 0.0
        %6650 = vmatpush1.msra.mxu0 0.0
        %6651 = vmatprep.subr.mxu0 0.0
        %6652 = vmatpush1.msra.mxu0 0.0
        %6653 = vmatprep.subr.mxu0 0.0
        %6654 = vmatpush1.msra.mxu0 0.0
        %6655 = vmatprep.subr.mxu0 0.0
        %6656 = vmatpush1.msra.mxu0 0.0
        %6657 = vmatprep.subr.mxu0 0.0
        %6658 = vmatpush1.msra.mxu0 0.0
        %6659 = vmatprep.subr.mxu0 0.0
        %6660 = vmatpush1.msra.mxu0 0.0
        %6661 = vmatprep.subr.mxu0 0.0
        %6662 = vmatpush1.msra.mxu0 0.0
        %6663 = vmatprep.subr.mxu0 0.0
        %6664 = vmatpush1.msra.mxu0 0.0
        %6665 = vmatprep.subr.mxu0 0.0
        %6666 = vmatpush1.msra.mxu0 0.0
        %6667 = vmatprep.subr.mxu0 0.0
        %6668 = vmatpush1.msra.mxu0 0.0
        %6669 = vmatprep.subr.mxu0 0.0
        %6670 = vmatpush1.msra.mxu0 0.0
        %6671 = vmatprep.subr.mxu0 0.0
        %6672 = vmatpush1.msra.mxu0 0.0
        %6673 = vmatprep.subr.mxu0 0.0
        %6674 = vmatpush1.msra.mxu0 0.0
        %6675 = vmatprep.subr.mxu0 0.0
        %6676 = vmatpush1.msra.mxu0 0.0
        %6677 = vmatprep.subr.mxu0 0.0
        %6678 = vmatpush1.msra.mxu0 0.0
        %6679 = vmatprep.subr.mxu0 0.0
        %6680 = vmatpush1.msra.mxu0 0.0
        %6681 = vmatprep.subr.mxu0 0.0
        %6682 = vmatpush1.msra.mxu0 0.0
        %6683 = vmatprep.subr.mxu0 0.0
        %6684 = vmatpush1.msra.mxu0 0.0
        %6685 = vmatprep.subr.mxu0 0.0
        %6686 = vmatpush1.msra.mxu0 0.0
        %6687 = vmatprep.subr.mxu0 0.0
        %6688 = vmatpush1.msra.mxu0 0.0
        %6689 = vmatprep.subr.mxu0 0.0
        %6690 = vmatpush1.msra.mxu0 0.0
        %6691 = vmatprep.subr.mxu0 0.0
        %6692 = vmatpush1.msra.mxu0 0.0
        %6693 = vmatprep.subr.mxu0 0.0
        %6694 = vmatpush1.msra.mxu0 0.0
        %6695 = vmatprep.subr.mxu0 0.0
        %6696 = vmatpush1.msra.mxu0 0.0
        %6697 = vmatprep.subr.mxu0 0.0
        %6698 = vmatpush1.msra.mxu0 0.0
        %6699 = vmatprep.subr.mxu0 0.0
        %6700 = vmatpush1.msra.mxu0 0.0
        %6701 = vmatprep.subr.mxu0 0.0
        %6702 = vmatpush1.msra.mxu0 0.0
        %6703 = vmatprep.subr.mxu0 0.0
        %6704 = vmatpush1.msra.mxu0 0.0
        %6705 = vmatprep.subr.mxu0 0.0
        %6706 = vmatpush1.msra.mxu0 0.0
        %6707 = vmatprep.mubr.f32.mxu0 0.0
        %6708 = vmatmul.mubr.f32.gmra.mrb[0].mxu0 %v6066
        %v6709 = vpop.f32.mrb[0].mxu0
        %v6710 = vadd.f32 0.0, %v6709
        %v6711 = vpop.f32.mrb[0].mxu0
        %v6712 = vadd.f32 0.0, %v6711
        %6713 = vmatprep.mubr.f32.mxu0 0.0
        %6714 = vmatmul.mubr.f32.gmra.mrb[0].mxu0 %v6069
        %v6715 = vpop.f32.mrb[0].mxu0
        %v6716 = vadd.f32 0.0, %v6715
        %v6717 = vpop.f32.mrb[0].mxu0
        %v6718 = vadd.f32 0.0, %v6717
        %6719 = vmatprep.mubr.f32.mxu0 0.0
        %6720 = vmatmul.mubr.f32.gmra.mrb[0].mxu0 %v6072
        %v6721 = vpop.f32.mrb[0].mxu0
        %v6722 = vadd.f32 0.0, %v6721
        %v6723 = vpop.f32.mrb[0].mxu0
        %v6724 = vadd.f32 0.0, %v6723
        %6725 = vmatprep.mubr.f32.mxu0 0.0
        %6726 = vmatmul.mubr.f32.gmra.mrb[0].mxu0 %v6075
        %v6727 = vpop.f32.mrb[0].mxu0
        %v6728 = vadd.f32 0.0, %v6727
        %v6729 = vpop.f32.mrb[0].mxu0
        %v6730 = vadd.f32 0.0, %v6729
        %6731 = vdwg.mxu0
        %6732 = vmatprep.subr.mxu0 %v4018
        %6733 = vmatpush1.msra.mxu0 %v3915
        %6734 = vmatprep.subr.mxu0 %v4274
        %6735 = vmatpush1.msra.mxu0 %v4273
        %6736 = vmatprep.subr.mxu0 %v6107
        %6737 = vmatpush1.msra.mxu0 %v6105
        %6738 = vmatprep.subr.mxu0 0.0
        %6739 = vmatpush1.msra.mxu0 0.0
        %6740 = vmatprep.subr.mxu0 0.0
        %6741 = vmatpush1.msra.mxu0 0.0
        %6742 = vmatprep.subr.mxu0 0.0
        %6743 = vmatpush1.msra.mxu0 0.0
        %6744 = vmatprep.subr.mxu0 0.0
        %6745 = vmatpush1.msra.mxu0 0.0
        %6746 = vmatprep.subr.mxu0 0.0
        %6747 = vmatpush1.msra.mxu0 0.0
        %6748 = vmatprep.subr.mxu0 0.0
        %6749 = vmatpush1.msra.mxu0 0.0
        %6750 = vmatprep.subr.mxu0 0.0
        %6751 = vmatpush1.msra.mxu0 0.0
        %6752 = vmatprep.subr.mxu0 0.0
        %6753 = vmatpush1.msra.mxu0 0.0
        %6754 = vmatprep.subr.mxu0 0.0
        %6755 = vmatpush1.msra.mxu0 0.0
        %6756 = vmatprep.subr.mxu0 0.0
        %6757 = vmatpush1.msra.mxu0 0.0
        %6758 = vmatprep.subr.mxu0 0.0
        %6759 = vmatpush1.msra.mxu0 0.0
        %6760 = vmatprep.subr.mxu0 0.0
        %6761 = vmatpush1.msra.mxu0 0.0
        %6762 = vmatprep.subr.mxu0 0.0
        %6763 = vmatpush1.msra.mxu0 0.0
        %6764 = vmatprep.subr.mxu0 0.0
        %6765 = vmatpush1.msra.mxu0 0.0
        %6766 = vmatprep.subr.mxu0 0.0
        %6767 = vmatpush1.msra.mxu0 0.0
        %6768 = vmatprep.subr.mxu0 0.0
        %6769 = vmatpush1.msra.mxu0 0.0
        %6770 = vmatprep.subr.mxu0 0.0
        %6771 = vmatpush1.msra.mxu0 0.0
        %6772 = vmatprep.subr.mxu0 0.0
        %6773 = vmatpush1.msra.mxu0 0.0
        %6774 = vmatprep.subr.mxu0 0.0
        %6775 = vmatpush1.msra.mxu0 0.0
        %6776 = vmatprep.subr.mxu0 0.0
        %6777 = vmatpush1.msra.mxu0 0.0
        %6778 = vmatprep.subr.mxu0 0.0
        %6779 = vmatpush1.msra.mxu0 0.0
        %6780 = vmatprep.subr.mxu0 0.0
        %6781 = vmatpush1.msra.mxu0 0.0
        %6782 = vmatprep.subr.mxu0 0.0
        %6783 = vmatpush1.msra.mxu0 0.0
        %6784 = vmatprep.subr.mxu0 0.0
        %6785 = vmatpush1.msra.mxu0 0.0
        %6786 = vmatprep.subr.mxu0 0.0
        %6787 = vmatpush1.msra.mxu0 0.0
        %6788 = vmatprep.subr.mxu0 0.0
        %6789 = vmatpush1.msra.mxu0 0.0
        %6790 = vmatprep.subr.mxu0 0.0
        %6791 = vmatpush1.msra.mxu0 0.0
        %6792 = vmatprep.subr.mxu0 0.0
        %6793 = vmatpush1.msra.mxu0 0.0
        %6794 = vmatprep.subr.mxu0 0.0
        %6795 = vmatpush1.msra.mxu0 0.0
        %6796 = vmatprep.mubr.f32.mxu0 0.0
        %6797 = vmatmul.mubr.f32.gmra.mrb[0].mxu0 %v6066
        %v6798 = vpop.f32.mrb[0].mxu0
        %v6799 = vadd.f32 0.0, %v6798
        %v6800 = vpop.f32.mrb[0].mxu0
        %v6801 = vadd.f32 0.0, %v6800
        %6802 = vmatprep.mubr.f32.mxu0 0.0
        %6803 = vmatmul.mubr.f32.gmra.mrb[0].mxu0 %v6069
        %v6804 = vpop.f32.mrb[0].mxu0
        %v6805 = vadd.f32 0.0, %v6804
        %v6806 = vpop.f32.mrb[0].mxu0
        %v6807 = vadd.f32 0.0, %v6806
        %6808 = vmatprep.mubr.f32.mxu0 0.0
        %6809 = vmatmul.mubr.f32.gmra.mrb[0].mxu0 %v6072
        %v6810 = vpop.f32.mrb[0].mxu0
        %v6811 = vadd.f32 0.0, %v6810
        %v6812 = vpop.f32.mrb[0].mxu0
        %v6813 = vadd.f32 0.0, %v6812
        %6814 = vmatprep.mubr.f32.mxu0 0.0
        %6815 = vmatmul.mubr.f32.gmra.mrb[0].mxu0 %v6075
        %v6816 = vpop.f32.mrb[0].mxu0
        %v6817 = vadd.f32 0.0, %v6816
        %v6818 = vpop.f32.mrb[0].mxu0
        %v6819 = vadd.f32 0.0, %v6818
        %6820 = vdwg.mxu0
        %v6821 = vadd.f32 %v5416, %v6176
        %v6822 = vadd.f32 %v5418, %v6178
        %v6823 = vadd.f32 %v5505, %v6265
        %v6824 = vadd.f32 %v5507, %v6267
        %v6825 = vadd.f32 %v5594, %v6354
        %v6826 = vadd.f32 %v5596, %v6356
        %v6827 = vadd.f32 %v5683, %v6443
        %v6828 = vadd.f32 %v5685, %v6445
        %v6829 = vadd.f32 %v5772, %v6532
        %v6830 = vadd.f32 %v5774, %v6534
        %v6831 = vadd.f32 %v5861, %v6621
        %v6832 = vadd.f32 %v5863, %v6623
        %v6833 = vadd.f32 %v5950, %v6710
        %v6834 = vadd.f32 %v5952, %v6712
        %v6835 = vadd.f32 %v6039, %v6799
        %v6836 = vadd.f32 %v6041, %v6801
        %v6837 = vadd.f32 %v5422, %v6182
        %v6838 = vadd.f32 %v5424, %v6184
        %v6839 = vadd.f32 %v5511, %v6271
        %v6840 = vadd.f32 %v5513, %v6273
        %v6841 = vadd.f32 %v5600, %v6360
        %v6842 = vadd.f32 %v5602, %v6362
        %v6843 = vadd.f32 %v5689, %v6449
        %v6844 = vadd.f32 %v5691, %v6451
        %v6845 = vadd.f32 %v5778, %v6538
        %v6846 = vadd.f32 %v5780, %v6540
        %v6847 = vadd.f32 %v5867, %v6627
        %v6848 = vadd.f32 %v5869, %v6629
        %v6849 = vadd.f32 %v5956, %v6716
        %v6850 = vadd.f32 %v5958, %v6718
        %v6851 = vadd.f32 %v6045, %v6805
        %v6852 = vadd.f32 %v6047, %v6807
        %v6853 = vadd.f32 %v5428, %v6188
        %v6854 = vadd.f32 %v5430, %v6190
        %v6855 = vadd.f32 %v5517, %v6277
        %v6856 = vadd.f32 %v5519, %v6279
        %v6857 = vadd.f32 %v5606, %v6366
        %v6858 = vadd.f32 %v5608, %v6368
        %v6859 = vadd.f32 %v5695, %v6455
        %v6860 = vadd.f32 %v5697, %v6457
        %v6861 = vadd.f32 %v5784, %v6544
        %v6862 = vadd.f32 %v5786, %v6546
        %v6863 = vadd.f32 %v5873, %v6633
        %v6864 = vadd.f32 %v5875, %v6635
        %v6865 = vadd.f32 %v5962, %v6722
        %v6866 = vadd.f32 %v5964, %v6724
        %v6867 = vadd.f32 %v6051, %v6811
        %v6868 = vadd.f32 %v6053, %v6813
        %v6869 = vadd.f32 %v5434, %v6194
        %v6870 = vadd.f32 %v5436, %v6196
        %v6871 = vadd.f32 %v5523, %v6283
        %v6872 = vadd.f32 %v5525, %v6285
        %v6873 = vadd.f32 %v5612, %v6372
        %v6874 = vadd.f32 %v5614, %v6374
        %v6875 = vadd.f32 %v5701, %v6461
        %v6876 = vadd.f32 %v5703, %v6463
        %v6877 = vadd.f32 %v5790, %v6550
        %v6878 = vadd.f32 %v5792, %v6552
        %v6879 = vadd.f32 %v5879, %v6639
        %v6880 = vadd.f32 %v5881, %v6641
        %v6881 = vadd.f32 %v5968, %v6728
        %v6882 = vadd.f32 %v5970, %v6730
        %v6883 = vadd.f32 %v6057, %v6817
        %v6884 = vadd.f32 %v6059, %v6819
        %6886 = vset.pattern.permute.xlu0 0
        %6887 = vperm.xlu0 %6886, %v284
        %v6888 = vpop.permute.xlu0 %6887
        %6891 = vset.pattern.permute.xlu0 0
        %6892 = vperm.xlu0 %6891, %v285
        %v6893 = vpop.permute.xlu0 %6892
        %6896 = vset.pattern.permute.xlu0 0
        %6897 = vperm.xlu0 %6896, %v286
        %v6898 = vpop.permute.xlu0 %6897
        %6901 = vset.pattern.permute.xlu0 0
        %6902 = vperm.xlu0 %6901, %v287
        %v6903 = vpop.permute.xlu0 %6902
        %v6905 = vadd.f32 %v6821, %v6888
        %v6906 = vadd.f32 %v6822, %v6888
        %v6907 = vadd.f32 %v6823, %v6888
        %v6908 = vadd.f32 %v6824, %v6888
        %v6909 = vadd.f32 %v6825, %v6888
        %v6910 = vadd.f32 %v6826, %v6888
        %v6911 = vadd.f32 %v6827, %v6888
        %v6912 = vadd.f32 %v6828, %v6888
        %v6913 = vadd.f32 %v6829, %v6888
        %v6914 = vadd.f32 %v6830, %v6888
        %v6915 = vadd.f32 %v6831, %v6888
        %v6916 = vadd.f32 %v6832, %v6888
        %v6917 = vadd.f32 %v6833, %v6888
        %v6918 = vadd.f32 %v6834, %v6888
        %v6919 = vadd.f32 %v6835, %v6888
        %v6920 = vadd.f32 %v6836, %v6888
        %v6921 = vadd.f32 %v6837, %v6893
        %v6922 = vadd.f32 %v6838, %v6893
        %v6923 = vadd.f32 %v6839, %v6893
        %v6924 = vadd.f32 %v6840, %v6893
        %v6925 = vadd.f32 %v6841, %v6893
        %v6926 = vadd.f32 %v6842, %v6893
        %v6927 = vadd.f32 %v6843, %v6893
        %v6928 = vadd.f32 %v6844, %v6893
        %v6929 = vadd.f32 %v6845, %v6893
        %v6930 = vadd.f32 %v6846, %v6893
        %v6931 = vadd.f32 %v6847, %v6893
        %v6932 = vadd.f32 %v6848, %v6893
        %v6933 = vadd.f32 %v6849, %v6893
        %v6934 = vadd.f32 %v6850, %v6893
        %v6935 = vadd.f32 %v6851, %v6893
        %v6936 = vadd.f32 %v6852, %v6893
        %v6937 = vadd.f32 %v6853, %v6898
        %v6938 = vadd.f32 %v6854, %v6898
        %v6939 = vadd.f32 %v6855, %v6898
        %v6940 = vadd.f32 %v6856, %v6898
        %v6941 = vadd.f32 %v6857, %v6898
        %v6942 = vadd.f32 %v6858, %v6898
        %v6943 = vadd.f32 %v6859, %v6898
        %v6944 = vadd.f32 %v6860, %v6898
        %v6945 = vadd.f32 %v6861, %v6898
        %v6946 = vadd.f32 %v6862, %v6898
        %v6947 = vadd.f32 %v6863, %v6898
        %v6948 = vadd.f32 %v6864, %v6898
        %v6949 = vadd.f32 %v6865, %v6898
        %v6950 = vadd.f32 %v6866, %v6898
        %v6951 = vadd.f32 %v6867, %v6898
        %v6952 = vadd.f32 %v6868, %v6898
        %v6953 = vadd.f32 %v6869, %v6903
        %v6954 = vadd.f32 %v6870, %v6903
        %v6955 = vadd.f32 %v6871, %v6903
        %v6956 = vadd.f32 %v6872, %v6903
        %v6957 = vadd.f32 %v6873, %v6903
        %v6958 = vadd.f32 %v6874, %v6903
        %v6959 = vadd.f32 %v6875, %v6903
        %v6960 = vadd.f32 %v6876, %v6903
        %v6961 = vadd.f32 %v6877, %v6903
        %v6962 = vadd.f32 %v6878, %v6903
        %v6963 = vadd.f32 %v6879, %v6903
        %v6964 = vadd.f32 %v6880, %v6903
        %v6965 = vadd.f32 %v6881, %v6903
        %v6966 = vadd.f32 %v6882, %v6903
        %v6967 = vadd.f32 %v6883, %v6903
        %v6968 = vadd.f32 %v6884, %v6903
        %v6969 = vmax.f32 %v6905, 0.0
        %v6970 = vmax.f32 %v6906, 0.0
        %v6971 = vmax.f32 %v6907, 0.0
        %v6972 = vmax.f32 %v6908, 0.0
        %v6973 = vmax.f32 %v6909, 0.0
        %v6974 = vmax.f32 %v6910, 0.0
        %v6975 = vmax.f32 %v6911, 0.0
        %v6976 = vmax.f32 %v6912, 0.0
        %v6977 = vmax.f32 %v6913, 0.0
        %v6978 = vmax.f32 %v6914, 0.0
        %v6979 = vmax.f32 %v6915, 0.0
        %v6980 = vmax.f32 %v6916, 0.0
        %v6981 = vmax.f32 %v6917, 0.0
        %v6982 = vmax.f32 %v6918, 0.0
        %v6983 = vmax.f32 %v6919, 0.0
        %v6984 = vmax.f32 %v6920, 0.0
        %v6985 = vmax.f32 %v6921, 0.0
        %v6986 = vmax.f32 %v6922, 0.0
        %v6987 = vmax.f32 %v6923, 0.0
        %v6988 = vmax.f32 %v6924, 0.0
        %v6989 = vmax.f32 %v6925, 0.0
        %v6990 = vmax.f32 %v6926, 0.0
        %v6991 = vmax.f32 %v6927, 0.0
        %v6992 = vmax.f32 %v6928, 0.0
        %v6993 = vmax.f32 %v6929, 0.0
        %v6994 = vmax.f32 %v6930, 0.0
        %v6995 = vmax.f32 %v6931, 0.0
        %v6996 = vmax.f32 %v6932, 0.0
        %v6997 = vmax.f32 %v6933, 0.0
        %v6998 = vmax.f32 %v6934, 0.0
        %v6999 = vmax.f32 %v6935, 0.0
        %v7000 = vmax.f32 %v6936, 0.0
        %v7001 = vmax.f32 %v6937, 0.0
        %v7002 = vmax.f32 %v6938, 0.0
        %v7003 = vmax.f32 %v6939, 0.0
        %v7004 = vmax.f32 %v6940, 0.0
        %v7005 = vmax.f32 %v6941, 0.0
        %v7006 = vmax.f32 %v6942, 0.0
        %v7007 = vmax.f32 %v6943, 0.0
        %v7008 = vmax.f32 %v6944, 0.0
        %v7009 = vmax.f32 %v6945, 0.0
        %v7010 = vmax.f32 %v6946, 0.0
        %v7011 = vmax.f32 %v6947, 0.0
        %v7012 = vmax.f32 %v6948, 0.0
        %v7013 = vmax.f32 %v6949, 0.0
        %v7014 = vmax.f32 %v6950, 0.0
        %v7015 = vmax.f32 %v6951, 0.0
        %v7016 = vmax.f32 %v6952, 0.0
        %v7017 = vmax.f32 %v6953, 0.0
        %v7018 = vmax.f32 %v6954, 0.0
        %v7019 = vmax.f32 %v6955, 0.0
        %v7020 = vmax.f32 %v6956, 0.0
        %v7021 = vmax.f32 %v6957, 0.0
        %v7022 = vmax.f32 %v6958, 0.0
        %v7023 = vmax.f32 %v6959, 0.0
        %v7024 = vmax.f32 %v6960, 0.0
        %v7025 = vmax.f32 %v6961, 0.0
        %v7026 = vmax.f32 %v6962, 0.0
        %v7027 = vmax.f32 %v6963, 0.0
        %v7028 = vmax.f32 %v6964, 0.0
        %v7029 = vmax.f32 %v6965, 0.0
        %v7030 = vmax.f32 %v6966, 0.0
        %v7031 = vmax.f32 %v6967, 0.0
        %v7032 = vmax.f32 %v6968, 0.0
        %v7033 = vld [vmem:[%s4] sm:$0xff]
        %v7034 = vld [vmem:[%s4 + $0x8] sm:$0xff]
        %v7035 = vld [vmem:[%s4 + $0x10] sm:$0xff]
        %v7036 = vld [vmem:[%s4 + $0x18] sm:$0xff]
        %7037 = vset.pattern.permute.xlu0 1
        %7038 = vperm.xlu0 %7037, %v284
        %v7039 = vpop.permute.xlu0 %7038
        %7041 = vset.pattern.permute.xlu0 1
        %7042 = vperm.xlu0 %7041, %v285
        %v7043 = vpop.permute.xlu0 %7042
        %7045 = vset.pattern.permute.xlu0 1
        %7046 = vperm.xlu0 %7045, %v286
        %v7047 = vpop.permute.xlu0 %7046
        %7049 = vset.pattern.permute.xlu0 1
        %7050 = vperm.xlu0 %7049, %v287
        %v7051 = vpop.permute.xlu0 %7050
        %vm7053 = vcmask 261120
        %v7055 = vsel %vm7053, %v7033, 0
        %v7058 = vsel %vm7053, %v7034, 0
        %v7061 = vsel %vm7053, %v7035, 0
        %v7064 = vsel %vm7053, %v7036, 0
        %7066 = vmatprep.subr.mxu0 %v6970
        %7067 = vmatpush1.msra.mxu0 %v6969
        %7068 = vmatprep.subr.mxu0 %v6986
        %7069 = vmatpush1.msra.mxu0 %v6985
        %7070 = vmatprep.subr.mxu0 %v7002
        %7071 = vmatpush1.msra.mxu0 %v7001
        %7072 = vmatprep.subr.mxu0 %v7018
        %7073 = vmatpush1.msra.mxu0 %v7017
        %7074 = vmatprep.subr.mxu0 0.0
        %7075 = vmatpush1.msra.mxu0 0.0
        %7076 = vmatprep.subr.mxu0 0.0
        %7077 = vmatpush1.msra.mxu0 0.0
        %7078 = vmatprep.subr.mxu0 0.0
        %7079 = vmatpush1.msra.mxu0 0.0
        %7080 = vmatprep.subr.mxu0 0.0
        %7081 = vmatpush1.msra.mxu0 0.0
        %7082 = vmatprep.subr.mxu0 0.0
        %7083 = vmatpush1.msra.mxu0 0.0
        %7084 = vmatprep.subr.mxu0 0.0
        %7085 = vmatpush1.msra.mxu0 0.0
        %7086 = vmatprep.subr.mxu0 0.0
        %7087 = vmatpush1.msra.mxu0 0.0
        %7088 = vmatprep.subr.mxu0 0.0
        %7089 = vmatpush1.msra.mxu0 0.0
        %7090 = vmatprep.subr.mxu0 0.0
        %7091 = vmatpush1.msra.mxu0 0.0
        %7092 = vmatprep.subr.mxu0 0.0
        %7093 = vmatpush1.msra.mxu0 0.0
        %7094 = vmatprep.subr.mxu0 0.0
        %7095 = vmatpush1.msra.mxu0 0.0
        %7096 = vmatprep.subr.mxu0 0.0
        %7097 = vmatpush1.msra.mxu0 0.0
        %7098 = vmatprep.subr.mxu0 0.0
        %7099 = vmatpush1.msra.mxu0 0.0
        %7100 = vmatprep.subr.mxu0 0.0
        %7101 = vmatpush1.msra.mxu0 0.0
        %7102 = vmatprep.subr.mxu0 0.0
        %7103 = vmatpush1.msra.mxu0 0.0
        %7104 = vmatprep.subr.mxu0 0.0
        %7105 = vmatpush1.msra.mxu0 0.0
        %7106 = vmatprep.subr.mxu0 0.0
        %7107 = vmatpush1.msra.mxu0 0.0
        %7108 = vmatprep.subr.mxu0 0.0
        %7109 = vmatpush1.msra.mxu0 0.0
        %7110 = vmatprep.subr.mxu0 0.0
        %7111 = vmatpush1.msra.mxu0 0.0
        %7112 = vmatprep.subr.mxu0 0.0
        %7113 = vmatpush1.msra.mxu0 0.0
        %7114 = vmatprep.subr.mxu0 0.0
        %7115 = vmatpush1.msra.mxu0 0.0
        %7116 = vmatprep.subr.mxu0 0.0
        %7117 = vmatpush1.msra.mxu0 0.0
        %7118 = vmatprep.subr.mxu0 0.0
        %7119 = vmatpush1.msra.mxu0 0.0
        %7120 = vmatprep.subr.mxu0 0.0
        %7121 = vmatpush1.msra.mxu0 0.0
        %7122 = vmatprep.subr.mxu0 0.0
        %7123 = vmatpush1.msra.mxu0 0.0
        %7124 = vmatprep.subr.mxu0 0.0
        %7125 = vmatpush1.msra.mxu0 0.0
        %7126 = vmatprep.subr.mxu0 0.0
        %7127 = vmatpush1.msra.mxu0 0.0
        %7128 = vmatprep.subr.mxu0 0.0
        %7129 = vmatpush1.msra.mxu0 0.0
        %7130 = vmatprep.mubr.f32.mxu0 0.0
        %7131 = vmatmul.mubr.f32.gmra.mrb[0].mxu0 %v7055
        %v7132 = vpop.f32.mrb[0].mxu0
        %v7133 = vadd.f32 %v7039, %v7132
        %v7134 = vpop.f32.mrb[0].mxu0
        %v7135 = vadd.f32 %v7039, %v7134
        %7136 = vmatprep.mubr.f32.mxu0 0.0
        %7137 = vmatmul.mubr.f32.gmra.mrb[0].mxu0 %v7058
        %v7138 = vpop.f32.mrb[0].mxu0
        %v7139 = vadd.f32 %v7043, %v7138
        %v7140 = vpop.f32.mrb[0].mxu0
        %v7141 = vadd.f32 %v7043, %v7140
        %7142 = vmatprep.mubr.f32.mxu0 0.0
        %7143 = vmatmul.mubr.f32.gmra.mrb[0].mxu0 %v7061
        %v7144 = vpop.f32.mrb[0].mxu0
        %v7145 = vadd.f32 %v7047, %v7144
        %v7146 = vpop.f32.mrb[0].mxu0
        %v7147 = vadd.f32 %v7047, %v7146
        %7148 = vmatprep.mubr.f32.mxu0 0.0
        %7149 = vmatmul.mubr.f32.gmra.mrb[0].mxu0 %v7064
        %v7150 = vpop.f32.mrb[0].mxu0
        %v7151 = vadd.f32 %v7051, %v7150
        %v7152 = vpop.f32.mrb[0].mxu0
        %v7153 = vadd.f32 %v7051, %v7152
        %7154 = vdwg.mxu0
        %7155 = vmatprep.subr.mxu0 %v6972
        %7156 = vmatpush1.msra.mxu0 %v6971
        %7157 = vmatprep.subr.mxu0 %v6988
        %7158 = vmatpush1.msra.mxu0 %v6987
        %7159 = vmatprep.subr.mxu0 %v7004
        %7160 = vmatpush1.msra.mxu0 %v7003
        %7161 = vmatprep.subr.mxu0 %v7020
        %7162 = vmatpush1.msra.mxu0 %v7019
        %7163 = vmatprep.subr.mxu0 0.0
        %7164 = vmatpush1.msra.mxu0 0.0
        %7165 = vmatprep.subr.mxu0 0.0
        %7166 = vmatpush1.msra.mxu0 0.0
        %7167 = vmatprep.subr.mxu0 0.0
        %7168 = vmatpush1.msra.mxu0 0.0
        %7169 = vmatprep.subr.mxu0 0.0
        %7170 = vmatpush1.msra.mxu0 0.0
        %7171 = vmatprep.subr.mxu0 0.0
        %7172 = vmatpush1.msra.mxu0 0.0
        %7173 = vmatprep.subr.mxu0 0.0
        %7174 = vmatpush1.msra.mxu0 0.0
        %7175 = vmatprep.subr.mxu0 0.0
        %7176 = vmatpush1.msra.mxu0 0.0
        %7177 = vmatprep.subr.mxu0 0.0
        %7178 = vmatpush1.msra.mxu0 0.0
        %7179 = vmatprep.subr.mxu0 0.0
        %7180 = vmatpush1.msra.mxu0 0.0
        %7181 = vmatprep.subr.mxu0 0.0
        %7182 = vmatpush1.msra.mxu0 0.0
        %7183 = vmatprep.subr.mxu0 0.0
        %7184 = vmatpush1.msra.mxu0 0.0
        %7185 = vmatprep.subr.mxu0 0.0
        %7186 = vmatpush1.msra.mxu0 0.0
        %7187 = vmatprep.subr.mxu0 0.0
        %7188 = vmatpush1.msra.mxu0 0.0
        %7189 = vmatprep.subr.mxu0 0.0
        %7190 = vmatpush1.msra.mxu0 0.0
        %7191 = vmatprep.subr.mxu0 0.0
        %7192 = vmatpush1.msra.mxu0 0.0
        %7193 = vmatprep.subr.mxu0 0.0
        %7194 = vmatpush1.msra.mxu0 0.0
        %7195 = vmatprep.subr.mxu0 0.0
        %7196 = vmatpush1.msra.mxu0 0.0
        %7197 = vmatprep.subr.mxu0 0.0
        %7198 = vmatpush1.msra.mxu0 0.0
        %7199 = vmatprep.subr.mxu0 0.0
        %7200 = vmatpush1.msra.mxu0 0.0
        %7201 = vmatprep.subr.mxu0 0.0
        %7202 = vmatpush1.msra.mxu0 0.0
        %7203 = vmatprep.subr.mxu0 0.0
        %7204 = vmatpush1.msra.mxu0 0.0
        %7205 = vmatprep.subr.mxu0 0.0
        %7206 = vmatpush1.msra.mxu0 0.0
        %7207 = vmatprep.subr.mxu0 0.0
        %7208 = vmatpush1.msra.mxu0 0.0
        %7209 = vmatprep.subr.mxu0 0.0
        %7210 = vmatpush1.msra.mxu0 0.0
        %7211 = vmatprep.subr.mxu0 0.0
        %7212 = vmatpush1.msra.mxu0 0.0
        %7213 = vmatprep.subr.mxu0 0.0
        %7214 = vmatpush1.msra.mxu0 0.0
        %7215 = vmatprep.subr.mxu0 0.0
        %7216 = vmatpush1.msra.mxu0 0.0
        %7217 = vmatprep.subr.mxu0 0.0
        %7218 = vmatpush1.msra.mxu0 0.0
        %7219 = vmatprep.mubr.f32.mxu0 0.0
        %7220 = vmatmul.mubr.f32.gmra.mrb[0].mxu0 %v7055
        %v7221 = vpop.f32.mrb[0].mxu0
        %v7222 = vadd.f32 %v7039, %v7221
        %v7223 = vpop.f32.mrb[0].mxu0
        %v7224 = vadd.f32 %v7039, %v7223
        %7225 = vmatprep.mubr.f32.mxu0 0.0
        %7226 = vmatmul.mubr.f32.gmra.mrb[0].mxu0 %v7058
        %v7227 = vpop.f32.mrb[0].mxu0
        %v7228 = vadd.f32 %v7043, %v7227
        %v7229 = vpop.f32.mrb[0].mxu0
        %v7230 = vadd.f32 %v7043, %v7229
        %7231 = vmatprep.mubr.f32.mxu0 0.0
        %7232 = vmatmul.mubr.f32.gmra.mrb[0].mxu0 %v7061
        %v7233 = vpop.f32.mrb[0].mxu0
        %v7234 = vadd.f32 %v7047, %v7233
        %v7235 = vpop.f32.mrb[0].mxu0
        %v7236 = vadd.f32 %v7047, %v7235
        %7237 = vmatprep.mubr.f32.mxu0 0.0
        %7238 = vmatmul.mubr.f32.gmra.mrb[0].mxu0 %v7064
        %v7239 = vpop.f32.mrb[0].mxu0
        %v7240 = vadd.f32 %v7051, %v7239
        %v7241 = vpop.f32.mrb[0].mxu0
        %v7242 = vadd.f32 %v7051, %v7241
        %7243 = vdwg.mxu0
        %7244 = vmatprep.subr.mxu0 %v6974
        %7245 = vmatpush1.msra.mxu0 %v6973
        %7246 = vmatprep.subr.mxu0 %v6990
        %7247 = vmatpush1.msra.mxu0 %v6989
        %7248 = vmatprep.subr.mxu0 %v7006
        %7249 = vmatpush1.msra.mxu0 %v7005
        %7250 = vmatprep.subr.mxu0 %v7022
        %7251 = vmatpush1.msra.mxu0 %v7021
        %7252 = vmatprep.subr.mxu0 0.0
        %7253 = vmatpush1.msra.mxu0 0.0
        %7254 = vmatprep.subr.mxu0 0.0
        %7255 = vmatpush1.msra.mxu0 0.0
        %7256 = vmatprep.subr.mxu0 0.0
        %7257 = vmatpush1.msra.mxu0 0.0
        %7258 = vmatprep.subr.mxu0 0.0
        %7259 = vmatpush1.msra.mxu0 0.0
        %7260 = vmatprep.subr.mxu0 0.0
        %7261 = vmatpush1.msra.mxu0 0.0
        %7262 = vmatprep.subr.mxu0 0.0
        %7263 = vmatpush1.msra.mxu0 0.0
        %7264 = vmatprep.subr.mxu0 0.0
        %7265 = vmatpush1.msra.mxu0 0.0
        %7266 = vmatprep.subr.mxu0 0.0
        %7267 = vmatpush1.msra.mxu0 0.0
        %7268 = vmatprep.subr.mxu0 0.0
        %7269 = vmatpush1.msra.mxu0 0.0
        %7270 = vmatprep.subr.mxu0 0.0
        %7271 = vmatpush1.msra.mxu0 0.0
        %7272 = vmatprep.subr.mxu0 0.0
        %7273 = vmatpush1.msra.mxu0 0.0
        %7274 = vmatprep.subr.mxu0 0.0
        %7275 = vmatpush1.msra.mxu0 0.0
        %7276 = vmatprep.subr.mxu0 0.0
        %7277 = vmatpush1.msra.mxu0 0.0
        %7278 = vmatprep.subr.mxu0 0.0
        %7279 = vmatpush1.msra.mxu0 0.0
        %7280 = vmatprep.subr.mxu0 0.0
        %7281 = vmatpush1.msra.mxu0 0.0
        %7282 = vmatprep.subr.mxu0 0.0
        %7283 = vmatpush1.msra.mxu0 0.0
        %7284 = vmatprep.subr.mxu0 0.0
        %7285 = vmatpush1.msra.mxu0 0.0
        %7286 = vmatprep.subr.mxu0 0.0
        %7287 = vmatpush1.msra.mxu0 0.0
        %7288 = vmatprep.subr.mxu0 0.0
        %7289 = vmatpush1.msra.mxu0 0.0
        %7290 = vmatprep.subr.mxu0 0.0
        %7291 = vmatpush1.msra.mxu0 0.0
        %7292 = vmatprep.subr.mxu0 0.0
        %7293 = vmatpush1.msra.mxu0 0.0
        %7294 = vmatprep.subr.mxu0 0.0
        %7295 = vmatpush1.msra.mxu0 0.0
        %7296 = vmatprep.subr.mxu0 0.0
        %7297 = vmatpush1.msra.mxu0 0.0
        %7298 = vmatprep.subr.mxu0 0.0
        %7299 = vmatpush1.msra.mxu0 0.0
        %7300 = vmatprep.subr.mxu0 0.0
        %7301 = vmatpush1.msra.mxu0 0.0
        %7302 = vmatprep.subr.mxu0 0.0
        %7303 = vmatpush1.msra.mxu0 0.0
        %7304 = vmatprep.subr.mxu0 0.0
        %7305 = vmatpush1.msra.mxu0 0.0
        %7306 = vmatprep.subr.mxu0 0.0
        %7307 = vmatpush1.msra.mxu0 0.0
        %7308 = vmatprep.mubr.f32.mxu0 0.0
        %7309 = vmatmul.mubr.f32.gmra.mrb[0].mxu0 %v7055
        %v7310 = vpop.f32.mrb[0].mxu0
        %v7311 = vadd.f32 %v7039, %v7310
        %v7312 = vpop.f32.mrb[0].mxu0
        %v7313 = vadd.f32 %v7039, %v7312
        %7314 = vmatprep.mubr.f32.mxu0 0.0
        %7315 = vmatmul.mubr.f32.gmra.mrb[0].mxu0 %v7058
        %v7316 = vpop.f32.mrb[0].mxu0
        %v7317 = vadd.f32 %v7043, %v7316
        %v7318 = vpop.f32.mrb[0].mxu0
        %v7319 = vadd.f32 %v7043, %v7318
        %7320 = vmatprep.mubr.f32.mxu0 0.0
        %7321 = vmatmul.mubr.f32.gmra.mrb[0].mxu0 %v7061
        %v7322 = vpop.f32.mrb[0].mxu0
        %v7323 = vadd.f32 %v7047, %v7322
        %v7324 = vpop.f32.mrb[0].mxu0
        %v7325 = vadd.f32 %v7047, %v7324
        %7326 = vmatprep.mubr.f32.mxu0 0.0
        %7327 = vmatmul.mubr.f32.gmra.mrb[0].mxu0 %v7064
        %v7328 = vpop.f32.mrb[0].mxu0
        %v7329 = vadd.f32 %v7051, %v7328
        %v7330 = vpop.f32.mrb[0].mxu0
        %v7331 = vadd.f32 %v7051, %v7330
        %7332 = vdwg.mxu0
        %7333 = vmatprep.subr.mxu0 %v6976
        %7334 = vmatpush1.msra.mxu0 %v6975
        %7335 = vmatprep.subr.mxu0 %v6992
        %7336 = vmatpush1.msra.mxu0 %v6991
        %7337 = vmatprep.subr.mxu0 %v7008
        %7338 = vmatpush1.msra.mxu0 %v7007
        %7339 = vmatprep.subr.mxu0 %v7024
        %7340 = vmatpush1.msra.mxu0 %v7023
        %7341 = vmatprep.subr.mxu0 0.0
        %7342 = vmatpush1.msra.mxu0 0.0
        %7343 = vmatprep.subr.mxu0 0.0
        %7344 = vmatpush1.msra.mxu0 0.0
        %7345 = vmatprep.subr.mxu0 0.0
        %7346 = vmatpush1.msra.mxu0 0.0
        %7347 = vmatprep.subr.mxu0 0.0
        %7348 = vmatpush1.msra.mxu0 0.0
        %7349 = vmatprep.subr.mxu0 0.0
        %7350 = vmatpush1.msra.mxu0 0.0
        %7351 = vmatprep.subr.mxu0 0.0
        %7352 = vmatpush1.msra.mxu0 0.0
        %7353 = vmatprep.subr.mxu0 0.0
        %7354 = vmatpush1.msra.mxu0 0.0
        %7355 = vmatprep.subr.mxu0 0.0
        %7356 = vmatpush1.msra.mxu0 0.0
        %7357 = vmatprep.subr.mxu0 0.0
        %7358 = vmatpush1.msra.mxu0 0.0
        %7359 = vmatprep.subr.mxu0 0.0
        %7360 = vmatpush1.msra.mxu0 0.0
        %7361 = vmatprep.subr.mxu0 0.0
        %7362 = vmatpush1.msra.mxu0 0.0
        %7363 = vmatprep.subr.mxu0 0.0
        %7364 = vmatpush1.msra.mxu0 0.0
        %7365 = vmatprep.subr.mxu0 0.0
        %7366 = vmatpush1.msra.mxu0 0.0
        %7367 = vmatprep.subr.mxu0 0.0
        %7368 = vmatpush1.msra.mxu0 0.0
        %7369 = vmatprep.subr.mxu0 0.0
        %7370 = vmatpush1.msra.mxu0 0.0
        %7371 = vmatprep.subr.mxu0 0.0
        %7372 = vmatpush1.msra.mxu0 0.0
        %7373 = vmatprep.subr.mxu0 0.0
        %7374 = vmatpush1.msra.mxu0 0.0
        %7375 = vmatprep.subr.mxu0 0.0
        %7376 = vmatpush1.msra.mxu0 0.0
        %7377 = vmatprep.subr.mxu0 0.0
        %7378 = vmatpush1.msra.mxu0 0.0
        %7379 = vmatprep.subr.mxu0 0.0
        %7380 = vmatpush1.msra.mxu0 0.0
        %7381 = vmatprep.subr.mxu0 0.0
        %7382 = vmatpush1.msra.mxu0 0.0
        %7383 = vmatprep.subr.mxu0 0.0
        %7384 = vmatpush1.msra.mxu0 0.0
        %7385 = vmatprep.subr.mxu0 0.0
        %7386 = vmatpush1.msra.mxu0 0.0
        %7387 = vmatprep.subr.mxu0 0.0
        %7388 = vmatpush1.msra.mxu0 0.0
        %7389 = vmatprep.subr.mxu0 0.0
        %7390 = vmatpush1.msra.mxu0 0.0
        %7391 = vmatprep.subr.mxu0 0.0
        %7392 = vmatpush1.msra.mxu0 0.0
        %7393 = vmatprep.subr.mxu0 0.0
        %7394 = vmatpush1.msra.mxu0 0.0
        %7395 = vmatprep.subr.mxu0 0.0
        %7396 = vmatpush1.msra.mxu0 0.0
        %7397 = vmatprep.mubr.f32.mxu0 0.0
        %7398 = vmatmul.mubr.f32.gmra.mrb[0].mxu0 %v7055
        %v7399 = vpop.f32.mrb[0].mxu0
        %v7400 = vadd.f32 %v7039, %v7399
        %v7401 = vpop.f32.mrb[0].mxu0
        %v7402 = vadd.f32 %v7039, %v7401
        %7403 = vmatprep.mubr.f32.mxu0 0.0
        %7404 = vmatmul.mubr.f32.gmra.mrb[0].mxu0 %v7058
        %v7405 = vpop.f32.mrb[0].mxu0
        %v7406 = vadd.f32 %v7043, %v7405
        %v7407 = vpop.f32.mrb[0].mxu0
        %v7408 = vadd.f32 %v7043, %v7407
        %7409 = vmatprep.mubr.f32.mxu0 0.0
        %7410 = vmatmul.mubr.f32.gmra.mrb[0].mxu0 %v7061
        %v7411 = vpop.f32.mrb[0].mxu0
        %v7412 = vadd.f32 %v7047, %v7411
        %v7413 = vpop.f32.mrb[0].mxu0
        %v7414 = vadd.f32 %v7047, %v7413
        %7415 = vmatprep.mubr.f32.mxu0 0.0
        %7416 = vmatmul.mubr.f32.gmra.mrb[0].mxu0 %v7064
        %v7417 = vpop.f32.mrb[0].mxu0
        %v7418 = vadd.f32 %v7051, %v7417
        %v7419 = vpop.f32.mrb[0].mxu0
        %v7420 = vadd.f32 %v7051, %v7419
        %7421 = vdwg.mxu0
        %7422 = vmatprep.subr.mxu0 %v6978
        %7423 = vmatpush1.msra.mxu0 %v6977
        %7424 = vmatprep.subr.mxu0 %v6994
        %7425 = vmatpush1.msra.mxu0 %v6993
        %7426 = vmatprep.subr.mxu0 %v7010
        %7427 = vmatpush1.msra.mxu0 %v7009
        %7428 = vmatprep.subr.mxu0 %v7026
        %7429 = vmatpush1.msra.mxu0 %v7025
        %7430 = vmatprep.subr.mxu0 0.0
        %7431 = vmatpush1.msra.mxu0 0.0
        %7432 = vmatprep.subr.mxu0 0.0
        %7433 = vmatpush1.msra.mxu0 0.0
        %7434 = vmatprep.subr.mxu0 0.0
        %7435 = vmatpush1.msra.mxu0 0.0
        %7436 = vmatprep.subr.mxu0 0.0
        %7437 = vmatpush1.msra.mxu0 0.0
        %7438 = vmatprep.subr.mxu0 0.0
        %7439 = vmatpush1.msra.mxu0 0.0
        %7440 = vmatprep.subr.mxu0 0.0
        %7441 = vmatpush1.msra.mxu0 0.0
        %7442 = vmatprep.subr.mxu0 0.0
        %7443 = vmatpush1.msra.mxu0 0.0
        %7444 = vmatprep.subr.mxu0 0.0
        %7445 = vmatpush1.msra.mxu0 0.0
        %7446 = vmatprep.subr.mxu0 0.0
        %7447 = vmatpush1.msra.mxu0 0.0
        %7448 = vmatprep.subr.mxu0 0.0
        %7449 = vmatpush1.msra.mxu0 0.0
        %7450 = vmatprep.subr.mxu0 0.0
        %7451 = vmatpush1.msra.mxu0 0.0
        %7452 = vmatprep.subr.mxu0 0.0
        %7453 = vmatpush1.msra.mxu0 0.0
        %7454 = vmatprep.subr.mxu0 0.0
        %7455 = vmatpush1.msra.mxu0 0.0
        %7456 = vmatprep.subr.mxu0 0.0
        %7457 = vmatpush1.msra.mxu0 0.0
        %7458 = vmatprep.subr.mxu0 0.0
        %7459 = vmatpush1.msra.mxu0 0.0
        %7460 = vmatprep.subr.mxu0 0.0
        %7461 = vmatpush1.msra.mxu0 0.0
        %7462 = vmatprep.subr.mxu0 0.0
        %7463 = vmatpush1.msra.mxu0 0.0
        %7464 = vmatprep.subr.mxu0 0.0
        %7465 = vmatpush1.msra.mxu0 0.0
        %7466 = vmatprep.subr.mxu0 0.0
        %7467 = vmatpush1.msra.mxu0 0.0
        %7468 = vmatprep.subr.mxu0 0.0
        %7469 = vmatpush1.msra.mxu0 0.0
        %7470 = vmatprep.subr.mxu0 0.0
        %7471 = vmatpush1.msra.mxu0 0.0
        %7472 = vmatprep.subr.mxu0 0.0
        %7473 = vmatpush1.msra.mxu0 0.0
        %7474 = vmatprep.subr.mxu0 0.0
        %7475 = vmatpush1.msra.mxu0 0.0
        %7476 = vmatprep.subr.mxu0 0.0
        %7477 = vmatpush1.msra.mxu0 0.0
        %7478 = vmatprep.subr.mxu0 0.0
        %7479 = vmatpush1.msra.mxu0 0.0
        %7480 = vmatprep.subr.mxu0 0.0
        %7481 = vmatpush1.msra.mxu0 0.0
        %7482 = vmatprep.subr.mxu0 0.0
        %7483 = vmatpush1.msra.mxu0 0.0
        %7484 = vmatprep.subr.mxu0 0.0
        %7485 = vmatpush1.msra.mxu0 0.0
        %7486 = vmatprep.mubr.f32.mxu0 0.0
        %7487 = vmatmul.mubr.f32.gmra.mrb[0].mxu0 %v7055
        %v7488 = vpop.f32.mrb[0].mxu0
        %v7489 = vadd.f32 %v7039, %v7488
        %v7490 = vpop.f32.mrb[0].mxu0
        %v7491 = vadd.f32 %v7039, %v7490
        %7492 = vmatprep.mubr.f32.mxu0 0.0
        %7493 = vmatmul.mubr.f32.gmra.mrb[0].mxu0 %v7058
        %v7494 = vpop.f32.mrb[0].mxu0
        %v7495 = vadd.f32 %v7043, %v7494
        %v7496 = vpop.f32.mrb[0].mxu0
        %v7497 = vadd.f32 %v7043, %v7496
        %7498 = vmatprep.mubr.f32.mxu0 0.0
        %7499 = vmatmul.mubr.f32.gmra.mrb[0].mxu0 %v7061
        %v7500 = vpop.f32.mrb[0].mxu0
        %v7501 = vadd.f32 %v7047, %v7500
        %v7502 = vpop.f32.mrb[0].mxu0
        %v7503 = vadd.f32 %v7047, %v7502
        %7504 = vmatprep.mubr.f32.mxu0 0.0
        %7505 = vmatmul.mubr.f32.gmra.mrb[0].mxu0 %v7064
        %v7506 = vpop.f32.mrb[0].mxu0
        %v7507 = vadd.f32 %v7051, %v7506
        %v7508 = vpop.f32.mrb[0].mxu0
        %v7509 = vadd.f32 %v7051, %v7508
        %7510 = vdwg.mxu0
        %7511 = vmatprep.subr.mxu0 %v6980
        %7512 = vmatpush1.msra.mxu0 %v6979
        %7513 = vmatprep.subr.mxu0 %v6996
        %7514 = vmatpush1.msra.mxu0 %v6995
        %7515 = vmatprep.subr.mxu0 %v7012
        %7516 = vmatpush1.msra.mxu0 %v7011
        %7517 = vmatprep.subr.mxu0 %v7028
        %7518 = vmatpush1.msra.mxu0 %v7027
        %7519 = vmatprep.subr.mxu0 0.0
        %7520 = vmatpush1.msra.mxu0 0.0
        %7521 = vmatprep.subr.mxu0 0.0
        %7522 = vmatpush1.msra.mxu0 0.0
        %7523 = vmatprep.subr.mxu0 0.0
        %7524 = vmatpush1.msra.mxu0 0.0
        %7525 = vmatprep.subr.mxu0 0.0
        %7526 = vmatpush1.msra.mxu0 0.0
        %7527 = vmatprep.subr.mxu0 0.0
        %7528 = vmatpush1.msra.mxu0 0.0
        %7529 = vmatprep.subr.mxu0 0.0
        %7530 = vmatpush1.msra.mxu0 0.0
        %7531 = vmatprep.subr.mxu0 0.0
        %7532 = vmatpush1.msra.mxu0 0.0
        %7533 = vmatprep.subr.mxu0 0.0
        %7534 = vmatpush1.msra.mxu0 0.0
        %7535 = vmatprep.subr.mxu0 0.0
        %7536 = vmatpush1.msra.mxu0 0.0
        %7537 = vmatprep.subr.mxu0 0.0
        %7538 = vmatpush1.msra.mxu0 0.0
        %7539 = vmatprep.subr.mxu0 0.0
        %7540 = vmatpush1.msra.mxu0 0.0
        %7541 = vmatprep.subr.mxu0 0.0
        %7542 = vmatpush1.msra.mxu0 0.0
        %7543 = vmatprep.subr.mxu0 0.0
        %7544 = vmatpush1.msra.mxu0 0.0
        %7545 = vmatprep.subr.mxu0 0.0
        %7546 = vmatpush1.msra.mxu0 0.0
        %7547 = vmatprep.subr.mxu0 0.0
        %7548 = vmatpush1.msra.mxu0 0.0
        %7549 = vmatprep.subr.mxu0 0.0
        %7550 = vmatpush1.msra.mxu0 0.0
        %7551 = vmatprep.subr.mxu0 0.0
        %7552 = vmatpush1.msra.mxu0 0.0
        %7553 = vmatprep.subr.mxu0 0.0
        %7554 = vmatpush1.msra.mxu0 0.0
        %7555 = vmatprep.subr.mxu0 0.0
        %7556 = vmatpush1.msra.mxu0 0.0
        %7557 = vmatprep.subr.mxu0 0.0
        %7558 = vmatpush1.msra.mxu0 0.0
        %7559 = vmatprep.subr.mxu0 0.0
        %7560 = vmatpush1.msra.mxu0 0.0
        %7561 = vmatprep.subr.mxu0 0.0
        %7562 = vmatpush1.msra.mxu0 0.0
        %7563 = vmatprep.subr.mxu0 0.0
        %7564 = vmatpush1.msra.mxu0 0.0
        %7565 = vmatprep.subr.mxu0 0.0
        %7566 = vmatpush1.msra.mxu0 0.0
        %7567 = vmatprep.subr.mxu0 0.0
        %7568 = vmatpush1.msra.mxu0 0.0
        %7569 = vmatprep.subr.mxu0 0.0
        %7570 = vmatpush1.msra.mxu0 0.0
        %7571 = vmatprep.subr.mxu0 0.0
        %7572 = vmatpush1.msra.mxu0 0.0
        %7573 = vmatprep.subr.mxu0 0.0
        %7574 = vmatpush1.msra.mxu0 0.0
        %7575 = vmatprep.mubr.f32.mxu0 0.0
        %7576 = vmatmul.mubr.f32.gmra.mrb[0].mxu0 %v7055
        %v7577 = vpop.f32.mrb[0].mxu0
        %v7578 = vadd.f32 %v7039, %v7577
        %v7579 = vpop.f32.mrb[0].mxu0
        %v7580 = vadd.f32 %v7039, %v7579
        %7581 = vmatprep.mubr.f32.mxu0 0.0
        %7582 = vmatmul.mubr.f32.gmra.mrb[0].mxu0 %v7058
        %v7583 = vpop.f32.mrb[0].mxu0
        %v7584 = vadd.f32 %v7043, %v7583
        %v7585 = vpop.f32.mrb[0].mxu0
        %v7586 = vadd.f32 %v7043, %v7585
        %7587 = vmatprep.mubr.f32.mxu0 0.0
        %7588 = vmatmul.mubr.f32.gmra.mrb[0].mxu0 %v7061
        %v7589 = vpop.f32.mrb[0].mxu0
        %v7590 = vadd.f32 %v7047, %v7589
        %v7591 = vpop.f32.mrb[0].mxu0
        %v7592 = vadd.f32 %v7047, %v7591
        %7593 = vmatprep.mubr.f32.mxu0 0.0
        %7594 = vmatmul.mubr.f32.gmra.mrb[0].mxu0 %v7064
        %v7595 = vpop.f32.mrb[0].mxu0
        %v7596 = vadd.f32 %v7051, %v7595
        %v7597 = vpop.f32.mrb[0].mxu0
        %v7598 = vadd.f32 %v7051, %v7597
        %7599 = vdwg.mxu0
        %7600 = vmatprep.subr.mxu0 %v6982
        %7601 = vmatpush1.msra.mxu0 %v6981
        %7602 = vmatprep.subr.mxu0 %v6998
        %7603 = vmatpush1.msra.mxu0 %v6997
        %7604 = vmatprep.subr.mxu0 %v7014
        %7605 = vmatpush1.msra.mxu0 %v7013
        %7606 = vmatprep.subr.mxu0 %v7030
        %7607 = vmatpush1.msra.mxu0 %v7029
        %7608 = vmatprep.subr.mxu0 0.0
        %7609 = vmatpush1.msra.mxu0 0.0
        %7610 = vmatprep.subr.mxu0 0.0
        %7611 = vmatpush1.msra.mxu0 0.0
        %7612 = vmatprep.subr.mxu0 0.0
        %7613 = vmatpush1.msra.mxu0 0.0
        %7614 = vmatprep.subr.mxu0 0.0
        %7615 = vmatpush1.msra.mxu0 0.0
        %7616 = vmatprep.subr.mxu0 0.0
        %7617 = vmatpush1.msra.mxu0 0.0
        %7618 = vmatprep.subr.mxu0 0.0
        %7619 = vmatpush1.msra.mxu0 0.0
        %7620 = vmatprep.subr.mxu0 0.0
        %7621 = vmatpush1.msra.mxu0 0.0
        %7622 = vmatprep.subr.mxu0 0.0
        %7623 = vmatpush1.msra.mxu0 0.0
        %7624 = vmatprep.subr.mxu0 0.0
        %7625 = vmatpush1.msra.mxu0 0.0
        %7626 = vmatprep.subr.mxu0 0.0
        %7627 = vmatpush1.msra.mxu0 0.0
        %7628 = vmatprep.subr.mxu0 0.0
        %7629 = vmatpush1.msra.mxu0 0.0
        %7630 = vmatprep.subr.mxu0 0.0
        %7631 = vmatpush1.msra.mxu0 0.0
        %7632 = vmatprep.subr.mxu0 0.0
        %7633 = vmatpush1.msra.mxu0 0.0
        %7634 = vmatprep.subr.mxu0 0.0
        %7635 = vmatpush1.msra.mxu0 0.0
        %7636 = vmatprep.subr.mxu0 0.0
        %7637 = vmatpush1.msra.mxu0 0.0
        %7638 = vmatprep.subr.mxu0 0.0
        %7639 = vmatpush1.msra.mxu0 0.0
        %7640 = vmatprep.subr.mxu0 0.0
        %7641 = vmatpush1.msra.mxu0 0.0
        %7642 = vmatprep.subr.mxu0 0.0
        %7643 = vmatpush1.msra.mxu0 0.0
        %7644 = vmatprep.subr.mxu0 0.0
        %7645 = vmatpush1.msra.mxu0 0.0
        %7646 = vmatprep.subr.mxu0 0.0
        %7647 = vmatpush1.msra.mxu0 0.0
        %7648 = vmatprep.subr.mxu0 0.0
        %7649 = vmatpush1.msra.mxu0 0.0
        %7650 = vmatprep.subr.mxu0 0.0
        %7651 = vmatpush1.msra.mxu0 0.0
        %7652 = vmatprep.subr.mxu0 0.0
        %7653 = vmatpush1.msra.mxu0 0.0
        %7654 = vmatprep.subr.mxu0 0.0
        %7655 = vmatpush1.msra.mxu0 0.0
        %7656 = vmatprep.subr.mxu0 0.0
        %7657 = vmatpush1.msra.mxu0 0.0
        %7658 = vmatprep.subr.mxu0 0.0
        %7659 = vmatpush1.msra.mxu0 0.0
        %7660 = vmatprep.subr.mxu0 0.0
        %7661 = vmatpush1.msra.mxu0 0.0
        %7662 = vmatprep.subr.mxu0 0.0
        %7663 = vmatpush1.msra.mxu0 0.0
        %7664 = vmatprep.mubr.f32.mxu0 0.0
        %7665 = vmatmul.mubr.f32.gmra.mrb[0].mxu0 %v7055
        %v7666 = vpop.f32.mrb[0].mxu0
        %v7667 = vadd.f32 %v7039, %v7666
        %v7668 = vpop.f32.mrb[0].mxu0
        %v7669 = vadd.f32 %v7039, %v7668
        %7670 = vmatprep.mubr.f32.mxu0 0.0
        %7671 = vmatmul.mubr.f32.gmra.mrb[0].mxu0 %v7058
        %v7672 = vpop.f32.mrb[0].mxu0
        %v7673 = vadd.f32 %v7043, %v7672
        %v7674 = vpop.f32.mrb[0].mxu0
        %v7675 = vadd.f32 %v7043, %v7674
        %7676 = vmatprep.mubr.f32.mxu0 0.0
        %7677 = vmatmul.mubr.f32.gmra.mrb[0].mxu0 %v7061
        %v7678 = vpop.f32.mrb[0].mxu0
        %v7679 = vadd.f32 %v7047, %v7678
        %v7680 = vpop.f32.mrb[0].mxu0
        %v7681 = vadd.f32 %v7047, %v7680
        %7682 = vmatprep.mubr.f32.mxu0 0.0
        %7683 = vmatmul.mubr.f32.gmra.mrb[0].mxu0 %v7064
        %v7684 = vpop.f32.mrb[0].mxu0
        %v7685 = vadd.f32 %v7051, %v7684
        %v7686 = vpop.f32.mrb[0].mxu0
        %v7687 = vadd.f32 %v7051, %v7686
        %7688 = vdwg.mxu0
        %7689 = vmatprep.subr.mxu0 %v6984
        %7690 = vmatpush1.msra.mxu0 %v6983
        %7691 = vmatprep.subr.mxu0 %v7000
        %7692 = vmatpush1.msra.mxu0 %v6999
        %7693 = vmatprep.subr.mxu0 %v7016
        %7694 = vmatpush1.msra.mxu0 %v7015
        %7695 = vmatprep.subr.mxu0 %v7032
        %7696 = vmatpush1.msra.mxu0 %v7031
        %7697 = vmatprep.subr.mxu0 0.0
        %7698 = vmatpush1.msra.mxu0 0.0
        %7699 = vmatprep.subr.mxu0 0.0
        %7700 = vmatpush1.msra.mxu0 0.0
        %7701 = vmatprep.subr.mxu0 0.0
        %7702 = vmatpush1.msra.mxu0 0.0
        %7703 = vmatprep.subr.mxu0 0.0
        %7704 = vmatpush1.msra.mxu0 0.0
        %7705 = vmatprep.subr.mxu0 0.0
        %7706 = vmatpush1.msra.mxu0 0.0
        %7707 = vmatprep.subr.mxu0 0.0
        %7708 = vmatpush1.msra.mxu0 0.0
        %7709 = vmatprep.subr.mxu0 0.0
        %7710 = vmatpush1.msra.mxu0 0.0
        %7711 = vmatprep.subr.mxu0 0.0
        %7712 = vmatpush1.msra.mxu0 0.0
        %7713 = vmatprep.subr.mxu0 0.0
        %7714 = vmatpush1.msra.mxu0 0.0
        %7715 = vmatprep.subr.mxu0 0.0
        %7716 = vmatpush1.msra.mxu0 0.0
        %7717 = vmatprep.subr.mxu0 0.0
        %7718 = vmatpush1.msra.mxu0 0.0
        %7719 = vmatprep.subr.mxu0 0.0
        %7720 = vmatpush1.msra.mxu0 0.0
        %7721 = vmatprep.subr.mxu0 0.0
        %7722 = vmatpush1.msra.mxu0 0.0
        %7723 = vmatprep.subr.mxu0 0.0
        %7724 = vmatpush1.msra.mxu0 0.0
        %7725 = vmatprep.subr.mxu0 0.0
        %7726 = vmatpush1.msra.mxu0 0.0
        %7727 = vmatprep.subr.mxu0 0.0
        %7728 = vmatpush1.msra.mxu0 0.0
        %7729 = vmatprep.subr.mxu0 0.0
        %7730 = vmatpush1.msra.mxu0 0.0
        %7731 = vmatprep.subr.mxu0 0.0
        %7732 = vmatpush1.msra.mxu0 0.0
        %7733 = vmatprep.subr.mxu0 0.0
        %7734 = vmatpush1.msra.mxu0 0.0
        %7735 = vmatprep.subr.mxu0 0.0
        %7736 = vmatpush1.msra.mxu0 0.0
        %7737 = vmatprep.subr.mxu0 0.0
        %7738 = vmatpush1.msra.mxu0 0.0
        %7739 = vmatprep.subr.mxu0 0.0
        %7740 = vmatpush1.msra.mxu0 0.0
        %7741 = vmatprep.subr.mxu0 0.0
        %7742 = vmatpush1.msra.mxu0 0.0
        %7743 = vmatprep.subr.mxu0 0.0
        %7744 = vmatpush1.msra.mxu0 0.0
        %7745 = vmatprep.subr.mxu0 0.0
        %7746 = vmatpush1.msra.mxu0 0.0
        %7747 = vmatprep.subr.mxu0 0.0
        %7748 = vmatpush1.msra.mxu0 0.0
        %7749 = vmatprep.subr.mxu0 0.0
        %7750 = vmatpush1.msra.mxu0 0.0
        %7751 = vmatprep.subr.mxu0 0.0
        %7752 = vmatpush1.msra.mxu0 0.0
        %7753 = vmatprep.mubr.f32.mxu0 0.0
        %7754 = vmatmul.mubr.f32.gmra.mrb[0].mxu0 %v7055
        %v7755 = vpop.f32.mrb[0].mxu0
        %v7756 = vadd.f32 %v7039, %v7755
        %v7757 = vpop.f32.mrb[0].mxu0
        %v7758 = vadd.f32 %v7039, %v7757
        %7759 = vmatprep.mubr.f32.mxu0 0.0
        %7760 = vmatmul.mubr.f32.gmra.mrb[0].mxu0 %v7058
        %v7761 = vpop.f32.mrb[0].mxu0
        %v7762 = vadd.f32 %v7043, %v7761
        %v7763 = vpop.f32.mrb[0].mxu0
        %v7764 = vadd.f32 %v7043, %v7763
        %7765 = vmatprep.mubr.f32.mxu0 0.0
        %7766 = vmatmul.mubr.f32.gmra.mrb[0].mxu0 %v7061
        %v7767 = vpop.f32.mrb[0].mxu0
        %v7768 = vadd.f32 %v7047, %v7767
        %v7769 = vpop.f32.mrb[0].mxu0
        %v7770 = vadd.f32 %v7047, %v7769
        %7771 = vmatprep.mubr.f32.mxu0 0.0
        %7772 = vmatmul.mubr.f32.gmra.mrb[0].mxu0 %v7064
        %v7773 = vpop.f32.mrb[0].mxu0
        %v7774 = vadd.f32 %v7051, %v7773
        %v7775 = vpop.f32.mrb[0].mxu0
        %v7776 = vadd.f32 %v7051, %v7775
        %7777 = vdwg.mxu0
        %v7778 = vmax.f32 %v7133, 0.0
        %v7779 = vmax.f32 %v7135, 0.0
        %v7780 = vmax.f32 %v7222, 0.0
        %v7781 = vmax.f32 %v7224, 0.0
        %v7782 = vmax.f32 %v7311, 0.0
        %v7783 = vmax.f32 %v7313, 0.0
        %v7784 = vmax.f32 %v7400, 0.0
        %v7785 = vmax.f32 %v7402, 0.0
        %v7786 = vmax.f32 %v7489, 0.0
        %v7787 = vmax.f32 %v7491, 0.0
        %v7788 = vmax.f32 %v7578, 0.0
        %v7789 = vmax.f32 %v7580, 0.0
        %v7790 = vmax.f32 %v7667, 0.0
        %v7791 = vmax.f32 %v7669, 0.0
        %v7792 = vmax.f32 %v7756, 0.0
        %v7793 = vmax.f32 %v7758, 0.0
        %v7794 = vmax.f32 %v7139, 0.0
        %v7795 = vmax.f32 %v7141, 0.0
        %v7796 = vmax.f32 %v7228, 0.0
        %v7797 = vmax.f32 %v7230, 0.0
        %v7798 = vmax.f32 %v7317, 0.0
        %v7799 = vmax.f32 %v7319, 0.0
        %v7800 = vmax.f32 %v7406, 0.0
        %v7801 = vmax.f32 %v7408, 0.0
        %v7802 = vmax.f32 %v7495, 0.0
        %v7803 = vmax.f32 %v7497, 0.0
        %v7804 = vmax.f32 %v7584, 0.0
        %v7805 = vmax.f32 %v7586, 0.0
        %v7806 = vmax.f32 %v7673, 0.0
        %v7807 = vmax.f32 %v7675, 0.0
        %v7808 = vmax.f32 %v7762, 0.0
        %v7809 = vmax.f32 %v7764, 0.0
        %v7810 = vmax.f32 %v7145, 0.0
        %v7811 = vmax.f32 %v7147, 0.0
        %v7812 = vmax.f32 %v7234, 0.0
        %v7813 = vmax.f32 %v7236, 0.0
        %v7814 = vmax.f32 %v7323, 0.0
        %v7815 = vmax.f32 %v7325, 0.0
        %v7816 = vmax.f32 %v7412, 0.0
        %v7817 = vmax.f32 %v7414, 0.0
        %v7818 = vmax.f32 %v7501, 0.0
        %v7819 = vmax.f32 %v7503, 0.0
        %v7820 = vmax.f32 %v7590, 0.0
        %v7821 = vmax.f32 %v7592, 0.0
        %v7822 = vmax.f32 %v7679, 0.0
        %v7823 = vmax.f32 %v7681, 0.0
        %v7824 = vmax.f32 %v7768, 0.0
        %v7825 = vmax.f32 %v7770, 0.0
        %v7826 = vmax.f32 %v7151, 0.0
        %v7827 = vmax.f32 %v7153, 0.0
        %v7828 = vmax.f32 %v7240, 0.0
        %v7829 = vmax.f32 %v7242, 0.0
        %v7830 = vmax.f32 %v7329, 0.0
        %v7831 = vmax.f32 %v7331, 0.0
        %v7832 = vmax.f32 %v7418, 0.0
        %v7833 = vmax.f32 %v7420, 0.0
        %v7834 = vmax.f32 %v7507, 0.0
        %v7835 = vmax.f32 %v7509, 0.0
        %v7836 = vmax.f32 %v7596, 0.0
        %v7837 = vmax.f32 %v7598, 0.0
        %v7838 = vmax.f32 %v7685, 0.0
        %v7839 = vmax.f32 %v7687, 0.0
        %v7840 = vmax.f32 %v7774, 0.0
        %v7841 = vmax.f32 %v7776, 0.0
        %v7842 = vadd.f32 %v7778, %v7794
        %v7843 = vadd.f32 %v7842, %v7810
        %v7844 = vadd.f32 %v7843, %v7826
        %v7845 = vrot.slane %v7844, 4
        %v7846 = vadd.f32 %v7844, %v7845
        %v7847 = vrot.slane %v7846, 2
        %v7848 = vadd.f32 %v7846, %v7847
        %v7849 = vrot.slane %v7848, 1
        %v7850 = vadd.f32 %v7848, %v7849
        %v7851 = vadd.f32 %v7779, %v7795
        %v7852 = vadd.f32 %v7851, %v7811
        %v7853 = vadd.f32 %v7852, %v7827
        %v7854 = vrot.slane %v7853, 4
        %v7855 = vadd.f32 %v7853, %v7854
        %v7856 = vrot.slane %v7855, 2
        %v7857 = vadd.f32 %v7855, %v7856
        %v7858 = vrot.slane %v7857, 1
        %v7859 = vadd.f32 %v7857, %v7858
        %v7860 = vadd.f32 %v7780, %v7796
        %v7861 = vadd.f32 %v7860, %v7812
        %v7862 = vadd.f32 %v7861, %v7828
        %v7863 = vrot.slane %v7862, 4
        %v7864 = vadd.f32 %v7862, %v7863
        %v7865 = vrot.slane %v7864, 2
        %v7866 = vadd.f32 %v7864, %v7865
        %v7867 = vrot.slane %v7866, 1
        %v7868 = vadd.f32 %v7866, %v7867
        %v7869 = vadd.f32 %v7781, %v7797
        %v7870 = vadd.f32 %v7869, %v7813
        %v7871 = vadd.f32 %v7870, %v7829
        %v7872 = vrot.slane %v7871, 4
        %v7873 = vadd.f32 %v7871, %v7872
        %v7874 = vrot.slane %v7873, 2
        %v7875 = vadd.f32 %v7873, %v7874
        %v7876 = vrot.slane %v7875, 1
        %v7877 = vadd.f32 %v7875, %v7876
        %v7878 = vadd.f32 %v7782, %v7798
        %v7879 = vadd.f32 %v7878, %v7814
        %v7880 = vadd.f32 %v7879, %v7830
        %v7881 = vrot.slane %v7880, 4
        %v7882 = vadd.f32 %v7880, %v7881
        %v7883 = vrot.slane %v7882, 2
        %v7884 = vadd.f32 %v7882, %v7883
        %v7885 = vrot.slane %v7884, 1
        %v7886 = vadd.f32 %v7884, %v7885
        %v7887 = vadd.f32 %v7783, %v7799
        %v7888 = vadd.f32 %v7887, %v7815
        %v7889 = vadd.f32 %v7888, %v7831
        %v7890 = vrot.slane %v7889, 4
        %v7891 = vadd.f32 %v7889, %v7890
        %v7892 = vrot.slane %v7891, 2
        %v7893 = vadd.f32 %v7891, %v7892
        %v7894 = vrot.slane %v7893, 1
        %v7895 = vadd.f32 %v7893, %v7894
        %v7896 = vadd.f32 %v7784, %v7800
        %v7897 = vadd.f32 %v7896, %v7816
        %v7898 = vadd.f32 %v7897, %v7832
        %v7899 = vrot.slane %v7898, 4
        %v7900 = vadd.f32 %v7898, %v7899
        %v7901 = vrot.slane %v7900, 2
        %v7902 = vadd.f32 %v7900, %v7901
        %v7903 = vrot.slane %v7902, 1
        %v7904 = vadd.f32 %v7902, %v7903
        %v7905 = vadd.f32 %v7785, %v7801
        %v7906 = vadd.f32 %v7905, %v7817
        %v7907 = vadd.f32 %v7906, %v7833
        %v7908 = vrot.slane %v7907, 4
        %v7909 = vadd.f32 %v7907, %v7908
        %v7910 = vrot.slane %v7909, 2
        %v7911 = vadd.f32 %v7909, %v7910
        %v7912 = vrot.slane %v7911, 1
        %v7913 = vadd.f32 %v7911, %v7912
        %v7914 = vadd.f32 %v7786, %v7802
        %v7915 = vadd.f32 %v7914, %v7818
        %v7916 = vadd.f32 %v7915, %v7834
        %v7917 = vrot.slane %v7916, 4
        %v7918 = vadd.f32 %v7916, %v7917
        %v7919 = vrot.slane %v7918, 2
        %v7920 = vadd.f32 %v7918, %v7919
        %v7921 = vrot.slane %v7920, 1
        %v7922 = vadd.f32 %v7920, %v7921
        %v7923 = vadd.f32 %v7787, %v7803
        %v7924 = vadd.f32 %v7923, %v7819
        %v7925 = vadd.f32 %v7924, %v7835
        %v7926 = vrot.slane %v7925, 4
        %v7927 = vadd.f32 %v7925, %v7926
        %v7928 = vrot.slane %v7927, 2
        %v7929 = vadd.f32 %v7927, %v7928
        %v7930 = vrot.slane %v7929, 1
        %v7931 = vadd.f32 %v7929, %v7930
        %v7932 = vadd.f32 %v7788, %v7804
        %v7933 = vadd.f32 %v7932, %v7820
        %v7934 = vadd.f32 %v7933, %v7836
        %v7935 = vrot.slane %v7934, 4
        %v7936 = vadd.f32 %v7934, %v7935
        %v7937 = vrot.slane %v7936, 2
        %v7938 = vadd.f32 %v7936, %v7937
        %v7939 = vrot.slane %v7938, 1
        %v7940 = vadd.f32 %v7938, %v7939
        %v7941 = vadd.f32 %v7789, %v7805
        %v7942 = vadd.f32 %v7941, %v7821
        %v7943 = vadd.f32 %v7942, %v7837
        %v7944 = vrot.slane %v7943, 4
        %v7945 = vadd.f32 %v7943, %v7944
        %v7946 = vrot.slane %v7945, 2
        %v7947 = vadd.f32 %v7945, %v7946
        %v7948 = vrot.slane %v7947, 1
        %v7949 = vadd.f32 %v7947, %v7948
        %v7950 = vadd.f32 %v7790, %v7806
        %v7951 = vadd.f32 %v7950, %v7822
        %v7952 = vadd.f32 %v7951, %v7838
        %v7953 = vrot.slane %v7952, 4
        %v7954 = vadd.f32 %v7952, %v7953
        %v7955 = vrot.slane %v7954, 2
        %v7956 = vadd.f32 %v7954, %v7955
        %v7957 = vrot.slane %v7956, 1
        %v7958 = vadd.f32 %v7956, %v7957
        %v7959 = vadd.f32 %v7791, %v7807
        %v7960 = vadd.f32 %v7959, %v7823
        %v7961 = vadd.f32 %v7960, %v7839
        %v7962 = vrot.slane %v7961, 4
        %v7963 = vadd.f32 %v7961, %v7962
        %v7964 = vrot.slane %v7963, 2
        %v7965 = vadd.f32 %v7963, %v7964
        %v7966 = vrot.slane %v7965, 1
        %v7967 = vadd.f32 %v7965, %v7966
        %v7968 = vadd.f32 %v7792, %v7808
        %v7969 = vadd.f32 %v7968, %v7824
        %v7970 = vadd.f32 %v7969, %v7840
        %v7971 = vrot.slane %v7970, 4
        %v7972 = vadd.f32 %v7970, %v7971
        %v7973 = vrot.slane %v7972, 2
        %v7974 = vadd.f32 %v7972, %v7973
        %v7975 = vrot.slane %v7974, 1
        %v7976 = vadd.f32 %v7974, %v7975
        %v7977 = vadd.f32 %v7793, %v7809
        %v7978 = vadd.f32 %v7977, %v7825
        %v7979 = vadd.f32 %v7978, %v7841
        %v7980 = vrot.slane %v7979, 4
        %v7981 = vadd.f32 %v7979, %v7980
        %v7982 = vrot.slane %v7981, 2
        %v7983 = vadd.f32 %v7981, %v7982
        %v7984 = vrot.slane %v7983, 1
        %v7985 = vadd.f32 %v7983, %v7984
        %v7986 = vrcp.pop 32.0
        %v7987 = vmul.f32 %v7850, %v7986
        %v7988 = vmul.f32 %v7859, %v7986
        %v7989 = vmul.f32 %v7868, %v7986
        %v7990 = vmul.f32 %v7877, %v7986
        %v7991 = vmul.f32 %v7886, %v7986
        %v7992 = vmul.f32 %v7895, %v7986
        %v7993 = vmul.f32 %v7904, %v7986
        %v7994 = vmul.f32 %v7913, %v7986
        %v7995 = vmul.f32 %v7922, %v7986
        %v7996 = vmul.f32 %v7931, %v7986
        %v7997 = vmul.f32 %v7940, %v7986
        %v7998 = vmul.f32 %v7949, %v7986
        %v7999 = vmul.f32 %v7958, %v7986
        %v8000 = vmul.f32 %v7967, %v7986
        %v8001 = vmul.f32 %v7976, %v7986
        %v8002 = vmul.f32 %v7985, %v7986
        %v8003 = vmul.f32 %v7778, %v7778
        %v8004 = vmul.f32 %v7779, %v7779
        %v8005 = vmul.f32 %v7780, %v7780
        %v8006 = vmul.f32 %v7781, %v7781
        %v8007 = vmul.f32 %v7782, %v7782
        %v8008 = vmul.f32 %v7783, %v7783
        %v8009 = vmul.f32 %v7784, %v7784
        %v8010 = vmul.f32 %v7785, %v7785
        %v8011 = vmul.f32 %v7786, %v7786
        %v8012 = vmul.f32 %v7787, %v7787
        %v8013 = vmul.f32 %v7788, %v7788
        %v8014 = vmul.f32 %v7789, %v7789
        %v8015 = vmul.f32 %v7790, %v7790
        %v8016 = vmul.f32 %v7791, %v7791
        %v8017 = vmul.f32 %v7792, %v7792
        %v8018 = vmul.f32 %v7793, %v7793
        %v8019 = vmul.f32 %v7794, %v7794
        %v8020 = vmul.f32 %v7795, %v7795
        %v8021 = vmul.f32 %v7796, %v7796
        %v8022 = vmul.f32 %v7797, %v7797
        %v8023 = vmul.f32 %v7798, %v7798
        %v8024 = vmul.f32 %v7799, %v7799
        %v8025 = vmul.f32 %v7800, %v7800
        %v8026 = vmul.f32 %v7801, %v7801
        %v8027 = vmul.f32 %v7802, %v7802
        %v8028 = vmul.f32 %v7803, %v7803
        %v8029 = vmul.f32 %v7804, %v7804
        %v8030 = vmul.f32 %v7805, %v7805
        %v8031 = vmul.f32 %v7806, %v7806
        %v8032 = vmul.f32 %v7807, %v7807
        %v8033 = vmul.f32 %v7808, %v7808
        %v8034 = vmul.f32 %v7809, %v7809
        %v8035 = vmul.f32 %v7810, %v7810
        %v8036 = vmul.f32 %v7811, %v7811
        %v8037 = vmul.f32 %v7812, %v7812
        %v8038 = vmul.f32 %v7813, %v7813
        %v8039 = vmul.f32 %v7814, %v7814
        %v8040 = vmul.f32 %v7815, %v7815
        %v8041 = vmul.f32 %v7816, %v7816
        %v8042 = vmul.f32 %v7817, %v7817
        %v8043 = vmul.f32 %v7818, %v7818
        %v8044 = vmul.f32 %v7819, %v7819
        %v8045 = vmul.f32 %v7820, %v7820
        %v8046 = vmul.f32 %v7821, %v7821
        %v8047 = vmul.f32 %v7822, %v7822
        %v8048 = vmul.f32 %v7823, %v7823
        %v8049 = vmul.f32 %v7824, %v7824
        %v8050 = vmul.f32 %v7825, %v7825
        %v8051 = vmul.f32 %v7826, %v7826
        %v8052 = vmul.f32 %v7827, %v7827
        %v8053 = vmul.f32 %v7828, %v7828
        %v8054 = vmul.f32 %v7829, %v7829
        %v8055 = vmul.f32 %v7830, %v7830
        %v8056 = vmul.f32 %v7831, %v7831
        %v8057 = vmul.f32 %v7832, %v7832
        %v8058 = vmul.f32 %v7833, %v7833
        %v8059 = vmul.f32 %v7834, %v7834
        %v8060 = vmul.f32 %v7835, %v7835
        %v8061 = vmul.f32 %v7836, %v7836
        %v8062 = vmul.f32 %v7837, %v7837
        %v8063 = vmul.f32 %v7838, %v7838
        %v8064 = vmul.f32 %v7839, %v7839
        %v8065 = vmul.f32 %v7840, %v7840
        %v8066 = vmul.f32 %v7841, %v7841
        %v8067 = vadd.f32 %v8003, %v8019
        %v8068 = vadd.f32 %v8067, %v8035
        %v8069 = vadd.f32 %v8068, %v8051
        %v8070 = vrot.slane %v8069, 4
        %v8071 = vadd.f32 %v8069, %v8070
        %v8072 = vrot.slane %v8071, 2
        %v8073 = vadd.f32 %v8071, %v8072
        %v8074 = vrot.slane %v8073, 1
        %v8075 = vadd.f32 %v8073, %v8074
        %v8076 = vadd.f32 %v8004, %v8020
        %v8077 = vadd.f32 %v8076, %v8036
        %v8078 = vadd.f32 %v8077, %v8052
        %v8079 = vrot.slane %v8078, 4
        %v8080 = vadd.f32 %v8078, %v8079
        %v8081 = vrot.slane %v8080, 2
        %v8082 = vadd.f32 %v8080, %v8081
        %v8083 = vrot.slane %v8082, 1
        %v8084 = vadd.f32 %v8082, %v8083
        %v8085 = vadd.f32 %v8005, %v8021
        %v8086 = vadd.f32 %v8085, %v8037
        %v8087 = vadd.f32 %v8086, %v8053
        %v8088 = vrot.slane %v8087, 4
        %v8089 = vadd.f32 %v8087, %v8088
        %v8090 = vrot.slane %v8089, 2
        %v8091 = vadd.f32 %v8089, %v8090
        %v8092 = vrot.slane %v8091, 1
        %v8093 = vadd.f32 %v8091, %v8092
        %v8094 = vadd.f32 %v8006, %v8022
        %v8095 = vadd.f32 %v8094, %v8038
        %v8096 = vadd.f32 %v8095, %v8054
        %v8097 = vrot.slane %v8096, 4
        %v8098 = vadd.f32 %v8096, %v8097
        %v8099 = vrot.slane %v8098, 2
        %v8100 = vadd.f32 %v8098, %v8099
        %v8101 = vrot.slane %v8100, 1
        %v8102 = vadd.f32 %v8100, %v8101
        %v8103 = vadd.f32 %v8007, %v8023
        %v8104 = vadd.f32 %v8103, %v8039
        %v8105 = vadd.f32 %v8104, %v8055
        %v8106 = vrot.slane %v8105, 4
        %v8107 = vadd.f32 %v8105, %v8106
        %v8108 = vrot.slane %v8107, 2
        %v8109 = vadd.f32 %v8107, %v8108
        %v8110 = vrot.slane %v8109, 1
        %v8111 = vadd.f32 %v8109, %v8110
        %v8112 = vadd.f32 %v8008, %v8024
        %v8113 = vadd.f32 %v8112, %v8040
        %v8114 = vadd.f32 %v8113, %v8056
        %v8115 = vrot.slane %v8114, 4
        %v8116 = vadd.f32 %v8114, %v8115
        %v8117 = vrot.slane %v8116, 2
        %v8118 = vadd.f32 %v8116, %v8117
        %v8119 = vrot.slane %v8118, 1
        %v8120 = vadd.f32 %v8118, %v8119
        %v8121 = vadd.f32 %v8009, %v8025
        %v8122 = vadd.f32 %v8121, %v8041
        %v8123 = vadd.f32 %v8122, %v8057
        %v8124 = vrot.slane %v8123, 4
        %v8125 = vadd.f32 %v8123, %v8124
        %v8126 = vrot.slane %v8125, 2
        %v8127 = vadd.f32 %v8125, %v8126
        %v8128 = vrot.slane %v8127, 1
        %v8129 = vadd.f32 %v8127, %v8128
        %v8130 = vadd.f32 %v8010, %v8026
        %v8131 = vadd.f32 %v8130, %v8042
        %v8132 = vadd.f32 %v8131, %v8058
        %v8133 = vrot.slane %v8132, 4
        %v8134 = vadd.f32 %v8132, %v8133
        %v8135 = vrot.slane %v8134, 2
        %v8136 = vadd.f32 %v8134, %v8135
        %v8137 = vrot.slane %v8136, 1
        %v8138 = vadd.f32 %v8136, %v8137
        %v8139 = vadd.f32 %v8011, %v8027
        %v8140 = vadd.f32 %v8139, %v8043
        %v8141 = vadd.f32 %v8140, %v8059
        %v8142 = vrot.slane %v8141, 4
        %v8143 = vadd.f32 %v8141, %v8142
        %v8144 = vrot.slane %v8143, 2
        %v8145 = vadd.f32 %v8143, %v8144
        %v8146 = vrot.slane %v8145, 1
        %v8147 = vadd.f32 %v8145, %v8146
        %v8148 = vadd.f32 %v8012, %v8028
        %v8149 = vadd.f32 %v8148, %v8044
        %v8150 = vadd.f32 %v8149, %v8060
        %v8151 = vrot.slane %v8150, 4
        %v8152 = vadd.f32 %v8150, %v8151
        %v8153 = vrot.slane %v8152, 2
        %v8154 = vadd.f32 %v8152, %v8153
        %v8155 = vrot.slane %v8154, 1
        %v8156 = vadd.f32 %v8154, %v8155
        %v8157 = vadd.f32 %v8013, %v8029
        %v8158 = vadd.f32 %v8157, %v8045
        %v8159 = vadd.f32 %v8158, %v8061
        %v8160 = vrot.slane %v8159, 4
        %v8161 = vadd.f32 %v8159, %v8160
        %v8162 = vrot.slane %v8161, 2
        %v8163 = vadd.f32 %v8161, %v8162
        %v8164 = vrot.slane %v8163, 1
        %v8165 = vadd.f32 %v8163, %v8164
        %v8166 = vadd.f32 %v8014, %v8030
        %v8167 = vadd.f32 %v8166, %v8046
        %v8168 = vadd.f32 %v8167, %v8062
        %v8169 = vrot.slane %v8168, 4
        %v8170 = vadd.f32 %v8168, %v8169
        %v8171 = vrot.slane %v8170, 2
        %v8172 = vadd.f32 %v8170, %v8171
        %v8173 = vrot.slane %v8172, 1
        %v8174 = vadd.f32 %v8172, %v8173
        %v8175 = vadd.f32 %v8015, %v8031
        %v8176 = vadd.f32 %v8175, %v8047
        %v8177 = vadd.f32 %v8176, %v8063
        %v8178 = vrot.slane %v8177, 4
        %v8179 = vadd.f32 %v8177, %v8178
        %v8180 = vrot.slane %v8179, 2
        %v8181 = vadd.f32 %v8179, %v8180
        %v8182 = vrot.slane %v8181, 1
        %v8183 = vadd.f32 %v8181, %v8182
        %v8184 = vadd.f32 %v8016, %v8032
        %v8185 = vadd.f32 %v8184, %v8048
        %v8186 = vadd.f32 %v8185, %v8064
        %v8187 = vrot.slane %v8186, 4
        %v8188 = vadd.f32 %v8186, %v8187
        %v8189 = vrot.slane %v8188, 2
        %v8190 = vadd.f32 %v8188, %v8189
        %v8191 = vrot.slane %v8190, 1
        %v8192 = vadd.f32 %v8190, %v8191
        %v8193 = vadd.f32 %v8017, %v8033
        %v8194 = vadd.f32 %v8193, %v8049
        %v8195 = vadd.f32 %v8194, %v8065
        %v8196 = vrot.slane %v8195, 4
        %v8197 = vadd.f32 %v8195, %v8196
        %v8198 = vrot.slane %v8197, 2
        %v8199 = vadd.f32 %v8197, %v8198
        %v8200 = vrot.slane %v8199, 1
        %v8201 = vadd.f32 %v8199, %v8200
        %v8202 = vadd.f32 %v8018, %v8034
        %v8203 = vadd.f32 %v8202, %v8050
        %v8204 = vadd.f32 %v8203, %v8066
        %v8205 = vrot.slane %v8204, 4
        %v8206 = vadd.f32 %v8204, %v8205
        %v8207 = vrot.slane %v8206, 2
        %v8208 = vadd.f32 %v8206, %v8207
        %v8209 = vrot.slane %v8208, 1
        %v8210 = vadd.f32 %v8208, %v8209
        %v8211 = vmul.f32 %v8075, %v7986
        %v8212 = vmul.f32 %v8084, %v7986
        %v8213 = vmul.f32 %v8093, %v7986
        %v8214 = vmul.f32 %v8102, %v7986
        %v8215 = vmul.f32 %v8111, %v7986
        %v8216 = vmul.f32 %v8120, %v7986
        %v8217 = vmul.f32 %v8129, %v7986
        %v8218 = vmul.f32 %v8138, %v7986
        %v8219 = vmul.f32 %v8147, %v7986
        %v8220 = vmul.f32 %v8156, %v7986
        %v8221 = vmul.f32 %v8165, %v7986
        %v8222 = vmul.f32 %v8174, %v7986
        %v8223 = vmul.f32 %v8183, %v7986
        %v8224 = vmul.f32 %v8192, %v7986
        %v8225 = vmul.f32 %v8201, %v7986
        %v8226 = vmul.f32 %v8210, %v7986
        %v8227 = vmul.f32 %v7987, %v7987
        %v8228 = vmul.f32 %v7988, %v7988
        %v8229 = vmul.f32 %v7989, %v7989
        %v8230 = vmul.f32 %v7990, %v7990
        %v8231 = vmul.f32 %v7991, %v7991
        %v8232 = vmul.f32 %v7992, %v7992
        %v8233 = vmul.f32 %v7993, %v7993
        %v8234 = vmul.f32 %v7994, %v7994
        %v8235 = vmul.f32 %v7995, %v7995
        %v8236 = vmul.f32 %v7996, %v7996
        %v8237 = vmul.f32 %v7997, %v7997
        %v8238 = vmul.f32 %v7998, %v7998
        %v8239 = vmul.f32 %v7999, %v7999
        %v8240 = vmul.f32 %v8000, %v8000
        %v8241 = vmul.f32 %v8001, %v8001
        %v8242 = vmul.f32 %v8002, %v8002
        %v8243 = vsub.f32 %v8211, %v8227
        %v8244 = vsub.f32 %v8212, %v8228
        %v8245 = vsub.f32 %v8213, %v8229
        %v8246 = vsub.f32 %v8214, %v8230
        %v8247 = vsub.f32 %v8215, %v8231
        %v8248 = vsub.f32 %v8216, %v8232
        %v8249 = vsub.f32 %v8217, %v8233
        %v8250 = vsub.f32 %v8218, %v8234
        %v8251 = vsub.f32 %v8219, %v8235
        %v8252 = vsub.f32 %v8220, %v8236
        %v8253 = vsub.f32 %v8221, %v8237
        %v8254 = vsub.f32 %v8222, %v8238
        %v8255 = vsub.f32 %v8223, %v8239
        %v8256 = vsub.f32 %v8224, %v8240
        %v8257 = vsub.f32 %v8225, %v8241
        %v8258 = vsub.f32 %v8226, %v8242
        %v8259 = vsub.f32 %v7778, %v7987
        %v8260 = vsub.f32 %v7779, %v7988
        %v8261 = vsub.f32 %v7780, %v7989
        %v8262 = vsub.f32 %v7781, %v7990
        %v8263 = vsub.f32 %v7782, %v7991
        %v8264 = vsub.f32 %v7783, %v7992
        %v8265 = vsub.f32 %v7784, %v7993
        %v8266 = vsub.f32 %v7785, %v7994
        %v8267 = vsub.f32 %v7786, %v7995
        %v8268 = vsub.f32 %v7787, %v7996
        %v8269 = vsub.f32 %v7788, %v7997
        %v8270 = vsub.f32 %v7789, %v7998
        %v8271 = vsub.f32 %v7790, %v7999
        %v8272 = vsub.f32 %v7791, %v8000
        %v8273 = vsub.f32 %v7792, %v8001
        %v8274 = vsub.f32 %v7793, %v8002
        %v8275 = vsub.f32 %v7794, %v7987
        %v8276 = vsub.f32 %v7795, %v7988
        %v8277 = vsub.f32 %v7796, %v7989
        %v8278 = vsub.f32 %v7797, %v7990
        %v8279 = vsub.f32 %v7798, %v7991
        %v8280 = vsub.f32 %v7799, %v7992
        %v8281 = vsub.f32 %v7800, %v7993
        %v8282 = vsub.f32 %v7801, %v7994
        %v8283 = vsub.f32 %v7802, %v7995
        %v8284 = vsub.f32 %v7803, %v7996
        %v8285 = vsub.f32 %v7804, %v7997
        %v8286 = vsub.f32 %v7805, %v7998
        %v8287 = vsub.f32 %v7806, %v7999
        %v8288 = vsub.f32 %v7807, %v8000
        %v8289 = vsub.f32 %v7808, %v8001
        %v8290 = vsub.f32 %v7809, %v8002
        %v8291 = vsub.f32 %v7810, %v7987
        %v8292 = vsub.f32 %v7811, %v7988
        %v8293 = vsub.f32 %v7812, %v7989
        %v8294 = vsub.f32 %v7813, %v7990
        %v8295 = vsub.f32 %v7814, %v7991
        %v8296 = vsub.f32 %v7815, %v7992
        %v8297 = vsub.f32 %v7816, %v7993
        %v8298 = vsub.f32 %v7817, %v7994
        %v8299 = vsub.f32 %v7818, %v7995
        %v8300 = vsub.f32 %v7819, %v7996
        %v8301 = vsub.f32 %v7820, %v7997
        %v8302 = vsub.f32 %v7821, %v7998
        %v8303 = vsub.f32 %v7822, %v7999
        %v8304 = vsub.f32 %v7823, %v8000
        %v8305 = vsub.f32 %v7824, %v8001
        %v8306 = vsub.f32 %v7825, %v8002
        %v8307 = vsub.f32 %v7826, %v7987
        %v8308 = vsub.f32 %v7827, %v7988
        %v8309 = vsub.f32 %v7828, %v7989
        %v8310 = vsub.f32 %v7829, %v7990
        %v8311 = vsub.f32 %v7830, %v7991
        %v8312 = vsub.f32 %v7831, %v7992
        %v8313 = vsub.f32 %v7832, %v7993
        %v8314 = vsub.f32 %v7833, %v7994
        %v8315 = vsub.f32 %v7834, %v7995
        %v8316 = vsub.f32 %v7835, %v7996
        %v8317 = vsub.f32 %v7836, %v7997
        %v8318 = vsub.f32 %v7837, %v7998
        %v8319 = vsub.f32 %v7838, %v7999
        %v8320 = vsub.f32 %v7839, %v8000
        %v8321 = vsub.f32 %v7840, %v8001
        %v8322 = vsub.f32 %v7841, %v8002
        %v8323 = vadd.f32 %v8243, 1e-05
        %v8324 = vadd.f32 %v8244, 1e-05
        %v8325 = vadd.f32 %v8245, 1e-05
        %v8326 = vadd.f32 %v8246, 1e-05
        %v8327 = vadd.f32 %v8247, 1e-05
        %v8328 = vadd.f32 %v8248, 1e-05
        %v8329 = vadd.f32 %v8249, 1e-05
        %v8330 = vadd.f32 %v8250, 1e-05
        %v8331 = vadd.f32 %v8251, 1e-05
        %v8332 = vadd.f32 %v8252, 1e-05
        %v8333 = vadd.f32 %v8253, 1e-05
        %v8334 = vadd.f32 %v8254, 1e-05
        %v8335 = vadd.f32 %v8255, 1e-05
        %v8336 = vadd.f32 %v8256, 1e-05
        %v8337 = vadd.f32 %v8257, 1e-05
        %v8338 = vadd.f32 %v8258, 1e-05
        %v8339 = vrsqrt.pop %v8323
        %v8340 = vrsqrt.pop %v8324
        %v8341 = vrsqrt.pop %v8325
        %v8342 = vrsqrt.pop %v8326
        %v8343 = vrsqrt.pop %v8327
        %v8344 = vrsqrt.pop %v8328
        %v8345 = vrsqrt.pop %v8329
        %v8346 = vrsqrt.pop %v8330
        %v8347 = vrsqrt.pop %v8331
        %v8348 = vrsqrt.pop %v8332
        %v8349 = vrsqrt.pop %v8333
        %v8350 = vrsqrt.pop %v8334
        %v8351 = vrsqrt.pop %v8335
        %v8352 = vrsqrt.pop %v8336
        %v8353 = vrsqrt.pop %v8337
        %v8354 = vrsqrt.pop %v8338
        %v8355 = vmul.f32 %v8259, %v8339
        %v8356 = vmul.f32 %v8260, %v8340
        %v8357 = vmul.f32 %v8261, %v8341
        %v8358 = vmul.f32 %v8262, %v8342
        %v8359 = vmul.f32 %v8263, %v8343
        %v8360 = vmul.f32 %v8264, %v8344
        %v8361 = vmul.f32 %v8265, %v8345
        %v8362 = vmul.f32 %v8266, %v8346
        %v8363 = vmul.f32 %v8267, %v8347
        %v8364 = vmul.f32 %v8268, %v8348
        %v8365 = vmul.f32 %v8269, %v8349
        %v8366 = vmul.f32 %v8270, %v8350
        %v8367 = vmul.f32 %v8271, %v8351
        %v8368 = vmul.f32 %v8272, %v8352
        %v8369 = vmul.f32 %v8273, %v8353
        %v8370 = vmul.f32 %v8274, %v8354
        %v8371 = vmul.f32 %v8275, %v8339
        %v8372 = vmul.f32 %v8276, %v8340
        %v8373 = vmul.f32 %v8277, %v8341
        %v8374 = vmul.f32 %v8278, %v8342
        %v8375 = vmul.f32 %v8279, %v8343
        %v8376 = vmul.f32 %v8280, %v8344
        %v8377 = vmul.f32 %v8281, %v8345
        %v8378 = vmul.f32 %v8282, %v8346
        %v8379 = vmul.f32 %v8283, %v8347
        %v8380 = vmul.f32 %v8284, %v8348
        %v8381 = vmul.f32 %v8285, %v8349
        %v8382 = vmul.f32 %v8286, %v8350
        %v8383 = vmul.f32 %v8287, %v8351
        %v8384 = vmul.f32 %v8288, %v8352
        %v8385 = vmul.f32 %v8289, %v8353
        %v8386 = vmul.f32 %v8290, %v8354
        %v8387 = vmul.f32 %v8291, %v8339
        %v8388 = vmul.f32 %v8292, %v8340
        %v8389 = vmul.f32 %v8293, %v8341
        %v8390 = vmul.f32 %v8294, %v8342
        %v8391 = vmul.f32 %v8295, %v8343
        %v8392 = vmul.f32 %v8296, %v8344
        %v8393 = vmul.f32 %v8297, %v8345
        %v8394 = vmul.f32 %v8298, %v8346
        %v8395 = vmul.f32 %v8299, %v8347
        %v8396 = vmul.f32 %v8300, %v8348
        %v8397 = vmul.f32 %v8301, %v8349
        %v8398 = vmul.f32 %v8302, %v8350
        %v8399 = vmul.f32 %v8303, %v8351
        %v8400 = vmul.f32 %v8304, %v8352
        %v8401 = vmul.f32 %v8305, %v8353
        %v8402 = vmul.f32 %v8306, %v8354
        %v8403 = vmul.f32 %v8307, %v8339
        %v8404 = vmul.f32 %v8308, %v8340
        %v8405 = vmul.f32 %v8309, %v8341
        %v8406 = vmul.f32 %v8310, %v8342
        %v8407 = vmul.f32 %v8311, %v8343
        %v8408 = vmul.f32 %v8312, %v8344
        %v8409 = vmul.f32 %v8313, %v8345
        %v8410 = vmul.f32 %v8314, %v8346
        %v8411 = vmul.f32 %v8315, %v8347
        %v8412 = vmul.f32 %v8316, %v8348
        %v8413 = vmul.f32 %v8317, %v8349
        %v8414 = vmul.f32 %v8318, %v8350
        %v8415 = vmul.f32 %v8319, %v8351
        %v8416 = vmul.f32 %v8320, %v8352
        %v8417 = vmul.f32 %v8321, %v8353
        %v8418 = vmul.f32 %v8322, %v8354
        %8419 = vset.pattern.permute.xlu0 3
        %8420 = vperm.xlu0 %8419, %v284
        %v8421 = vpop.permute.xlu0 %8420
        %8423 = vset.pattern.permute.xlu0 3
        %8424 = vperm.xlu0 %8423, %v285
        %v8425 = vpop.permute.xlu0 %8424
        %8427 = vset.pattern.permute.xlu0 3
        %8428 = vperm.xlu0 %8427, %v286
        %v8429 = vpop.permute.xlu0 %8428
        %8431 = vset.pattern.permute.xlu0 3
        %8432 = vperm.xlu0 %8431, %v287
        %v8433 = vpop.permute.xlu0 %8432
        %v8435 = vmul.f32 %v8355, %v8421
        %v8436 = vmul.f32 %v8356, %v8421
        %v8437 = vmul.f32 %v8357, %v8421
        %v8438 = vmul.f32 %v8358, %v8421
        %v8439 = vmul.f32 %v8359, %v8421
        %v8440 = vmul.f32 %v8360, %v8421
        %v8441 = vmul.f32 %v8361, %v8421
        %v8442 = vmul.f32 %v8362, %v8421
        %v8443 = vmul.f32 %v8363, %v8421
        %v8444 = vmul.f32 %v8364, %v8421
        %v8445 = vmul.f32 %v8365, %v8421
        %v8446 = vmul.f32 %v8366, %v8421
        %v8447 = vmul.f32 %v8367, %v8421
        %v8448 = vmul.f32 %v8368, %v8421
        %v8449 = vmul.f32 %v8369, %v8421
        %v8450 = vmul.f32 %v8370, %v8421
        %v8451 = vmul.f32 %v8371, %v8425
        %v8452 = vmul.f32 %v8372, %v8425
        %v8453 = vmul.f32 %v8373, %v8425
        %v8454 = vmul.f32 %v8374, %v8425
        %v8455 = vmul.f32 %v8375, %v8425
        %v8456 = vmul.f32 %v8376, %v8425
        %v8457 = vmul.f32 %v8377, %v8425
        %v8458 = vmul.f32 %v8378, %v8425
        %v8459 = vmul.f32 %v8379, %v8425
        %v8460 = vmul.f32 %v8380, %v8425
        %v8461 = vmul.f32 %v8381, %v8425
        %v8462 = vmul.f32 %v8382, %v8425
        %v8463 = vmul.f32 %v8383, %v8425
        %v8464 = vmul.f32 %v8384, %v8425
        %v8465 = vmul.f32 %v8385, %v8425
        %v8466 = vmul.f32 %v8386, %v8425
        %v8467 = vmul.f32 %v8387, %v8429
        %v8468 = vmul.f32 %v8388, %v8429
        %v8469 = vmul.f32 %v8389, %v8429
        %v8470 = vmul.f32 %v8390, %v8429
        %v8471 = vmul.f32 %v8391, %v8429
        %v8472 = vmul.f32 %v8392, %v8429
        %v8473 = vmul.f32 %v8393, %v8429
        %v8474 = vmul.f32 %v8394, %v8429
        %v8475 = vmul.f32 %v8395, %v8429
        %v8476 = vmul.f32 %v8396, %v8429
        %v8477 = vmul.f32 %v8397, %v8429
        %v8478 = vmul.f32 %v8398, %v8429
        %v8479 = vmul.f32 %v8399, %v8429
        %v8480 = vmul.f32 %v8400, %v8429
        %v8481 = vmul.f32 %v8401, %v8429
        %v8482 = vmul.f32 %v8402, %v8429
        %v8483 = vmul.f32 %v8403, %v8433
        %v8484 = vmul.f32 %v8404, %v8433
        %v8485 = vmul.f32 %v8405, %v8433
        %v8486 = vmul.f32 %v8406, %v8433
        %v8487 = vmul.f32 %v8407, %v8433
        %v8488 = vmul.f32 %v8408, %v8433
        %v8489 = vmul.f32 %v8409, %v8433
        %v8490 = vmul.f32 %v8410, %v8433
        %v8491 = vmul.f32 %v8411, %v8433
        %v8492 = vmul.f32 %v8412, %v8433
        %v8493 = vmul.f32 %v8413, %v8433
        %v8494 = vmul.f32 %v8414, %v8433
        %v8495 = vmul.f32 %v8415, %v8433
        %v8496 = vmul.f32 %v8416, %v8433
        %v8497 = vmul.f32 %v8417, %v8433
        %v8498 = vmul.f32 %v8418, %v8433
        %8499 = vset.pattern.permute.xlu0 5
        %8500 = vperm.xlu0 %8499, %v284
        %v8501 = vpop.permute.xlu0 %8500
        %8503 = vset.pattern.permute.xlu0 5
        %8504 = vperm.xlu0 %8503, %v285
        %v8505 = vpop.permute.xlu0 %8504
        %8507 = vset.pattern.permute.xlu0 5
        %8508 = vperm.xlu0 %8507, %v286
        %v8509 = vpop.permute.xlu0 %8508
        %8511 = vset.pattern.permute.xlu0 5
        %8512 = vperm.xlu0 %8511, %v287
        %v8513 = vpop.permute.xlu0 %8512
        %v8515 = vadd.f32 %v8435, %v8501
        %v8516 = vadd.f32 %v8436, %v8501
        %v8517 = vadd.f32 %v8437, %v8501
        %v8518 = vadd.f32 %v8438, %v8501
        %v8519 = vadd.f32 %v8439, %v8501
        %v8520 = vadd.f32 %v8440, %v8501
        %v8521 = vadd.f32 %v8441, %v8501
        %v8522 = vadd.f32 %v8442, %v8501
        %v8523 = vadd.f32 %v8443, %v8501
        %v8524 = vadd.f32 %v8444, %v8501
        %v8525 = vadd.f32 %v8445, %v8501
        %v8526 = vadd.f32 %v8446, %v8501
        %v8527 = vadd.f32 %v8447, %v8501
        %v8528 = vadd.f32 %v8448, %v8501
        %v8529 = vadd.f32 %v8449, %v8501
        %v8530 = vadd.f32 %v8450, %v8501
        %v8531 = vadd.f32 %v8451, %v8505
        %v8532 = vadd.f32 %v8452, %v8505
        %v8533 = vadd.f32 %v8453, %v8505
        %v8534 = vadd.f32 %v8454, %v8505
        %v8535 = vadd.f32 %v8455, %v8505
        %v8536 = vadd.f32 %v8456, %v8505
        %v8537 = vadd.f32 %v8457, %v8505
        %v8538 = vadd.f32 %v8458, %v8505
        %v8539 = vadd.f32 %v8459, %v8505
        %v8540 = vadd.f32 %v8460, %v8505
        %v8541 = vadd.f32 %v8461, %v8505
        %v8542 = vadd.f32 %v8462, %v8505
        %v8543 = vadd.f32 %v8463, %v8505
        %v8544 = vadd.f32 %v8464, %v8505
        %v8545 = vadd.f32 %v8465, %v8505
        %v8546 = vadd.f32 %v8466, %v8505
        %v8547 = vadd.f32 %v8467, %v8509
        %v8548 = vadd.f32 %v8468, %v8509
        %v8549 = vadd.f32 %v8469, %v8509
        %v8550 = vadd.f32 %v8470, %v8509
        %v8551 = vadd.f32 %v8471, %v8509
        %v8552 = vadd.f32 %v8472, %v8509
        %v8553 = vadd.f32 %v8473, %v8509
        %v8554 = vadd.f32 %v8474, %v8509
        %v8555 = vadd.f32 %v8475, %v8509
        %v8556 = vadd.f32 %v8476, %v8509
        %v8557 = vadd.f32 %v8477, %v8509
        %v8558 = vadd.f32 %v8478, %v8509
        %v8559 = vadd.f32 %v8479, %v8509
        %v8560 = vadd.f32 %v8480, %v8509
        %v8561 = vadd.f32 %v8481, %v8509
        %v8562 = vadd.f32 %v8482, %v8509
        %v8563 = vadd.f32 %v8483, %v8513
        %v8564 = vadd.f32 %v8484, %v8513
        %v8565 = vadd.f32 %v8485, %v8513
        %v8566 = vadd.f32 %v8486, %v8513
        %v8567 = vadd.f32 %v8487, %v8513
        %v8568 = vadd.f32 %v8488, %v8513
        %v8569 = vadd.f32 %v8489, %v8513
        %v8570 = vadd.f32 %v8490, %v8513
        %v8571 = vadd.f32 %v8491, %v8513
        %v8572 = vadd.f32 %v8492, %v8513
        %v8573 = vadd.f32 %v8493, %v8513
        %v8574 = vadd.f32 %v8494, %v8513
        %v8575 = vadd.f32 %v8495, %v8513
        %v8576 = vadd.f32 %v8496, %v8513
        %v8577 = vadd.f32 %v8497, %v8513
        %v8578 = vadd.f32 %v8498, %v8513
        %s8579 = scalar_lea.vmem %s4, 32
        %v8580 = vld [vmem:[%s8579] sm:$0xff]
        %v8581 = vld [vmem:[%s8579 + $0x8] sm:$0xff]
        %v8582 = vld [vmem:[%s8579 + $0x10] sm:$0xff]
        %v8583 = vld [vmem:[%s8579 + $0x18] sm:$0xff]
        %8584 = vset.pattern.permute.xlu0 2
        %8585 = vperm.xlu0 %8584, %v284
        %v8586 = vpop.permute.xlu0 %8585
        %8588 = vset.pattern.permute.xlu0 2
        %8589 = vperm.xlu0 %8588, %v285
        %v8590 = vpop.permute.xlu0 %8589
        %8592 = vset.pattern.permute.xlu0 2
        %8593 = vperm.xlu0 %8592, %v286
        %v8594 = vpop.permute.xlu0 %8593
        %8596 = vset.pattern.permute.xlu0 2
        %8597 = vperm.xlu0 %8596, %v287
        %v8598 = vpop.permute.xlu0 %8597
        %v8601 = vsel %vm7053, %v8580, 0
        %v8604 = vsel %vm7053, %v8581, 0
        %v8607 = vsel %vm7053, %v8582, 0
        %v8610 = vsel %vm7053, %v8583, 0
        %8612 = vmatprep.subr.mxu0 %v8516
        %8613 = vmatpush1.msra.mxu0 %v8515
        %8614 = vmatprep.subr.mxu0 %v8532
        %8615 = vmatpush1.msra.mxu0 %v8531
        %8616 = vmatprep.subr.mxu0 %v8548
        %8617 = vmatpush1.msra.mxu0 %v8547
        %8618 = vmatprep.subr.mxu0 %v8564
        %8619 = vmatpush1.msra.mxu0 %v8563
        %8620 = vmatprep.subr.mxu0 0.0
        %8621 = vmatpush1.msra.mxu0 0.0
        %8622 = vmatprep.subr.mxu0 0.0
        %8623 = vmatpush1.msra.mxu0 0.0
        %8624 = vmatprep.subr.mxu0 0.0
        %8625 = vmatpush1.msra.mxu0 0.0
        %8626 = vmatprep.subr.mxu0 0.0
        %8627 = vmatpush1.msra.mxu0 0.0
        %8628 = vmatprep.subr.mxu0 0.0
        %8629 = vmatpush1.msra.mxu0 0.0
        %8630 = vmatprep.subr.mxu0 0.0
        %8631 = vmatpush1.msra.mxu0 0.0
        %8632 = vmatprep.subr.mxu0 0.0
        %8633 = vmatpush1.msra.mxu0 0.0
        %8634 = vmatprep.subr.mxu0 0.0
        %8635 = vmatpush1.msra.mxu0 0.0
        %8636 = vmatprep.subr.mxu0 0.0
        %8637 = vmatpush1.msra.mxu0 0.0
        %8638 = vmatprep.subr.mxu0 0.0
        %8639 = vmatpush1.msra.mxu0 0.0
        %8640 = vmatprep.subr.mxu0 0.0
        %8641 = vmatpush1.msra.mxu0 0.0
        %8642 = vmatprep.subr.mxu0 0.0
        %8643 = vmatpush1.msra.mxu0 0.0
        %8644 = vmatprep.subr.mxu0 0.0
        %8645 = vmatpush1.msra.mxu0 0.0
        %8646 = vmatprep.subr.mxu0 0.0
        %8647 = vmatpush1.msra.mxu0 0.0
        %8648 = vmatprep.subr.mxu0 0.0
        %8649 = vmatpush1.msra.mxu0 0.0
        %8650 = vmatprep.subr.mxu0 0.0
        %8651 = vmatpush1.msra.mxu0 0.0
        %8652 = vmatprep.subr.mxu0 0.0
        %8653 = vmatpush1.msra.mxu0 0.0
        %8654 = vmatprep.subr.mxu0 0.0
        %8655 = vmatpush1.msra.mxu0 0.0
        %8656 = vmatprep.subr.mxu0 0.0
        %8657 = vmatpush1.msra.mxu0 0.0
        %8658 = vmatprep.subr.mxu0 0.0
        %8659 = vmatpush1.msra.mxu0 0.0
        %8660 = vmatprep.subr.mxu0 0.0
        %8661 = vmatpush1.msra.mxu0 0.0
        %8662 = vmatprep.subr.mxu0 0.0
        %8663 = vmatpush1.msra.mxu0 0.0
        %8664 = vmatprep.subr.mxu0 0.0
        %8665 = vmatpush1.msra.mxu0 0.0
        %8666 = vmatprep.subr.mxu0 0.0
        %8667 = vmatpush1.msra.mxu0 0.0
        %8668 = vmatprep.subr.mxu0 0.0
        %8669 = vmatpush1.msra.mxu0 0.0
        %8670 = vmatprep.subr.mxu0 0.0
        %8671 = vmatpush1.msra.mxu0 0.0
        %8672 = vmatprep.subr.mxu0 0.0
        %8673 = vmatpush1.msra.mxu0 0.0
        %8674 = vmatprep.subr.mxu0 0.0
        %8675 = vmatpush1.msra.mxu0 0.0
        %8676 = vmatprep.mubr.f32.mxu0 0.0
        %8677 = vmatmul.mubr.f32.gmra.mrb[0].mxu0 %v8601
        %v8678 = vpop.f32.mrb[0].mxu0
        %v8679 = vadd.f32 %v8586, %v8678
        %v8680 = vpop.f32.mrb[0].mxu0
        %v8681 = vadd.f32 %v8586, %v8680
        %8682 = vmatprep.mubr.f32.mxu0 0.0
        %8683 = vmatmul.mubr.f32.gmra.mrb[0].mxu0 %v8604
        %v8684 = vpop.f32.mrb[0].mxu0
        %v8685 = vadd.f32 %v8590, %v8684
        %v8686 = vpop.f32.mrb[0].mxu0
        %v8687 = vadd.f32 %v8590, %v8686
        %8688 = vmatprep.mubr.f32.mxu0 0.0
        %8689 = vmatmul.mubr.f32.gmra.mrb[0].mxu0 %v8607
        %v8690 = vpop.f32.mrb[0].mxu0
        %v8691 = vadd.f32 %v8594, %v8690
        %v8692 = vpop.f32.mrb[0].mxu0
        %v8693 = vadd.f32 %v8594, %v8692
        %8694 = vmatprep.mubr.f32.mxu0 0.0
        %8695 = vmatmul.mubr.f32.gmra.mrb[0].mxu0 %v8610
        %v8696 = vpop.f32.mrb[0].mxu0
        %v8697 = vadd.f32 %v8598, %v8696
        %v8698 = vpop.f32.mrb[0].mxu0
        %v8699 = vadd.f32 %v8598, %v8698
        %8700 = vdwg.mxu0
        %8701 = vmatprep.subr.mxu0 %v8518
        %8702 = vmatpush1.msra.mxu0 %v8517
        %8703 = vmatprep.subr.mxu0 %v8534
        %8704 = vmatpush1.msra.mxu0 %v8533
        %8705 = vmatprep.subr.mxu0 %v8550
        %8706 = vmatpush1.msra.mxu0 %v8549
        %8707 = vmatprep.subr.mxu0 %v8566
        %8708 = vmatpush1.msra.mxu0 %v8565
        %8709 = vmatprep.subr.mxu0 0.0
        %8710 = vmatpush1.msra.mxu0 0.0
        %8711 = vmatprep.subr.mxu0 0.0
        %8712 = vmatpush1.msra.mxu0 0.0
        %8713 = vmatprep.subr.mxu0 0.0
        %8714 = vmatpush1.msra.mxu0 0.0
        %8715 = vmatprep.subr.mxu0 0.0
        %8716 = vmatpush1.msra.mxu0 0.0
        %8717 = vmatprep.subr.mxu0 0.0
        %8718 = vmatpush1.msra.mxu0 0.0
        %8719 = vmatprep.subr.mxu0 0.0
        %8720 = vmatpush1.msra.mxu0 0.0
        %8721 = vmatprep.subr.mxu0 0.0
        %8722 = vmatpush1.msra.mxu0 0.0
        %8723 = vmatprep.subr.mxu0 0.0
        %8724 = vmatpush1.msra.mxu0 0.0
        %8725 = vmatprep.subr.mxu0 0.0
        %8726 = vmatpush1.msra.mxu0 0.0
        %8727 = vmatprep.subr.mxu0 0.0
        %8728 = vmatpush1.msra.mxu0 0.0
        %8729 = vmatprep.subr.mxu0 0.0
        %8730 = vmatpush1.msra.mxu0 0.0
        %8731 = vmatprep.subr.mxu0 0.0
        %8732 = vmatpush1.msra.mxu0 0.0
        %8733 = vmatprep.subr.mxu0 0.0
        %8734 = vmatpush1.msra.mxu0 0.0
        %8735 = vmatprep.subr.mxu0 0.0
        %8736 = vmatpush1.msra.mxu0 0.0
        %8737 = vmatprep.subr.mxu0 0.0
        %8738 = vmatpush1.msra.mxu0 0.0
        %8739 = vmatprep.subr.mxu0 0.0
        %8740 = vmatpush1.msra.mxu0 0.0
        %8741 = vmatprep.subr.mxu0 0.0
        %8742 = vmatpush1.msra.mxu0 0.0
        %8743 = vmatprep.subr.mxu0 0.0
        %8744 = vmatpush1.msra.mxu0 0.0
        %8745 = vmatprep.subr.mxu0 0.0
        %8746 = vmatpush1.msra.mxu0 0.0
        %8747 = vmatprep.subr.mxu0 0.0
        %8748 = vmatpush1.msra.mxu0 0.0
        %8749 = vmatprep.subr.mxu0 0.0
        %8750 = vmatpush1.msra.mxu0 0.0
        %8751 = vmatprep.subr.mxu0 0.0
        %8752 = vmatpush1.msra.mxu0 0.0
        %8753 = vmatprep.subr.mxu0 0.0
        %8754 = vmatpush1.msra.mxu0 0.0
        %8755 = vmatprep.subr.mxu0 0.0
        %8756 = vmatpush1.msra.mxu0 0.0
        %8757 = vmatprep.subr.mxu0 0.0
        %8758 = vmatpush1.msra.mxu0 0.0
        %8759 = vmatprep.subr.mxu0 0.0
        %8760 = vmatpush1.msra.mxu0 0.0
        %8761 = vmatprep.subr.mxu0 0.0
        %8762 = vmatpush1.msra.mxu0 0.0
        %8763 = vmatprep.subr.mxu0 0.0
        %8764 = vmatpush1.msra.mxu0 0.0
        %8765 = vmatprep.mubr.f32.mxu0 0.0
        %8766 = vmatmul.mubr.f32.gmra.mrb[0].mxu0 %v8601
        %v8767 = vpop.f32.mrb[0].mxu0
        %v8768 = vadd.f32 %v8586, %v8767
        %v8769 = vpop.f32.mrb[0].mxu0
        %v8770 = vadd.f32 %v8586, %v8769
        %8771 = vmatprep.mubr.f32.mxu0 0.0
        %8772 = vmatmul.mubr.f32.gmra.mrb[0].mxu0 %v8604
        %v8773 = vpop.f32.mrb[0].mxu0
        %v8774 = vadd.f32 %v8590, %v8773
        %v8775 = vpop.f32.mrb[0].mxu0
        %v8776 = vadd.f32 %v8590, %v8775
        %8777 = vmatprep.mubr.f32.mxu0 0.0
        %8778 = vmatmul.mubr.f32.gmra.mrb[0].mxu0 %v8607
        %v8779 = vpop.f32.mrb[0].mxu0
        %v8780 = vadd.f32 %v8594, %v8779
        %v8781 = vpop.f32.mrb[0].mxu0
        %v8782 = vadd.f32 %v8594, %v8781
        %8783 = vmatprep.mubr.f32.mxu0 0.0
        %8784 = vmatmul.mubr.f32.gmra.mrb[0].mxu0 %v8610
        %v8785 = vpop.f32.mrb[0].mxu0
        %v8786 = vadd.f32 %v8598, %v8785
        %v8787 = vpop.f32.mrb[0].mxu0
        %v8788 = vadd.f32 %v8598, %v8787
        %8789 = vdwg.mxu0
        %8790 = vmatprep.subr.mxu0 %v8520
        %8791 = vmatpush1.msra.mxu0 %v8519
        %8792 = vmatprep.subr.mxu0 %v8536
        %8793 = vmatpush1.msra.mxu0 %v8535
        %8794 = vmatprep.subr.mxu0 %v8552
        %8795 = vmatpush1.msra.mxu0 %v8551
        %8796 = vmatprep.subr.mxu0 %v8568
        %8797 = vmatpush1.msra.mxu0 %v8567
        %8798 = vmatprep.subr.mxu0 0.0
        %8799 = vmatpush1.msra.mxu0 0.0
        %8800 = vmatprep.subr.mxu0 0.0
        %8801 = vmatpush1.msra.mxu0 0.0
        %8802 = vmatprep.subr.mxu0 0.0
        %8803 = vmatpush1.msra.mxu0 0.0
        %8804 = vmatprep.subr.mxu0 0.0
        %8805 = vmatpush1.msra.mxu0 0.0
        %8806 = vmatprep.subr.mxu0 0.0
        %8807 = vmatpush1.msra.mxu0 0.0
        %8808 = vmatprep.subr.mxu0 0.0
        %8809 = vmatpush1.msra.mxu0 0.0
        %8810 = vmatprep.subr.mxu0 0.0
        %8811 = vmatpush1.msra.mxu0 0.0
        %8812 = vmatprep.subr.mxu0 0.0
        %8813 = vmatpush1.msra.mxu0 0.0
        %8814 = vmatprep.subr.mxu0 0.0
        %8815 = vmatpush1.msra.mxu0 0.0
        %8816 = vmatprep.subr.mxu0 0.0
        %8817 = vmatpush1.msra.mxu0 0.0
        %8818 = vmatprep.subr.mxu0 0.0
        %8819 = vmatpush1.msra.mxu0 0.0
        %8820 = vmatprep.subr.mxu0 0.0
        %8821 = vmatpush1.msra.mxu0 0.0
        %8822 = vmatprep.subr.mxu0 0.0
        %8823 = vmatpush1.msra.mxu0 0.0
        %8824 = vmatprep.subr.mxu0 0.0
        %8825 = vmatpush1.msra.mxu0 0.0
        %8826 = vmatprep.subr.mxu0 0.0
        %8827 = vmatpush1.msra.mxu0 0.0
        %8828 = vmatprep.subr.mxu0 0.0
        %8829 = vmatpush1.msra.mxu0 0.0
        %8830 = vmatprep.subr.mxu0 0.0
        %8831 = vmatpush1.msra.mxu0 0.0
        %8832 = vmatprep.subr.mxu0 0.0
        %8833 = vmatpush1.msra.mxu0 0.0
        %8834 = vmatprep.subr.mxu0 0.0
        %8835 = vmatpush1.msra.mxu0 0.0
        %8836 = vmatprep.subr.mxu0 0.0
        %8837 = vmatpush1.msra.mxu0 0.0
        %8838 = vmatprep.subr.mxu0 0.0
        %8839 = vmatpush1.msra.mxu0 0.0
        %8840 = vmatprep.subr.mxu0 0.0
        %8841 = vmatpush1.msra.mxu0 0.0
        %8842 = vmatprep.subr.mxu0 0.0
        %8843 = vmatpush1.msra.mxu0 0.0
        %8844 = vmatprep.subr.mxu0 0.0
        %8845 = vmatpush1.msra.mxu0 0.0
        %8846 = vmatprep.subr.mxu0 0.0
        %8847 = vmatpush1.msra.mxu0 0.0
        %8848 = vmatprep.subr.mxu0 0.0
        %8849 = vmatpush1.msra.mxu0 0.0
        %8850 = vmatprep.subr.mxu0 0.0
        %8851 = vmatpush1.msra.mxu0 0.0
        %8852 = vmatprep.subr.mxu0 0.0
        %8853 = vmatpush1.msra.mxu0 0.0
        %8854 = vmatprep.mubr.f32.mxu0 0.0
        %8855 = vmatmul.mubr.f32.gmra.mrb[0].mxu0 %v8601
        %v8856 = vpop.f32.mrb[0].mxu0
        %v8857 = vadd.f32 %v8586, %v8856
        %v8858 = vpop.f32.mrb[0].mxu0
        %v8859 = vadd.f32 %v8586, %v8858
        %8860 = vmatprep.mubr.f32.mxu0 0.0
        %8861 = vmatmul.mubr.f32.gmra.mrb[0].mxu0 %v8604
        %v8862 = vpop.f32.mrb[0].mxu0
        %v8863 = vadd.f32 %v8590, %v8862
        %v8864 = vpop.f32.mrb[0].mxu0
        %v8865 = vadd.f32 %v8590, %v8864
        %8866 = vmatprep.mubr.f32.mxu0 0.0
        %8867 = vmatmul.mubr.f32.gmra.mrb[0].mxu0 %v8607
        %v8868 = vpop.f32.mrb[0].mxu0
        %v8869 = vadd.f32 %v8594, %v8868
        %v8870 = vpop.f32.mrb[0].mxu0
        %v8871 = vadd.f32 %v8594, %v8870
        %8872 = vmatprep.mubr.f32.mxu0 0.0
        %8873 = vmatmul.mubr.f32.gmra.mrb[0].mxu0 %v8610
        %v8874 = vpop.f32.mrb[0].mxu0
        %v8875 = vadd.f32 %v8598, %v8874
        %v8876 = vpop.f32.mrb[0].mxu0
        %v8877 = vadd.f32 %v8598, %v8876
        %8878 = vdwg.mxu0
        %8879 = vmatprep.subr.mxu0 %v8522
        %8880 = vmatpush1.msra.mxu0 %v8521
        %8881 = vmatprep.subr.mxu0 %v8538
        %8882 = vmatpush1.msra.mxu0 %v8537
        %8883 = vmatprep.subr.mxu0 %v8554
        %8884 = vmatpush1.msra.mxu0 %v8553
        %8885 = vmatprep.subr.mxu0 %v8570
        %8886 = vmatpush1.msra.mxu0 %v8569
        %8887 = vmatprep.subr.mxu0 0.0
        %8888 = vmatpush1.msra.mxu0 0.0
        %8889 = vmatprep.subr.mxu0 0.0
        %8890 = vmatpush1.msra.mxu0 0.0
        %8891 = vmatprep.subr.mxu0 0.0
        %8892 = vmatpush1.msra.mxu0 0.0
        %8893 = vmatprep.subr.mxu0 0.0
        %8894 = vmatpush1.msra.mxu0 0.0
        %8895 = vmatprep.subr.mxu0 0.0
        %8896 = vmatpush1.msra.mxu0 0.0
        %8897 = vmatprep.subr.mxu0 0.0
        %8898 = vmatpush1.msra.mxu0 0.0
        %8899 = vmatprep.subr.mxu0 0.0
        %8900 = vmatpush1.msra.mxu0 0.0
        %8901 = vmatprep.subr.mxu0 0.0
        %8902 = vmatpush1.msra.mxu0 0.0
        %8903 = vmatprep.subr.mxu0 0.0
        %8904 = vmatpush1.msra.mxu0 0.0
        %8905 = vmatprep.subr.mxu0 0.0
        %8906 = vmatpush1.msra.mxu0 0.0
        %8907 = vmatprep.subr.mxu0 0.0
        %8908 = vmatpush1.msra.mxu0 0.0
        %8909 = vmatprep.subr.mxu0 0.0
        %8910 = vmatpush1.msra.mxu0 0.0
        %8911 = vmatprep.subr.mxu0 0.0
        %8912 = vmatpush1.msra.mxu0 0.0
        %8913 = vmatprep.subr.mxu0 0.0
        %8914 = vmatpush1.msra.mxu0 0.0
        %8915 = vmatprep.subr.mxu0 0.0
        %8916 = vmatpush1.msra.mxu0 0.0
        %8917 = vmatprep.subr.mxu0 0.0
        %8918 = vmatpush1.msra.mxu0 0.0
        %8919 = vmatprep.subr.mxu0 0.0
        %8920 = vmatpush1.msra.mxu0 0.0
        %8921 = vmatprep.subr.mxu0 0.0
        %8922 = vmatpush1.msra.mxu0 0.0
        %8923 = vmatprep.subr.mxu0 0.0
        %8924 = vmatpush1.msra.mxu0 0.0
        %8925 = vmatprep.subr.mxu0 0.0
        %8926 = vmatpush1.msra.mxu0 0.0
        %8927 = vmatprep.subr.mxu0 0.0
        %8928 = vmatpush1.msra.mxu0 0.0
        %8929 = vmatprep.subr.mxu0 0.0
        %8930 = vmatpush1.msra.mxu0 0.0
        %8931 = vmatprep.subr.mxu0 0.0
        %8932 = vmatpush1.msra.mxu0 0.0
        %8933 = vmatprep.subr.mxu0 0.0
        %8934 = vmatpush1.msra.mxu0 0.0
        %8935 = vmatprep.subr.mxu0 0.0
        %8936 = vmatpush1.msra.mxu0 0.0
        %8937 = vmatprep.subr.mxu0 0.0
        %8938 = vmatpush1.msra.mxu0 0.0
        %8939 = vmatprep.subr.mxu0 0.0
        %8940 = vmatpush1.msra.mxu0 0.0
        %8941 = vmatprep.subr.mxu0 0.0
        %8942 = vmatpush1.msra.mxu0 0.0
        %8943 = vmatprep.mubr.f32.mxu0 0.0
        %8944 = vmatmul.mubr.f32.gmra.mrb[0].mxu0 %v8601
        %v8945 = vpop.f32.mrb[0].mxu0
        %v8946 = vadd.f32 %v8586, %v8945
        %v8947 = vpop.f32.mrb[0].mxu0
        %v8948 = vadd.f32 %v8586, %v8947
        %8949 = vmatprep.mubr.f32.mxu0 0.0
        %8950 = vmatmul.mubr.f32.gmra.mrb[0].mxu0 %v8604
        %v8951 = vpop.f32.mrb[0].mxu0
        %v8952 = vadd.f32 %v8590, %v8951
        %v8953 = vpop.f32.mrb[0].mxu0
        %v8954 = vadd.f32 %v8590, %v8953
        %8955 = vmatprep.mubr.f32.mxu0 0.0
        %8956 = vmatmul.mubr.f32.gmra.mrb[0].mxu0 %v8607
        %v8957 = vpop.f32.mrb[0].mxu0
        %v8958 = vadd.f32 %v8594, %v8957
        %v8959 = vpop.f32.mrb[0].mxu0
        %v8960 = vadd.f32 %v8594, %v8959
        %8961 = vmatprep.mubr.f32.mxu0 0.0
        %8962 = vmatmul.mubr.f32.gmra.mrb[0].mxu0 %v8610
        %v8963 = vpop.f32.mrb[0].mxu0
        %v8964 = vadd.f32 %v8598, %v8963
        %v8965 = vpop.f32.mrb[0].mxu0
        %v8966 = vadd.f32 %v8598, %v8965
        %8967 = vdwg.mxu0
        %8968 = vmatprep.subr.mxu0 %v8524
        %8969 = vmatpush1.msra.mxu0 %v8523
        %8970 = vmatprep.subr.mxu0 %v8540
        %8971 = vmatpush1.msra.mxu0 %v8539
        %8972 = vmatprep.subr.mxu0 %v8556
        %8973 = vmatpush1.msra.mxu0 %v8555
        %8974 = vmatprep.subr.mxu0 %v8572
        %8975 = vmatpush1.msra.mxu0 %v8571
        %8976 = vmatprep.subr.mxu0 0.0
        %8977 = vmatpush1.msra.mxu0 0.0
        %8978 = vmatprep.subr.mxu0 0.0
        %8979 = vmatpush1.msra.mxu0 0.0
        %8980 = vmatprep.subr.mxu0 0.0
        %8981 = vmatpush1.msra.mxu0 0.0
        %8982 = vmatprep.subr.mxu0 0.0
        %8983 = vmatpush1.msra.mxu0 0.0
        %8984 = vmatprep.subr.mxu0 0.0
        %8985 = vmatpush1.msra.mxu0 0.0
        %8986 = vmatprep.subr.mxu0 0.0
        %8987 = vmatpush1.msra.mxu0 0.0
        %8988 = vmatprep.subr.mxu0 0.0
        %8989 = vmatpush1.msra.mxu0 0.0
        %8990 = vmatprep.subr.mxu0 0.0
        %8991 = vmatpush1.msra.mxu0 0.0
        %8992 = vmatprep.subr.mxu0 0.0
        %8993 = vmatpush1.msra.mxu0 0.0
        %8994 = vmatprep.subr.mxu0 0.0
        %8995 = vmatpush1.msra.mxu0 0.0
        %8996 = vmatprep.subr.mxu0 0.0
        %8997 = vmatpush1.msra.mxu0 0.0
        %8998 = vmatprep.subr.mxu0 0.0
        %8999 = vmatpush1.msra.mxu0 0.0
        %9000 = vmatprep.subr.mxu0 0.0
        %9001 = vmatpush1.msra.mxu0 0.0
        %9002 = vmatprep.subr.mxu0 0.0
        %9003 = vmatpush1.msra.mxu0 0.0
        %9004 = vmatprep.subr.mxu0 0.0
        %9005 = vmatpush1.msra.mxu0 0.0
        %9006 = vmatprep.subr.mxu0 0.0
        %9007 = vmatpush1.msra.mxu0 0.0
        %9008 = vmatprep.subr.mxu0 0.0
        %9009 = vmatpush1.msra.mxu0 0.0
        %9010 = vmatprep.subr.mxu0 0.0
        %9011 = vmatpush1.msra.mxu0 0.0
        %9012 = vmatprep.subr.mxu0 0.0
        %9013 = vmatpush1.msra.mxu0 0.0
        %9014 = vmatprep.subr.mxu0 0.0
        %9015 = vmatpush1.msra.mxu0 0.0
        %9016 = vmatprep.subr.mxu0 0.0
        %9017 = vmatpush1.msra.mxu0 0.0
        %9018 = vmatprep.subr.mxu0 0.0
        %9019 = vmatpush1.msra.mxu0 0.0
        %9020 = vmatprep.subr.mxu0 0.0
        %9021 = vmatpush1.msra.mxu0 0.0
        %9022 = vmatprep.subr.mxu0 0.0
        %9023 = vmatpush1.msra.mxu0 0.0
        %9024 = vmatprep.subr.mxu0 0.0
        %9025 = vmatpush1.msra.mxu0 0.0
        %9026 = vmatprep.subr.mxu0 0.0
        %9027 = vmatpush1.msra.mxu0 0.0
        %9028 = vmatprep.subr.mxu0 0.0
        %9029 = vmatpush1.msra.mxu0 0.0
        %9030 = vmatprep.subr.mxu0 0.0
        %9031 = vmatpush1.msra.mxu0 0.0
        %9032 = vmatprep.mubr.f32.mxu0 0.0
        %9033 = vmatmul.mubr.f32.gmra.mrb[0].mxu0 %v8601
        %v9034 = vpop.f32.mrb[0].mxu0
        %v9035 = vadd.f32 %v8586, %v9034
        %v9036 = vpop.f32.mrb[0].mxu0
        %v9037 = vadd.f32 %v8586, %v9036
        %9038 = vmatprep.mubr.f32.mxu0 0.0
        %9039 = vmatmul.mubr.f32.gmra.mrb[0].mxu0 %v8604
        %v9040 = vpop.f32.mrb[0].mxu0
        %v9041 = vadd.f32 %v8590, %v9040
        %v9042 = vpop.f32.mrb[0].mxu0
        %v9043 = vadd.f32 %v8590, %v9042
        %9044 = vmatprep.mubr.f32.mxu0 0.0
        %9045 = vmatmul.mubr.f32.gmra.mrb[0].mxu0 %v8607
        %v9046 = vpop.f32.mrb[0].mxu0
        %v9047 = vadd.f32 %v8594, %v9046
        %v9048 = vpop.f32.mrb[0].mxu0
        %v9049 = vadd.f32 %v8594, %v9048
        %9050 = vmatprep.mubr.f32.mxu0 0.0
        %9051 = vmatmul.mubr.f32.gmra.mrb[0].mxu0 %v8610
        %v9052 = vpop.f32.mrb[0].mxu0
        %v9053 = vadd.f32 %v8598, %v9052
        %v9054 = vpop.f32.mrb[0].mxu0
        %v9055 = vadd.f32 %v8598, %v9054
        %9056 = vdwg.mxu0
        %9057 = vmatprep.subr.mxu0 %v8526
        %9058 = vmatpush1.msra.mxu0 %v8525
        %9059 = vmatprep.subr.mxu0 %v8542
        %9060 = vmatpush1.msra.mxu0 %v8541
        %9061 = vmatprep.subr.mxu0 %v8558
        %9062 = vmatpush1.msra.mxu0 %v8557
        %9063 = vmatprep.subr.mxu0 %v8574
        %9064 = vmatpush1.msra.mxu0 %v8573
        %9065 = vmatprep.subr.mxu0 0.0
        %9066 = vmatpush1.msra.mxu0 0.0
        %9067 = vmatprep.subr.mxu0 0.0
        %9068 = vmatpush1.msra.mxu0 0.0
        %9069 = vmatprep.subr.mxu0 0.0
        %9070 = vmatpush1.msra.mxu0 0.0
        %9071 = vmatprep.subr.mxu0 0.0
        %9072 = vmatpush1.msra.mxu0 0.0
        %9073 = vmatprep.subr.mxu0 0.0
        %9074 = vmatpush1.msra.mxu0 0.0
        %9075 = vmatprep.subr.mxu0 0.0
        %9076 = vmatpush1.msra.mxu0 0.0
        %9077 = vmatprep.subr.mxu0 0.0
        %9078 = vmatpush1.msra.mxu0 0.0
        %9079 = vmatprep.subr.mxu0 0.0
        %9080 = vmatpush1.msra.mxu0 0.0
        %9081 = vmatprep.subr.mxu0 0.0
        %9082 = vmatpush1.msra.mxu0 0.0
        %9083 = vmatprep.subr.mxu0 0.0
        %9084 = vmatpush1.msra.mxu0 0.0
        %9085 = vmatprep.subr.mxu0 0.0
        %9086 = vmatpush1.msra.mxu0 0.0
        %9087 = vmatprep.subr.mxu0 0.0
        %9088 = vmatpush1.msra.mxu0 0.0
        %9089 = vmatprep.subr.mxu0 0.0
        %9090 = vmatpush1.msra.mxu0 0.0
        %9091 = vmatprep.subr.mxu0 0.0
        %9092 = vmatpush1.msra.mxu0 0.0
        %9093 = vmatprep.subr.mxu0 0.0
        %9094 = vmatpush1.msra.mxu0 0.0
        %9095 = vmatprep.subr.mxu0 0.0
        %9096 = vmatpush1.msra.mxu0 0.0
        %9097 = vmatprep.subr.mxu0 0.0
        %9098 = vmatpush1.msra.mxu0 0.0
        %9099 = vmatprep.subr.mxu0 0.0
        %9100 = vmatpush1.msra.mxu0 0.0
        %9101 = vmatprep.subr.mxu0 0.0
        %9102 = vmatpush1.msra.mxu0 0.0
        %9103 = vmatprep.subr.mxu0 0.0
        %9104 = vmatpush1.msra.mxu0 0.0
        %9105 = vmatprep.subr.mxu0 0.0
        %9106 = vmatpush1.msra.mxu0 0.0
        %9107 = vmatprep.subr.mxu0 0.0
        %9108 = vmatpush1.msra.mxu0 0.0
        %9109 = vmatprep.subr.mxu0 0.0
        %9110 = vmatpush1.msra.mxu0 0.0
        %9111 = vmatprep.subr.mxu0 0.0
        %9112 = vmatpush1.msra.mxu0 0.0
        %9113 = vmatprep.subr.mxu0 0.0
        %9114 = vmatpush1.msra.mxu0 0.0
        %9115 = vmatprep.subr.mxu0 0.0
        %9116 = vmatpush1.msra.mxu0 0.0
        %9117 = vmatprep.subr.mxu0 0.0
        %9118 = vmatpush1.msra.mxu0 0.0
        %9119 = vmatprep.subr.mxu0 0.0
        %9120 = vmatpush1.msra.mxu0 0.0
        %9121 = vmatprep.mubr.f32.mxu0 0.0
        %9122 = vmatmul.mubr.f32.gmra.mrb[0].mxu0 %v8601
        %v9123 = vpop.f32.mrb[0].mxu0
        %v9124 = vadd.f32 %v8586, %v9123
        %v9125 = vpop.f32.mrb[0].mxu0
        %v9126 = vadd.f32 %v8586, %v9125
        %9127 = vmatprep.mubr.f32.mxu0 0.0
        %9128 = vmatmul.mubr.f32.gmra.mrb[0].mxu0 %v8604
        %v9129 = vpop.f32.mrb[0].mxu0
        %v9130 = vadd.f32 %v8590, %v9129
        %v9131 = vpop.f32.mrb[0].mxu0
        %v9132 = vadd.f32 %v8590, %v9131
        %9133 = vmatprep.mubr.f32.mxu0 0.0
        %9134 = vmatmul.mubr.f32.gmra.mrb[0].mxu0 %v8607
        %v9135 = vpop.f32.mrb[0].mxu0
        %v9136 = vadd.f32 %v8594, %v9135
        %v9137 = vpop.f32.mrb[0].mxu0
        %v9138 = vadd.f32 %v8594, %v9137
        %9139 = vmatprep.mubr.f32.mxu0 0.0
        %9140 = vmatmul.mubr.f32.gmra.mrb[0].mxu0 %v8610
        %v9141 = vpop.f32.mrb[0].mxu0
        %v9142 = vadd.f32 %v8598, %v9141
        %v9143 = vpop.f32.mrb[0].mxu0
        %v9144 = vadd.f32 %v8598, %v9143
        %9145 = vdwg.mxu0
        %9146 = vmatprep.subr.mxu0 %v8528
        %9147 = vmatpush1.msra.mxu0 %v8527
        %9148 = vmatprep.subr.mxu0 %v8544
        %9149 = vmatpush1.msra.mxu0 %v8543
        %9150 = vmatprep.subr.mxu0 %v8560
        %9151 = vmatpush1.msra.mxu0 %v8559
        %9152 = vmatprep.subr.mxu0 %v8576
        %9153 = vmatpush1.msra.mxu0 %v8575
        %9154 = vmatprep.subr.mxu0 0.0
        %9155 = vmatpush1.msra.mxu0 0.0
        %9156 = vmatprep.subr.mxu0 0.0
        %9157 = vmatpush1.msra.mxu0 0.0
        %9158 = vmatprep.subr.mxu0 0.0
        %9159 = vmatpush1.msra.mxu0 0.0
        %9160 = vmatprep.subr.mxu0 0.0
        %9161 = vmatpush1.msra.mxu0 0.0
        %9162 = vmatprep.subr.mxu0 0.0
        %9163 = vmatpush1.msra.mxu0 0.0
        %9164 = vmatprep.subr.mxu0 0.0
        %9165 = vmatpush1.msra.mxu0 0.0
        %9166 = vmatprep.subr.mxu0 0.0
        %9167 = vmatpush1.msra.mxu0 0.0
        %9168 = vmatprep.subr.mxu0 0.0
        %9169 = vmatpush1.msra.mxu0 0.0
        %9170 = vmatprep.subr.mxu0 0.0
        %9171 = vmatpush1.msra.mxu0 0.0
        %9172 = vmatprep.subr.mxu0 0.0
        %9173 = vmatpush1.msra.mxu0 0.0
        %9174 = vmatprep.subr.mxu0 0.0
        %9175 = vmatpush1.msra.mxu0 0.0
        %9176 = vmatprep.subr.mxu0 0.0
        %9177 = vmatpush1.msra.mxu0 0.0
        %9178 = vmatprep.subr.mxu0 0.0
        %9179 = vmatpush1.msra.mxu0 0.0
        %9180 = vmatprep.subr.mxu0 0.0
        %9181 = vmatpush1.msra.mxu0 0.0
        %9182 = vmatprep.subr.mxu0 0.0
        %9183 = vmatpush1.msra.mxu0 0.0
        %9184 = vmatprep.subr.mxu0 0.0
        %9185 = vmatpush1.msra.mxu0 0.0
        %9186 = vmatprep.subr.mxu0 0.0
        %9187 = vmatpush1.msra.mxu0 0.0
        %9188 = vmatprep.subr.mxu0 0.0
        %9189 = vmatpush1.msra.mxu0 0.0
        %9190 = vmatprep.subr.mxu0 0.0
        %9191 = vmatpush1.msra.mxu0 0.0
        %9192 = vmatprep.subr.mxu0 0.0
        %9193 = vmatpush1.msra.mxu0 0.0
        %9194 = vmatprep.subr.mxu0 0.0
        %9195 = vmatpush1.msra.mxu0 0.0
        %9196 = vmatprep.subr.mxu0 0.0
        %9197 = vmatpush1.msra.mxu0 0.0
        %9198 = vmatprep.subr.mxu0 0.0
        %9199 = vmatpush1.msra.mxu0 0.0
        %9200 = vmatprep.subr.mxu0 0.0
        %9201 = vmatpush1.msra.mxu0 0.0
        %9202 = vmatprep.subr.mxu0 0.0
        %9203 = vmatpush1.msra.mxu0 0.0
        %9204 = vmatprep.subr.mxu0 0.0
        %9205 = vmatpush1.msra.mxu0 0.0
        %9206 = vmatprep.subr.mxu0 0.0
        %9207 = vmatpush1.msra.mxu0 0.0
        %9208 = vmatprep.subr.mxu0 0.0
        %9209 = vmatpush1.msra.mxu0 0.0
        %9210 = vmatprep.mubr.f32.mxu0 0.0
        %9211 = vmatmul.mubr.f32.gmra.mrb[0].mxu0 %v8601
        %v9212 = vpop.f32.mrb[0].mxu0
        %v9213 = vadd.f32 %v8586, %v9212
        %v9214 = vpop.f32.mrb[0].mxu0
        %v9215 = vadd.f32 %v8586, %v9214
        %9216 = vmatprep.mubr.f32.mxu0 0.0
        %9217 = vmatmul.mubr.f32.gmra.mrb[0].mxu0 %v8604
        %v9218 = vpop.f32.mrb[0].mxu0
        %v9219 = vadd.f32 %v8590, %v9218
        %v9220 = vpop.f32.mrb[0].mxu0
        %v9221 = vadd.f32 %v8590, %v9220
        %9222 = vmatprep.mubr.f32.mxu0 0.0
        %9223 = vmatmul.mubr.f32.gmra.mrb[0].mxu0 %v8607
        %v9224 = vpop.f32.mrb[0].mxu0
        %v9225 = vadd.f32 %v8594, %v9224
        %v9226 = vpop.f32.mrb[0].mxu0
        %v9227 = vadd.f32 %v8594, %v9226
        %9228 = vmatprep.mubr.f32.mxu0 0.0
        %9229 = vmatmul.mubr.f32.gmra.mrb[0].mxu0 %v8610
        %v9230 = vpop.f32.mrb[0].mxu0
        %v9231 = vadd.f32 %v8598, %v9230
        %v9232 = vpop.f32.mrb[0].mxu0
        %v9233 = vadd.f32 %v8598, %v9232
        %9234 = vdwg.mxu0
        %9235 = vmatprep.subr.mxu0 %v8530
        %9236 = vmatpush1.msra.mxu0 %v8529
        %9237 = vmatprep.subr.mxu0 %v8546
        %9238 = vmatpush1.msra.mxu0 %v8545
        %9239 = vmatprep.subr.mxu0 %v8562
        %9240 = vmatpush1.msra.mxu0 %v8561
        %9241 = vmatprep.subr.mxu0 %v8578
        %9242 = vmatpush1.msra.mxu0 %v8577
        %9243 = vmatprep.subr.mxu0 0.0
        %9244 = vmatpush1.msra.mxu0 0.0
        %9245 = vmatprep.subr.mxu0 0.0
        %9246 = vmatpush1.msra.mxu0 0.0
        %9247 = vmatprep.subr.mxu0 0.0
        %9248 = vmatpush1.msra.mxu0 0.0
        %9249 = vmatprep.subr.mxu0 0.0
        %9250 = vmatpush1.msra.mxu0 0.0
        %9251 = vmatprep.subr.mxu0 0.0
        %9252 = vmatpush1.msra.mxu0 0.0
        %9253 = vmatprep.subr.mxu0 0.0
        %9254 = vmatpush1.msra.mxu0 0.0
        %9255 = vmatprep.subr.mxu0 0.0
        %9256 = vmatpush1.msra.mxu0 0.0
        %9257 = vmatprep.subr.mxu0 0.0
        %9258 = vmatpush1.msra.mxu0 0.0
        %9259 = vmatprep.subr.mxu0 0.0
        %9260 = vmatpush1.msra.mxu0 0.0
        %9261 = vmatprep.subr.mxu0 0.0
        %9262 = vmatpush1.msra.mxu0 0.0
        %9263 = vmatprep.subr.mxu0 0.0
        %9264 = vmatpush1.msra.mxu0 0.0
        %9265 = vmatprep.subr.mxu0 0.0
        %9266 = vmatpush1.msra.mxu0 0.0
        %9267 = vmatprep.subr.mxu0 0.0
        %9268 = vmatpush1.msra.mxu0 0.0
        %9269 = vmatprep.subr.mxu0 0.0
        %9270 = vmatpush1.msra.mxu0 0.0
        %9271 = vmatprep.subr.mxu0 0.0
        %9272 = vmatpush1.msra.mxu0 0.0
        %9273 = vmatprep.subr.mxu0 0.0
        %9274 = vmatpush1.msra.mxu0 0.0
        %9275 = vmatprep.subr.mxu0 0.0
        %9276 = vmatpush1.msra.mxu0 0.0
        %9277 = vmatprep.subr.mxu0 0.0
        %9278 = vmatpush1.msra.mxu0 0.0
        %9279 = vmatprep.subr.mxu0 0.0
        %9280 = vmatpush1.msra.mxu0 0.0
        %9281 = vmatprep.subr.mxu0 0.0
        %9282 = vmatpush1.msra.mxu0 0.0
        %9283 = vmatprep.subr.mxu0 0.0
        %9284 = vmatpush1.msra.mxu0 0.0
        %9285 = vmatprep.subr.mxu0 0.0
        %9286 = vmatpush1.msra.mxu0 0.0
        %9287 = vmatprep.subr.mxu0 0.0
        %9288 = vmatpush1.msra.mxu0 0.0
        %9289 = vmatprep.subr.mxu0 0.0
        %9290 = vmatpush1.msra.mxu0 0.0
        %9291 = vmatprep.subr.mxu0 0.0
        %9292 = vmatpush1.msra.mxu0 0.0
        %9293 = vmatprep.subr.mxu0 0.0
        %9294 = vmatpush1.msra.mxu0 0.0
        %9295 = vmatprep.subr.mxu0 0.0
        %9296 = vmatpush1.msra.mxu0 0.0
        %9297 = vmatprep.subr.mxu0 0.0
        %9298 = vmatpush1.msra.mxu0 0.0
        %9299 = vmatprep.mubr.f32.mxu0 0.0
        %9300 = vmatmul.mubr.f32.gmra.mrb[0].mxu0 %v8601
        %v9301 = vpop.f32.mrb[0].mxu0
        %v9302 = vadd.f32 %v8586, %v9301
        %v9303 = vpop.f32.mrb[0].mxu0
        %v9304 = vadd.f32 %v8586, %v9303
        %9305 = vmatprep.mubr.f32.mxu0 0.0
        %9306 = vmatmul.mubr.f32.gmra.mrb[0].mxu0 %v8604
        %v9307 = vpop.f32.mrb[0].mxu0
        %v9308 = vadd.f32 %v8590, %v9307
        %v9309 = vpop.f32.mrb[0].mxu0
        %v9310 = vadd.f32 %v8590, %v9309
        %9311 = vmatprep.mubr.f32.mxu0 0.0
        %9312 = vmatmul.mubr.f32.gmra.mrb[0].mxu0 %v8607
        %v9313 = vpop.f32.mrb[0].mxu0
        %v9314 = vadd.f32 %v8594, %v9313
        %v9315 = vpop.f32.mrb[0].mxu0
        %v9316 = vadd.f32 %v8594, %v9315
        %9317 = vmatprep.mubr.f32.mxu0 0.0
        %9318 = vmatmul.mubr.f32.gmra.mrb[0].mxu0 %v8610
        %v9319 = vpop.f32.mrb[0].mxu0
        %v9320 = vadd.f32 %v8598, %v9319
        %v9321 = vpop.f32.mrb[0].mxu0
        %v9322 = vadd.f32 %v8598, %v9321
        %9323 = vdwg.mxu0
        %v9324 = vmax.f32 %v8679, 0.0
        %v9325 = vmax.f32 %v8681, 0.0
        %v9326 = vmax.f32 %v8768, 0.0
        %v9327 = vmax.f32 %v8770, 0.0
        %v9328 = vmax.f32 %v8857, 0.0
        %v9329 = vmax.f32 %v8859, 0.0
        %v9330 = vmax.f32 %v8946, 0.0
        %v9331 = vmax.f32 %v8948, 0.0
        %v9332 = vmax.f32 %v9035, 0.0
        %v9333 = vmax.f32 %v9037, 0.0
        %v9334 = vmax.f32 %v9124, 0.0
        %v9335 = vmax.f32 %v9126, 0.0
        %v9336 = vmax.f32 %v9213, 0.0
        %v9337 = vmax.f32 %v9215, 0.0
        %v9338 = vmax.f32 %v9302, 0.0
        %v9339 = vmax.f32 %v9304, 0.0
        %v9340 = vmax.f32 %v8685, 0.0
        %v9341 = vmax.f32 %v8687, 0.0
        %v9342 = vmax.f32 %v8774, 0.0
        %v9343 = vmax.f32 %v8776, 0.0
        %v9344 = vmax.f32 %v8863, 0.0
        %v9345 = vmax.f32 %v8865, 0.0
        %v9346 = vmax.f32 %v8952, 0.0
        %v9347 = vmax.f32 %v8954, 0.0
        %v9348 = vmax.f32 %v9041, 0.0
        %v9349 = vmax.f32 %v9043, 0.0
        %v9350 = vmax.f32 %v9130, 0.0
        %v9351 = vmax.f32 %v9132, 0.0
        %v9352 = vmax.f32 %v9219, 0.0
        %v9353 = vmax.f32 %v9221, 0.0
        %v9354 = vmax.f32 %v9308, 0.0
        %v9355 = vmax.f32 %v9310, 0.0
        %v9356 = vmax.f32 %v8691, 0.0
        %v9357 = vmax.f32 %v8693, 0.0
        %v9358 = vmax.f32 %v8780, 0.0
        %v9359 = vmax.f32 %v8782, 0.0
        %v9360 = vmax.f32 %v8869, 0.0
        %v9361 = vmax.f32 %v8871, 0.0
        %v9362 = vmax.f32 %v8958, 0.0
        %v9363 = vmax.f32 %v8960, 0.0
        %v9364 = vmax.f32 %v9047, 0.0
        %v9365 = vmax.f32 %v9049, 0.0
        %v9366 = vmax.f32 %v9136, 0.0
        %v9367 = vmax.f32 %v9138, 0.0
        %v9368 = vmax.f32 %v9225, 0.0
        %v9369 = vmax.f32 %v9227, 0.0
        %v9370 = vmax.f32 %v9314, 0.0
        %v9371 = vmax.f32 %v9316, 0.0
        %v9372 = vmax.f32 %v8697, 0.0
        %v9373 = vmax.f32 %v8699, 0.0
        %v9374 = vmax.f32 %v8786, 0.0
        %v9375 = vmax.f32 %v8788, 0.0
        %v9376 = vmax.f32 %v8875, 0.0
        %v9377 = vmax.f32 %v8877, 0.0
        %v9378 = vmax.f32 %v8964, 0.0
        %v9379 = vmax.f32 %v8966, 0.0
        %v9380 = vmax.f32 %v9053, 0.0
        %v9381 = vmax.f32 %v9055, 0.0
        %v9382 = vmax.f32 %v9142, 0.0
        %v9383 = vmax.f32 %v9144, 0.0
        %v9384 = vmax.f32 %v9231, 0.0
        %v9385 = vmax.f32 %v9233, 0.0
        %v9386 = vmax.f32 %v9320, 0.0
        %v9387 = vmax.f32 %v9322, 0.0
        %v9388 = vadd.f32 %v9324, %v9340
        %v9389 = vadd.f32 %v9388, %v9356
        %v9390 = vadd.f32 %v9389, %v9372
        %v9391 = vrot.slane %v9390, 4
        %v9392 = vadd.f32 %v9390, %v9391
        %v9393 = vrot.slane %v9392, 2
        %v9394 = vadd.f32 %v9392, %v9393
        %v9395 = vrot.slane %v9394, 1
        %v9396 = vadd.f32 %v9394, %v9395
        %v9397 = vadd.f32 %v9325, %v9341
        %v9398 = vadd.f32 %v9397, %v9357
        %v9399 = vadd.f32 %v9398, %v9373
        %v9400 = vrot.slane %v9399, 4
        %v9401 = vadd.f32 %v9399, %v9400
        %v9402 = vrot.slane %v9401, 2
        %v9403 = vadd.f32 %v9401, %v9402
        %v9404 = vrot.slane %v9403, 1
        %v9405 = vadd.f32 %v9403, %v9404
        %v9406 = vadd.f32 %v9326, %v9342
        %v9407 = vadd.f32 %v9406, %v9358
        %v9408 = vadd.f32 %v9407, %v9374
        %v9409 = vrot.slane %v9408, 4
        %v9410 = vadd.f32 %v9408, %v9409
        %v9411 = vrot.slane %v9410, 2
        %v9412 = vadd.f32 %v9410, %v9411
        %v9413 = vrot.slane %v9412, 1
        %v9414 = vadd.f32 %v9412, %v9413
        %v9415 = vadd.f32 %v9327, %v9343
        %v9416 = vadd.f32 %v9415, %v9359
        %v9417 = vadd.f32 %v9416, %v9375
        %v9418 = vrot.slane %v9417, 4
        %v9419 = vadd.f32 %v9417, %v9418
        %v9420 = vrot.slane %v9419, 2
        %v9421 = vadd.f32 %v9419, %v9420
        %v9422 = vrot.slane %v9421, 1
        %v9423 = vadd.f32 %v9421, %v9422
        %v9424 = vadd.f32 %v9328, %v9344
        %v9425 = vadd.f32 %v9424, %v9360
        %v9426 = vadd.f32 %v9425, %v9376
        %v9427 = vrot.slane %v9426, 4
        %v9428 = vadd.f32 %v9426, %v9427
        %v9429 = vrot.slane %v9428, 2
        %v9430 = vadd.f32 %v9428, %v9429
        %v9431 = vrot.slane %v9430, 1
        %v9432 = vadd.f32 %v9430, %v9431
        %v9433 = vadd.f32 %v9329, %v9345
        %v9434 = vadd.f32 %v9433, %v9361
        %v9435 = vadd.f32 %v9434, %v9377
        %v9436 = vrot.slane %v9435, 4
        %v9437 = vadd.f32 %v9435, %v9436
        %v9438 = vrot.slane %v9437, 2
        %v9439 = vadd.f32 %v9437, %v9438
        %v9440 = vrot.slane %v9439, 1
        %v9441 = vadd.f32 %v9439, %v9440
        %v9442 = vadd.f32 %v9330, %v9346
        %v9443 = vadd.f32 %v9442, %v9362
        %v9444 = vadd.f32 %v9443, %v9378
        %v9445 = vrot.slane %v9444, 4
        %v9446 = vadd.f32 %v9444, %v9445
        %v9447 = vrot.slane %v9446, 2
        %v9448 = vadd.f32 %v9446, %v9447
        %v9449 = vrot.slane %v9448, 1
        %v9450 = vadd.f32 %v9448, %v9449
        %v9451 = vadd.f32 %v9331, %v9347
        %v9452 = vadd.f32 %v9451, %v9363
        %v9453 = vadd.f32 %v9452, %v9379
        %v9454 = vrot.slane %v9453, 4
        %v9455 = vadd.f32 %v9453, %v9454
        %v9456 = vrot.slane %v9455, 2
        %v9457 = vadd.f32 %v9455, %v9456
        %v9458 = vrot.slane %v9457, 1
        %v9459 = vadd.f32 %v9457, %v9458
        %v9460 = vadd.f32 %v9332, %v9348
        %v9461 = vadd.f32 %v9460, %v9364
        %v9462 = vadd.f32 %v9461, %v9380
        %v9463 = vrot.slane %v9462, 4
        %v9464 = vadd.f32 %v9462, %v9463
        %v9465 = vrot.slane %v9464, 2
        %v9466 = vadd.f32 %v9464, %v9465
        %v9467 = vrot.slane %v9466, 1
        %v9468 = vadd.f32 %v9466, %v9467
        %v9469 = vadd.f32 %v9333, %v9349
        %v9470 = vadd.f32 %v9469, %v9365
        %v9471 = vadd.f32 %v9470, %v9381
        %v9472 = vrot.slane %v9471, 4
        %v9473 = vadd.f32 %v9471, %v9472
        %v9474 = vrot.slane %v9473, 2
        %v9475 = vadd.f32 %v9473, %v9474
        %v9476 = vrot.slane %v9475, 1
        %v9477 = vadd.f32 %v9475, %v9476
        %v9478 = vadd.f32 %v9334, %v9350
        %v9479 = vadd.f32 %v9478, %v9366
        %v9480 = vadd.f32 %v9479, %v9382
        %v9481 = vrot.slane %v9480, 4
        %v9482 = vadd.f32 %v9480, %v9481
        %v9483 = vrot.slane %v9482, 2
        %v9484 = vadd.f32 %v9482, %v9483
        %v9485 = vrot.slane %v9484, 1
        %v9486 = vadd.f32 %v9484, %v9485
        %v9487 = vadd.f32 %v9335, %v9351
        %v9488 = vadd.f32 %v9487, %v9367
        %v9489 = vadd.f32 %v9488, %v9383
        %v9490 = vrot.slane %v9489, 4
        %v9491 = vadd.f32 %v9489, %v9490
        %v9492 = vrot.slane %v9491, 2
        %v9493 = vadd.f32 %v9491, %v9492
        %v9494 = vrot.slane %v9493, 1
        %v9495 = vadd.f32 %v9493, %v9494
        %v9496 = vadd.f32 %v9336, %v9352
        %v9497 = vadd.f32 %v9496, %v9368
        %v9498 = vadd.f32 %v9497, %v9384
        %v9499 = vrot.slane %v9498, 4
        %v9500 = vadd.f32 %v9498, %v9499
        %v9501 = vrot.slane %v9500, 2
        %v9502 = vadd.f32 %v9500, %v9501
        %v9503 = vrot.slane %v9502, 1
        %v9504 = vadd.f32 %v9502, %v9503
        %v9505 = vadd.f32 %v9337, %v9353
        %v9506 = vadd.f32 %v9505, %v9369
        %v9507 = vadd.f32 %v9506, %v9385
        %v9508 = vrot.slane %v9507, 4
        %v9509 = vadd.f32 %v9507, %v9508
        %v9510 = vrot.slane %v9509, 2
        %v9511 = vadd.f32 %v9509, %v9510
        %v9512 = vrot.slane %v9511, 1
        %v9513 = vadd.f32 %v9511, %v9512
        %v9514 = vadd.f32 %v9338, %v9354
        %v9515 = vadd.f32 %v9514, %v9370
        %v9516 = vadd.f32 %v9515, %v9386
        %v9517 = vrot.slane %v9516, 4
        %v9518 = vadd.f32 %v9516, %v9517
        %v9519 = vrot.slane %v9518, 2
        %v9520 = vadd.f32 %v9518, %v9519
        %v9521 = vrot.slane %v9520, 1
        %v9522 = vadd.f32 %v9520, %v9521
        %v9523 = vadd.f32 %v9339, %v9355
        %v9524 = vadd.f32 %v9523, %v9371
        %v9525 = vadd.f32 %v9524, %v9387
        %v9526 = vrot.slane %v9525, 4
        %v9527 = vadd.f32 %v9525, %v9526
        %v9528 = vrot.slane %v9527, 2
        %v9529 = vadd.f32 %v9527, %v9528
        %v9530 = vrot.slane %v9529, 1
        %v9531 = vadd.f32 %v9529, %v9530
        %v9532 = vmul.f32 %v9396, %v7986
        %v9533 = vmul.f32 %v9405, %v7986
        %v9534 = vmul.f32 %v9414, %v7986
        %v9535 = vmul.f32 %v9423, %v7986
        %v9536 = vmul.f32 %v9432, %v7986
        %v9537 = vmul.f32 %v9441, %v7986
        %v9538 = vmul.f32 %v9450, %v7986
        %v9539 = vmul.f32 %v9459, %v7986
        %v9540 = vmul.f32 %v9468, %v7986
        %v9541 = vmul.f32 %v9477, %v7986
        %v9542 = vmul.f32 %v9486, %v7986
        %v9543 = vmul.f32 %v9495, %v7986
        %v9544 = vmul.f32 %v9504, %v7986
        %v9545 = vmul.f32 %v9513, %v7986
        %v9546 = vmul.f32 %v9522, %v7986
        %v9547 = vmul.f32 %v9531, %v7986
        %v9548 = vmul.f32 %v9324, %v9324
        %v9549 = vmul.f32 %v9325, %v9325
        %v9550 = vmul.f32 %v9326, %v9326
        %v9551 = vmul.f32 %v9327, %v9327
        %v9552 = vmul.f32 %v9328, %v9328
        %v9553 = vmul.f32 %v9329, %v9329
        %v9554 = vmul.f32 %v9330, %v9330
        %v9555 = vmul.f32 %v9331, %v9331
        %v9556 = vmul.f32 %v9332, %v9332
        %v9557 = vmul.f32 %v9333, %v9333
        %v9558 = vmul.f32 %v9334, %v9334
        %v9559 = vmul.f32 %v9335, %v9335
        %v9560 = vmul.f32 %v9336, %v9336
        %v9561 = vmul.f32 %v9337, %v9337
        %v9562 = vmul.f32 %v9338, %v9338
        %v9563 = vmul.f32 %v9339, %v9339
        %v9564 = vmul.f32 %v9340, %v9340
        %v9565 = vmul.f32 %v9341, %v9341
        %v9566 = vmul.f32 %v9342, %v9342
        %v9567 = vmul.f32 %v9343, %v9343
        %v9568 = vmul.f32 %v9344, %v9344
        %v9569 = vmul.f32 %v9345, %v9345
        %v9570 = vmul.f32 %v9346, %v9346
        %v9571 = vmul.f32 %v9347, %v9347
        %v9572 = vmul.f32 %v9348, %v9348
        %v9573 = vmul.f32 %v9349, %v9349
        %v9574 = vmul.f32 %v9350, %v9350
        %v9575 = vmul.f32 %v9351, %v9351
        %v9576 = vmul.f32 %v9352, %v9352
        %v9577 = vmul.f32 %v9353, %v9353
        %v9578 = vmul.f32 %v9354, %v9354
        %v9579 = vmul.f32 %v9355, %v9355
        %v9580 = vmul.f32 %v9356, %v9356
        %v9581 = vmul.f32 %v9357, %v9357
        %v9582 = vmul.f32 %v9358, %v9358
        %v9583 = vmul.f32 %v9359, %v9359
        %v9584 = vmul.f32 %v9360, %v9360
        %v9585 = vmul.f32 %v9361, %v9361
        %v9586 = vmul.f32 %v9362, %v9362
        %v9587 = vmul.f32 %v9363, %v9363
        %v9588 = vmul.f32 %v9364, %v9364
        %v9589 = vmul.f32 %v9365, %v9365
        %v9590 = vmul.f32 %v9366, %v9366
        %v9591 = vmul.f32 %v9367, %v9367
        %v9592 = vmul.f32 %v9368, %v9368
        %v9593 = vmul.f32 %v9369, %v9369
        %v9594 = vmul.f32 %v9370, %v9370
        %v9595 = vmul.f32 %v9371, %v9371
        %v9596 = vmul.f32 %v9372, %v9372
        %v9597 = vmul.f32 %v9373, %v9373
        %v9598 = vmul.f32 %v9374, %v9374
        %v9599 = vmul.f32 %v9375, %v9375
        %v9600 = vmul.f32 %v9376, %v9376
        %v9601 = vmul.f32 %v9377, %v9377
        %v9602 = vmul.f32 %v9378, %v9378
        %v9603 = vmul.f32 %v9379, %v9379
        %v9604 = vmul.f32 %v9380, %v9380
        %v9605 = vmul.f32 %v9381, %v9381
        %v9606 = vmul.f32 %v9382, %v9382
        %v9607 = vmul.f32 %v9383, %v9383
        %v9608 = vmul.f32 %v9384, %v9384
        %v9609 = vmul.f32 %v9385, %v9385
        %v9610 = vmul.f32 %v9386, %v9386
        %v9611 = vmul.f32 %v9387, %v9387
        %v9612 = vadd.f32 %v9548, %v9564
        %v9613 = vadd.f32 %v9612, %v9580
        %v9614 = vadd.f32 %v9613, %v9596
        %v9615 = vrot.slane %v9614, 4
        %v9616 = vadd.f32 %v9614, %v9615
        %v9617 = vrot.slane %v9616, 2
        %v9618 = vadd.f32 %v9616, %v9617
        %v9619 = vrot.slane %v9618, 1
        %v9620 = vadd.f32 %v9618, %v9619
        %v9621 = vadd.f32 %v9549, %v9565
        %v9622 = vadd.f32 %v9621, %v9581
        %v9623 = vadd.f32 %v9622, %v9597
        %v9624 = vrot.slane %v9623, 4
        %v9625 = vadd.f32 %v9623, %v9624
        %v9626 = vrot.slane %v9625, 2
        %v9627 = vadd.f32 %v9625, %v9626
        %v9628 = vrot.slane %v9627, 1
        %v9629 = vadd.f32 %v9627, %v9628
        %v9630 = vadd.f32 %v9550, %v9566
        %v9631 = vadd.f32 %v9630, %v9582
        %v9632 = vadd.f32 %v9631, %v9598
        %v9633 = vrot.slane %v9632, 4
        %v9634 = vadd.f32 %v9632, %v9633
        %v9635 = vrot.slane %v9634, 2
        %v9636 = vadd.f32 %v9634, %v9635
        %v9637 = vrot.slane %v9636, 1
        %v9638 = vadd.f32 %v9636, %v9637
        %v9639 = vadd.f32 %v9551, %v9567
        %v9640 = vadd.f32 %v9639, %v9583
        %v9641 = vadd.f32 %v9640, %v9599
        %v9642 = vrot.slane %v9641, 4
        %v9643 = vadd.f32 %v9641, %v9642
        %v9644 = vrot.slane %v9643, 2
        %v9645 = vadd.f32 %v9643, %v9644
        %v9646 = vrot.slane %v9645, 1
        %v9647 = vadd.f32 %v9645, %v9646
        %v9648 = vadd.f32 %v9552, %v9568
        %v9649 = vadd.f32 %v9648, %v9584
        %v9650 = vadd.f32 %v9649, %v9600
        %v9651 = vrot.slane %v9650, 4
        %v9652 = vadd.f32 %v9650, %v9651
        %v9653 = vrot.slane %v9652, 2
        %v9654 = vadd.f32 %v9652, %v9653
        %v9655 = vrot.slane %v9654, 1
        %v9656 = vadd.f32 %v9654, %v9655
        %v9657 = vadd.f32 %v9553, %v9569
        %v9658 = vadd.f32 %v9657, %v9585
        %v9659 = vadd.f32 %v9658, %v9601
        %v9660 = vrot.slane %v9659, 4
        %v9661 = vadd.f32 %v9659, %v9660
        %v9662 = vrot.slane %v9661, 2
        %v9663 = vadd.f32 %v9661, %v9662
        %v9664 = vrot.slane %v9663, 1
        %v9665 = vadd.f32 %v9663, %v9664
        %v9666 = vadd.f32 %v9554, %v9570
        %v9667 = vadd.f32 %v9666, %v9586
        %v9668 = vadd.f32 %v9667, %v9602
        %v9669 = vrot.slane %v9668, 4
        %v9670 = vadd.f32 %v9668, %v9669
        %v9671 = vrot.slane %v9670, 2
        %v9672 = vadd.f32 %v9670, %v9671
        %v9673 = vrot.slane %v9672, 1
        %v9674 = vadd.f32 %v9672, %v9673
        %v9675 = vadd.f32 %v9555, %v9571
        %v9676 = vadd.f32 %v9675, %v9587
        %v9677 = vadd.f32 %v9676, %v9603
        %v9678 = vrot.slane %v9677, 4
        %v9679 = vadd.f32 %v9677, %v9678
        %v9680 = vrot.slane %v9679, 2
        %v9681 = vadd.f32 %v9679, %v9680
        %v9682 = vrot.slane %v9681, 1
        %v9683 = vadd.f32 %v9681, %v9682
        %v9684 = vadd.f32 %v9556, %v9572
        %v9685 = vadd.f32 %v9684, %v9588
        %v9686 = vadd.f32 %v9685, %v9604
        %v9687 = vrot.slane %v9686, 4
        %v9688 = vadd.f32 %v9686, %v9687
        %v9689 = vrot.slane %v9688, 2
        %v9690 = vadd.f32 %v9688, %v9689
        %v9691 = vrot.slane %v9690, 1
        %v9692 = vadd.f32 %v9690, %v9691
        %v9693 = vadd.f32 %v9557, %v9573
        %v9694 = vadd.f32 %v9693, %v9589
        %v9695 = vadd.f32 %v9694, %v9605
        %v9696 = vrot.slane %v9695, 4
        %v9697 = vadd.f32 %v9695, %v9696
        %v9698 = vrot.slane %v9697, 2
        %v9699 = vadd.f32 %v9697, %v9698
        %v9700 = vrot.slane %v9699, 1
        %v9701 = vadd.f32 %v9699, %v9700
        %v9702 = vadd.f32 %v9558, %v9574
        %v9703 = vadd.f32 %v9702, %v9590
        %v9704 = vadd.f32 %v9703, %v9606
        %v9705 = vrot.slane %v9704, 4
        %v9706 = vadd.f32 %v9704, %v9705
        %v9707 = vrot.slane %v9706, 2
        %v9708 = vadd.f32 %v9706, %v9707
        %v9709 = vrot.slane %v9708, 1
        %v9710 = vadd.f32 %v9708, %v9709
        %v9711 = vadd.f32 %v9559, %v9575
        %v9712 = vadd.f32 %v9711, %v9591
        %v9713 = vadd.f32 %v9712, %v9607
        %v9714 = vrot.slane %v9713, 4
        %v9715 = vadd.f32 %v9713, %v9714
        %v9716 = vrot.slane %v9715, 2
        %v9717 = vadd.f32 %v9715, %v9716
        %v9718 = vrot.slane %v9717, 1
        %v9719 = vadd.f32 %v9717, %v9718
        %v9720 = vadd.f32 %v9560, %v9576
        %v9721 = vadd.f32 %v9720, %v9592
        %v9722 = vadd.f32 %v9721, %v9608
        %v9723 = vrot.slane %v9722, 4
        %v9724 = vadd.f32 %v9722, %v9723
        %v9725 = vrot.slane %v9724, 2
        %v9726 = vadd.f32 %v9724, %v9725
        %v9727 = vrot.slane %v9726, 1
        %v9728 = vadd.f32 %v9726, %v9727
        %v9729 = vadd.f32 %v9561, %v9577
        %v9730 = vadd.f32 %v9729, %v9593
        %v9731 = vadd.f32 %v9730, %v9609
        %v9732 = vrot.slane %v9731, 4
        %v9733 = vadd.f32 %v9731, %v9732
        %v9734 = vrot.slane %v9733, 2
        %v9735 = vadd.f32 %v9733, %v9734
        %v9736 = vrot.slane %v9735, 1
        %v9737 = vadd.f32 %v9735, %v9736
        %v9738 = vadd.f32 %v9562, %v9578
        %v9739 = vadd.f32 %v9738, %v9594
        %v9740 = vadd.f32 %v9739, %v9610
        %v9741 = vrot.slane %v9740, 4
        %v9742 = vadd.f32 %v9740, %v9741
        %v9743 = vrot.slane %v9742, 2
        %v9744 = vadd.f32 %v9742, %v9743
        %v9745 = vrot.slane %v9744, 1
        %v9746 = vadd.f32 %v9744, %v9745
        %v9747 = vadd.f32 %v9563, %v9579
        %v9748 = vadd.f32 %v9747, %v9595
        %v9749 = vadd.f32 %v9748, %v9611
        %v9750 = vrot.slane %v9749, 4
        %v9751 = vadd.f32 %v9749, %v9750
        %v9752 = vrot.slane %v9751, 2
        %v9753 = vadd.f32 %v9751, %v9752
        %v9754 = vrot.slane %v9753, 1
        %v9755 = vadd.f32 %v9753, %v9754
        %v9756 = vmul.f32 %v9620, %v7986
        %v9757 = vmul.f32 %v9629, %v7986
        %v9758 = vmul.f32 %v9638, %v7986
        %v9759 = vmul.f32 %v9647, %v7986
        %v9760 = vmul.f32 %v9656, %v7986
        %v9761 = vmul.f32 %v9665, %v7986
        %v9762 = vmul.f32 %v9674, %v7986
        %v9763 = vmul.f32 %v9683, %v7986
        %v9764 = vmul.f32 %v9692, %v7986
        %v9765 = vmul.f32 %v9701, %v7986
        %v9766 = vmul.f32 %v9710, %v7986
        %v9767 = vmul.f32 %v9719, %v7986
        %v9768 = vmul.f32 %v9728, %v7986
        %v9769 = vmul.f32 %v9737, %v7986
        %v9770 = vmul.f32 %v9746, %v7986
        %v9771 = vmul.f32 %v9755, %v7986
        %v9772 = vmul.f32 %v9532, %v9532
        %v9773 = vmul.f32 %v9533, %v9533
        %v9774 = vmul.f32 %v9534, %v9534
        %v9775 = vmul.f32 %v9535, %v9535
        %v9776 = vmul.f32 %v9536, %v9536
        %v9777 = vmul.f32 %v9537, %v9537
        %v9778 = vmul.f32 %v9538, %v9538
        %v9779 = vmul.f32 %v9539, %v9539
        %v9780 = vmul.f32 %v9540, %v9540
        %v9781 = vmul.f32 %v9541, %v9541
        %v9782 = vmul.f32 %v9542, %v9542
        %v9783 = vmul.f32 %v9543, %v9543
        %v9784 = vmul.f32 %v9544, %v9544
        %v9785 = vmul.f32 %v9545, %v9545
        %v9786 = vmul.f32 %v9546, %v9546
        %v9787 = vmul.f32 %v9547, %v9547
        %v9788 = vsub.f32 %v9756, %v9772
        %v9789 = vsub.f32 %v9757, %v9773
        %v9790 = vsub.f32 %v9758, %v9774
        %v9791 = vsub.f32 %v9759, %v9775
        %v9792 = vsub.f32 %v9760, %v9776
        %v9793 = vsub.f32 %v9761, %v9777
        %v9794 = vsub.f32 %v9762, %v9778
        %v9795 = vsub.f32 %v9763, %v9779
        %v9796 = vsub.f32 %v9764, %v9780
        %v9797 = vsub.f32 %v9765, %v9781
        %v9798 = vsub.f32 %v9766, %v9782
        %v9799 = vsub.f32 %v9767, %v9783
        %v9800 = vsub.f32 %v9768, %v9784
        %v9801 = vsub.f32 %v9769, %v9785
        %v9802 = vsub.f32 %v9770, %v9786
        %v9803 = vsub.f32 %v9771, %v9787
        %v9804 = vsub.f32 %v9324, %v9532
        %v9805 = vsub.f32 %v9325, %v9533
        %v9806 = vsub.f32 %v9326, %v9534
        %v9807 = vsub.f32 %v9327, %v9535
        %v9808 = vsub.f32 %v9328, %v9536
        %v9809 = vsub.f32 %v9329, %v9537
        %v9810 = vsub.f32 %v9330, %v9538
        %v9811 = vsub.f32 %v9331, %v9539
        %v9812 = vsub.f32 %v9332, %v9540
        %v9813 = vsub.f32 %v9333, %v9541
        %v9814 = vsub.f32 %v9334, %v9542
        %v9815 = vsub.f32 %v9335, %v9543
        %v9816 = vsub.f32 %v9336, %v9544
        %v9817 = vsub.f32 %v9337, %v9545
        %v9818 = vsub.f32 %v9338, %v9546
        %v9819 = vsub.f32 %v9339, %v9547
        %v9820 = vsub.f32 %v9340, %v9532
        %v9821 = vsub.f32 %v9341, %v9533
        %v9822 = vsub.f32 %v9342, %v9534
        %v9823 = vsub.f32 %v9343, %v9535
        %v9824 = vsub.f32 %v9344, %v9536
        %v9825 = vsub.f32 %v9345, %v9537
        %v9826 = vsub.f32 %v9346, %v9538
        %v9827 = vsub.f32 %v9347, %v9539
        %v9828 = vsub.f32 %v9348, %v9540
        %v9829 = vsub.f32 %v9349, %v9541
        %v9830 = vsub.f32 %v9350, %v9542
        %v9831 = vsub.f32 %v9351, %v9543
        %v9832 = vsub.f32 %v9352, %v9544
        %v9833 = vsub.f32 %v9353, %v9545
        %v9834 = vsub.f32 %v9354, %v9546
        %v9835 = vsub.f32 %v9355, %v9547
        %v9836 = vsub.f32 %v9356, %v9532
        %v9837 = vsub.f32 %v9357, %v9533
        %v9838 = vsub.f32 %v9358, %v9534
        %v9839 = vsub.f32 %v9359, %v9535
        %v9840 = vsub.f32 %v9360, %v9536
        %v9841 = vsub.f32 %v9361, %v9537
        %v9842 = vsub.f32 %v9362, %v9538
        %v9843 = vsub.f32 %v9363, %v9539
        %v9844 = vsub.f32 %v9364, %v9540
        %v9845 = vsub.f32 %v9365, %v9541
        %v9846 = vsub.f32 %v9366, %v9542
        %v9847 = vsub.f32 %v9367, %v9543
        %v9848 = vsub.f32 %v9368, %v9544
        %v9849 = vsub.f32 %v9369, %v9545
        %v9850 = vsub.f32 %v9370, %v9546
        %v9851 = vsub.f32 %v9371, %v9547
        %v9852 = vsub.f32 %v9372, %v9532
        %v9853 = vsub.f32 %v9373, %v9533
        %v9854 = vsub.f32 %v9374, %v9534
        %v9855 = vsub.f32 %v9375, %v9535
        %v9856 = vsub.f32 %v9376, %v9536
        %v9857 = vsub.f32 %v9377, %v9537
        %v9858 = vsub.f32 %v9378, %v9538
        %v9859 = vsub.f32 %v9379, %v9539
        %v9860 = vsub.f32 %v9380, %v9540
        %v9861 = vsub.f32 %v9381, %v9541
        %v9862 = vsub.f32 %v9382, %v9542
        %v9863 = vsub.f32 %v9383, %v9543
        %v9864 = vsub.f32 %v9384, %v9544
        %v9865 = vsub.f32 %v9385, %v9545
        %v9866 = vsub.f32 %v9386, %v9546
        %v9867 = vsub.f32 %v9387, %v9547
        %v9868 = vadd.f32 %v9788, 1e-05
        %v9869 = vadd.f32 %v9789, 1e-05
        %v9870 = vadd.f32 %v9790, 1e-05
        %v9871 = vadd.f32 %v9791, 1e-05
        %v9872 = vadd.f32 %v9792, 1e-05
        %v9873 = vadd.f32 %v9793, 1e-05
        %v9874 = vadd.f32 %v9794, 1e-05
        %v9875 = vadd.f32 %v9795, 1e-05
        %v9876 = vadd.f32 %v9796, 1e-05
        %v9877 = vadd.f32 %v9797, 1e-05
        %v9878 = vadd.f32 %v9798, 1e-05
        %v9879 = vadd.f32 %v9799, 1e-05
        %v9880 = vadd.f32 %v9800, 1e-05
        %v9881 = vadd.f32 %v9801, 1e-05
        %v9882 = vadd.f32 %v9802, 1e-05
        %v9883 = vadd.f32 %v9803, 1e-05
        %v9884 = vrsqrt.pop %v9868
        %v9885 = vrsqrt.pop %v9869
        %v9886 = vrsqrt.pop %v9870
        %v9887 = vrsqrt.pop %v9871
        %v9888 = vrsqrt.pop %v9872
        %v9889 = vrsqrt.pop %v9873
        %v9890 = vrsqrt.pop %v9874
        %v9891 = vrsqrt.pop %v9875
        %v9892 = vrsqrt.pop %v9876
        %v9893 = vrsqrt.pop %v9877
        %v9894 = vrsqrt.pop %v9878
        %v9895 = vrsqrt.pop %v9879
        %v9896 = vrsqrt.pop %v9880
        %v9897 = vrsqrt.pop %v9881
        %v9898 = vrsqrt.pop %v9882
        %v9899 = vrsqrt.pop %v9883
        %v9900 = vmul.f32 %v9804, %v9884
        %v9901 = vmul.f32 %v9805, %v9885
        %v9902 = vmul.f32 %v9806, %v9886
        %v9903 = vmul.f32 %v9807, %v9887
        %v9904 = vmul.f32 %v9808, %v9888
        %v9905 = vmul.f32 %v9809, %v9889
        %v9906 = vmul.f32 %v9810, %v9890
        %v9907 = vmul.f32 %v9811, %v9891
        %v9908 = vmul.f32 %v9812, %v9892
        %v9909 = vmul.f32 %v9813, %v9893
        %v9910 = vmul.f32 %v9814, %v9894
        %v9911 = vmul.f32 %v9815, %v9895
        %v9912 = vmul.f32 %v9816, %v9896
        %v9913 = vmul.f32 %v9817, %v9897
        %v9914 = vmul.f32 %v9818, %v9898
        %v9915 = vmul.f32 %v9819, %v9899
        %v9916 = vmul.f32 %v9820, %v9884
        %v9917 = vmul.f32 %v9821, %v9885
        %v9918 = vmul.f32 %v9822, %v9886
        %v9919 = vmul.f32 %v9823, %v9887
        %v9920 = vmul.f32 %v9824, %v9888
        %v9921 = vmul.f32 %v9825, %v9889
        %v9922 = vmul.f32 %v9826, %v9890
        %v9923 = vmul.f32 %v9827, %v9891
        %v9924 = vmul.f32 %v9828, %v9892
        %v9925 = vmul.f32 %v9829, %v9893
        %v9926 = vmul.f32 %v9830, %v9894
        %v9927 = vmul.f32 %v9831, %v9895
        %v9928 = vmul.f32 %v9832, %v9896
        %v9929 = vmul.f32 %v9833, %v9897
        %v9930 = vmul.f32 %v9834, %v9898
        %v9931 = vmul.f32 %v9835, %v9899
        %v9932 = vmul.f32 %v9836, %v9884
        %v9933 = vmul.f32 %v9837, %v9885
        %v9934 = vmul.f32 %v9838, %v9886
        %v9935 = vmul.f32 %v9839, %v9887
        %v9936 = vmul.f32 %v9840, %v9888
        %v9937 = vmul.f32 %v9841, %v9889
        %v9938 = vmul.f32 %v9842, %v9890
        %v9939 = vmul.f32 %v9843, %v9891
        %v9940 = vmul.f32 %v9844, %v9892
        %v9941 = vmul.f32 %v9845, %v9893
        %v9942 = vmul.f32 %v9846, %v9894
        %v9943 = vmul.f32 %v9847, %v9895
        %v9944 = vmul.f32 %v9848, %v9896
        %v9945 = vmul.f32 %v9849, %v9897
        %v9946 = vmul.f32 %v9850, %v9898
        %v9947 = vmul.f32 %v9851, %v9899
        %v9948 = vmul.f32 %v9852, %v9884
        %v9949 = vmul.f32 %v9853, %v9885
        %v9950 = vmul.f32 %v9854, %v9886
        %v9951 = vmul.f32 %v9855, %v9887
        %v9952 = vmul.f32 %v9856, %v9888
        %v9953 = vmul.f32 %v9857, %v9889
        %v9954 = vmul.f32 %v9858, %v9890
        %v9955 = vmul.f32 %v9859, %v9891
        %v9956 = vmul.f32 %v9860, %v9892
        %v9957 = vmul.f32 %v9861, %v9893
        %v9958 = vmul.f32 %v9862, %v9894
        %v9959 = vmul.f32 %v9863, %v9895
        %v9960 = vmul.f32 %v9864, %v9896
        %v9961 = vmul.f32 %v9865, %v9897
        %v9962 = vmul.f32 %v9866, %v9898
        %v9963 = vmul.f32 %v9867, %v9899
        %9964 = vset.pattern.permute.xlu0 4
        %9965 = vperm.xlu0 %9964, %v284
        %v9966 = vpop.permute.xlu0 %9965
        %9968 = vset.pattern.permute.xlu0 4
        %9969 = vperm.xlu0 %9968, %v285
        %v9970 = vpop.permute.xlu0 %9969
        %9972 = vset.pattern.permute.xlu0 4
        %9973 = vperm.xlu0 %9972, %v286
        %v9974 = vpop.permute.xlu0 %9973
        %9976 = vset.pattern.permute.xlu0 4
        %9977 = vperm.xlu0 %9976, %v287
        %v9978 = vpop.permute.xlu0 %9977
        %v9980 = vmul.f32 %v9900, %v9966
        %v9981 = vmul.f32 %v9901, %v9966
        %v9982 = vmul.f32 %v9902, %v9966
        %v9983 = vmul.f32 %v9903, %v9966
        %v9984 = vmul.f32 %v9904, %v9966
        %v9985 = vmul.f32 %v9905, %v9966
        %v9986 = vmul.f32 %v9906, %v9966
        %v9987 = vmul.f32 %v9907, %v9966
        %v9988 = vmul.f32 %v9908, %v9966
        %v9989 = vmul.f32 %v9909, %v9966
        %v9990 = vmul.f32 %v9910, %v9966
        %v9991 = vmul.f32 %v9911, %v9966
        %v9992 = vmul.f32 %v9912, %v9966
        %v9993 = vmul.f32 %v9913, %v9966
        %v9994 = vmul.f32 %v9914, %v9966
        %v9995 = vmul.f32 %v9915, %v9966
        %v9996 = vmul.f32 %v9916, %v9970
        %v9997 = vmul.f32 %v9917, %v9970
        %v9998 = vmul.f32 %v9918, %v9970
        %v9999 = vmul.f32 %v9919, %v9970
        %v10000 = vmul.f32 %v9920, %v9970
        %v10001 = vmul.f32 %v9921, %v9970
        %v10002 = vmul.f32 %v9922, %v9970
        %v10003 = vmul.f32 %v9923, %v9970
        %v10004 = vmul.f32 %v9924, %v9970
        %v10005 = vmul.f32 %v9925, %v9970
        %v10006 = vmul.f32 %v9926, %v9970
        %v10007 = vmul.f32 %v9927, %v9970
        %v10008 = vmul.f32 %v9928, %v9970
        %v10009 = vmul.f32 %v9929, %v9970
        %v10010 = vmul.f32 %v9930, %v9970
        %v10011 = vmul.f32 %v9931, %v9970
        %v10012 = vmul.f32 %v9932, %v9974
        %v10013 = vmul.f32 %v9933, %v9974
        %v10014 = vmul.f32 %v9934, %v9974
        %v10015 = vmul.f32 %v9935, %v9974
        %v10016 = vmul.f32 %v9936, %v9974
        %v10017 = vmul.f32 %v9937, %v9974
        %v10018 = vmul.f32 %v9938, %v9974
        %v10019 = vmul.f32 %v9939, %v9974
        %v10020 = vmul.f32 %v9940, %v9974
        %v10021 = vmul.f32 %v9941, %v9974
        %v10022 = vmul.f32 %v9942, %v9974
        %v10023 = vmul.f32 %v9943, %v9974
        %v10024 = vmul.f32 %v9944, %v9974
        %v10025 = vmul.f32 %v9945, %v9974
        %v10026 = vmul.f32 %v9946, %v9974
        %v10027 = vmul.f32 %v9947, %v9974
        %v10028 = vmul.f32 %v9948, %v9978
        %v10029 = vmul.f32 %v9949, %v9978
        %v10030 = vmul.f32 %v9950, %v9978
        %v10031 = vmul.f32 %v9951, %v9978
        %v10032 = vmul.f32 %v9952, %v9978
        %v10033 = vmul.f32 %v9953, %v9978
        %v10034 = vmul.f32 %v9954, %v9978
        %v10035 = vmul.f32 %v9955, %v9978
        %v10036 = vmul.f32 %v9956, %v9978
        %v10037 = vmul.f32 %v9957, %v9978
        %v10038 = vmul.f32 %v9958, %v9978
        %v10039 = vmul.f32 %v9959, %v9978
        %v10040 = vmul.f32 %v9960, %v9978
        %v10041 = vmul.f32 %v9961, %v9978
        %v10042 = vmul.f32 %v9962, %v9978
        %v10043 = vmul.f32 %v9963, %v9978
        %10044 = vset.pattern.permute.xlu0 6
        %10045 = vperm.xlu0 %10044, %v284
        %v10046 = vpop.permute.xlu0 %10045
        %10048 = vset.pattern.permute.xlu0 6
        %10049 = vperm.xlu0 %10048, %v285
        %v10050 = vpop.permute.xlu0 %10049
        %10052 = vset.pattern.permute.xlu0 6
        %10053 = vperm.xlu0 %10052, %v286
        %v10054 = vpop.permute.xlu0 %10053
        %10056 = vset.pattern.permute.xlu0 6
        %10057 = vperm.xlu0 %10056, %v287
        %v10058 = vpop.permute.xlu0 %10057
        %v10060 = vadd.f32 %v9980, %v10046
        %v10061 = vadd.f32 %v9981, %v10046
        %v10062 = vadd.f32 %v9982, %v10046
        %v10063 = vadd.f32 %v9983, %v10046
        %v10064 = vadd.f32 %v9984, %v10046
        %v10065 = vadd.f32 %v9985, %v10046
        %v10066 = vadd.f32 %v9986, %v10046
        %v10067 = vadd.f32 %v9987, %v10046
        %v10068 = vadd.f32 %v9988, %v10046
        %v10069 = vadd.f32 %v9989, %v10046
        %v10070 = vadd.f32 %v9990, %v10046
        %v10071 = vadd.f32 %v9991, %v10046
        %v10072 = vadd.f32 %v9992, %v10046
        %v10073 = vadd.f32 %v9993, %v10046
        %v10074 = vadd.f32 %v9994, %v10046
        %v10075 = vadd.f32 %v9995, %v10046
        %v10076 = vadd.f32 %v9996, %v10050
        %v10077 = vadd.f32 %v9997, %v10050
        %v10078 = vadd.f32 %v9998, %v10050
        %v10079 = vadd.f32 %v9999, %v10050
        %v10080 = vadd.f32 %v10000, %v10050
        %v10081 = vadd.f32 %v10001, %v10050
        %v10082 = vadd.f32 %v10002, %v10050
        %v10083 = vadd.f32 %v10003, %v10050
        %v10084 = vadd.f32 %v10004, %v10050
        %v10085 = vadd.f32 %v10005, %v10050
        %v10086 = vadd.f32 %v10006, %v10050
        %v10087 = vadd.f32 %v10007, %v10050
        %v10088 = vadd.f32 %v10008, %v10050
        %v10089 = vadd.f32 %v10009, %v10050
        %v10090 = vadd.f32 %v10010, %v10050
        %v10091 = vadd.f32 %v10011, %v10050
        %v10092 = vadd.f32 %v10012, %v10054
        %v10093 = vadd.f32 %v10013, %v10054
        %v10094 = vadd.f32 %v10014, %v10054
        %v10095 = vadd.f32 %v10015, %v10054
        %v10096 = vadd.f32 %v10016, %v10054
        %v10097 = vadd.f32 %v10017, %v10054
        %v10098 = vadd.f32 %v10018, %v10054
        %v10099 = vadd.f32 %v10019, %v10054
        %v10100 = vadd.f32 %v10020, %v10054
        %v10101 = vadd.f32 %v10021, %v10054
        %v10102 = vadd.f32 %v10022, %v10054
        %v10103 = vadd.f32 %v10023, %v10054
        %v10104 = vadd.f32 %v10024, %v10054
        %v10105 = vadd.f32 %v10025, %v10054
        %v10106 = vadd.f32 %v10026, %v10054
        %v10107 = vadd.f32 %v10027, %v10054
        %v10108 = vadd.f32 %v10028, %v10058
        %v10109 = vadd.f32 %v10029, %v10058
        %v10110 = vadd.f32 %v10030, %v10058
        %v10111 = vadd.f32 %v10031, %v10058
        %v10112 = vadd.f32 %v10032, %v10058
        %v10113 = vadd.f32 %v10033, %v10058
        %v10114 = vadd.f32 %v10034, %v10058
        %v10115 = vadd.f32 %v10035, %v10058
        %v10116 = vadd.f32 %v10036, %v10058
        %v10117 = vadd.f32 %v10037, %v10058
        %v10118 = vadd.f32 %v10038, %v10058
        %v10119 = vadd.f32 %v10039, %v10058
        %v10120 = vadd.f32 %v10040, %v10058
        %v10121 = vadd.f32 %v10041, %v10058
        %v10122 = vadd.f32 %v10042, %v10058
        %v10123 = vadd.f32 %v10043, %v10058
        %v10124 = vld [vmem:[%s5] sm:$0x7]
        %10125 = vset.pattern.permute.xlu0 7
        %10126 = vperm.xlu0 %10125, %v284
        %v10127 = vpop.permute.xlu0 %10126
        %v10130 = vsel %vm7053, %v10124, 0
        %10132 = vmatprep.subr.mxu0 %v10061
        %10133 = vmatpush1.msra.mxu0 %v10060
        %10134 = vmatprep.subr.mxu0 %v10077
        %10135 = vmatpush1.msra.mxu0 %v10076
        %10136 = vmatprep.subr.mxu0 %v10093
        %10137 = vmatpush1.msra.mxu0 %v10092
        %10138 = vmatprep.subr.mxu0 %v10109
        %10139 = vmatpush1.msra.mxu0 %v10108
        %10140 = vmatprep.subr.mxu0 0.0
        %10141 = vmatpush1.msra.mxu0 0.0
        %10142 = vmatprep.subr.mxu0 0.0
        %10143 = vmatpush1.msra.mxu0 0.0
        %10144 = vmatprep.subr.mxu0 0.0
        %10145 = vmatpush1.msra.mxu0 0.0
        %10146 = vmatprep.subr.mxu0 0.0
        %10147 = vmatpush1.msra.mxu0 0.0
        %10148 = vmatprep.subr.mxu0 0.0
        %10149 = vmatpush1.msra.mxu0 0.0
        %10150 = vmatprep.subr.mxu0 0.0
        %10151 = vmatpush1.msra.mxu0 0.0
        %10152 = vmatprep.subr.mxu0 0.0
        %10153 = vmatpush1.msra.mxu0 0.0
        %10154 = vmatprep.subr.mxu0 0.0
        %10155 = vmatpush1.msra.mxu0 0.0
        %10156 = vmatprep.subr.mxu0 0.0
        %10157 = vmatpush1.msra.mxu0 0.0
        %10158 = vmatprep.subr.mxu0 0.0
        %10159 = vmatpush1.msra.mxu0 0.0
        %10160 = vmatprep.subr.mxu0 0.0
        %10161 = vmatpush1.msra.mxu0 0.0
        %10162 = vmatprep.subr.mxu0 0.0
        %10163 = vmatpush1.msra.mxu0 0.0
        %10164 = vmatprep.subr.mxu0 0.0
        %10165 = vmatpush1.msra.mxu0 0.0
        %10166 = vmatprep.subr.mxu0 0.0
        %10167 = vmatpush1.msra.mxu0 0.0
        %10168 = vmatprep.subr.mxu0 0.0
        %10169 = vmatpush1.msra.mxu0 0.0
        %10170 = vmatprep.subr.mxu0 0.0
        %10171 = vmatpush1.msra.mxu0 0.0
        %10172 = vmatprep.subr.mxu0 0.0
        %10173 = vmatpush1.msra.mxu0 0.0
        %10174 = vmatprep.subr.mxu0 0.0
        %10175 = vmatpush1.msra.mxu0 0.0
        %10176 = vmatprep.subr.mxu0 0.0
        %10177 = vmatpush1.msra.mxu0 0.0
        %10178 = vmatprep.subr.mxu0 0.0
        %10179 = vmatpush1.msra.mxu0 0.0
        %10180 = vmatprep.subr.mxu0 0.0
        %10181 = vmatpush1.msra.mxu0 0.0
        %10182 = vmatprep.subr.mxu0 0.0
        %10183 = vmatpush1.msra.mxu0 0.0
        %10184 = vmatprep.subr.mxu0 0.0
        %10185 = vmatpush1.msra.mxu0 0.0
        %10186 = vmatprep.subr.mxu0 0.0
        %10187 = vmatpush1.msra.mxu0 0.0
        %10188 = vmatprep.subr.mxu0 0.0
        %10189 = vmatpush1.msra.mxu0 0.0
        %10190 = vmatprep.subr.mxu0 0.0
        %10191 = vmatpush1.msra.mxu0 0.0
        %10192 = vmatprep.subr.mxu0 0.0
        %10193 = vmatpush1.msra.mxu0 0.0
        %10194 = vmatprep.subr.mxu0 0.0
        %10195 = vmatpush1.msra.mxu0 0.0
        %10196 = vmatprep.mubr.f32.mxu0 0.0
        %10197 = vmatmul.mubr.f32.gmra.mrb[0].mxu0 %v10130
        %v10198 = vpop.f32.mrb[0].mxu0
        %v10199 = vadd.f32 %v10127, %v10198
        %v10200 = vpop.f32.mrb[0].mxu0
        %v10201 = vadd.f32 %v10127, %v10200
        %10202 = vdwg.mxu0
        %10203 = vmatprep.subr.mxu0 %v10063
        %10204 = vmatpush1.msra.mxu0 %v10062
        %10205 = vmatprep.subr.mxu0 %v10079
        %10206 = vmatpush1.msra.mxu0 %v10078
        %10207 = vmatprep.subr.mxu0 %v10095
        %10208 = vmatpush1.msra.mxu0 %v10094
        %10209 = vmatprep.subr.mxu0 %v10111
        %10210 = vmatpush1.msra.mxu0 %v10110
        %10211 = vmatprep.subr.mxu0 0.0
        %10212 = vmatpush1.msra.mxu0 0.0
        %10213 = vmatprep.subr.mxu0 0.0
        %10214 = vmatpush1.msra.mxu0 0.0
        %10215 = vmatprep.subr.mxu0 0.0
        %10216 = vmatpush1.msra.mxu0 0.0
        %10217 = vmatprep.subr.mxu0 0.0
        %10218 = vmatpush1.msra.mxu0 0.0
        %10219 = vmatprep.subr.mxu0 0.0
        %10220 = vmatpush1.msra.mxu0 0.0
        %10221 = vmatprep.subr.mxu0 0.0
        %10222 = vmatpush1.msra.mxu0 0.0
        %10223 = vmatprep.subr.mxu0 0.0
        %10224 = vmatpush1.msra.mxu0 0.0
        %10225 = vmatprep.subr.mxu0 0.0
        %10226 = vmatpush1.msra.mxu0 0.0
        %10227 = vmatprep.subr.mxu0 0.0
        %10228 = vmatpush1.msra.mxu0 0.0
        %10229 = vmatprep.subr.mxu0 0.0
        %10230 = vmatpush1.msra.mxu0 0.0
        %10231 = vmatprep.subr.mxu0 0.0
        %10232 = vmatpush1.msra.mxu0 0.0
        %10233 = vmatprep.subr.mxu0 0.0
        %10234 = vmatpush1.msra.mxu0 0.0
        %10235 = vmatprep.subr.mxu0 0.0
        %10236 = vmatpush1.msra.mxu0 0.0
        %10237 = vmatprep.subr.mxu0 0.0
        %10238 = vmatpush1.msra.mxu0 0.0
        %10239 = vmatprep.subr.mxu0 0.0
        %10240 = vmatpush1.msra.mxu0 0.0
        %10241 = vmatprep.subr.mxu0 0.0
        %10242 = vmatpush1.msra.mxu0 0.0
        %10243 = vmatprep.subr.mxu0 0.0
        %10244 = vmatpush1.msra.mxu0 0.0
        %10245 = vmatprep.subr.mxu0 0.0
        %10246 = vmatpush1.msra.mxu0 0.0
        %10247 = vmatprep.subr.mxu0 0.0
        %10248 = vmatpush1.msra.mxu0 0.0
        %10249 = vmatprep.subr.mxu0 0.0
        %10250 = vmatpush1.msra.mxu0 0.0
        %10251 = vmatprep.subr.mxu0 0.0
        %10252 = vmatpush1.msra.mxu0 0.0
        %10253 = vmatprep.subr.mxu0 0.0
        %10254 = vmatpush1.msra.mxu0 0.0
        %10255 = vmatprep.subr.mxu0 0.0
        %10256 = vmatpush1.msra.mxu0 0.0
        %10257 = vmatprep.subr.mxu0 0.0
        %10258 = vmatpush1.msra.mxu0 0.0
        %10259 = vmatprep.subr.mxu0 0.0
        %10260 = vmatpush1.msra.mxu0 0.0
        %10261 = vmatprep.subr.mxu0 0.0
        %10262 = vmatpush1.msra.mxu0 0.0
        %10263 = vmatprep.subr.mxu0 0.0
        %10264 = vmatpush1.msra.mxu0 0.0
        %10265 = vmatprep.subr.mxu0 0.0
        %10266 = vmatpush1.msra.mxu0 0.0
        %10267 = vmatprep.mubr.f32.mxu0 0.0
        %10268 = vmatmul.mubr.f32.gmra.mrb[0].mxu0 %v10130
        %v10269 = vpop.f32.mrb[0].mxu0
        %v10270 = vadd.f32 %v10127, %v10269
        %v10271 = vpop.f32.mrb[0].mxu0
        %v10272 = vadd.f32 %v10127, %v10271
        %10273 = vdwg.mxu0
        %10274 = vmatprep.subr.mxu0 %v10065
        %10275 = vmatpush1.msra.mxu0 %v10064
        %10276 = vmatprep.subr.mxu0 %v10081
        %10277 = vmatpush1.msra.mxu0 %v10080
        %10278 = vmatprep.subr.mxu0 %v10097
        %10279 = vmatpush1.msra.mxu0 %v10096
        %10280 = vmatprep.subr.mxu0 %v10113
        %10281 = vmatpush1.msra.mxu0 %v10112
        %10282 = vmatprep.subr.mxu0 0.0
        %10283 = vmatpush1.msra.mxu0 0.0
        %10284 = vmatprep.subr.mxu0 0.0
        %10285 = vmatpush1.msra.mxu0 0.0
        %10286 = vmatprep.subr.mxu0 0.0
        %10287 = vmatpush1.msra.mxu0 0.0
        %10288 = vmatprep.subr.mxu0 0.0
        %10289 = vmatpush1.msra.mxu0 0.0
        %10290 = vmatprep.subr.mxu0 0.0
        %10291 = vmatpush1.msra.mxu0 0.0
        %10292 = vmatprep.subr.mxu0 0.0
        %10293 = vmatpush1.msra.mxu0 0.0
        %10294 = vmatprep.subr.mxu0 0.0
        %10295 = vmatpush1.msra.mxu0 0.0
        %10296 = vmatprep.subr.mxu0 0.0
        %10297 = vmatpush1.msra.mxu0 0.0
        %10298 = vmatprep.subr.mxu0 0.0
        %10299 = vmatpush1.msra.mxu0 0.0
        %10300 = vmatprep.subr.mxu0 0.0
        %10301 = vmatpush1.msra.mxu0 0.0
        %10302 = vmatprep.subr.mxu0 0.0
        %10303 = vmatpush1.msra.mxu0 0.0
        %10304 = vmatprep.subr.mxu0 0.0
        %10305 = vmatpush1.msra.mxu0 0.0
        %10306 = vmatprep.subr.mxu0 0.0
        %10307 = vmatpush1.msra.mxu0 0.0
        %10308 = vmatprep.subr.mxu0 0.0
        %10309 = vmatpush1.msra.mxu0 0.0
        %10310 = vmatprep.subr.mxu0 0.0
        %10311 = vmatpush1.msra.mxu0 0.0
        %10312 = vmatprep.subr.mxu0 0.0
        %10313 = vmatpush1.msra.mxu0 0.0
        %10314 = vmatprep.subr.mxu0 0.0
        %10315 = vmatpush1.msra.mxu0 0.0
        %10316 = vmatprep.subr.mxu0 0.0
        %10317 = vmatpush1.msra.mxu0 0.0
        %10318 = vmatprep.subr.mxu0 0.0
        %10319 = vmatpush1.msra.mxu0 0.0
        %10320 = vmatprep.subr.mxu0 0.0
        %10321 = vmatpush1.msra.mxu0 0.0
        %10322 = vmatprep.subr.mxu0 0.0
        %10323 = vmatpush1.msra.mxu0 0.0
        %10324 = vmatprep.subr.mxu0 0.0
        %10325 = vmatpush1.msra.mxu0 0.0
        %10326 = vmatprep.subr.mxu0 0.0
        %10327 = vmatpush1.msra.mxu0 0.0
        %10328 = vmatprep.subr.mxu0 0.0
        %10329 = vmatpush1.msra.mxu0 0.0
        %10330 = vmatprep.subr.mxu0 0.0
        %10331 = vmatpush1.msra.mxu0 0.0
        %10332 = vmatprep.subr.mxu0 0.0
        %10333 = vmatpush1.msra.mxu0 0.0
        %10334 = vmatprep.subr.mxu0 0.0
        %10335 = vmatpush1.msra.mxu0 0.0
        %10336 = vmatprep.subr.mxu0 0.0
        %10337 = vmatpush1.msra.mxu0 0.0
        %10338 = vmatprep.mubr.f32.mxu0 0.0
        %10339 = vmatmul.mubr.f32.gmra.mrb[0].mxu0 %v10130
        %v10340 = vpop.f32.mrb[0].mxu0
        %v10341 = vadd.f32 %v10127, %v10340
        %v10342 = vpop.f32.mrb[0].mxu0
        %v10343 = vadd.f32 %v10127, %v10342
        %10344 = vdwg.mxu0
        %10345 = vmatprep.subr.mxu0 %v10067
        %10346 = vmatpush1.msra.mxu0 %v10066
        %10347 = vmatprep.subr.mxu0 %v10083
        %10348 = vmatpush1.msra.mxu0 %v10082
        %10349 = vmatprep.subr.mxu0 %v10099
        %10350 = vmatpush1.msra.mxu0 %v10098
        %10351 = vmatprep.subr.mxu0 %v10115
        %10352 = vmatpush1.msra.mxu0 %v10114
        %10353 = vmatprep.subr.mxu0 0.0
        %10354 = vmatpush1.msra.mxu0 0.0
        %10355 = vmatprep.subr.mxu0 0.0
        %10356 = vmatpush1.msra.mxu0 0.0
        %10357 = vmatprep.subr.mxu0 0.0
        %10358 = vmatpush1.msra.mxu0 0.0
        %10359 = vmatprep.subr.mxu0 0.0
        %10360 = vmatpush1.msra.mxu0 0.0
        %10361 = vmatprep.subr.mxu0 0.0
        %10362 = vmatpush1.msra.mxu0 0.0
        %10363 = vmatprep.subr.mxu0 0.0
        %10364 = vmatpush1.msra.mxu0 0.0
        %10365 = vmatprep.subr.mxu0 0.0
        %10366 = vmatpush1.msra.mxu0 0.0
        %10367 = vmatprep.subr.mxu0 0.0
        %10368 = vmatpush1.msra.mxu0 0.0
        %10369 = vmatprep.subr.mxu0 0.0
        %10370 = vmatpush1.msra.mxu0 0.0
        %10371 = vmatprep.subr.mxu0 0.0
        %10372 = vmatpush1.msra.mxu0 0.0
        %10373 = vmatprep.subr.mxu0 0.0
        %10374 = vmatpush1.msra.mxu0 0.0
        %10375 = vmatprep.subr.mxu0 0.0
        %10376 = vmatpush1.msra.mxu0 0.0
        %10377 = vmatprep.subr.mxu0 0.0
        %10378 = vmatpush1.msra.mxu0 0.0
        %10379 = vmatprep.subr.mxu0 0.0
        %10380 = vmatpush1.msra.mxu0 0.0
        %10381 = vmatprep.subr.mxu0 0.0
        %10382 = vmatpush1.msra.mxu0 0.0
        %10383 = vmatprep.subr.mxu0 0.0
        %10384 = vmatpush1.msra.mxu0 0.0
        %10385 = vmatprep.subr.mxu0 0.0
        %10386 = vmatpush1.msra.mxu0 0.0
        %10387 = vmatprep.subr.mxu0 0.0
        %10388 = vmatpush1.msra.mxu0 0.0
        %10389 = vmatprep.subr.mxu0 0.0
        %10390 = vmatpush1.msra.mxu0 0.0
        %10391 = vmatprep.subr.mxu0 0.0
        %10392 = vmatpush1.msra.mxu0 0.0
        %10393 = vmatprep.subr.mxu0 0.0
        %10394 = vmatpush1.msra.mxu0 0.0
        %10395 = vmatprep.subr.mxu0 0.0
        %10396 = vmatpush1.msra.mxu0 0.0
        %10397 = vmatprep.subr.mxu0 0.0
        %10398 = vmatpush1.msra.mxu0 0.0
        %10399 = vmatprep.subr.mxu0 0.0
        %10400 = vmatpush1.msra.mxu0 0.0
        %10401 = vmatprep.subr.mxu0 0.0
        %10402 = vmatpush1.msra.mxu0 0.0
        %10403 = vmatprep.subr.mxu0 0.0
        %10404 = vmatpush1.msra.mxu0 0.0
        %10405 = vmatprep.subr.mxu0 0.0
        %10406 = vmatpush1.msra.mxu0 0.0
        %10407 = vmatprep.subr.mxu0 0.0
        %10408 = vmatpush1.msra.mxu0 0.0
        %10409 = vmatprep.mubr.f32.mxu0 0.0
        %10410 = vmatmul.mubr.f32.gmra.mrb[0].mxu0 %v10130
        %v10411 = vpop.f32.mrb[0].mxu0
        %v10412 = vadd.f32 %v10127, %v10411
        %v10413 = vpop.f32.mrb[0].mxu0
        %v10414 = vadd.f32 %v10127, %v10413
        %10415 = vdwg.mxu0
        %10416 = vmatprep.subr.mxu0 %v10069
        %10417 = vmatpush1.msra.mxu0 %v10068
        %10418 = vmatprep.subr.mxu0 %v10085
        %10419 = vmatpush1.msra.mxu0 %v10084
        %10420 = vmatprep.subr.mxu0 %v10101
        %10421 = vmatpush1.msra.mxu0 %v10100
        %10422 = vmatprep.subr.mxu0 %v10117
        %10423 = vmatpush1.msra.mxu0 %v10116
        %10424 = vmatprep.subr.mxu0 0.0
        %10425 = vmatpush1.msra.mxu0 0.0
        %10426 = vmatprep.subr.mxu0 0.0
        %10427 = vmatpush1.msra.mxu0 0.0
        %10428 = vmatprep.subr.mxu0 0.0
        %10429 = vmatpush1.msra.mxu0 0.0
        %10430 = vmatprep.subr.mxu0 0.0
        %10431 = vmatpush1.msra.mxu0 0.0
        %10432 = vmatprep.subr.mxu0 0.0
        %10433 = vmatpush1.msra.mxu0 0.0
        %10434 = vmatprep.subr.mxu0 0.0
        %10435 = vmatpush1.msra.mxu0 0.0
        %10436 = vmatprep.subr.mxu0 0.0
        %10437 = vmatpush1.msra.mxu0 0.0
        %10438 = vmatprep.subr.mxu0 0.0
        %10439 = vmatpush1.msra.mxu0 0.0
        %10440 = vmatprep.subr.mxu0 0.0
        %10441 = vmatpush1.msra.mxu0 0.0
        %10442 = vmatprep.subr.mxu0 0.0
        %10443 = vmatpush1.msra.mxu0 0.0
        %10444 = vmatprep.subr.mxu0 0.0
        %10445 = vmatpush1.msra.mxu0 0.0
        %10446 = vmatprep.subr.mxu0 0.0
        %10447 = vmatpush1.msra.mxu0 0.0
        %10448 = vmatprep.subr.mxu0 0.0
        %10449 = vmatpush1.msra.mxu0 0.0
        %10450 = vmatprep.subr.mxu0 0.0
        %10451 = vmatpush1.msra.mxu0 0.0
        %10452 = vmatprep.subr.mxu0 0.0
        %10453 = vmatpush1.msra.mxu0 0.0
        %10454 = vmatprep.subr.mxu0 0.0
        %10455 = vmatpush1.msra.mxu0 0.0
        %10456 = vmatprep.subr.mxu0 0.0
        %10457 = vmatpush1.msra.mxu0 0.0
        %10458 = vmatprep.subr.mxu0 0.0
        %10459 = vmatpush1.msra.mxu0 0.0
        %10460 = vmatprep.subr.mxu0 0.0
        %10461 = vmatpush1.msra.mxu0 0.0
        %10462 = vmatprep.subr.mxu0 0.0
        %10463 = vmatpush1.msra.mxu0 0.0
        %10464 = vmatprep.subr.mxu0 0.0
        %10465 = vmatpush1.msra.mxu0 0.0
        %10466 = vmatprep.subr.mxu0 0.0
        %10467 = vmatpush1.msra.mxu0 0.0
        %10468 = vmatprep.subr.mxu0 0.0
        %10469 = vmatpush1.msra.mxu0 0.0
        %10470 = vmatprep.subr.mxu0 0.0
        %10471 = vmatpush1.msra.mxu0 0.0
        %10472 = vmatprep.subr.mxu0 0.0
        %10473 = vmatpush1.msra.mxu0 0.0
        %10474 = vmatprep.subr.mxu0 0.0
        %10475 = vmatpush1.msra.mxu0 0.0
        %10476 = vmatprep.subr.mxu0 0.0
        %10477 = vmatpush1.msra.mxu0 0.0
        %10478 = vmatprep.subr.mxu0 0.0
        %10479 = vmatpush1.msra.mxu0 0.0
        %10480 = vmatprep.mubr.f32.mxu0 0.0
        %10481 = vmatmul.mubr.f32.gmra.mrb[0].mxu0 %v10130
        %v10482 = vpop.f32.mrb[0].mxu0
        %v10483 = vadd.f32 %v10127, %v10482
        %v10484 = vpop.f32.mrb[0].mxu0
        %v10485 = vadd.f32 %v10127, %v10484
        %10486 = vdwg.mxu0
        %10487 = vmatprep.subr.mxu0 %v10071
        %10488 = vmatpush1.msra.mxu0 %v10070
        %10489 = vmatprep.subr.mxu0 %v10087
        %10490 = vmatpush1.msra.mxu0 %v10086
        %10491 = vmatprep.subr.mxu0 %v10103
        %10492 = vmatpush1.msra.mxu0 %v10102
        %10493 = vmatprep.subr.mxu0 %v10119
        %10494 = vmatpush1.msra.mxu0 %v10118
        %10495 = vmatprep.subr.mxu0 0.0
        %10496 = vmatpush1.msra.mxu0 0.0
        %10497 = vmatprep.subr.mxu0 0.0
        %10498 = vmatpush1.msra.mxu0 0.0
        %10499 = vmatprep.subr.mxu0 0.0
        %10500 = vmatpush1.msra.mxu0 0.0
        %10501 = vmatprep.subr.mxu0 0.0
        %10502 = vmatpush1.msra.mxu0 0.0
        %10503 = vmatprep.subr.mxu0 0.0
        %10504 = vmatpush1.msra.mxu0 0.0
        %10505 = vmatprep.subr.mxu0 0.0
        %10506 = vmatpush1.msra.mxu0 0.0
        %10507 = vmatprep.subr.mxu0 0.0
        %10508 = vmatpush1.msra.mxu0 0.0
        %10509 = vmatprep.subr.mxu0 0.0
        %10510 = vmatpush1.msra.mxu0 0.0
        %10511 = vmatprep.subr.mxu0 0.0
        %10512 = vmatpush1.msra.mxu0 0.0
        %10513 = vmatprep.subr.mxu0 0.0
        %10514 = vmatpush1.msra.mxu0 0.0
        %10515 = vmatprep.subr.mxu0 0.0
        %10516 = vmatpush1.msra.mxu0 0.0
        %10517 = vmatprep.subr.mxu0 0.0
        %10518 = vmatpush1.msra.mxu0 0.0
        %10519 = vmatprep.subr.mxu0 0.0
        %10520 = vmatpush1.msra.mxu0 0.0
        %10521 = vmatprep.subr.mxu0 0.0
        %10522 = vmatpush1.msra.mxu0 0.0
        %10523 = vmatprep.subr.mxu0 0.0
        %10524 = vmatpush1.msra.mxu0 0.0
        %10525 = vmatprep.subr.mxu0 0.0
        %10526 = vmatpush1.msra.mxu0 0.0
        %10527 = vmatprep.subr.mxu0 0.0
        %10528 = vmatpush1.msra.mxu0 0.0
        %10529 = vmatprep.subr.mxu0 0.0
        %10530 = vmatpush1.msra.mxu0 0.0
        %10531 = vmatprep.subr.mxu0 0.0
        %10532 = vmatpush1.msra.mxu0 0.0
        %10533 = vmatprep.subr.mxu0 0.0
        %10534 = vmatpush1.msra.mxu0 0.0
        %10535 = vmatprep.subr.mxu0 0.0
        %10536 = vmatpush1.msra.mxu0 0.0
        %10537 = vmatprep.subr.mxu0 0.0
        %10538 = vmatpush1.msra.mxu0 0.0
        %10539 = vmatprep.subr.mxu0 0.0
        %10540 = vmatpush1.msra.mxu0 0.0
        %10541 = vmatprep.subr.mxu0 0.0
        %10542 = vmatpush1.msra.mxu0 0.0
        %10543 = vmatprep.subr.mxu0 0.0
        %10544 = vmatpush1.msra.mxu0 0.0
        %10545 = vmatprep.subr.mxu0 0.0
        %10546 = vmatpush1.msra.mxu0 0.0
        %10547 = vmatprep.subr.mxu0 0.0
        %10548 = vmatpush1.msra.mxu0 0.0
        %10549 = vmatprep.subr.mxu0 0.0
        %10550 = vmatpush1.msra.mxu0 0.0
        %10551 = vmatprep.mubr.f32.mxu0 0.0
        %10552 = vmatmul.mubr.f32.gmra.mrb[0].mxu0 %v10130
        %v10553 = vpop.f32.mrb[0].mxu0
        %v10554 = vadd.f32 %v10127, %v10553
        %v10555 = vpop.f32.mrb[0].mxu0
        %v10556 = vadd.f32 %v10127, %v10555
        %10557 = vdwg.mxu0
        %10558 = vmatprep.subr.mxu0 %v10073
        %10559 = vmatpush1.msra.mxu0 %v10072
        %10560 = vmatprep.subr.mxu0 %v10089
        %10561 = vmatpush1.msra.mxu0 %v10088
        %10562 = vmatprep.subr.mxu0 %v10105
        %10563 = vmatpush1.msra.mxu0 %v10104
        %10564 = vmatprep.subr.mxu0 %v10121
        %10565 = vmatpush1.msra.mxu0 %v10120
        %10566 = vmatprep.subr.mxu0 0.0
        %10567 = vmatpush1.msra.mxu0 0.0
        %10568 = vmatprep.subr.mxu0 0.0
        %10569 = vmatpush1.msra.mxu0 0.0
        %10570 = vmatprep.subr.mxu0 0.0
        %10571 = vmatpush1.msra.mxu0 0.0
        %10572 = vmatprep.subr.mxu0 0.0
        %10573 = vmatpush1.msra.mxu0 0.0
        %10574 = vmatprep.subr.mxu0 0.0
        %10575 = vmatpush1.msra.mxu0 0.0
        %10576 = vmatprep.subr.mxu0 0.0
        %10577 = vmatpush1.msra.mxu0 0.0
        %10578 = vmatprep.subr.mxu0 0.0
        %10579 = vmatpush1.msra.mxu0 0.0
        %10580 = vmatprep.subr.mxu0 0.0
        %10581 = vmatpush1.msra.mxu0 0.0
        %10582 = vmatprep.subr.mxu0 0.0
        %10583 = vmatpush1.msra.mxu0 0.0
        %10584 = vmatprep.subr.mxu0 0.0
        %10585 = vmatpush1.msra.mxu0 0.0
        %10586 = vmatprep.subr.mxu0 0.0
        %10587 = vmatpush1.msra.mxu0 0.0
        %10588 = vmatprep.subr.mxu0 0.0
        %10589 = vmatpush1.msra.mxu0 0.0
        %10590 = vmatprep.subr.mxu0 0.0
        %10591 = vmatpush1.msra.mxu0 0.0
        %10592 = vmatprep.subr.mxu0 0.0
        %10593 = vmatpush1.msra.mxu0 0.0
        %10594 = vmatprep.subr.mxu0 0.0
        %10595 = vmatpush1.msra.mxu0 0.0
        %10596 = vmatprep.subr.mxu0 0.0
        %10597 = vmatpush1.msra.mxu0 0.0
        %10598 = vmatprep.subr.mxu0 0.0
        %10599 = vmatpush1.msra.mxu0 0.0
        %10600 = vmatprep.subr.mxu0 0.0
        %10601 = vmatpush1.msra.mxu0 0.0
        %10602 = vmatprep.subr.mxu0 0.0
        %10603 = vmatpush1.msra.mxu0 0.0
        %10604 = vmatprep.subr.mxu0 0.0
        %10605 = vmatpush1.msra.mxu0 0.0
        %10606 = vmatprep.subr.mxu0 0.0
        %10607 = vmatpush1.msra.mxu0 0.0
        %10608 = vmatprep.subr.mxu0 0.0
        %10609 = vmatpush1.msra.mxu0 0.0
        %10610 = vmatprep.subr.mxu0 0.0
        %10611 = vmatpush1.msra.mxu0 0.0
        %10612 = vmatprep.subr.mxu0 0.0
        %10613 = vmatpush1.msra.mxu0 0.0
        %10614 = vmatprep.subr.mxu0 0.0
        %10615 = vmatpush1.msra.mxu0 0.0
        %10616 = vmatprep.subr.mxu0 0.0
        %10617 = vmatpush1.msra.mxu0 0.0
        %10618 = vmatprep.subr.mxu0 0.0
        %10619 = vmatpush1.msra.mxu0 0.0
        %10620 = vmatprep.subr.mxu0 0.0
        %10621 = vmatpush1.msra.mxu0 0.0
        %10622 = vmatprep.mubr.f32.mxu0 0.0
        %10623 = vmatmul.mubr.f32.gmra.mrb[0].mxu0 %v10130
        %v10624 = vpop.f32.mrb[0].mxu0
        %v10625 = vadd.f32 %v10127, %v10624
        %v10626 = vpop.f32.mrb[0].mxu0
        %v10627 = vadd.f32 %v10127, %v10626
        %10628 = vdwg.mxu0
        %10629 = vmatprep.subr.mxu0 %v10075
        %10630 = vmatpush1.msra.mxu0 %v10074
        %10631 = vmatprep.subr.mxu0 %v10091
        %10632 = vmatpush1.msra.mxu0 %v10090
        %10633 = vmatprep.subr.mxu0 %v10107
        %10634 = vmatpush1.msra.mxu0 %v10106
        %10635 = vmatprep.subr.mxu0 %v10123
        %10636 = vmatpush1.msra.mxu0 %v10122
        %10637 = vmatprep.subr.mxu0 0.0
        %10638 = vmatpush1.msra.mxu0 0.0
        %10639 = vmatprep.subr.mxu0 0.0
        %10640 = vmatpush1.msra.mxu0 0.0
        %10641 = vmatprep.subr.mxu0 0.0
        %10642 = vmatpush1.msra.mxu0 0.0
        %10643 = vmatprep.subr.mxu0 0.0
        %10644 = vmatpush1.msra.mxu0 0.0
        %10645 = vmatprep.subr.mxu0 0.0
        %10646 = vmatpush1.msra.mxu0 0.0
        %10647 = vmatprep.subr.mxu0 0.0
        %10648 = vmatpush1.msra.mxu0 0.0
        %10649 = vmatprep.subr.mxu0 0.0
        %10650 = vmatpush1.msra.mxu0 0.0
        %10651 = vmatprep.subr.mxu0 0.0
        %10652 = vmatpush1.msra.mxu0 0.0
        %10653 = vmatprep.subr.mxu0 0.0
        %10654 = vmatpush1.msra.mxu0 0.0
        %10655 = vmatprep.subr.mxu0 0.0
        %10656 = vmatpush1.msra.mxu0 0.0
        %10657 = vmatprep.subr.mxu0 0.0
        %10658 = vmatpush1.msra.mxu0 0.0
        %10659 = vmatprep.subr.mxu0 0.0
        %10660 = vmatpush1.msra.mxu0 0.0
        %10661 = vmatprep.subr.mxu0 0.0
        %10662 = vmatpush1.msra.mxu0 0.0
        %10663 = vmatprep.subr.mxu0 0.0
        %10664 = vmatpush1.msra.mxu0 0.0
        %10665 = vmatprep.subr.mxu0 0.0
        %10666 = vmatpush1.msra.mxu0 0.0
        %10667 = vmatprep.subr.mxu0 0.0
        %10668 = vmatpush1.msra.mxu0 0.0
        %10669 = vmatprep.subr.mxu0 0.0
        %10670 = vmatpush1.msra.mxu0 0.0
        %10671 = vmatprep.subr.mxu0 0.0
        %10672 = vmatpush1.msra.mxu0 0.0
        %10673 = vmatprep.subr.mxu0 0.0
        %10674 = vmatpush1.msra.mxu0 0.0
        %10675 = vmatprep.subr.mxu0 0.0
        %10676 = vmatpush1.msra.mxu0 0.0
        %10677 = vmatprep.subr.mxu0 0.0
        %10678 = vmatpush1.msra.mxu0 0.0
        %10679 = vmatprep.subr.mxu0 0.0
        %10680 = vmatpush1.msra.mxu0 0.0
        %10681 = vmatprep.subr.mxu0 0.0
        %10682 = vmatpush1.msra.mxu0 0.0
        %10683 = vmatprep.subr.mxu0 0.0
        %10684 = vmatpush1.msra.mxu0 0.0
        %10685 = vmatprep.subr.mxu0 0.0
        %10686 = vmatpush1.msra.mxu0 0.0
        %10687 = vmatprep.subr.mxu0 0.0
        %10688 = vmatpush1.msra.mxu0 0.0
        %10689 = vmatprep.subr.mxu0 0.0
        %10690 = vmatpush1.msra.mxu0 0.0
        %10691 = vmatprep.subr.mxu0 0.0
        %10692 = vmatpush1.msra.mxu0 0.0
        %10693 = vmatprep.mubr.f32.mxu0 0.0
        %10694 = vmatmul.mubr.f32.gmra.mrb[0].mxu0 %v10130
        %v10695 = vpop.f32.mrb[0].mxu0
        %v10696 = vadd.f32 %v10127, %v10695
        %v10697 = vpop.f32.mrb[0].mxu0
        %v10698 = vadd.f32 %v10127, %v10697
        %10699 = vdwg.mxu0
        %v10700 = vxor.u32 %v10199, 2147483648
        %v10701 = vxor.u32 %v10201, 2147483648
        %v10702 = vxor.u32 %v10270, 2147483648
        %v10703 = vxor.u32 %v10272, 2147483648
        %v10704 = vxor.u32 %v10341, 2147483648
        %v10705 = vxor.u32 %v10343, 2147483648
        %v10706 = vxor.u32 %v10412, 2147483648
        %v10707 = vxor.u32 %v10414, 2147483648
        %v10708 = vxor.u32 %v10483, 2147483648
        %v10709 = vxor.u32 %v10485, 2147483648
        %v10710 = vxor.u32 %v10554, 2147483648
        %v10711 = vxor.u32 %v10556, 2147483648
        %v10712 = vxor.u32 %v10625, 2147483648
        %v10713 = vxor.u32 %v10627, 2147483648
        %v10714 = vxor.u32 %v10696, 2147483648
        %v10715 = vxor.u32 %v10698, 2147483648
        %v10716 = vmul.f32 %v10700, 1.442695
        %v10717 = vpow.pop %v10716
        %v10718 = vmul.f32 %v10701, 1.442695
        %v10719 = vpow.pop %v10718
        %v10720 = vmul.f32 %v10702, 1.442695
        %v10721 = vpow.pop %v10720
        %v10722 = vmul.f32 %v10703, 1.442695
        %v10723 = vpow.pop %v10722
        %v10724 = vmul.f32 %v10704, 1.442695
        %v10725 = vpow.pop %v10724
        %v10726 = vmul.f32 %v10705, 1.442695
        %v10727 = vpow.pop %v10726
        %v10728 = vmul.f32 %v10706, 1.442695
        %v10729 = vpow.pop %v10728
        %v10730 = vmul.f32 %v10707, 1.442695
        %v10731 = vpow.pop %v10730
        %v10732 = vmul.f32 %v10708, 1.442695
        %v10733 = vpow.pop %v10732
        %v10734 = vmul.f32 %v10709, 1.442695
        %v10735 = vpow.pop %v10734
        %v10736 = vmul.f32 %v10710, 1.442695
        %v10737 = vpow.pop %v10736
        %v10738 = vmul.f32 %v10711, 1.442695
        %v10739 = vpow.pop %v10738
        %v10740 = vmul.f32 %v10712, 1.442695
        %v10741 = vpow.pop %v10740
        %v10742 = vmul.f32 %v10713, 1.442695
        %v10743 = vpow.pop %v10742
        %v10744 = vmul.f32 %v10714, 1.442695
        %v10745 = vpow.pop %v10744
        %v10746 = vmul.f32 %v10715, 1.442695
        %v10747 = vpow.pop %v10746
        %v10748 = vadd.f32 %v10717, 1.0
        %v10749 = vadd.f32 %v10719, 1.0
        %v10750 = vadd.f32 %v10721, 1.0
        %v10751 = vadd.f32 %v10723, 1.0
        %v10752 = vadd.f32 %v10725, 1.0
        %v10753 = vadd.f32 %v10727, 1.0
        %v10754 = vadd.f32 %v10729, 1.0
        %v10755 = vadd.f32 %v10731, 1.0
        %v10756 = vadd.f32 %v10733, 1.0
        %v10757 = vadd.f32 %v10735, 1.0
        %v10758 = vadd.f32 %v10737, 1.0
        %v10759 = vadd.f32 %v10739, 1.0
        %v10760 = vadd.f32 %v10741, 1.0
        %v10761 = vadd.f32 %v10743, 1.0
        %v10762 = vadd.f32 %v10745, 1.0
        %v10763 = vadd.f32 %v10747, 1.0
        %v10764 = vrcp.pop %v10748
        %v10765 = vmul.f32 1.0, %v10764
        %v10766 = vrcp.pop %v10749
        %v10767 = vmul.f32 1.0, %v10766
        %v10768 = vrcp.pop %v10750
        %v10769 = vmul.f32 1.0, %v10768
        %v10770 = vrcp.pop %v10751
        %v10771 = vmul.f32 1.0, %v10770
        %v10772 = vrcp.pop %v10752
        %v10773 = vmul.f32 1.0, %v10772
        %v10774 = vrcp.pop %v10753
        %v10775 = vmul.f32 1.0, %v10774
        %v10776 = vrcp.pop %v10754
        %v10777 = vmul.f32 1.0, %v10776
        %v10778 = vrcp.pop %v10755
        %v10779 = vmul.f32 1.0, %v10778
        %v10780 = vrcp.pop %v10756
        %v10781 = vmul.f32 1.0, %v10780
        %v10782 = vrcp.pop %v10757
        %v10783 = vmul.f32 1.0, %v10782
        %v10784 = vrcp.pop %v10758
        %v10785 = vmul.f32 1.0, %v10784
        %v10786 = vrcp.pop %v10759
        %v10787 = vmul.f32 1.0, %v10786
        %v10788 = vrcp.pop %v10760
        %v10789 = vmul.f32 1.0, %v10788
        %v10790 = vrcp.pop %v10761
        %v10791 = vmul.f32 1.0, %v10790
        %v10792 = vrcp.pop %v10762
        %v10793 = vmul.f32 1.0, %v10792
        %v10794 = vrcp.pop %v10763
        %v10795 = vmul.f32 1.0, %v10794
        %v10812 = vcombine.low %v10765, %v10767
        %v10813 = vcombine.low %v10769, %v10771
        %v10814 = vcombine.low %v10773, %v10775
        %v10815 = vcombine.low %v10777, %v10779
        %v10816 = vcombine.low %v10781, %v10783
        %v10817 = vcombine.low %v10785, %v10787
        %v10818 = vcombine.low %v10789, %v10791
        %v10819 = vcombine.low %v10793, %v10795
        %10828 = vst [vmem:[%s272] sm:$0x77] %v10812
        %10829 = vst [vmem:[%s272 + $0x8] sm:$0x77] %v10813
        %10830 = vst [vmem:[%s272 + $0x10] sm:$0x77] %v10814
        %10831 = vst [vmem:[%s272 + $0x18] sm:$0x77] %v10815
        %10832 = vst [vmem:[%s272 + $0x20] sm:$0x77] %v10816
        %10833 = vst [vmem:[%s272 + $0x28] sm:$0x77] %v10817
        %10834 = vst [vmem:[%s272 + $0x30] sm:$0x77] %v10818
        %10835 = vst [vmem:[%s272 + $0x38] sm:$0x77] %v10819
        %s10836 = sand.u32 %s181, 1
        %s10837 = scalar_lea.sflag [#allocation3], %s10836
        %s10838 = sand.u32 %s181, 1
        %s10839 = smul.addr %s10838, 64
        %s10840 = scalar_lea.vmem [#allocation2], %s10839
        // Predicated region
        $region49: #{mlp_forward.1} parent=47 // pred_check
          %p10841 = pneg %p191
        $region50: #{mlp_forward.1} parent=47 // pred_check_branch
          %10843 = sbr.rel (%p10841) target = $region52
        $region51: #{mlp_forward.1} parent=47 // pred_region
          %s10844 = smul.u32 16, %s21
          %s10846 = ssub.s32 1024, 1024
          %10847 = vsyncadd %s10837, %s10846
          %s10848 = smul.addr %s10844, 64
          %s10849 = scalar_lea.hbm %s7, %s10848
          %s10851 = sshll.u32 %s10840, 4
          %s10852 = int_to_ptr.vmem [resolvable:$true] %s10851
          %10854 = dma.vmem_to_hbm [thread:$0]  %s10852, 1024, %s10849, %s10837
        $region52: #{mlp_forward.1} parent=47 // pred_fallthru
          _
      $region48: #{mlp_forward.1} parent=5 // pred_fallthru
        _
      %p10855 = scmp.le.s32.totalorder 2, %s16
      // Predicated region
      $region53: #{mlp_forward.1} parent=5 // pred_check
        %p10856 = pneg %p10855
      $region54: #{mlp_forward.1} parent=5 // pred_check_branch
        %10858 = sbr.rel (%p10856) target = $region56
      $region55: #{mlp_forward.1} parent=5 // pred_region
        %s10859 = ssub.s32 %s16, 2
        // Predicated region
        $region57: #{mlp_forward.1} parent=55 // pred_check
          %p10860 = pneg %p197
        $region58: #{mlp_forward.1} parent=55 // pred_check_branch
          %10862 = sbr.rel (%p10860) target = $region60
        $region59: #{mlp_forward.1} parent=55 // pred_region
          %s10863 = sand.u32 %s182, 1
          %s10864 = scalar_lea.sflag [#allocation3], %s10863
          %s10865 = sand.u32 %s182, 1
          %s10866 = smul.addr %s10865, 64
          %s10867 = scalar_lea.vmem [#allocation2], %s10866
          %10868 = dma.done %s10864, 1024
        $region60: #{mlp_forward.1} parent=55 // pred_fallthru
          _
      $region56: #{mlp_forward.1} parent=5 // pred_fallthru
        _
    $region6: #{mlp_forward.1} parent=1 // loop_footer
      %s20 = sadd.s32 1, %s16
    $region7: #{mlp_forward.1} parent=1 // loop_footer_branch
      %15 = sbr.rel target = $region3
    $region8: #{mlp_forward.1} parent=1 // loop_exit
      _
    %10869 = vsyncpa [#allocation3], 1
    %s10870 = scalar_lea.sflag [#allocation3], 1
    %10871 = vsyncpa %s10870, 1

</llo_original>
